<compile_context>
chip_gen: v7x
topology: tpu7x:2x2x1
jax: 0.10.0
libtpu: 0.0.40
codegen_flags: <defaults>
</compile_context>

<pallas_src>
import functools

import jax
import jax.numpy as jnp
from jax.experimental import pallas as pl
from jax.experimental.pallas import tpu as pltpu

LN_EPS = 1e-5                              # torch.nn.LayerNorm default
_SQRT_2_OVER_PI = 0.7978845608028654
_SQRT_HALF = 0.7071067811865476

_ON_TPU = jax.default_backend() == "tpu"
# bf16 MXU operands (f32 accumulation) only on a real TPU backend; plain f32 elsewhere
# so the kernel also runs under CPU / interpret checking.
_MM_DTYPE = jnp.bfloat16 if _ON_TPU else jnp.float32
_MM_BYTES = jnp.dtype(_MM_DTYPE).itemsize


# --------------------------------------------------------------------------
# elementwise helpers
# --------------------------------------------------------------------------
def _gelu_tanh(x):
    # tanh-form GELU (EUP transcendental, low VALU pressure).
    # Max abs deviation from the exact erf GELU is ~3e-3 (documented numerics change).
    return 0.5 * x * (1.0 + jnp.tanh(_SQRT_2_OVER_PI * (x + 0.044715 * x * x * x)))


def _erf(x):
    # float32-accurate erf (A&S 7.1.26) -- used only by the pure-JAX reference.
    a1, a2, a3, a4, a5 = 0.254829592, -0.284496736, 1.421413741, -1.453152027, 1.061405429
    p = 0.3275911
    ax = jnp.abs(x)
    t = 1.0 / (1.0 + p * ax)
    poly = ((((a5 * t + a4) * t + a3) * t + a2) * t + a1) * t
    y = 1.0 - poly * jnp.exp(-ax * ax)
    return jnp.where(x >= 0.0, y, -y)


def _gelu_exact(x):
    return 0.5 * x * (1.0 + _erf(x * _SQRT_HALF))


def _layernorm(x, g, b):
    mu = jnp.mean(x, axis=-1, keepdims=True)
    var = jnp.mean(jnp.square(x - mu), axis=-1, keepdims=True)
    return (x - mu) * jax.lax.rsqrt(var + LN_EPS) * g + b


def _recip(x):
    # softmax denominator: EUP approx reciprocal on TPU (rows sum to 1 +/- ~2^-12),
    # exact divide elsewhere.
    return pl.reciprocal(x, approx=True) if _ON_TPU else 1.0 / x


# --------------------------------------------------------------------------
# Fused Pallas kernel: norm1 + MergeAttention + norm2 + MLP (per batch / query tile)
# --------------------------------------------------------------------------
def _merge_block_kernel(x_ref, xs_ref, n1g_ref, n1b_ref, ang_ref, anb_ref,
                        wq_ref, wk_ref, wv_ref, wp_ref, bp_ref,
                        n2g_ref, n2b_ref, w1_ref, b1_ref, w2_ref, b2_ref,
                        o_ref, kt_ref, v_ref, *, num_heads):
    tn, C = x_ref.shape
    mm = kt_ref.dtype

    # ---- once per batch (t == 0): attn.norm + GELU on x_source, per-head K^T / V caches
    @pl.when(pl.program_id(1) == 0)
    def _fill_kv_cache():
        xs = _layernorm(xs_ref[...].astype(jnp.float32), ang_ref[...], anb_ref[...])
        xs = _gelu_tanh(xs).astype(mm)
        for h in range(num_heads):
            k_h = jnp.dot(xs, wk_ref[h], preferred_element_type=jnp.float32)   # (S, hd)
            v_h = jnp.dot(xs, wv_ref[h], preferred_element_type=jnp.float32)   # (S, hd)
            kt_ref[h] = k_h.T.astype(mm)   # transpose once per batch, not per query tile
            v_ref[h] = v_h.astype(mm)

    # ---- per query tile ----
    x = x_ref[...].astype(jnp.float32)                              # (TN, C) pre-norm residual
    xn1 = _layernorm(x, n1g_ref[...], n1b_ref[...]).astype(mm)      # norm1 (q path), mm dtype

    # per-head attention; projected context accumulated directly into a (TN, C) f32 slab
    acc = jnp.zeros((tn, C), jnp.float32)
    for h in range(num_heads):
        q_h = jnp.dot(xn1, wq_ref[h], preferred_element_type=jnp.float32)          # (TN, hd); scale pre-folded
        logits = jnp.dot(q_h.astype(mm), kt_ref[h], preferred_element_type=jnp.float32)   # (TN, S)
        logits = logits - jnp.max(logits, axis=-1, keepdims=True)
        p = jnp.exp(logits)
        p = p * _recip(jnp.sum(p, axis=-1, keepdims=True))
        ctx = jnp.dot(p.astype(mm), v_ref[h], preferred_element_type=jnp.float32)          # (TN, hd)
        acc = acc + jnp.dot(ctx.astype(mm), wp_ref[h], preferred_element_type=jnp.float32)  # (TN, C)
    x = x + acc + bp_ref[...]                                       # attention residual (f32)

    # ---- norm2 + MLP (fc1 -> GELU -> fc2) + residual, all resident in VMEM ----
    xn2 = _layernorm(x, n2g_ref[...], n2b_ref[...]).astype(mm)
    h1 = jnp.dot(xn2, w1_ref[...], preferred_element_type=jnp.float32) + b1_ref[...]
    # TODO(synk): original MyMlp inserts token2map -> depthwise-conv3x3 -> map2token spatial
    # mixing (loc_orig / idx_agg / agg_weight / H / W) between fc1 and the activation; its
    # definition was not provided, so it is omitted here.
    h1 = _gelu_tanh(h1)
    y = jnp.dot(h1.astype(mm), w2_ref[...], preferred_element_type=jnp.float32) + b2_ref[...]
    o_ref[...] = (x + y).astype(o_ref.dtype)


def _default_tile_n():
    # 512-row query tiles on 128 MiB-VMEM chips (v5e/v6e); 256 on v7x (64 MiB) / unknown.
    try:
        if pltpu.get_tpu_info().vmem_capacity_bytes >= 128 * 1024 * 1024:
            return 512
    except Exception:   # CPU / interpret / older API: conservative fallback
        pass
    return 256


def merge_block_pallas(x, x_source, params, num_heads):
    B, N, C = x.shape
    S = x_source.shape[1]
    hd = C // num_heads
    p = params['attn']
    m = params['mlp']
    Hd = m['w1'].shape[1]
    scale = hd ** -0.5
    mm = _MM_DTYPE

    # ---- weight prep (once, outside the kernel): fold the softmax scale into wq, split
    # the fused kv weight, reshape to per-head slabs (removes all in-kernel head
    # transposes) and cast to the matmul dtype.
    def per_head_cols(w):           # (C, C) -> (H, C, hd): columns h*hd:(h+1)*hd per head
        return jnp.transpose(w.reshape(C, num_heads, hd), (1, 0, 2)).astype(mm)

    wq = per_head_cols(p['wq'] * scale)
    wk = per_head_cols(p['wkv'][:, :C])
    wv = per_head_cols(p['wkv'][:, C:])
    wp = p['wproj'].reshape(num_heads, hd, C).astype(mm)   # rows h*hd:(h+1)*hd per head
    w1 = m['w1'].astype(mm)
    w2 = m['w2'].astype(mm)
    xs = x_source.astype(mm)        # halves the per-batch x_source DMA on TPU

    tile_n = min(N, _default_tile_n())
    n_tiles = pl.cdiv(N, tile_n)    # ragged last block handled by Pallas; no jnp.pad copy

    # scoped-VMEM budget derived from the actual block sizes (clamped to [32, 100] MiB)
    weight_bytes = (4 * C * C + 2 * C * Hd) * _MM_BYTES
    block_bytes = 2 * (2 * tile_n * C * 4) + 2 * S * C * _MM_BYTES
    scratch_bytes = 2 * num_heads * S * hd * _MM_BYTES
    work_bytes = 3 * tile_n * S * 4 + 2 * tile_n * Hd * 4 + 6 * tile_n * C * 4
    vmem_limit = int(min(100 * 2 ** 20,
                         max(32 * 2 ** 20,
                             1.5 * (2 * weight_bytes + block_bytes + scratch_bytes + work_bytes))))

    cost = pl.CostEstimate(
        flops=int(2 * B * (2 * N * C * C + 2 * S * C * C + 2 * N * S * C + 2 * N * C * Hd)),
        transcendentals=int(B * (num_heads * N * S + S * C + N * Hd)),
        bytes_accessed=int(B * (2 * N * C * 4 + S * C * _MM_BYTES) + weight_bytes))

    kern = functools.partial(_merge_block_kernel, num_heads=num_heads)

    def vec_spec(cols):
        return pl.BlockSpec((1, cols), lambda b, t: (0, 0))

    def full_spec(shape):
        return pl.BlockSpec(shape, lambda b, t: (0,) * len(shape))

    out = pl.pallas_call(
        kern,
        out_shape=jax.ShapeDtypeStruct((B, N, C), x.dtype),
        grid=(B, n_tiles),
        in_specs=[
            pl.BlockSpec((None, tile_n, C), lambda b, t: (b, t, 0)),   # x (pre-norm residual)
            pl.BlockSpec((None, S, C), lambda b, t: (b, 0, 0)),        # x_source (downup output)
            vec_spec(C), vec_spec(C),                                  # norm1 gamma, beta
            vec_spec(C), vec_spec(C),                                  # attn.norm gamma, beta
            full_spec((num_heads, C, hd)),                             # wq (scale folded)
            full_spec((num_heads, C, hd)),                             # wk
            full_spec((num_heads, C, hd)),                             # wv
            full_spec((num_heads, hd, C)),                             # wproj
            vec_spec(C),                                               # proj bias
            vec_spec(C), vec_spec(C),                                  # norm2 gamma, beta
            full_spec((C, Hd)), vec_spec(Hd),                          # w1, b1
            full_spec((Hd, C)), vec_spec(C),                           # w2, b2
        ],
        out_specs=pl.BlockSpec((None, tile_n, C), lambda b, t: (b, t, 0)),
        scratch_shapes=[pltpu.VMEM((num_heads, hd, S), mm),            # K^T cache (per batch)
                        pltpu.VMEM((num_heads, S, hd), mm)],           # V   cache (per batch)
        compiler_params=pltpu.CompilerParams(
            # b "parallel" (v7x megacore shards batches; TODO(synk): split tile_n across
            # cores instead when B == 1), t "arbitrary" so per-batch K/V caches are reused.
            dimension_semantics=("parallel", "arbitrary"),
            vmem_limit_bytes=vmem_limit),
        cost_estimate=cost,
    )(x, xs,
      params['norm1_g'], params['norm1_b'],
      p['norm_g'], p['norm_b'],
      wq, wk, wv, wp, p['bproj'],
      params['norm2_g'], params['norm2_b'],
      w1, m['b1'], w2, m['b2'])
    return out


# --------------------------------------------------------------------------
# downup: TCFormer sparse weighted aggregation of source tokens onto the target token
# layout (row-normalized sparse matmul). Data-dependent scatter -> plain JAX glue.
# --------------------------------------------------------------------------
def downup(target_dict, source_dict):
    x_s = source_dict['x']                          # (B, S, C)
    idx_agg_s = source_dict['idx_agg']              # (B, N0) in [0, S)
    idx_agg_t = target_dict['idx_agg']              # (B, N0) in [0, T)
    agg_weight_t = target_dict['agg_weight']        # (B, N0, 1)
    B, T, C = target_dict['x'].shape
    N0 = idx_agg_s.shape[1]

    w = agg_weight_t.reshape(B * N0)
    seg_t = (idx_agg_t + jnp.arange(B)[:, None] * T).reshape(B * N0)
    all_w = jax.ops.segment_sum(w, seg_t, num_segments=B * T) + 1e-6
    w = w / all_w[seg_t]
    gathered = jnp.take_along_axis(x_s, idx_agg_s[..., None], axis=1)    # (B, N0, C)
    contrib = gathered.reshape(B * N0, C) * w[:, None]
    out = jax.ops.segment_sum(contrib, seg_t, num_segments=B * T)
    return out.reshape(B, T, C).astype(x_s.dtype)


# --------------------------------------------------------------------------
# MergeBlock forward (drop_path / dropout are identity: rates are 0.0)
# --------------------------------------------------------------------------
def merge_block_forward(tar_dict, gather_dict, params, num_heads, src_dict=None):
    x = tar_dict['x']
    # norm1 on the source path only feeds the sparse downup gather (plain-JAX glue);
    # the fused kernel recomputes norm1 in-VMEM for the q path.
    src = dict(tar_dict if src_dict is None else src_dict)
    src['x'] = _layernorm(src['x'], params['norm1_g'], params['norm1_b'])
    x_source = downup(gather_dict, src)                     # (B, S, C)
    return merge_block_pallas(x, x_source, params, num_heads)


# --------------------------------------------------------------------------
# pure-JAX reference (full f32, exact erf GELU, exact softmax) for correctness check
# --------------------------------------------------------------------------
def reference_forward(tar_dict, gather_dict, params, num_heads):
    x = tar_dict['x']
    B, N, C = x.shape
    hd = C // num_heads
    xn1 = _layernorm(x, params['norm1_g'], params['norm1_b'])
    src = dict(tar_dict)
    src['x'] = xn1
    x_source = downup(gather_dict, src)
    S = x_source.shape[1]

    p = params['attn']
    xs = _gelu_exact(_layernorm(x_source, p['norm_g'], p['norm_b']))
    q = xn1 @ p['wq']
    kv = xs @ p['wkv']
    k, v = kv[..., :C], kv[..., C:]
    qh = q.reshape(B, N, num_heads, hd).transpose(0, 2, 1, 3)
    kh = k.reshape(B, S, num_heads, hd).transpose(0, 2, 1, 3)
    vh = v.reshape(B, S, num_heads, hd).transpose(0, 2, 1, 3)
    att = jnp.einsum('bhnd,bhsd->bhns', qh * (hd ** -0.5), kh)
    att = jax.nn.softmax(att, axis=-1)
    out = jnp.einsum('bhns,bhsd->bhnd', att, vh).transpose(0, 2, 1, 3).reshape(B, N, C)
    x = x + out @ p['wproj'] + p['bproj']

    m = params['mlp']
    xn2 = _layernorm(x, params['norm2_g'], params['norm2_b'])
    h = _gelu_exact(xn2 @ m['w1'] + m['b1'])
    return x + h @ m['w2'] + m['b2']


# --------------------------------------------------------------------------
# deterministic parameter init (trunc_normal std=0.02 like the module)
# --------------------------------------------------------------------------
def init_params(key, dim, mlp_ratio=4.0):
    hidden = int(dim * mlp_ratio)
    ks = jax.random.split(key, 5)

    def tn(k, shape):
        return 0.02 * jax.random.truncated_normal(k, -2.0, 2.0, shape, jnp.float32)

    ones = jnp.ones((1, dim), jnp.float32)
    zeros = jnp.zeros((1, dim), jnp.float32)
    return {
        'norm1_g': ones, 'norm1_b': zeros,
        'norm2_g': ones, 'norm2_b': zeros,
        'attn': {
            'wq': tn(ks[0], (dim, dim)),            # qkv_bias=False
            'wkv': tn(ks[1], (dim, 2 * dim)),
            'wproj': tn(ks[2], (dim, dim)),
            'bproj': jnp.zeros((1, dim), jnp.float32),
            'norm_g': ones, 'norm_b': zeros,        # MergeAttention.norm (LayerNorm)
        },
        'mlp': {
            'w1': tn(ks[3], (dim, hidden)),
            'b1': jnp.zeros((1, hidden), jnp.float32),
            'w2': tn(ks[4], (hidden, dim)),
            'b2': jnp.zeros((1, dim), jnp.float32),
        },
    }


if __name__ == "__main__":
    key = jax.random.PRNGKey(0)
    B, C, num_heads = 2, 64, 8          # head_dim = 8
    N_tar = 16                          # target tokens (query length)
    T_gather = 8                        # gathered tokens (kv length)
    H = W = 8
    N0 = H * W                          # original grid points

    keys = jax.random.split(key, 8)
    x = jax.random.normal(keys[0], (B, N_tar, C), jnp.float32)
    tar_dict = {
        'x': x,
        'idx_agg': jax.random.randint(keys[1], (B, N0), 0, N_tar),
        'agg_weight': jax.random.uniform(keys[2], (B, N0, 1), jnp.float32, 0.1, 1.0),
        'loc_orig': jax.random.uniform(keys[3], (B, N0, 2), jnp.float32, -1.0, 1.0),
        'map_size': (H, W),
    }
    gather_dict = {
        'x': jnp.zeros((B, T_gather, C), jnp.float32),   # only its shape is used by downup
        'idx_agg': jax.random.randint(keys[4], (B, N0), 0, T_gather),
        'agg_weight': jax.random.uniform(keys[5], (B, N0, 1), jnp.float32, 0.1, 1.0),
    }

    params = init_params(keys[6], C, mlp_ratio=4.0)

    out = merge_block_forward(tar_dict, gather_dict, params, num_heads, src_dict=None)
    out = jax.block_until_ready(out)

    ref = reference_forward(tar_dict, gather_dict, params, num_heads)
    assert out.shape == (B, N_tar, C), out.shape
    # kernel uses (on TPU) bf16 MXU operands, tanh-GELU and an approx softmax reciprocal;
    # the reference is exact-erf / exact-softmax full-f32
    if not bool(jnp.allclose(out, ref, rtol=1e-2, atol=1e-2)):
        raise SystemExit(f"mismatch vs reference: max abs err = {float(jnp.max(jnp.abs(out - ref)))}")
    print("KERNEL_OK")
</pallas_src>

<mosaic_0001>
module attributes {stable_mosaic.version = 11 : i64} {
  func.func @_merge_block_kernel(%arg0: i32, %arg1: i32, %arg2: memref<1x16x64xf32, #tpu.memory_space<vmem>>, %arg3: memref<1x8x64xf32, #tpu.memory_space<vmem>>, %arg4: memref<1x64xf32, #tpu.memory_space<vmem>>, %arg5: memref<1x64xf32, #tpu.memory_space<vmem>>, %arg6: memref<1x64xf32, #tpu.memory_space<vmem>>, %arg7: memref<1x64xf32, #tpu.memory_space<vmem>>, %arg8: memref<8x64x8xf32, #tpu.memory_space<vmem>>, %arg9: memref<8x64x8xf32, #tpu.memory_space<vmem>>, %arg10: memref<8x64x8xf32, #tpu.memory_space<vmem>>, %arg11: memref<8x8x64xf32, #tpu.memory_space<vmem>>, %arg12: memref<1x64xf32, #tpu.memory_space<vmem>>, %arg13: memref<1x64xf32, #tpu.memory_space<vmem>>, %arg14: memref<1x64xf32, #tpu.memory_space<vmem>>, %arg15: memref<64x256xf32, #tpu.memory_space<vmem>>, %arg16: memref<1x256xf32, #tpu.memory_space<vmem>>, %arg17: memref<256x64xf32, #tpu.memory_space<vmem>>, %arg18: memref<1x64xf32, #tpu.memory_space<vmem>>, %arg19: memref<1x16x64xf32, #tpu.memory_space<vmem>>, %arg20: memref<8x8x8xf32, #tpu.memory_space<vmem>>, %arg21: memref<8x8x8xf32, #tpu.memory_space<vmem>>) attributes {dimension_semantics = [#tpu.dimension_semantics<parallel>, #tpu.dimension_semantics<arbitrary>], iteration_bounds = array<i64: 2, 1>, scalar_prefetch = 0 : i64, scratch_operands = 2 : i64, tpu.core_type = #tpu.core_type<tc>, window_params = [{transform_indices = @transform_0, window_bounds = array<i64: 1, 16, 64>}, {transform_indices = @transform_1, window_bounds = array<i64: 1, 8, 64>}, {pipeline_mode = #tpu.pipeline_mode<synchronous>, transform_indices = @transform_2, window_bounds = array<i64: 1, 64>}, {pipeline_mode = #tpu.pipeline_mode<synchronous>, transform_indices = @transform_3, window_bounds = array<i64: 1, 64>}, {pipeline_mode = #tpu.pipeline_mode<synchronous>, transform_indices = @transform_4, window_bounds = array<i64: 1, 64>}, {pipeline_mode = #tpu.pipeline_mode<synchronous>, transform_indices = @transform_5, window_bounds = array<i64: 1, 64>}, {pipeline_mode = #tpu.pipeline_mode<synchronous>, transform_indices = @transform_6, window_bounds = array<i64: 8, 64, 8>}, {pipeline_mode = #tpu.pipeline_mode<synchronous>, transform_indices = @transform_7, window_bounds = array<i64: 8, 64, 8>}, {pipeline_mode = #tpu.pipeline_mode<synchronous>, transform_indices = @transform_8, window_bounds = array<i64: 8, 64, 8>}, {pipeline_mode = #tpu.pipeline_mode<synchronous>, transform_indices = @transform_9, window_bounds = array<i64: 8, 8, 64>}, {pipeline_mode = #tpu.pipeline_mode<synchronous>, transform_indices = @transform_10, window_bounds = array<i64: 1, 64>}, {pipeline_mode = #tpu.pipeline_mode<synchronous>, transform_indices = @transform_11, window_bounds = array<i64: 1, 64>}, {pipeline_mode = #tpu.pipeline_mode<synchronous>, transform_indices = @transform_12, window_bounds = array<i64: 1, 64>}, {pipeline_mode = #tpu.pipeline_mode<synchronous>, transform_indices = @transform_13, window_bounds = array<i64: 64, 256>}, {pipeline_mode = #tpu.pipeline_mode<synchronous>, transform_indices = @transform_14, window_bounds = array<i64: 1, 256>}, {pipeline_mode = #tpu.pipeline_mode<synchronous>, transform_indices = @transform_15, window_bounds = array<i64: 256, 64>}, {pipeline_mode = #tpu.pipeline_mode<synchronous>, transform_indices = @transform_16, window_bounds = array<i64: 1, 64>}, {transform_indices = @transform_17, window_bounds = array<i64: 1, 16, 64>}]} {
    %c0_i32 = arith.constant 0 : i32
    %0 = arith.cmpi eq, %arg1, %c0_i32 : i32
    %1 = arith.extui %0 : i1 to i32
    %c0_i32_0 = arith.constant 0 : i32
    %2 = arith.cmpi ne, %1, %c0_i32_0 : i32
    scf.if %2 {
      %c0_185 = arith.constant 0 : index
      %c0_186 = arith.constant 0 : index
      %c0_187 = arith.constant 0 : index
      %277 = vector.load %arg3[%c0_185, %c0_186, %c0_187] : memref<1x8x64xf32, #tpu.memory_space<vmem>>, vector<1x8x64xf32>
      %278 = vector.shape_cast %277 : vector<1x8x64xf32> to vector<8x64xf32>
      %c0_188 = arith.constant 0 : index
      %c0_189 = arith.constant 0 : index
      %279 = vector.load %arg6[%c0_188, %c0_189] : memref<1x64xf32, #tpu.memory_space<vmem>>, vector<1x64xf32>
      %c0_190 = arith.constant 0 : index
      %c0_191 = arith.constant 0 : index
      %280 = vector.load %arg7[%c0_190, %c0_191] : memref<1x64xf32, #tpu.memory_space<vmem>>, vector<1x64xf32>
      %cst_192 = arith.constant dense<0.000000e+00> : vector<8xf32>
      %281 = vector.multi_reduction <add>, %278, %cst_192 [1] : vector<8x64xf32> to vector<8xf32>
      %282 = vector.shape_cast %281 : vector<8xf32> to vector<8x1xf32>
      %cst_193 = arith.constant 6.400000e+01 : f32
      %283 = vector.broadcast %cst_193 : f32 to vector<8x1xf32>
      %284 = arith.divf %282, %283 : vector<8x1xf32>
      %285 = vector.broadcast %284 : vector<8x1xf32> to vector<8x64xf32>
      %286 = arith.subf %278, %285 : vector<8x64xf32>
      %287 = arith.mulf %286, %286 : vector<8x64xf32>
      %cst_194 = arith.constant dense<0.000000e+00> : vector<8xf32>
      %288 = vector.multi_reduction <add>, %287, %cst_194 [1] : vector<8x64xf32> to vector<8xf32>
      %289 = vector.shape_cast %288 : vector<8xf32> to vector<8x1xf32>
      %cst_195 = arith.constant 6.400000e+01 : f32
      %290 = vector.broadcast %cst_195 : f32 to vector<8x1xf32>
      %291 = arith.divf %289, %290 : vector<8x1xf32>
      %292 = vector.broadcast %284 : vector<8x1xf32> to vector<8x64xf32>
      %293 = arith.subf %278, %292 : vector<8x64xf32>
      %cst_196 = arith.constant 9.99999974E-6 : f32
      %294 = vector.broadcast %cst_196 : f32 to vector<8x1xf32>
      %295 = arith.addf %291, %294 : vector<8x1xf32>
      %296 = math.rsqrt %295 : vector<8x1xf32>
      %297 = vector.broadcast %296 : vector<8x1xf32> to vector<8x64xf32>
      %298 = arith.mulf %293, %297 : vector<8x64xf32>
      %299 = vector.broadcast %279 : vector<1x64xf32> to vector<8x64xf32>
      %300 = arith.mulf %298, %299 : vector<8x64xf32>
      %301 = vector.broadcast %280 : vector<1x64xf32> to vector<8x64xf32>
      %302 = arith.addf %300, %301 : vector<8x64xf32>
      %cst_197 = arith.constant 5.000000e-01 : f32
      %303 = vector.broadcast %cst_197 : f32 to vector<8x64xf32>
      %304 = arith.mulf %303, %302 : vector<8x64xf32>
      %cst_198 = arith.constant 4.471500e-02 : f32
      %305 = vector.broadcast %cst_198 : f32 to vector<8x64xf32>
      %306 = arith.mulf %305, %302 : vector<8x64xf32>
      %307 = arith.mulf %306, %302 : vector<8x64xf32>
      %308 = arith.mulf %307, %302 : vector<8x64xf32>
      %309 = arith.addf %302, %308 : vector<8x64xf32>
      %cst_199 = arith.constant 0.797884583 : f32
      %310 = vector.broadcast %cst_199 : f32 to vector<8x64xf32>
      %311 = arith.mulf %310, %309 : vector<8x64xf32>
      %312 = math.tanh %311 : vector<8x64xf32>
      %cst_200 = arith.constant 1.000000e+00 : f32
      %313 = vector.broadcast %cst_200 : f32 to vector<8x64xf32>
      %314 = arith.addf %313, %312 : vector<8x64xf32>
      %315 = arith.mulf %304, %314 : vector<8x64xf32>
      %c0_201 = arith.constant 0 : index
      %c0_202 = arith.constant 0 : index
      %c0_203 = arith.constant 0 : index
      %316 = vector.load %arg9[%c0_201, %c0_202, %c0_203] : memref<8x64x8xf32, #tpu.memory_space<vmem>>, vector<1x64x8xf32>
      %317 = vector.shape_cast %316 : vector<1x64x8xf32> to vector<64x8xf32>
      %cst_204 = arith.constant dense<0.000000e+00> : vector<8x8xf32>
      %318 = tpu.matmul %315, %317, %cst_204 {dimension_numbers = #tpu.dot_dimension_numbers<[1], [0], [0], [1], [0, 0, 1, 1], [], []>} : vector<8x64xf32>, vector<64x8xf32>, vector<8x8xf32> -> vector<8x8xf32>
      %c0_205 = arith.constant 0 : index
      %c0_206 = arith.constant 0 : index
      %c0_207 = arith.constant 0 : index
      %319 = vector.load %arg10[%c0_205, %c0_206, %c0_207] : memref<8x64x8xf32, #tpu.memory_space<vmem>>, vector<1x64x8xf32>
      %320 = vector.shape_cast %319 : vector<1x64x8xf32> to vector<64x8xf32>
      %cst_208 = arith.constant dense<0.000000e+00> : vector<8x8xf32>
      %321 = tpu.matmul %315, %320, %cst_208 {dimension_numbers = #tpu.dot_dimension_numbers<[1], [0], [0], [1], [0, 0, 1, 1], [], []>} : vector<8x64xf32>, vector<64x8xf32>, vector<8x8xf32> -> vector<8x8xf32>
      %322 = tpu.transpose %318, [1, 0] : vector<8x8xf32> -> vector<8x8xf32>
      %c0_209 = arith.constant 0 : index
      %c0_210 = arith.constant 0 : index
      %c0_211 = arith.constant 0 : index
      %323 = vector.load %arg20[%c0_209, %c0_210, %c0_211] : memref<8x8x8xf32, #tpu.memory_space<vmem>>, vector<1x8x8xf32>
      %324 = vector.shape_cast %323 : vector<1x8x8xf32> to vector<8x8xf32>
      %325 = vector.shape_cast %322 : vector<8x8xf32> to vector<1x8x8xf32>
      tpu.vector_store %arg20[%c0_209, %c0_210, %c0_211], %325 {strides = array<i32>} : memref<8x8x8xf32, #tpu.memory_space<vmem>>, vector<1x8x8xf32>,
      %c0_212 = arith.constant 0 : index
      %c0_213 = arith.constant 0 : index
      %c0_214 = arith.constant 0 : index
      %326 = vector.load %arg21[%c0_212, %c0_213, %c0_214] : memref<8x8x8xf32, #tpu.memory_space<vmem>>, vector<1x8x8xf32>
      %327 = vector.shape_cast %326 : vector<1x8x8xf32> to vector<8x8xf32>
      %328 = vector.shape_cast %321 : vector<8x8xf32> to vector<1x8x8xf32>
      tpu.vector_store %arg21[%c0_212, %c0_213, %c0_214], %328 {strides = array<i32>} : memref<8x8x8xf32, #tpu.memory_space<vmem>>, vector<1x8x8xf32>,
      %c1_215 = arith.constant 1 : index
      %c0_216 = arith.constant 0 : index
      %c0_217 = arith.constant 0 : index
      %329 = vector.load %arg9[%c1_215, %c0_216, %c0_217] : memref<8x64x8xf32, #tpu.memory_space<vmem>>, vector<1x64x8xf32>
      %330 = vector.shape_cast %329 : vector<1x64x8xf32> to vector<64x8xf32>
      %cst_218 = arith.constant dense<0.000000e+00> : vector<8x8xf32>
      %331 = tpu.matmul %315, %330, %cst_218 {dimension_numbers = #tpu.dot_dimension_numbers<[1], [0], [0], [1], [0, 0, 1, 1], [], []>} : vector<8x64xf32>, vector<64x8xf32>, vector<8x8xf32> -> vector<8x8xf32>
      %c1_219 = arith.constant 1 : index
      %c0_220 = arith.constant 0 : index
      %c0_221 = arith.constant 0 : index
      %332 = vector.load %arg10[%c1_219, %c0_220, %c0_221] : memref<8x64x8xf32, #tpu.memory_space<vmem>>, vector<1x64x8xf32>
      %333 = vector.shape_cast %332 : vector<1x64x8xf32> to vector<64x8xf32>
      %cst_222 = arith.constant dense<0.000000e+00> : vector<8x8xf32>
      %334 = tpu.matmul %315, %333, %cst_222 {dimension_numbers = #tpu.dot_dimension_numbers<[1], [0], [0], [1], [0, 0, 1, 1], [], []>} : vector<8x64xf32>, vector<64x8xf32>, vector<8x8xf32> -> vector<8x8xf32>
      %335 = tpu.transpose %331, [1, 0] : vector<8x8xf32> -> vector<8x8xf32>
      %c1_223 = arith.constant 1 : index
      %c0_224 = arith.constant 0 : index
      %c0_225 = arith.constant 0 : index
      %336 = vector.load %arg20[%c1_223, %c0_224, %c0_225] : memref<8x8x8xf32, #tpu.memory_space<vmem>>, vector<1x8x8xf32>
      %337 = vector.shape_cast %336 : vector<1x8x8xf32> to vector<8x8xf32>
      %338 = vector.shape_cast %335 : vector<8x8xf32> to vector<1x8x8xf32>
      tpu.vector_store %arg20[%c1_223, %c0_224, %c0_225], %338 {strides = array<i32>} : memref<8x8x8xf32, #tpu.memory_space<vmem>>, vector<1x8x8xf32>,
      %c1_226 = arith.constant 1 : index
      %c0_227 = arith.constant 0 : index
      %c0_228 = arith.constant 0 : index
      %339 = vector.load %arg21[%c1_226, %c0_227, %c0_228] : memref<8x8x8xf32, #tpu.memory_space<vmem>>, vector<1x8x8xf32>
      %340 = vector.shape_cast %339 : vector<1x8x8xf32> to vector<8x8xf32>
      %341 = vector.shape_cast %334 : vector<8x8xf32> to vector<1x8x8xf32>
      tpu.vector_store %arg21[%c1_226, %c0_227, %c0_228], %341 {strides = array<i32>} : memref<8x8x8xf32, #tpu.memory_space<vmem>>, vector<1x8x8xf32>,
      %c2_229 = arith.constant 2 : index
      %c0_230 = arith.constant 0 : index
      %c0_231 = arith.constant 0 : index
      %342 = vector.load %arg9[%c2_229, %c0_230, %c0_231] : memref<8x64x8xf32, #tpu.memory_space<vmem>>, vector<1x64x8xf32>
      %343 = vector.shape_cast %342 : vector<1x64x8xf32> to vector<64x8xf32>
      %cst_232 = arith.constant dense<0.000000e+00> : vector<8x8xf32>
      %344 = tpu.matmul %315, %343, %cst_232 {dimension_numbers = #tpu.dot_dimension_numbers<[1], [0], [0], [1], [0, 0, 1, 1], [], []>} : vector<8x64xf32>, vector<64x8xf32>, vector<8x8xf32> -> vector<8x8xf32>
      %c2_233 = arith.constant 2 : index
      %c0_234 = arith.constant 0 : index
      %c0_235 = arith.constant 0 : index
      %345 = vector.load %arg10[%c2_233, %c0_234, %c0_235] : memref<8x64x8xf32, #tpu.memory_space<vmem>>, vector<1x64x8xf32>
      %346 = vector.shape_cast %345 : vector<1x64x8xf32> to vector<64x8xf32>
      %cst_236 = arith.constant dense<0.000000e+00> : vector<8x8xf32>
      %347 = tpu.matmul %315, %346, %cst_236 {dimension_numbers = #tpu.dot_dimension_numbers<[1], [0], [0], [1], [0, 0, 1, 1], [], []>} : vector<8x64xf32>, vector<64x8xf32>, vector<8x8xf32> -> vector<8x8xf32>
      %348 = tpu.transpose %344, [1, 0] : vector<8x8xf32> -> vector<8x8xf32>
      %c2_237 = arith.constant 2 : index
      %c0_238 = arith.constant 0 : index
      %c0_239 = arith.constant 0 : index
      %349 = vector.load %arg20[%c2_237, %c0_238, %c0_239] : memref<8x8x8xf32, #tpu.memory_space<vmem>>, vector<1x8x8xf32>
      %350 = vector.shape_cast %349 : vector<1x8x8xf32> to vector<8x8xf32>
      %351 = vector.shape_cast %348 : vector<8x8xf32> to vector<1x8x8xf32>
      tpu.vector_store %arg20[%c2_237, %c0_238, %c0_239], %351 {strides = array<i32>} : memref<8x8x8xf32, #tpu.memory_space<vmem>>, vector<1x8x8xf32>,
      %c2_240 = arith.constant 2 : index
      %c0_241 = arith.constant 0 : index
      %c0_242 = arith.constant 0 : index
      %352 = vector.load %arg21[%c2_240, %c0_241, %c0_242] : memref<8x8x8xf32, #tpu.memory_space<vmem>>, vector<1x8x8xf32>
      %353 = vector.shape_cast %352 : vector<1x8x8xf32> to vector<8x8xf32>
      %354 = vector.shape_cast %347 : vector<8x8xf32> to vector<1x8x8xf32>
      tpu.vector_store %arg21[%c2_240, %c0_241, %c0_242], %354 {strides = array<i32>} : memref<8x8x8xf32, #tpu.memory_space<vmem>>, vector<1x8x8xf32>,
      %c3_243 = arith.constant 3 : index
      %c0_244 = arith.constant 0 : index
      %c0_245 = arith.constant 0 : index
      %355 = vector.load %arg9[%c3_243, %c0_244, %c0_245] : memref<8x64x8xf32, #tpu.memory_space<vmem>>, vector<1x64x8xf32>
      %356 = vector.shape_cast %355 : vector<1x64x8xf32> to vector<64x8xf32>
      %cst_246 = arith.constant dense<0.000000e+00> : vector<8x8xf32>
      %357 = tpu.matmul %315, %356, %cst_246 {dimension_numbers = #tpu.dot_dimension_numbers<[1], [0], [0], [1], [0, 0, 1, 1], [], []>} : vector<8x64xf32>, vector<64x8xf32>, vector<8x8xf32> -> vector<8x8xf32>
      %c3_247 = arith.constant 3 : index
      %c0_248 = arith.constant 0 : index
      %c0_249 = arith.constant 0 : index
      %358 = vector.load %arg10[%c3_247, %c0_248, %c0_249] : memref<8x64x8xf32, #tpu.memory_space<vmem>>, vector<1x64x8xf32>
      %359 = vector.shape_cast %358 : vector<1x64x8xf32> to vector<64x8xf32>
      %cst_250 = arith.constant dense<0.000000e+00> : vector<8x8xf32>
      %360 = tpu.matmul %315, %359, %cst_250 {dimension_numbers = #tpu.dot_dimension_numbers<[1], [0], [0], [1], [0, 0, 1, 1], [], []>} : vector<8x64xf32>, vector<64x8xf32>, vector<8x8xf32> -> vector<8x8xf32>
      %361 = tpu.transpose %357, [1, 0] : vector<8x8xf32> -> vector<8x8xf32>
      %c3_251 = arith.constant 3 : index
      %c0_252 = arith.constant 0 : index
      %c0_253 = arith.constant 0 : index
      %362 = vector.load %arg20[%c3_251, %c0_252, %c0_253] : memref<8x8x8xf32, #tpu.memory_space<vmem>>, vector<1x8x8xf32>
      %363 = vector.shape_cast %362 : vector<1x8x8xf32> to vector<8x8xf32>
      %364 = vector.shape_cast %361 : vector<8x8xf32> to vector<1x8x8xf32>
      tpu.vector_store %arg20[%c3_251, %c0_252, %c0_253], %364 {strides = array<i32>} : memref<8x8x8xf32, #tpu.memory_space<vmem>>, vector<1x8x8xf32>,
      %c3_254 = arith.constant 3 : index
      %c0_255 = arith.constant 0 : index
      %c0_256 = arith.constant 0 : index
      %365 = vector.load %arg21[%c3_254, %c0_255, %c0_256] : memref<8x8x8xf32, #tpu.memory_space<vmem>>, vector<1x8x8xf32>
      %366 = vector.shape_cast %365 : vector<1x8x8xf32> to vector<8x8xf32>
      %367 = vector.shape_cast %360 : vector<8x8xf32> to vector<1x8x8xf32>
      tpu.vector_store %arg21[%c3_254, %c0_255, %c0_256], %367 {strides = array<i32>} : memref<8x8x8xf32, #tpu.memory_space<vmem>>, vector<1x8x8xf32>,
      %c4_257 = arith.constant 4 : index
      %c0_258 = arith.constant 0 : index
      %c0_259 = arith.constant 0 : index
      %368 = vector.load %arg9[%c4_257, %c0_258, %c0_259] : memref<8x64x8xf32, #tpu.memory_space<vmem>>, vector<1x64x8xf32>
      %369 = vector.shape_cast %368 : vector<1x64x8xf32> to vector<64x8xf32>
      %cst_260 = arith.constant dense<0.000000e+00> : vector<8x8xf32>
      %370 = tpu.matmul %315, %369, %cst_260 {dimension_numbers = #tpu.dot_dimension_numbers<[1], [0], [0], [1], [0, 0, 1, 1], [], []>} : vector<8x64xf32>, vector<64x8xf32>, vector<8x8xf32> -> vector<8x8xf32>
      %c4_261 = arith.constant 4 : index
      %c0_262 = arith.constant 0 : index
      %c0_263 = arith.constant 0 : index
      %371 = vector.load %arg10[%c4_261, %c0_262, %c0_263] : memref<8x64x8xf32, #tpu.memory_space<vmem>>, vector<1x64x8xf32>
      %372 = vector.shape_cast %371 : vector<1x64x8xf32> to vector<64x8xf32>
      %cst_264 = arith.constant dense<0.000000e+00> : vector<8x8xf32>
      %373 = tpu.matmul %315, %372, %cst_264 {dimension_numbers = #tpu.dot_dimension_numbers<[1], [0], [0], [1], [0, 0, 1, 1], [], []>} : vector<8x64xf32>, vector<64x8xf32>, vector<8x8xf32> -> vector<8x8xf32>
      %374 = tpu.transpose %370, [1, 0] : vector<8x8xf32> -> vector<8x8xf32>
      %c4_265 = arith.constant 4 : index
      %c0_266 = arith.constant 0 : index
      %c0_267 = arith.constant 0 : index
      %375 = vector.load %arg20[%c4_265, %c0_266, %c0_267] : memref<8x8x8xf32, #tpu.memory_space<vmem>>, vector<1x8x8xf32>
      %376 = vector.shape_cast %375 : vector<1x8x8xf32> to vector<8x8xf32>
      %377 = vector.shape_cast %374 : vector<8x8xf32> to vector<1x8x8xf32>
      tpu.vector_store %arg20[%c4_265, %c0_266, %c0_267], %377 {strides = array<i32>} : memref<8x8x8xf32, #tpu.memory_space<vmem>>, vector<1x8x8xf32>,
      %c4_268 = arith.constant 4 : index
      %c0_269 = arith.constant 0 : index
      %c0_270 = arith.constant 0 : index
      %378 = vector.load %arg21[%c4_268, %c0_269, %c0_270] : memref<8x8x8xf32, #tpu.memory_space<vmem>>, vector<1x8x8xf32>
      %379 = vector.shape_cast %378 : vector<1x8x8xf32> to vector<8x8xf32>
      %380 = vector.shape_cast %373 : vector<8x8xf32> to vector<1x8x8xf32>
      tpu.vector_store %arg21[%c4_268, %c0_269, %c0_270], %380 {strides = array<i32>} : memref<8x8x8xf32, #tpu.memory_space<vmem>>, vector<1x8x8xf32>,
      %c5_271 = arith.constant 5 : index
      %c0_272 = arith.constant 0 : index
      %c0_273 = arith.constant 0 : index
      %381 = vector.load %arg9[%c5_271, %c0_272, %c0_273] : memref<8x64x8xf32, #tpu.memory_space<vmem>>, vector<1x64x8xf32>
      %382 = vector.shape_cast %381 : vector<1x64x8xf32> to vector<64x8xf32>
      %cst_274 = arith.constant dense<0.000000e+00> : vector<8x8xf32>
      %383 = tpu.matmul %315, %382, %cst_274 {dimension_numbers = #tpu.dot_dimension_numbers<[1], [0], [0], [1], [0, 0, 1, 1], [], []>} : vector<8x64xf32>, vector<64x8xf32>, vector<8x8xf32> -> vector<8x8xf32>
      %c5_275 = arith.constant 5 : index
      %c0_276 = arith.constant 0 : index
      %c0_277 = arith.constant 0 : index
      %384 = vector.load %arg10[%c5_275, %c0_276, %c0_277] : memref<8x64x8xf32, #tpu.memory_space<vmem>>, vector<1x64x8xf32>
      %385 = vector.shape_cast %384 : vector<1x64x8xf32> to vector<64x8xf32>
      %cst_278 = arith.constant dense<0.000000e+00> : vector<8x8xf32>
      %386 = tpu.matmul %315, %385, %cst_278 {dimension_numbers = #tpu.dot_dimension_numbers<[1], [0], [0], [1], [0, 0, 1, 1], [], []>} : vector<8x64xf32>, vector<64x8xf32>, vector<8x8xf32> -> vector<8x8xf32>
      %387 = tpu.transpose %383, [1, 0] : vector<8x8xf32> -> vector<8x8xf32>
      %c5_279 = arith.constant 5 : index
      %c0_280 = arith.constant 0 : index
      %c0_281 = arith.constant 0 : index
      %388 = vector.load %arg20[%c5_279, %c0_280, %c0_281] : memref<8x8x8xf32, #tpu.memory_space<vmem>>, vector<1x8x8xf32>
      %389 = vector.shape_cast %388 : vector<1x8x8xf32> to vector<8x8xf32>
      %390 = vector.shape_cast %387 : vector<8x8xf32> to vector<1x8x8xf32>
      tpu.vector_store %arg20[%c5_279, %c0_280, %c0_281], %390 {strides = array<i32>} : memref<8x8x8xf32, #tpu.memory_space<vmem>>, vector<1x8x8xf32>,
      %c5_282 = arith.constant 5 : index
      %c0_283 = arith.constant 0 : index
      %c0_284 = arith.constant 0 : index
      %391 = vector.load %arg21[%c5_282, %c0_283, %c0_284] : memref<8x8x8xf32, #tpu.memory_space<vmem>>, vector<1x8x8xf32>
      %392 = vector.shape_cast %391 : vector<1x8x8xf32> to vector<8x8xf32>
      %393 = vector.shape_cast %386 : vector<8x8xf32> to vector<1x8x8xf32>
      tpu.vector_store %arg21[%c5_282, %c0_283, %c0_284], %393 {strides = array<i32>} : memref<8x8x8xf32, #tpu.memory_space<vmem>>, vector<1x8x8xf32>,
      %c6_285 = arith.constant 6 : index
      %c0_286 = arith.constant 0 : index
      %c0_287 = arith.constant 0 : index
      %394 = vector.load %arg9[%c6_285, %c0_286, %c0_287] : memref<8x64x8xf32, #tpu.memory_space<vmem>>, vector<1x64x8xf32>
      %395 = vector.shape_cast %394 : vector<1x64x8xf32> to vector<64x8xf32>
      %cst_288 = arith.constant dense<0.000000e+00> : vector<8x8xf32>
      %396 = tpu.matmul %315, %395, %cst_288 {dimension_numbers = #tpu.dot_dimension_numbers<[1], [0], [0], [1], [0, 0, 1, 1], [], []>} : vector<8x64xf32>, vector<64x8xf32>, vector<8x8xf32> -> vector<8x8xf32>
      %c6_289 = arith.constant 6 : index
      %c0_290 = arith.constant 0 : index
      %c0_291 = arith.constant 0 : index
      %397 = vector.load %arg10[%c6_289, %c0_290, %c0_291] : memref<8x64x8xf32, #tpu.memory_space<vmem>>, vector<1x64x8xf32>
      %398 = vector.shape_cast %397 : vector<1x64x8xf32> to vector<64x8xf32>
      %cst_292 = arith.constant dense<0.000000e+00> : vector<8x8xf32>
      %399 = tpu.matmul %315, %398, %cst_292 {dimension_numbers = #tpu.dot_dimension_numbers<[1], [0], [0], [1], [0, 0, 1, 1], [], []>} : vector<8x64xf32>, vector<64x8xf32>, vector<8x8xf32> -> vector<8x8xf32>
      %400 = tpu.transpose %396, [1, 0] : vector<8x8xf32> -> vector<8x8xf32>
      %c6_293 = arith.constant 6 : index
      %c0_294 = arith.constant 0 : index
      %c0_295 = arith.constant 0 : index
      %401 = vector.load %arg20[%c6_293, %c0_294, %c0_295] : memref<8x8x8xf32, #tpu.memory_space<vmem>>, vector<1x8x8xf32>
      %402 = vector.shape_cast %401 : vector<1x8x8xf32> to vector<8x8xf32>
      %403 = vector.shape_cast %400 : vector<8x8xf32> to vector<1x8x8xf32>
      tpu.vector_store %arg20[%c6_293, %c0_294, %c0_295], %403 {strides = array<i32>} : memref<8x8x8xf32, #tpu.memory_space<vmem>>, vector<1x8x8xf32>,
      %c6_296 = arith.constant 6 : index
      %c0_297 = arith.constant 0 : index
      %c0_298 = arith.constant 0 : index
      %404 = vector.load %arg21[%c6_296, %c0_297, %c0_298] : memref<8x8x8xf32, #tpu.memory_space<vmem>>, vector<1x8x8xf32>
      %405 = vector.shape_cast %404 : vector<1x8x8xf32> to vector<8x8xf32>
      %406 = vector.shape_cast %399 : vector<8x8xf32> to vector<1x8x8xf32>
      tpu.vector_store %arg21[%c6_296, %c0_297, %c0_298], %406 {strides = array<i32>} : memref<8x8x8xf32, #tpu.memory_space<vmem>>, vector<1x8x8xf32>,
      %c7_299 = arith.constant 7 : index
      %c0_300 = arith.constant 0 : index
      %c0_301 = arith.constant 0 : index
      %407 = vector.load %arg9[%c7_299, %c0_300, %c0_301] : memref<8x64x8xf32, #tpu.memory_space<vmem>>, vector<1x64x8xf32>
      %408 = vector.shape_cast %407 : vector<1x64x8xf32> to vector<64x8xf32>
      %cst_302 = arith.constant dense<0.000000e+00> : vector<8x8xf32>
      %409 = tpu.matmul %315, %408, %cst_302 {dimension_numbers = #tpu.dot_dimension_numbers<[1], [0], [0], [1], [0, 0, 1, 1], [], []>} : vector<8x64xf32>, vector<64x8xf32>, vector<8x8xf32> -> vector<8x8xf32>
      %c7_303 = arith.constant 7 : index
      %c0_304 = arith.constant 0 : index
      %c0_305 = arith.constant 0 : index
      %410 = vector.load %arg10[%c7_303, %c0_304, %c0_305] : memref<8x64x8xf32, #tpu.memory_space<vmem>>, vector<1x64x8xf32>
      %411 = vector.shape_cast %410 : vector<1x64x8xf32> to vector<64x8xf32>
      %cst_306 = arith.constant dense<0.000000e+00> : vector<8x8xf32>
      %412 = tpu.matmul %315, %411, %cst_306 {dimension_numbers = #tpu.dot_dimension_numbers<[1], [0], [0], [1], [0, 0, 1, 1], [], []>} : vector<8x64xf32>, vector<64x8xf32>, vector<8x8xf32> -> vector<8x8xf32>
      %413 = tpu.transpose %409, [1, 0] : vector<8x8xf32> -> vector<8x8xf32>
      %c7_307 = arith.constant 7 : index
      %c0_308 = arith.constant 0 : index
      %c0_309 = arith.constant 0 : index
      %414 = vector.load %arg20[%c7_307, %c0_308, %c0_309] : memref<8x8x8xf32, #tpu.memory_space<vmem>>, vector<1x8x8xf32>
      %415 = vector.shape_cast %414 : vector<1x8x8xf32> to vector<8x8xf32>
      %416 = vector.shape_cast %413 : vector<8x8xf32> to vector<1x8x8xf32>
      tpu.vector_store %arg20[%c7_307, %c0_308, %c0_309], %416 {strides = array<i32>} : memref<8x8x8xf32, #tpu.memory_space<vmem>>, vector<1x8x8xf32>,
      %c7_310 = arith.constant 7 : index
      %c0_311 = arith.constant 0 : index
      %c0_312 = arith.constant 0 : index
      %417 = vector.load %arg21[%c7_310, %c0_311, %c0_312] : memref<8x8x8xf32, #tpu.memory_space<vmem>>, vector<1x8x8xf32>
      %418 = vector.shape_cast %417 : vector<1x8x8xf32> to vector<8x8xf32>
      %419 = vector.shape_cast %412 : vector<8x8xf32> to vector<1x8x8xf32>
      tpu.vector_store %arg21[%c7_310, %c0_311, %c0_312], %419 {strides = array<i32>} : memref<8x8x8xf32, #tpu.memory_space<vmem>>, vector<1x8x8xf32>,
    } else {
    }
    %c0 = arith.constant 0 : index
    %c0_1 = arith.constant 0 : index
    %c0_2 = arith.constant 0 : index
    %3 = vector.load %arg2[%c0, %c0_1, %c0_2] : memref<1x16x64xf32, #tpu.memory_space<vmem>>, vector<1x16x64xf32>
    %4 = vector.shape_cast %3 : vector<1x16x64xf32> to vector<16x64xf32>
    %c0_3 = arith.constant 0 : index
    %c0_4 = arith.constant 0 : index
    %5 = vector.load %arg4[%c0_3, %c0_4] : memref<1x64xf32, #tpu.memory_space<vmem>>, vector<1x64xf32>
    %c0_5 = arith.constant 0 : index
    %c0_6 = arith.constant 0 : index
    %6 = vector.load %arg5[%c0_5, %c0_6] : memref<1x64xf32, #tpu.memory_space<vmem>>, vector<1x64xf32>
    %cst = arith.constant dense<0.000000e+00> : vector<16xf32>
    %7 = vector.multi_reduction <add>, %4, %cst [1] : vector<16x64xf32> to vector<16xf32>
    %8 = vector.shape_cast %7 : vector<16xf32> to vector<16x1xf32>
    %cst_7 = arith.constant 6.400000e+01 : f32
    %9 = vector.broadcast %cst_7 : f32 to vector<16x1xf32>
    %10 = arith.divf %8, %9 : vector<16x1xf32>
    %11 = vector.broadcast %10 : vector<16x1xf32> to vector<16x64xf32>
    %12 = arith.subf %4, %11 : vector<16x64xf32>
    %13 = arith.mulf %12, %12 : vector<16x64xf32>
    %cst_8 = arith.constant dense<0.000000e+00> : vector<16xf32>
    %14 = vector.multi_reduction <add>, %13, %cst_8 [1] : vector<16x64xf32> to vector<16xf32>
    %15 = vector.shape_cast %14 : vector<16xf32> to vector<16x1xf32>
    %cst_9 = arith.constant 6.400000e+01 : f32
    %16 = vector.broadcast %cst_9 : f32 to vector<16x1xf32>
    %17 = arith.divf %15, %16 : vector<16x1xf32>
    %18 = vector.broadcast %10 : vector<16x1xf32> to vector<16x64xf32>
    %19 = arith.subf %4, %18 : vector<16x64xf32>
    %cst_10 = arith.constant 9.99999974E-6 : f32
    %20 = vector.broadcast %cst_10 : f32 to vector<16x1xf32>
    %21 = arith.addf %17, %20 : vector<16x1xf32>
    %22 = math.rsqrt %21 : vector<16x1xf32>
    %23 = vector.broadcast %22 : vector<16x1xf32> to vector<16x64xf32>
    %24 = arith.mulf %19, %23 : vector<16x64xf32>
    %25 = vector.broadcast %5 : vector<1x64xf32> to vector<16x64xf32>
    %26 = arith.mulf %24, %25 : vector<16x64xf32>
    %27 = vector.broadcast %6 : vector<1x64xf32> to vector<16x64xf32>
    %28 = arith.addf %26, %27 : vector<16x64xf32>
    %cst_11 = arith.constant 0.000000e+00 : f32
    %29 = vector.broadcast %cst_11 : f32 to vector<16x64xf32>
    %c0_12 = arith.constant 0 : index
    %c0_13 = arith.constant 0 : index
    %c0_14 = arith.constant 0 : index
    %30 = vector.load %arg8[%c0_12, %c0_13, %c0_14] : memref<8x64x8xf32, #tpu.memory_space<vmem>>, vector<1x64x8xf32>
    %31 = vector.shape_cast %30 : vector<1x64x8xf32> to vector<64x8xf32>
    %cst_15 = arith.constant dense<0.000000e+00> : vector<16x8xf32>
    %32 = tpu.matmul %28, %31, %cst_15 {dimension_numbers = #tpu.dot_dimension_numbers<[1], [0], [0], [1], [0, 0, 1, 1], [], []>} : vector<16x64xf32>, vector<64x8xf32>, vector<16x8xf32> -> vector<16x8xf32>
    %c0_16 = arith.constant 0 : index
    %c0_17 = arith.constant 0 : index
    %c0_18 = arith.constant 0 : index
    %33 = vector.load %arg20[%c0_16, %c0_17, %c0_18] : memref<8x8x8xf32, #tpu.memory_space<vmem>>, vector<1x8x8xf32>
    %34 = vector.shape_cast %33 : vector<1x8x8xf32> to vector<8x8xf32>
    %cst_19 = arith.constant dense<0.000000e+00> : vector<16x8xf32>
    %35 = tpu.matmul %32, %34, %cst_19 {dimension_numbers = #tpu.dot_dimension_numbers<[1], [0], [0], [1], [0, 0, 1, 1], [], []>} : vector<16x8xf32>, vector<8x8xf32>, vector<16x8xf32> -> vector<16x8xf32>
    %cst_20 = arith.constant dense<0xFF800000> : vector<16xf32>
    %36 = vector.multi_reduction <maximumf>, %35, %cst_20 [1] : vector<16x8xf32> to vector<16xf32>
    %37 = vector.shape_cast %36 : vector<16xf32> to vector<16x1xf32>
    %38 = vector.broadcast %37 : vector<16x1xf32> to vector<16x8xf32>
    %39 = arith.subf %35, %38 : vector<16x8xf32>
    %40 = math.exp %39 : vector<16x8xf32>
    %cst_21 = arith.constant dense<0.000000e+00> : vector<16xf32>
    %41 = vector.multi_reduction <add>, %40, %cst_21 [1] : vector<16x8xf32> to vector<16xf32>
    %42 = vector.shape_cast %41 : vector<16xf32> to vector<16x1xf32>
    %cst_22 = arith.constant 1.000000e+00 : f32
    %43 = vector.broadcast %cst_22 : f32 to vector<16x1xf32>
    %44 = arith.divf %43, %42 : vector<16x1xf32>
    %45 = vector.broadcast %44 : vector<16x1xf32> to vector<16x8xf32>
    %46 = arith.mulf %40, %45 : vector<16x8xf32>
    %c0_23 = arith.constant 0 : index
    %c0_24 = arith.constant 0 : index
    %c0_25 = arith.constant 0 : index
    %47 = vector.load %arg21[%c0_23, %c0_24, %c0_25] : memref<8x8x8xf32, #tpu.memory_space<vmem>>, vector<1x8x8xf32>
    %48 = vector.shape_cast %47 : vector<1x8x8xf32> to vector<8x8xf32>
    %cst_26 = arith.constant dense<0.000000e+00> : vector<16x8xf32>
    %49 = tpu.matmul %46, %48, %cst_26 {dimension_numbers = #tpu.dot_dimension_numbers<[1], [0], [0], [1], [0, 0, 1, 1], [], []>} : vector<16x8xf32>, vector<8x8xf32>, vector<16x8xf32> -> vector<16x8xf32>
    %c0_27 = arith.constant 0 : index
    %c0_28 = arith.constant 0 : index
    %c0_29 = arith.constant 0 : index
    %50 = vector.load %arg11[%c0_27, %c0_28, %c0_29] : memref<8x8x64xf32, #tpu.memory_space<vmem>>, vector<1x8x64xf32>
    %51 = vector.shape_cast %50 : vector<1x8x64xf32> to vector<8x64xf32>
    %cst_30 = arith.constant dense<0.000000e+00> : vector<16x64xf32>
    %52 = tpu.matmul %49, %51, %cst_30 {dimension_numbers = #tpu.dot_dimension_numbers<[1], [0], [0], [1], [0, 0, 1, 1], [], []>} : vector<16x8xf32>, vector<8x64xf32>, vector<16x64xf32> -> vector<16x64xf32>
    %53 = arith.addf %29, %52 : vector<16x64xf32>
    %c1 = arith.constant 1 : index
    %c0_31 = arith.constant 0 : index
    %c0_32 = arith.constant 0 : index
    %54 = vector.load %arg8[%c1, %c0_31, %c0_32] : memref<8x64x8xf32, #tpu.memory_space<vmem>>, vector<1x64x8xf32>
    %55 = vector.shape_cast %54 : vector<1x64x8xf32> to vector<64x8xf32>
    %cst_33 = arith.constant dense<0.000000e+00> : vector<16x8xf32>
    %56 = tpu.matmul %28, %55, %cst_33 {dimension_numbers = #tpu.dot_dimension_numbers<[1], [0], [0], [1], [0, 0, 1, 1], [], []>} : vector<16x64xf32>, vector<64x8xf32>, vector<16x8xf32> -> vector<16x8xf32>
    %c1_34 = arith.constant 1 : index
    %c0_35 = arith.constant 0 : index
    %c0_36 = arith.constant 0 : index
    %57 = vector.load %arg20[%c1_34, %c0_35, %c0_36] : memref<8x8x8xf32, #tpu.memory_space<vmem>>, vector<1x8x8xf32>
    %58 = vector.shape_cast %57 : vector<1x8x8xf32> to vector<8x8xf32>
    %cst_37 = arith.constant dense<0.000000e+00> : vector<16x8xf32>
    %59 = tpu.matmul %56, %58, %cst_37 {dimension_numbers = #tpu.dot_dimension_numbers<[1], [0], [0], [1], [0, 0, 1, 1], [], []>} : vector<16x8xf32>, vector<8x8xf32>, vector<16x8xf32> -> vector<16x8xf32>
    %cst_38 = arith.constant dense<0xFF800000> : vector<16xf32>
    %60 = vector.multi_reduction <maximumf>, %59, %cst_38 [1] : vector<16x8xf32> to vector<16xf32>
    %61 = vector.shape_cast %60 : vector<16xf32> to vector<16x1xf32>
    %62 = vector.broadcast %61 : vector<16x1xf32> to vector<16x8xf32>
    %63 = arith.subf %59, %62 : vector<16x8xf32>
    %64 = math.exp %63 : vector<16x8xf32>
    %cst_39 = arith.constant dense<0.000000e+00> : vector<16xf32>
    %65 = vector.multi_reduction <add>, %64, %cst_39 [1] : vector<16x8xf32> to vector<16xf32>
    %66 = vector.shape_cast %65 : vector<16xf32> to vector<16x1xf32>
    %cst_40 = arith.constant 1.000000e+00 : f32
    %67 = vector.broadcast %cst_40 : f32 to vector<16x1xf32>
    %68 = arith.divf %67, %66 : vector<16x1xf32>
    %69 = vector.broadcast %68 : vector<16x1xf32> to vector<16x8xf32>
    %70 = arith.mulf %64, %69 : vector<16x8xf32>
    %c1_41 = arith.constant 1 : index
    %c0_42 = arith.constant 0 : index
    %c0_43 = arith.constant 0 : index
    %71 = vector.load %arg21[%c1_41, %c0_42, %c0_43] : memref<8x8x8xf32, #tpu.memory_space<vmem>>, vector<1x8x8xf32>
    %72 = vector.shape_cast %71 : vector<1x8x8xf32> to vector<8x8xf32>
    %cst_44 = arith.constant dense<0.000000e+00> : vector<16x8xf32>
    %73 = tpu.matmul %70, %72, %cst_44 {dimension_numbers = #tpu.dot_dimension_numbers<[1], [0], [0], [1], [0, 0, 1, 1], [], []>} : vector<16x8xf32>, vector<8x8xf32>, vector<16x8xf32> -> vector<16x8xf32>
    %c1_45 = arith.constant 1 : index
    %c0_46 = arith.constant 0 : index
    %c0_47 = arith.constant 0 : index
    %74 = vector.load %arg11[%c1_45, %c0_46, %c0_47] : memref<8x8x64xf32, #tpu.memory_space<vmem>>, vector<1x8x64xf32>
    %75 = vector.shape_cast %74 : vector<1x8x64xf32> to vector<8x64xf32>
    %cst_48 = arith.constant dense<0.000000e+00> : vector<16x64xf32>
    %76 = tpu.matmul %73, %75, %cst_48 {dimension_numbers = #tpu.dot_dimension_numbers<[1], [0], [0], [1], [0, 0, 1, 1], [], []>} : vector<16x8xf32>, vector<8x64xf32>, vector<16x64xf32> -> vector<16x64xf32>
    %77 = arith.addf %53, %76 : vector<16x64xf32>
    %c2 = arith.constant 2 : index
    %c0_49 = arith.constant 0 : index
    %c0_50 = arith.constant 0 : index
    %78 = vector.load %arg8[%c2, %c0_49, %c0_50] : memref<8x64x8xf32, #tpu.memory_space<vmem>>, vector<1x64x8xf32>
    %79 = vector.shape_cast %78 : vector<1x64x8xf32> to vector<64x8xf32>
    %cst_51 = arith.constant dense<0.000000e+00> : vector<16x8xf32>
    %80 = tpu.matmul %28, %79, %cst_51 {dimension_numbers = #tpu.dot_dimension_numbers<[1], [0], [0], [1], [0, 0, 1, 1], [], []>} : vector<16x64xf32>, vector<64x8xf32>, vector<16x8xf32> -> vector<16x8xf32>
    %c2_52 = arith.constant 2 : index
    %c0_53 = arith.constant 0 : index
    %c0_54 = arith.constant 0 : index
    %81 = vector.load %arg20[%c2_52, %c0_53, %c0_54] : memref<8x8x8xf32, #tpu.memory_space<vmem>>, vector<1x8x8xf32>
    %82 = vector.shape_cast %81 : vector<1x8x8xf32> to vector<8x8xf32>
    %cst_55 = arith.constant dense<0.000000e+00> : vector<16x8xf32>
    %83 = tpu.matmul %80, %82, %cst_55 {dimension_numbers = #tpu.dot_dimension_numbers<[1], [0], [0], [1], [0, 0, 1, 1], [], []>} : vector<16x8xf32>, vector<8x8xf32>, vector<16x8xf32> -> vector<16x8xf32>
    %cst_56 = arith.constant dense<0xFF800000> : vector<16xf32>
    %84 = vector.multi_reduction <maximumf>, %83, %cst_56 [1] : vector<16x8xf32> to vector<16xf32>
    %85 = vector.shape_cast %84 : vector<16xf32> to vector<16x1xf32>
    %86 = vector.broadcast %85 : vector<16x1xf32> to vector<16x8xf32>
    %87 = arith.subf %83, %86 : vector<16x8xf32>
    %88 = math.exp %87 : vector<16x8xf32>
    %cst_57 = arith.constant dense<0.000000e+00> : vector<16xf32>
    %89 = vector.multi_reduction <add>, %88, %cst_57 [1] : vector<16x8xf32> to vector<16xf32>
    %90 = vector.shape_cast %89 : vector<16xf32> to vector<16x1xf32>
    %cst_58 = arith.constant 1.000000e+00 : f32
    %91 = vector.broadcast %cst_58 : f32 to vector<16x1xf32>
    %92 = arith.divf %91, %90 : vector<16x1xf32>
    %93 = vector.broadcast %92 : vector<16x1xf32> to vector<16x8xf32>
    %94 = arith.mulf %88, %93 : vector<16x8xf32>
    %c2_59 = arith.constant 2 : index
    %c0_60 = arith.constant 0 : index
    %c0_61 = arith.constant 0 : index
    %95 = vector.load %arg21[%c2_59, %c0_60, %c0_61] : memref<8x8x8xf32, #tpu.memory_space<vmem>>, vector<1x8x8xf32>
    %96 = vector.shape_cast %95 : vector<1x8x8xf32> to vector<8x8xf32>
    %cst_62 = arith.constant dense<0.000000e+00> : vector<16x8xf32>
    %97 = tpu.matmul %94, %96, %cst_62 {dimension_numbers = #tpu.dot_dimension_numbers<[1], [0], [0], [1], [0, 0, 1, 1], [], []>} : vector<16x8xf32>, vector<8x8xf32>, vector<16x8xf32> -> vector<16x8xf32>
    %c2_63 = arith.constant 2 : index
    %c0_64 = arith.constant 0 : index
    %c0_65 = arith.constant 0 : index
    %98 = vector.load %arg11[%c2_63, %c0_64, %c0_65] : memref<8x8x64xf32, #tpu.memory_space<vmem>>, vector<1x8x64xf32>
    %99 = vector.shape_cast %98 : vector<1x8x64xf32> to vector<8x64xf32>
    %cst_66 = arith.constant dense<0.000000e+00> : vector<16x64xf32>
    %100 = tpu.matmul %97, %99, %cst_66 {dimension_numbers = #tpu.dot_dimension_numbers<[1], [0], [0], [1], [0, 0, 1, 1], [], []>} : vector<16x8xf32>, vector<8x64xf32>, vector<16x64xf32> -> vector<16x64xf32>
    %101 = arith.addf %77, %100 : vector<16x64xf32>
    %c3 = arith.constant 3 : index
    %c0_67 = arith.constant 0 : index
    %c0_68 = arith.constant 0 : index
    %102 = vector.load %arg8[%c3, %c0_67, %c0_68] : memref<8x64x8xf32, #tpu.memory_space<vmem>>, vector<1x64x8xf32>
    %103 = vector.shape_cast %102 : vector<1x64x8xf32> to vector<64x8xf32>
    %cst_69 = arith.constant dense<0.000000e+00> : vector<16x8xf32>
    %104 = tpu.matmul %28, %103, %cst_69 {dimension_numbers = #tpu.dot_dimension_numbers<[1], [0], [0], [1], [0, 0, 1, 1], [], []>} : vector<16x64xf32>, vector<64x8xf32>, vector<16x8xf32> -> vector<16x8xf32>
    %c3_70 = arith.constant 3 : index
    %c0_71 = arith.constant 0 : index
    %c0_72 = arith.constant 0 : index
    %105 = vector.load %arg20[%c3_70, %c0_71, %c0_72] : memref<8x8x8xf32, #tpu.memory_space<vmem>>, vector<1x8x8xf32>
    %106 = vector.shape_cast %105 : vector<1x8x8xf32> to vector<8x8xf32>
    %cst_73 = arith.constant dense<0.000000e+00> : vector<16x8xf32>
    %107 = tpu.matmul %104, %106, %cst_73 {dimension_numbers = #tpu.dot_dimension_numbers<[1], [0], [0], [1], [0, 0, 1, 1], [], []>} : vector<16x8xf32>, vector<8x8xf32>, vector<16x8xf32> -> vector<16x8xf32>
    %cst_74 = arith.constant dense<0xFF800000> : vector<16xf32>
    %108 = vector.multi_reduction <maximumf>, %107, %cst_74 [1] : vector<16x8xf32> to vector<16xf32>
    %109 = vector.shape_cast %108 : vector<16xf32> to vector<16x1xf32>
    %110 = vector.broadcast %109 : vector<16x1xf32> to vector<16x8xf32>
    %111 = arith.subf %107, %110 : vector<16x8xf32>
    %112 = math.exp %111 : vector<16x8xf32>
    %cst_75 = arith.constant dense<0.000000e+00> : vector<16xf32>
    %113 = vector.multi_reduction <add>, %112, %cst_75 [1] : vector<16x8xf32> to vector<16xf32>
    %114 = vector.shape_cast %113 : vector<16xf32> to vector<16x1xf32>
    %cst_76 = arith.constant 1.000000e+00 : f32
    %115 = vector.broadcast %cst_76 : f32 to vector<16x1xf32>
    %116 = arith.divf %115, %114 : vector<16x1xf32>
    %117 = vector.broadcast %116 : vector<16x1xf32> to vector<16x8xf32>
    %118 = arith.mulf %112, %117 : vector<16x8xf32>
    %c3_77 = arith.constant 3 : index
    %c0_78 = arith.constant 0 : index
    %c0_79 = arith.constant 0 : index
    %119 = vector.load %arg21[%c3_77, %c0_78, %c0_79] : memref<8x8x8xf32, #tpu.memory_space<vmem>>, vector<1x8x8xf32>
    %120 = vector.shape_cast %119 : vector<1x8x8xf32> to vector<8x8xf32>
    %cst_80 = arith.constant dense<0.000000e+00> : vector<16x8xf32>
    %121 = tpu.matmul %118, %120, %cst_80 {dimension_numbers = #tpu.dot_dimension_numbers<[1], [0], [0], [1], [0, 0, 1, 1], [], []>} : vector<16x8xf32>, vector<8x8xf32>, vector<16x8xf32> -> vector<16x8xf32>
    %c3_81 = arith.constant 3 : index
    %c0_82 = arith.constant 0 : index
    %c0_83 = arith.constant 0 : index
    %122 = vector.load %arg11[%c3_81, %c0_82, %c0_83] : memref<8x8x64xf32, #tpu.memory_space<vmem>>, vector<1x8x64xf32>
    %123 = vector.shape_cast %122 : vector<1x8x64xf32> to vector<8x64xf32>
    %cst_84 = arith.constant dense<0.000000e+00> : vector<16x64xf32>
    %124 = tpu.matmul %121, %123, %cst_84 {dimension_numbers = #tpu.dot_dimension_numbers<[1], [0], [0], [1], [0, 0, 1, 1], [], []>} : vector<16x8xf32>, vector<8x64xf32>, vector<16x64xf32> -> vector<16x64xf32>
    %125 = arith.addf %101, %124 : vector<16x64xf32>
    %c4 = arith.constant 4 : index
    %c0_85 = arith.constant 0 : index
    %c0_86 = arith.constant 0 : index
    %126 = vector.load %arg8[%c4, %c0_85, %c0_86] : memref<8x64x8xf32, #tpu.memory_space<vmem>>, vector<1x64x8xf32>
    %127 = vector.shape_cast %126 : vector<1x64x8xf32> to vector<64x8xf32>
    %cst_87 = arith.constant dense<0.000000e+00> : vector<16x8xf32>
    %128 = tpu.matmul %28, %127, %cst_87 {dimension_numbers = #tpu.dot_dimension_numbers<[1], [0], [0], [1], [0, 0, 1, 1], [], []>} : vector<16x64xf32>, vector<64x8xf32>, vector<16x8xf32> -> vector<16x8xf32>
    %c4_88 = arith.constant 4 : index
    %c0_89 = arith.constant 0 : index
    %c0_90 = arith.constant 0 : index
    %129 = vector.load %arg20[%c4_88, %c0_89, %c0_90] : memref<8x8x8xf32, #tpu.memory_space<vmem>>, vector<1x8x8xf32>
    %130 = vector.shape_cast %129 : vector<1x8x8xf32> to vector<8x8xf32>
    %cst_91 = arith.constant dense<0.000000e+00> : vector<16x8xf32>
    %131 = tpu.matmul %128, %130, %cst_91 {dimension_numbers = #tpu.dot_dimension_numbers<[1], [0], [0], [1], [0, 0, 1, 1], [], []>} : vector<16x8xf32>, vector<8x8xf32>, vector<16x8xf32> -> vector<16x8xf32>
    %cst_92 = arith.constant dense<0xFF800000> : vector<16xf32>
    %132 = vector.multi_reduction <maximumf>, %131, %cst_92 [1] : vector<16x8xf32> to vector<16xf32>
    %133 = vector.shape_cast %132 : vector<16xf32> to vector<16x1xf32>
    %134 = vector.broadcast %133 : vector<16x1xf32> to vector<16x8xf32>
    %135 = arith.subf %131, %134 : vector<16x8xf32>
    %136 = math.exp %135 : vector<16x8xf32>
    %cst_93 = arith.constant dense<0.000000e+00> : vector<16xf32>
    %137 = vector.multi_reduction <add>, %136, %cst_93 [1] : vector<16x8xf32> to vector<16xf32>
    %138 = vector.shape_cast %137 : vector<16xf32> to vector<16x1xf32>
    %cst_94 = arith.constant 1.000000e+00 : f32
    %139 = vector.broadcast %cst_94 : f32 to vector<16x1xf32>
    %140 = arith.divf %139, %138 : vector<16x1xf32>
    %141 = vector.broadcast %140 : vector<16x1xf32> to vector<16x8xf32>
    %142 = arith.mulf %136, %141 : vector<16x8xf32>
    %c4_95 = arith.constant 4 : index
    %c0_96 = arith.constant 0 : index
    %c0_97 = arith.constant 0 : index
    %143 = vector.load %arg21[%c4_95, %c0_96, %c0_97] : memref<8x8x8xf32, #tpu.memory_space<vmem>>, vector<1x8x8xf32>
    %144 = vector.shape_cast %143 : vector<1x8x8xf32> to vector<8x8xf32>
    %cst_98 = arith.constant dense<0.000000e+00> : vector<16x8xf32>
    %145 = tpu.matmul %142, %144, %cst_98 {dimension_numbers = #tpu.dot_dimension_numbers<[1], [0], [0], [1], [0, 0, 1, 1], [], []>} : vector<16x8xf32>, vector<8x8xf32>, vector<16x8xf32> -> vector<16x8xf32>
    %c4_99 = arith.constant 4 : index
    %c0_100 = arith.constant 0 : index
    %c0_101 = arith.constant 0 : index
    %146 = vector.load %arg11[%c4_99, %c0_100, %c0_101] : memref<8x8x64xf32, #tpu.memory_space<vmem>>, vector<1x8x64xf32>
    %147 = vector.shape_cast %146 : vector<1x8x64xf32> to vector<8x64xf32>
    %cst_102 = arith.constant dense<0.000000e+00> : vector<16x64xf32>
    %148 = tpu.matmul %145, %147, %cst_102 {dimension_numbers = #tpu.dot_dimension_numbers<[1], [0], [0], [1], [0, 0, 1, 1], [], []>} : vector<16x8xf32>, vector<8x64xf32>, vector<16x64xf32> -> vector<16x64xf32>
    %149 = arith.addf %125, %148 : vector<16x64xf32>
    %c5 = arith.constant 5 : index
    %c0_103 = arith.constant 0 : index
    %c0_104 = arith.constant 0 : index
    %150 = vector.load %arg8[%c5, %c0_103, %c0_104] : memref<8x64x8xf32, #tpu.memory_space<vmem>>, vector<1x64x8xf32>
    %151 = vector.shape_cast %150 : vector<1x64x8xf32> to vector<64x8xf32>
    %cst_105 = arith.constant dense<0.000000e+00> : vector<16x8xf32>
    %152 = tpu.matmul %28, %151, %cst_105 {dimension_numbers = #tpu.dot_dimension_numbers<[1], [0], [0], [1], [0, 0, 1, 1], [], []>} : vector<16x64xf32>, vector<64x8xf32>, vector<16x8xf32> -> vector<16x8xf32>
    %c5_106 = arith.constant 5 : index
    %c0_107 = arith.constant 0 : index
    %c0_108 = arith.constant 0 : index
    %153 = vector.load %arg20[%c5_106, %c0_107, %c0_108] : memref<8x8x8xf32, #tpu.memory_space<vmem>>, vector<1x8x8xf32>
    %154 = vector.shape_cast %153 : vector<1x8x8xf32> to vector<8x8xf32>
    %cst_109 = arith.constant dense<0.000000e+00> : vector<16x8xf32>
    %155 = tpu.matmul %152, %154, %cst_109 {dimension_numbers = #tpu.dot_dimension_numbers<[1], [0], [0], [1], [0, 0, 1, 1], [], []>} : vector<16x8xf32>, vector<8x8xf32>, vector<16x8xf32> -> vector<16x8xf32>
    %cst_110 = arith.constant dense<0xFF800000> : vector<16xf32>
    %156 = vector.multi_reduction <maximumf>, %155, %cst_110 [1] : vector<16x8xf32> to vector<16xf32>
    %157 = vector.shape_cast %156 : vector<16xf32> to vector<16x1xf32>
    %158 = vector.broadcast %157 : vector<16x1xf32> to vector<16x8xf32>
    %159 = arith.subf %155, %158 : vector<16x8xf32>
    %160 = math.exp %159 : vector<16x8xf32>
    %cst_111 = arith.constant dense<0.000000e+00> : vector<16xf32>
    %161 = vector.multi_reduction <add>, %160, %cst_111 [1] : vector<16x8xf32> to vector<16xf32>
    %162 = vector.shape_cast %161 : vector<16xf32> to vector<16x1xf32>
    %cst_112 = arith.constant 1.000000e+00 : f32
    %163 = vector.broadcast %cst_112 : f32 to vector<16x1xf32>
    %164 = arith.divf %163, %162 : vector<16x1xf32>
    %165 = vector.broadcast %164 : vector<16x1xf32> to vector<16x8xf32>
    %166 = arith.mulf %160, %165 : vector<16x8xf32>
    %c5_113 = arith.constant 5 : index
    %c0_114 = arith.constant 0 : index
    %c0_115 = arith.constant 0 : index
    %167 = vector.load %arg21[%c5_113, %c0_114, %c0_115] : memref<8x8x8xf32, #tpu.memory_space<vmem>>, vector<1x8x8xf32>
    %168 = vector.shape_cast %167 : vector<1x8x8xf32> to vector<8x8xf32>
    %cst_116 = arith.constant dense<0.000000e+00> : vector<16x8xf32>
    %169 = tpu.matmul %166, %168, %cst_116 {dimension_numbers = #tpu.dot_dimension_numbers<[1], [0], [0], [1], [0, 0, 1, 1], [], []>} : vector<16x8xf32>, vector<8x8xf32>, vector<16x8xf32> -> vector<16x8xf32>
    %c5_117 = arith.constant 5 : index
    %c0_118 = arith.constant 0 : index
    %c0_119 = arith.constant 0 : index
    %170 = vector.load %arg11[%c5_117, %c0_118, %c0_119] : memref<8x8x64xf32, #tpu.memory_space<vmem>>, vector<1x8x64xf32>
    %171 = vector.shape_cast %170 : vector<1x8x64xf32> to vector<8x64xf32>
    %cst_120 = arith.constant dense<0.000000e+00> : vector<16x64xf32>
    %172 = tpu.matmul %169, %171, %cst_120 {dimension_numbers = #tpu.dot_dimension_numbers<[1], [0], [0], [1], [0, 0, 1, 1], [], []>} : vector<16x8xf32>, vector<8x64xf32>, vector<16x64xf32> -> vector<16x64xf32>
    %173 = arith.addf %149, %172 : vector<16x64xf32>
    %c6 = arith.constant 6 : index
    %c0_121 = arith.constant 0 : index
    %c0_122 = arith.constant 0 : index
    %174 = vector.load %arg8[%c6, %c0_121, %c0_122] : memref<8x64x8xf32, #tpu.memory_space<vmem>>, vector<1x64x8xf32>
    %175 = vector.shape_cast %174 : vector<1x64x8xf32> to vector<64x8xf32>
    %cst_123 = arith.constant dense<0.000000e+00> : vector<16x8xf32>
    %176 = tpu.matmul %28, %175, %cst_123 {dimension_numbers = #tpu.dot_dimension_numbers<[1], [0], [0], [1], [0, 0, 1, 1], [], []>} : vector<16x64xf32>, vector<64x8xf32>, vector<16x8xf32> -> vector<16x8xf32>
    %c6_124 = arith.constant 6 : index
    %c0_125 = arith.constant 0 : index
    %c0_126 = arith.constant 0 : index
    %177 = vector.load %arg20[%c6_124, %c0_125, %c0_126] : memref<8x8x8xf32, #tpu.memory_space<vmem>>, vector<1x8x8xf32>
    %178 = vector.shape_cast %177 : vector<1x8x8xf32> to vector<8x8xf32>
    %cst_127 = arith.constant dense<0.000000e+00> : vector<16x8xf32>
    %179 = tpu.matmul %176, %178, %cst_127 {dimension_numbers = #tpu.dot_dimension_numbers<[1], [0], [0], [1], [0, 0, 1, 1], [], []>} : vector<16x8xf32>, vector<8x8xf32>, vector<16x8xf32> -> vector<16x8xf32>
    %cst_128 = arith.constant dense<0xFF800000> : vector<16xf32>
    %180 = vector.multi_reduction <maximumf>, %179, %cst_128 [1] : vector<16x8xf32> to vector<16xf32>
    %181 = vector.shape_cast %180 : vector<16xf32> to vector<16x1xf32>
    %182 = vector.broadcast %181 : vector<16x1xf32> to vector<16x8xf32>
    %183 = arith.subf %179, %182 : vector<16x8xf32>
    %184 = math.exp %183 : vector<16x8xf32>
    %cst_129 = arith.constant dense<0.000000e+00> : vector<16xf32>
    %185 = vector.multi_reduction <add>, %184, %cst_129 [1] : vector<16x8xf32> to vector<16xf32>
    %186 = vector.shape_cast %185 : vector<16xf32> to vector<16x1xf32>
    %cst_130 = arith.constant 1.000000e+00 : f32
    %187 = vector.broadcast %cst_130 : f32 to vector<16x1xf32>
    %188 = arith.divf %187, %186 : vector<16x1xf32>
    %189 = vector.broadcast %188 : vector<16x1xf32> to vector<16x8xf32>
    %190 = arith.mulf %184, %189 : vector<16x8xf32>
    %c6_131 = arith.constant 6 : index
    %c0_132 = arith.constant 0 : index
    %c0_133 = arith.constant 0 : index
    %191 = vector.load %arg21[%c6_131, %c0_132, %c0_133] : memref<8x8x8xf32, #tpu.memory_space<vmem>>, vector<1x8x8xf32>
    %192 = vector.shape_cast %191 : vector<1x8x8xf32> to vector<8x8xf32>
    %cst_134 = arith.constant dense<0.000000e+00> : vector<16x8xf32>
    %193 = tpu.matmul %190, %192, %cst_134 {dimension_numbers = #tpu.dot_dimension_numbers<[1], [0], [0], [1], [0, 0, 1, 1], [], []>} : vector<16x8xf32>, vector<8x8xf32>, vector<16x8xf32> -> vector<16x8xf32>
    %c6_135 = arith.constant 6 : index
    %c0_136 = arith.constant 0 : index
    %c0_137 = arith.constant 0 : index
    %194 = vector.load %arg11[%c6_135, %c0_136, %c0_137] : memref<8x8x64xf32, #tpu.memory_space<vmem>>, vector<1x8x64xf32>
    %195 = vector.shape_cast %194 : vector<1x8x64xf32> to vector<8x64xf32>
    %cst_138 = arith.constant dense<0.000000e+00> : vector<16x64xf32>
    %196 = tpu.matmul %193, %195, %cst_138 {dimension_numbers = #tpu.dot_dimension_numbers<[1], [0], [0], [1], [0, 0, 1, 1], [], []>} : vector<16x8xf32>, vector<8x64xf32>, vector<16x64xf32> -> vector<16x64xf32>
    %197 = arith.addf %173, %196 : vector<16x64xf32>
    %c7 = arith.constant 7 : index
    %c0_139 = arith.constant 0 : index
    %c0_140 = arith.constant 0 : index
    %198 = vector.load %arg8[%c7, %c0_139, %c0_140] : memref<8x64x8xf32, #tpu.memory_space<vmem>>, vector<1x64x8xf32>
    %199 = vector.shape_cast %198 : vector<1x64x8xf32> to vector<64x8xf32>
    %cst_141 = arith.constant dense<0.000000e+00> : vector<16x8xf32>
    %200 = tpu.matmul %28, %199, %cst_141 {dimension_numbers = #tpu.dot_dimension_numbers<[1], [0], [0], [1], [0, 0, 1, 1], [], []>} : vector<16x64xf32>, vector<64x8xf32>, vector<16x8xf32> -> vector<16x8xf32>
    %c7_142 = arith.constant 7 : index
    %c0_143 = arith.constant 0 : index
    %c0_144 = arith.constant 0 : index
    %201 = vector.load %arg20[%c7_142, %c0_143, %c0_144] : memref<8x8x8xf32, #tpu.memory_space<vmem>>, vector<1x8x8xf32>
    %202 = vector.shape_cast %201 : vector<1x8x8xf32> to vector<8x8xf32>
    %cst_145 = arith.constant dense<0.000000e+00> : vector<16x8xf32>
    %203 = tpu.matmul %200, %202, %cst_145 {dimension_numbers = #tpu.dot_dimension_numbers<[1], [0], [0], [1], [0, 0, 1, 1], [], []>} : vector<16x8xf32>, vector<8x8xf32>, vector<16x8xf32> -> vector<16x8xf32>
    %cst_146 = arith.constant dense<0xFF800000> : vector<16xf32>
    %204 = vector.multi_reduction <maximumf>, %203, %cst_146 [1] : vector<16x8xf32> to vector<16xf32>
    %205 = vector.shape_cast %204 : vector<16xf32> to vector<16x1xf32>
    %206 = vector.broadcast %205 : vector<16x1xf32> to vector<16x8xf32>
    %207 = arith.subf %203, %206 : vector<16x8xf32>
    %208 = math.exp %207 : vector<16x8xf32>
    %cst_147 = arith.constant dense<0.000000e+00> : vector<16xf32>
    %209 = vector.multi_reduction <add>, %208, %cst_147 [1] : vector<16x8xf32> to vector<16xf32>
    %210 = vector.shape_cast %209 : vector<16xf32> to vector<16x1xf32>
    %cst_148 = arith.constant 1.000000e+00 : f32
    %211 = vector.broadcast %cst_148 : f32 to vector<16x1xf32>
    %212 = arith.divf %211, %210 : vector<16x1xf32>
    %213 = vector.broadcast %212 : vector<16x1xf32> to vector<16x8xf32>
    %214 = arith.mulf %208, %213 : vector<16x8xf32>
    %c7_149 = arith.constant 7 : index
    %c0_150 = arith.constant 0 : index
    %c0_151 = arith.constant 0 : index
    %215 = vector.load %arg21[%c7_149, %c0_150, %c0_151] : memref<8x8x8xf32, #tpu.memory_space<vmem>>, vector<1x8x8xf32>
    %216 = vector.shape_cast %215 : vector<1x8x8xf32> to vector<8x8xf32>
    %cst_152 = arith.constant dense<0.000000e+00> : vector<16x8xf32>
    %217 = tpu.matmul %214, %216, %cst_152 {dimension_numbers = #tpu.dot_dimension_numbers<[1], [0], [0], [1], [0, 0, 1, 1], [], []>} : vector<16x8xf32>, vector<8x8xf32>, vector<16x8xf32> -> vector<16x8xf32>
    %c7_153 = arith.constant 7 : index
    %c0_154 = arith.constant 0 : index
    %c0_155 = arith.constant 0 : index
    %218 = vector.load %arg11[%c7_153, %c0_154, %c0_155] : memref<8x8x64xf32, #tpu.memory_space<vmem>>, vector<1x8x64xf32>
    %219 = vector.shape_cast %218 : vector<1x8x64xf32> to vector<8x64xf32>
    %cst_156 = arith.constant dense<0.000000e+00> : vector<16x64xf32>
    %220 = tpu.matmul %217, %219, %cst_156 {dimension_numbers = #tpu.dot_dimension_numbers<[1], [0], [0], [1], [0, 0, 1, 1], [], []>} : vector<16x8xf32>, vector<8x64xf32>, vector<16x64xf32> -> vector<16x64xf32>
    %221 = arith.addf %197, %220 : vector<16x64xf32>
    %222 = arith.addf %4, %221 : vector<16x64xf32>
    %c0_157 = arith.constant 0 : index
    %c0_158 = arith.constant 0 : index
    %223 = vector.load %arg12[%c0_157, %c0_158] : memref<1x64xf32, #tpu.memory_space<vmem>>, vector<1x64xf32>
    %224 = vector.broadcast %223 : vector<1x64xf32> to vector<16x64xf32>
    %225 = arith.addf %222, %224 : vector<16x64xf32>
    %c0_159 = arith.constant 0 : index
    %c0_160 = arith.constant 0 : index
    %226 = vector.load %arg13[%c0_159, %c0_160] : memref<1x64xf32, #tpu.memory_space<vmem>>, vector<1x64xf32>
    %c0_161 = arith.constant 0 : index
    %c0_162 = arith.constant 0 : index
    %227 = vector.load %arg14[%c0_161, %c0_162] : memref<1x64xf32, #tpu.memory_space<vmem>>, vector<1x64xf32>
    %cst_163 = arith.constant dense<0.000000e+00> : vector<16xf32>
    %228 = vector.multi_reduction <add>, %225, %cst_163 [1] : vector<16x64xf32> to vector<16xf32>
    %229 = vector.shape_cast %228 : vector<16xf32> to vector<16x1xf32>
    %cst_164 = arith.constant 6.400000e+01 : f32
    %230 = vector.broadcast %cst_164 : f32 to vector<16x1xf32>
    %231 = arith.divf %229, %230 : vector<16x1xf32>
    %232 = vector.broadcast %231 : vector<16x1xf32> to vector<16x64xf32>
    %233 = arith.subf %225, %232 : vector<16x64xf32>
    %234 = arith.mulf %233, %233 : vector<16x64xf32>
    %cst_165 = arith.constant dense<0.000000e+00> : vector<16xf32>
    %235 = vector.multi_reduction <add>, %234, %cst_165 [1] : vector<16x64xf32> to vector<16xf32>
    %236 = vector.shape_cast %235 : vector<16xf32> to vector<16x1xf32>
    %cst_166 = arith.constant 6.400000e+01 : f32
    %237 = vector.broadcast %cst_166 : f32 to vector<16x1xf32>
    %238 = arith.divf %236, %237 : vector<16x1xf32>
    %239 = vector.broadcast %231 : vector<16x1xf32> to vector<16x64xf32>
    %240 = arith.subf %225, %239 : vector<16x64xf32>
    %cst_167 = arith.constant 9.99999974E-6 : f32
    %241 = vector.broadcast %cst_167 : f32 to vector<16x1xf32>
    %242 = arith.addf %238, %241 : vector<16x1xf32>
    %243 = math.rsqrt %242 : vector<16x1xf32>
    %244 = vector.broadcast %243 : vector<16x1xf32> to vector<16x64xf32>
    %245 = arith.mulf %240, %244 : vector<16x64xf32>
    %246 = vector.broadcast %226 : vector<1x64xf32> to vector<16x64xf32>
    %247 = arith.mulf %245, %246 : vector<16x64xf32>
    %248 = vector.broadcast %227 : vector<1x64xf32> to vector<16x64xf32>
    %249 = arith.addf %247, %248 : vector<16x64xf32>
    %c0_168 = arith.constant 0 : index
    %c0_169 = arith.constant 0 : index
    %250 = vector.load %arg15[%c0_168, %c0_169] : memref<64x256xf32, #tpu.memory_space<vmem>>, vector<64x256xf32>
    %cst_170 = arith.constant dense<0.000000e+00> : vector<16x256xf32>
    %251 = tpu.matmul %249, %250, %cst_170 {dimension_numbers = #tpu.dot_dimension_numbers<[1], [0], [0], [1], [0, 0, 1, 1], [], []>} : vector<16x64xf32>, vector<64x256xf32>, vector<16x256xf32> -> vector<16x256xf32>
    %c0_171 = arith.constant 0 : index
    %c0_172 = arith.constant 0 : index
    %252 = vector.load %arg16[%c0_171, %c0_172] : memref<1x256xf32, #tpu.memory_space<vmem>>, vector<1x256xf32>
    %253 = vector.broadcast %252 : vector<1x256xf32> to vector<16x256xf32>
    %254 = arith.addf %251, %253 : vector<16x256xf32>
    %cst_173 = arith.constant 5.000000e-01 : f32
    %255 = vector.broadcast %cst_173 : f32 to vector<16x256xf32>
    %256 = arith.mulf %255, %254 : vector<16x256xf32>
    %cst_174 = arith.constant 4.471500e-02 : f32
    %257 = vector.broadcast %cst_174 : f32 to vector<16x256xf32>
    %258 = arith.mulf %257, %254 : vector<16x256xf32>
    %259 = arith.mulf %258, %254 : vector<16x256xf32>
    %260 = arith.mulf %259, %254 : vector<16x256xf32>
    %261 = arith.addf %254, %260 : vector<16x256xf32>
    %cst_175 = arith.constant 0.797884583 : f32
    %262 = vector.broadcast %cst_175 : f32 to vector<16x256xf32>
    %263 = arith.mulf %262, %261 : vector<16x256xf32>
    %264 = math.tanh %263 : vector<16x256xf32>
    %cst_176 = arith.constant 1.000000e+00 : f32
    %265 = vector.broadcast %cst_176 : f32 to vector<16x256xf32>
    %266 = arith.addf %265, %264 : vector<16x256xf32>
    %267 = arith.mulf %256, %266 : vector<16x256xf32>
    %c0_177 = arith.constant 0 : index
    %c0_178 = arith.constant 0 : index
    %268 = vector.load %arg17[%c0_177, %c0_178] : memref<256x64xf32, #tpu.memory_space<vmem>>, vector<256x64xf32>
    %cst_179 = arith.constant dense<0.000000e+00> : vector<16x64xf32>
    %269 = tpu.matmul %267, %268, %cst_179 {dimension_numbers = #tpu.dot_dimension_numbers<[1], [0], [0], [1], [0, 0, 1, 1], [], []>} : vector<16x256xf32>, vector<256x64xf32>, vector<16x64xf32> -> vector<16x64xf32>
    %c0_180 = arith.constant 0 : index
    %c0_181 = arith.constant 0 : index
    %270 = vector.load %arg18[%c0_180, %c0_181] : memref<1x64xf32, #tpu.memory_space<vmem>>, vector<1x64xf32>
    %271 = vector.broadcast %270 : vector<1x64xf32> to vector<16x64xf32>
    %272 = arith.addf %269, %271 : vector<16x64xf32>
    %273 = arith.addf %225, %272 : vector<16x64xf32>
    %c0_182 = arith.constant 0 : index
    %c0_183 = arith.constant 0 : index
    %c0_184 = arith.constant 0 : index
    %274 = vector.load %arg19[%c0_182, %c0_183, %c0_184] : memref<1x16x64xf32, #tpu.memory_space<vmem>>, vector<1x16x64xf32>
    %275 = vector.shape_cast %274 : vector<1x16x64xf32> to vector<16x64xf32>
    %276 = vector.shape_cast %273 : vector<16x64xf32> to vector<1x16x64xf32>
    tpu.vector_store %arg19[%c0_182, %c0_183, %c0_184], %276 {strides = array<i32>} : memref<1x16x64xf32, #tpu.memory_space<vmem>>, vector<1x16x64xf32>,
    return
  }
  func.func @transform_0(%arg0: i32, %arg1: i32) -> (i32, i32, i32) {
    %c0_i32 = arith.constant 0 : i32
    %c0_i32_0 = arith.constant 0 : i32
    return %arg0, %arg1, %c0_i32 : i32, i32, i32
  }
  func.func @transform_1(%arg0: i32, %arg1: i32) -> (i32, i32, i32) {
    %c0_i32 = arith.constant 0 : i32
    %c0_i32_0 = arith.constant 0 : i32
    %c0_i32_1 = arith.constant 0 : i32
    return %arg0, %c0_i32, %c0_i32_0 : i32, i32, i32
  }
  func.func @transform_2(%arg0: i32, %arg1: i32) -> (i32, i32) {
    %c0_i32 = arith.constant 0 : i32
    %c0_i32_0 = arith.constant 0 : i32
    %c0_i32_1 = arith.constant 0 : i32
    return %c0_i32, %c0_i32_0 : i32, i32
  }
  func.func @transform_3(%arg0: i32, %arg1: i32) -> (i32, i32) {
    %c0_i32 = arith.constant 0 : i32
    %c0_i32_0 = arith.constant 0 : i32
    %c0_i32_1 = arith.constant 0 : i32
    return %c0_i32, %c0_i32_0 : i32, i32
  }
  func.func @transform_4(%arg0: i32, %arg1: i32) -> (i32, i32) {
    %c0_i32 = arith.constant 0 : i32
    %c0_i32_0 = arith.constant 0 : i32
    %c0_i32_1 = arith.constant 0 : i32
    return %c0_i32, %c0_i32_0 : i32, i32
  }
  func.func @transform_5(%arg0: i32, %arg1: i32) -> (i32, i32) {
    %c0_i32 = arith.constant 0 : i32
    %c0_i32_0 = arith.constant 0 : i32
    %c0_i32_1 = arith.constant 0 : i32
    return %c0_i32, %c0_i32_0 : i32, i32
  }
  func.func @transform_6(%arg0: i32, %arg1: i32) -> (i32, i32, i32) {
    %c0_i32 = arith.constant 0 : i32
    %c0_i32_0 = arith.constant 0 : i32
    %c0_i32_1 = arith.constant 0 : i32
    %c0_i32_2 = arith.constant 0 : i32
    return %c0_i32, %c0_i32_0, %c0_i32_1 : i32, i32, i32
  }
  func.func @transform_7(%arg0: i32, %arg1: i32) -> (i32, i32, i32) {
    %c0_i32 = arith.constant 0 : i32
    %c0_i32_0 = arith.constant 0 : i32
    %c0_i32_1 = arith.constant 0 : i32
    %c0_i32_2 = arith.constant 0 : i32
    return %c0_i32, %c0_i32_0, %c0_i32_1 : i32, i32, i32
  }
  func.func @transform_8(%arg0: i32, %arg1: i32) -> (i32, i32, i32) {
    %c0_i32 = arith.constant 0 : i32
    %c0_i32_0 = arith.constant 0 : i32
    %c0_i32_1 = arith.constant 0 : i32
    %c0_i32_2 = arith.constant 0 : i32
    return %c0_i32, %c0_i32_0, %c0_i32_1 : i32, i32, i32
  }
  func.func @transform_9(%arg0: i32, %arg1: i32) -> (i32, i32, i32) {
    %c0_i32 = arith.constant 0 : i32
    %c0_i32_0 = arith.constant 0 : i32
    %c0_i32_1 = arith.constant 0 : i32
    %c0_i32_2 = arith.constant 0 : i32
    return %c0_i32, %c0_i32_0, %c0_i32_1 : i32, i32, i32
  }
  func.func @transform_10(%arg0: i32, %arg1: i32) -> (i32, i32) {
    %c0_i32 = arith.constant 0 : i32
    %c0_i32_0 = arith.constant 0 : i32
    %c0_i32_1 = arith.constant 0 : i32
    return %c0_i32, %c0_i32_0 : i32, i32
  }
  func.func @transform_11(%arg0: i32, %arg1: i32) -> (i32, i32) {
    %c0_i32 = arith.constant 0 : i32
    %c0_i32_0 = arith.constant 0 : i32
    %c0_i32_1 = arith.constant 0 : i32
    return %c0_i32, %c0_i32_0 : i32, i32
  }
  func.func @transform_12(%arg0: i32, %arg1: i32) -> (i32, i32) {
    %c0_i32 = arith.constant 0 : i32
    %c0_i32_0 = arith.constant 0 : i32
    %c0_i32_1 = arith.constant 0 : i32
    return %c0_i32, %c0_i32_0 : i32, i32
  }
  func.func @transform_13(%arg0: i32, %arg1: i32) -> (i32, i32) {
    %c0_i32 = arith.constant 0 : i32
    %c0_i32_0 = arith.constant 0 : i32
    %c0_i32_1 = arith.constant 0 : i32
    return %c0_i32, %c0_i32_0 : i32, i32
  }
  func.func @transform_14(%arg0: i32, %arg1: i32) -> (i32, i32) {
    %c0_i32 = arith.constant 0 : i32
    %c0_i32_0 = arith.constant 0 : i32
    %c0_i32_1 = arith.constant 0 : i32
    return %c0_i32, %c0_i32_0 : i32, i32
  }
  func.func @transform_15(%arg0: i32, %arg1: i32) -> (i32, i32) {
    %c0_i32 = arith.constant 0 : i32
    %c0_i32_0 = arith.constant 0 : i32
    %c0_i32_1 = arith.constant 0 : i32
    return %c0_i32, %c0_i32_0 : i32, i32
  }
  func.func @transform_16(%arg0: i32, %arg1: i32) -> (i32, i32) {
    %c0_i32 = arith.constant 0 : i32
    %c0_i32_0 = arith.constant 0 : i32
    %c0_i32_1 = arith.constant 0 : i32
    return %c0_i32, %c0_i32_0 : i32, i32
  }
  func.func @transform_17(%arg0: i32, %arg1: i32) -> (i32, i32, i32) {
    %c0_i32 = arith.constant 0 : i32
    %c0_i32_0 = arith.constant 0 : i32
    return %arg0, %arg1, %c0_i32 : i32, i32, i32
  }
}

</mosaic_0001>

<llo_original>
// kernel: tpu_custom_call.1
$region0: #{tpu_custom_call.1}
  #allocation0 [shape = 'u32[]', space=smem, size = 0x4, offset = 0x4, fixed_abs, tag = 'smem constant byte address 0x4 - core index']
  #allocation1 [shape = 'u32[144,128]{1,0:T(1,128)}', space=vmem, size = 0x12000, scoped, tag = 'internal scratch']
  #allocation2 [shape = 'f32[8,8,8]{2,1,0:T(8,128)}', space=vmem, size = 0x8000, scoped, tag = 'scratch operand']
  #allocation3 [shape = 'f32[8,8,8]{2,1,0:T(8,128)}', space=vmem, size = 0x8000, scoped, tag = 'scratch operand']
  %s0 = inlined_call_operand.vmem [shape: f32[2,16,64], index: 0, kind: input, shape index: {}]
  %s1 = inlined_call_operand.vmem [shape: f32[2,8,64], index: 1, kind: input, shape index: {}]
  %s2 = inlined_call_operand.vmem [shape: f32[1,64], index: 2, kind: input, shape index: {}]
  %s3 = inlined_call_operand.vmem [shape: f32[1,64], index: 3, kind: input, shape index: {}]
  %s4 = inlined_call_operand.vmem [shape: f32[1,64], index: 4, kind: input, shape index: {}]
  %s5 = inlined_call_operand.vmem [shape: f32[1,64], index: 5, kind: input, shape index: {}]
  %s6 = inlined_call_operand.vmem [shape: f32[8,64,8], index: 6, kind: input, shape index: {}]
  %s7 = inlined_call_operand.vmem [shape: f32[8,64,8], index: 7, kind: input, shape index: {}]
  %s8 = inlined_call_operand.vmem [shape: f32[8,64,8], index: 8, kind: input, shape index: {}]
  %s9 = inlined_call_operand.vmem [shape: f32[8,8,64], index: 9, kind: input, shape index: {}]
  %s10 = inlined_call_operand.vmem [shape: f32[1,64], index: 10, kind: input, shape index: {}]
  %s11 = inlined_call_operand.vmem [shape: f32[1,64], index: 11, kind: input, shape index: {}]
  %s12 = inlined_call_operand.vmem [shape: f32[1,64], index: 12, kind: input, shape index: {}]
  %s13 = inlined_call_operand.vmem [shape: f32[64,256], index: 13, kind: input, shape index: {}]
  %s14 = inlined_call_operand.vmem [shape: f32[1,256], index: 14, kind: input, shape index: {}]
  %s15 = inlined_call_operand.vmem [shape: f32[256,64], index: 15, kind: input, shape index: {}]
  %s16 = inlined_call_operand.vmem [shape: f32[1,64], index: 16, kind: input, shape index: {}]
  %s17 = inlined_call_operand.hbm [shape: f32[2,16,64], index: 17, kind: output, shape index: {}]
  %s18 = sld [smem:[#allocation0]]
  $region105: #{tpu_custom_call.1} parent=0
    _
  %s20 = ssub.s32 1, %s18
  %s21 = scalar_select 0, %s20, %s18
  $region1: #{tpu_custom_call.1} parent=0
    #allocation4 [shape = 'u8[16384]{0}', space=vmem, size = 0x4000, scoped, tag = 'output window, operand 0']
    #allocation5 [shape = 's32[2]{0}', space=sflag, size = 0x8, scoped, tag = 'scoped memory for tpu_custom_call.1']
    %22 = vsyncpa [#allocation5], 0
    %s23 = scalar_lea.sflag [#allocation5], 1
    %24 = vsyncpa %s23, 0
    loop: start=0, step=1, limit=4
    $region2: #{tpu_custom_call.1} parent=1 // loop_pre_header
      _
    $region3: #{tpu_custom_call.1} parent=1 // loop_header
      %s26 = sphi 0, %s30
      %p27 = scmp.ge.s32.totalorder %s26, 4
      %s33 = sphi 0, %s45
      %s34 = sphi 0, %s41
      %s35 = sphi 0, %s33
      %s36 = sphi 0, %s34
      %s37 = sphi 0, %s35
      %s38 = sphi 0, %s36
      %s50 = sphi 0, %s52
      %s53 = sphi 0, %s50
      %s54 = sphi 0, %s53
      %s70 = sphi 0, %s54
      %s76 = sphi 0, %s78
      %s79 = sphi 0, %s76
      %s80 = sphi 0, %s79
      %s96 = sphi 0, %s80
      %s100 = sphi 0, %s100
      %s102 = sphi 0, %s100
      %s103 = sphi 0, %s102
      %s117 = sphi 0, %s103
      %s121 = sphi 0, %s121
      %s123 = sphi 0, %s121
      %s124 = sphi 0, %s123
      %s138 = sphi 0, %s124
      %s142 = sphi 0, %s142
      %s144 = sphi 0, %s142
      %s145 = sphi 0, %s144
      %s159 = sphi 0, %s145
      %s163 = sphi 0, %s163
      %s165 = sphi 0, %s163
      %s166 = sphi 0, %s165
      %s180 = sphi 0, %s166
      %s184 = sphi 0, %s184
      %s186 = sphi 0, %s184
      %s187 = sphi 0, %s186
      %s201 = sphi 0, %s187
      %s205 = sphi 0, %s205
      %s207 = sphi 0, %s205
      %s208 = sphi 0, %s207
      %s222 = sphi 0, %s208
      %s226 = sphi 0, %s226
      %s228 = sphi 0, %s226
      %s229 = sphi 0, %s228
      %s243 = sphi 0, %s229
      %s247 = sphi 0, %s247
      %s249 = sphi 0, %s247
      %s250 = sphi 0, %s249
      %s264 = sphi 0, %s250
      %s268 = sphi 0, %s268
      %s270 = sphi 0, %s268
      %s271 = sphi 0, %s270
      %s285 = sphi 0, %s271
      %s289 = sphi 0, %s289
      %s291 = sphi 0, %s289
      %s292 = sphi 0, %s291
      %s306 = sphi 0, %s292
      %s310 = sphi 0, %s310
      %s312 = sphi 0, %s310
      %s313 = sphi 0, %s312
      %s327 = sphi 0, %s313
      %s331 = sphi 0, %s331
      %s333 = sphi 0, %s331
      %s334 = sphi 0, %s333
      %s348 = sphi 0, %s334
      %s352 = sphi 0, %s352
      %s354 = sphi 0, %s352
      %s355 = sphi 0, %s354
      %s369 = sphi 0, %s355
      %s373 = sphi 0, %s373
      %s375 = sphi 0, %s373
      %s376 = sphi 0, %s375
      %s390 = sphi 0, %s376
      %s394 = sphi 0, %s394
      %s396 = sphi 0, %s394
      %s397 = sphi 0, %s396
      %s411 = sphi 0, %s397
      %s419 = sphi 0, %s421
      %s422 = sphi 0, %s419
      %s423 = sphi 0, %s422
      %s439 = sphi 0, %s423
    $region4: #{tpu_custom_call.1} parent=1 // loop_header_branch
      %29 = sbr.rel (%p27) target = $region8
    $region5: #{tpu_custom_call.1} parent=1 // loop_body
      %s31 = ssub.s32 %s26, 1
      %s32 = ssub.s32 %s26, 2
      %s39 = sadd.s32 1, %s34
      %p40 = scmp.ge.s32.totalorder %s39, 1
      %s41 = scalar_select %p40, 0, %s39
      %s42 = sadd.s32 1, %s33
      %s43 = scalar_select %p40, %s42, %s33
      %p44 = scmp.ge.s32.totalorder %s43, 2
      %s45 = scalar_select %p44, 0, %s43
      %s46 = ssub.s32 %s33, %s45
      %s47 = ssub.s32 %s34, %s41
      %s48 = sor.u32 %s46, %s47
      %p49 = scmp.eq.s32.totalorder %s48, 0
      %s51 = sadd.s32 %s50, 1
      %s52 = scalar_select %p49, %s50, %s51
      %p55 = pneg %p49
      %p56 = scmp.eq.s32.totalorder %s26, 1
      %p57 = por %p55, %p56
      %p58 = scmp.ne.s32.totalorder %s50, %s53
      %p59 = scmp.eq.s32.totalorder %s26, 0
      %p60 = por %p58, %p59
      %p61 = scmp.ne.s32.totalorder %s50, %s53
      %p62 = scmp.eq.s32.totalorder %s31, 1
      %p63 = por %p61, %p62
      %p64 = scmp.ne.s32.totalorder %s53, %s54
      %p65 = scmp.eq.s32.totalorder %s31, 0
      %p66 = por %p64, %p65
      %p67 = scmp.ne.s32.totalorder %s53, %s54
      %p68 = scmp.eq.s32.totalorder %s32, 1
      %p69 = por %p67, %p68
      %p71 = scmp.ne.s32.totalorder %s54, %s70
      %p72 = scmp.eq.s32.totalorder %s32, 0
      %p73 = por %p71, %p72
      %s74 = ssub.s32 %s33, %s45
      %p75 = scmp.eq.s32.totalorder %s74, 0
      %s77 = sadd.s32 %s76, 1
      %s78 = scalar_select %p75, %s76, %s77
      %p81 = pneg %p75
      %p82 = scmp.eq.s32.totalorder %s26, 1
      %p83 = por %p81, %p82
      %p84 = scmp.ne.s32.totalorder %s76, %s79
      %p85 = scmp.eq.s32.totalorder %s26, 0
      %p86 = por %p84, %p85
      %p87 = scmp.ne.s32.totalorder %s76, %s79
      %p88 = scmp.eq.s32.totalorder %s31, 1
      %p89 = por %p87, %p88
      %p90 = scmp.ne.s32.totalorder %s79, %s80
      %p91 = scmp.eq.s32.totalorder %s31, 0
      %p92 = por %p90, %p91
      %p93 = scmp.ne.s32.totalorder %s79, %s80
      %p94 = scmp.eq.s32.totalorder %s32, 1
      %p95 = por %p93, %p94
      %p97 = scmp.ne.s32.totalorder %s80, %s96
      %p98 = scmp.eq.s32.totalorder %s32, 0
      %p99 = por %p97, %p98
      %s101 = sadd.s32 %s100, 1
      %p104 = scmp.eq.s32.totalorder %s26, 1
      %p105 = scmp.ne.s32.totalorder %s100, %s102
      %p106 = scmp.eq.s32.totalorder %s26, 0
      %p107 = por %p105, %p106
      %p108 = scmp.ne.s32.totalorder %s100, %s102
      %p109 = scmp.eq.s32.totalorder %s31, 1
      %p110 = por %p108, %p109
      %p111 = scmp.ne.s32.totalorder %s102, %s103
      %p112 = scmp.eq.s32.totalorder %s31, 0
      %p113 = por %p111, %p112
      %p114 = scmp.ne.s32.totalorder %s102, %s103
      %p115 = scmp.eq.s32.totalorder %s32, 1
      %p116 = por %p114, %p115
      %p118 = scmp.ne.s32.totalorder %s103, %s117
      %p119 = scmp.eq.s32.totalorder %s32, 0
      %p120 = por %p118, %p119
      %s122 = sadd.s32 %s121, 1
      %p125 = scmp.eq.s32.totalorder %s26, 1
      %p126 = scmp.ne.s32.totalorder %s121, %s123
      %p127 = scmp.eq.s32.totalorder %s26, 0
      %p128 = por %p126, %p127
      %p129 = scmp.ne.s32.totalorder %s121, %s123
      %p130 = scmp.eq.s32.totalorder %s31, 1
      %p131 = por %p129, %p130
      %p132 = scmp.ne.s32.totalorder %s123, %s124
      %p133 = scmp.eq.s32.totalorder %s31, 0
      %p134 = por %p132, %p133
      %p135 = scmp.ne.s32.totalorder %s123, %s124
      %p136 = scmp.eq.s32.totalorder %s32, 1
      %p137 = por %p135, %p136
      %p139 = scmp.ne.s32.totalorder %s124, %s138
      %p140 = scmp.eq.s32.totalorder %s32, 0
      %p141 = por %p139, %p140
      %s143 = sadd.s32 %s142, 1
      %p146 = scmp.eq.s32.totalorder %s26, 1
      %p147 = scmp.ne.s32.totalorder %s142, %s144
      %p148 = scmp.eq.s32.totalorder %s26, 0
      %p149 = por %p147, %p148
      %p150 = scmp.ne.s32.totalorder %s142, %s144
      %p151 = scmp.eq.s32.totalorder %s31, 1
      %p152 = por %p150, %p151
      %p153 = scmp.ne.s32.totalorder %s144, %s145
      %p154 = scmp.eq.s32.totalorder %s31, 0
      %p155 = por %p153, %p154
      %p156 = scmp.ne.s32.totalorder %s144, %s145
      %p157 = scmp.eq.s32.totalorder %s32, 1
      %p158 = por %p156, %p157
      %p160 = scmp.ne.s32.totalorder %s145, %s159
      %p161 = scmp.eq.s32.totalorder %s32, 0
      %p162 = por %p160, %p161
      %s164 = sadd.s32 %s163, 1
      %p167 = scmp.eq.s32.totalorder %s26, 1
      %p168 = scmp.ne.s32.totalorder %s163, %s165
      %p169 = scmp.eq.s32.totalorder %s26, 0
      %p170 = por %p168, %p169
      %p171 = scmp.ne.s32.totalorder %s163, %s165
      %p172 = scmp.eq.s32.totalorder %s31, 1
      %p173 = por %p171, %p172
      %p174 = scmp.ne.s32.totalorder %s165, %s166
      %p175 = scmp.eq.s32.totalorder %s31, 0
      %p176 = por %p174, %p175
      %p177 = scmp.ne.s32.totalorder %s165, %s166
      %p178 = scmp.eq.s32.totalorder %s32, 1
      %p179 = por %p177, %p178
      %p181 = scmp.ne.s32.totalorder %s166, %s180
      %p182 = scmp.eq.s32.totalorder %s32, 0
      %p183 = por %p181, %p182
      %s185 = sadd.s32 %s184, 1
      %p188 = scmp.eq.s32.totalorder %s26, 1
      %p189 = scmp.ne.s32.totalorder %s184, %s186
      %p190 = scmp.eq.s32.totalorder %s26, 0
      %p191 = por %p189, %p190
      %p192 = scmp.ne.s32.totalorder %s184, %s186
      %p193 = scmp.eq.s32.totalorder %s31, 1
      %p194 = por %p192, %p193
      %p195 = scmp.ne.s32.totalorder %s186, %s187
      %p196 = scmp.eq.s32.totalorder %s31, 0
      %p197 = por %p195, %p196
      %p198 = scmp.ne.s32.totalorder %s186, %s187
      %p199 = scmp.eq.s32.totalorder %s32, 1
      %p200 = por %p198, %p199
      %p202 = scmp.ne.s32.totalorder %s187, %s201
      %p203 = scmp.eq.s32.totalorder %s32, 0
      %p204 = por %p202, %p203
      %s206 = sadd.s32 %s205, 1
      %p209 = scmp.eq.s32.totalorder %s26, 1
      %p210 = scmp.ne.s32.totalorder %s205, %s207
      %p211 = scmp.eq.s32.totalorder %s26, 0
      %p212 = por %p210, %p211
      %p213 = scmp.ne.s32.totalorder %s205, %s207
      %p214 = scmp.eq.s32.totalorder %s31, 1
      %p215 = por %p213, %p214
      %p216 = scmp.ne.s32.totalorder %s207, %s208
      %p217 = scmp.eq.s32.totalorder %s31, 0
      %p218 = por %p216, %p217
      %p219 = scmp.ne.s32.totalorder %s207, %s208
      %p220 = scmp.eq.s32.totalorder %s32, 1
      %p221 = por %p219, %p220
      %p223 = scmp.ne.s32.totalorder %s208, %s222
      %p224 = scmp.eq.s32.totalorder %s32, 0
      %p225 = por %p223, %p224
      %s227 = sadd.s32 %s226, 1
      %p230 = scmp.eq.s32.totalorder %s26, 1
      %p231 = scmp.ne.s32.totalorder %s226, %s228
      %p232 = scmp.eq.s32.totalorder %s26, 0
      %p233 = por %p231, %p232
      %p234 = scmp.ne.s32.totalorder %s226, %s228
      %p235 = scmp.eq.s32.totalorder %s31, 1
      %p236 = por %p234, %p235
      %p237 = scmp.ne.s32.totalorder %s228, %s229
      %p238 = scmp.eq.s32.totalorder %s31, 0
      %p239 = por %p237, %p238
      %p240 = scmp.ne.s32.totalorder %s228, %s229
      %p241 = scmp.eq.s32.totalorder %s32, 1
      %p242 = por %p240, %p241
      %p244 = scmp.ne.s32.totalorder %s229, %s243
      %p245 = scmp.eq.s32.totalorder %s32, 0
      %p246 = por %p244, %p245
      %s248 = sadd.s32 %s247, 1
      %p251 = scmp.eq.s32.totalorder %s26, 1
      %p252 = scmp.ne.s32.totalorder %s247, %s249
      %p253 = scmp.eq.s32.totalorder %s26, 0
      %p254 = por %p252, %p253
      %p255 = scmp.ne.s32.totalorder %s247, %s249
      %p256 = scmp.eq.s32.totalorder %s31, 1
      %p257 = por %p255, %p256
      %p258 = scmp.ne.s32.totalorder %s249, %s250
      %p259 = scmp.eq.s32.totalorder %s31, 0
      %p260 = por %p258, %p259
      %p261 = scmp.ne.s32.totalorder %s249, %s250
      %p262 = scmp.eq.s32.totalorder %s32, 1
      %p263 = por %p261, %p262
      %p265 = scmp.ne.s32.totalorder %s250, %s264
      %p266 = scmp.eq.s32.totalorder %s32, 0
      %p267 = por %p265, %p266
      %s269 = sadd.s32 %s268, 1
      %p272 = scmp.eq.s32.totalorder %s26, 1
      %p273 = scmp.ne.s32.totalorder %s268, %s270
      %p274 = scmp.eq.s32.totalorder %s26, 0
      %p275 = por %p273, %p274
      %p276 = scmp.ne.s32.totalorder %s268, %s270
      %p277 = scmp.eq.s32.totalorder %s31, 1
      %p278 = por %p276, %p277
      %p279 = scmp.ne.s32.totalorder %s270, %s271
      %p280 = scmp.eq.s32.totalorder %s31, 0
      %p281 = por %p279, %p280
      %p282 = scmp.ne.s32.totalorder %s270, %s271
      %p283 = scmp.eq.s32.totalorder %s32, 1
      %p284 = por %p282, %p283
      %p286 = scmp.ne.s32.totalorder %s271, %s285
      %p287 = scmp.eq.s32.totalorder %s32, 0
      %p288 = por %p286, %p287
      %s290 = sadd.s32 %s289, 1
      %p293 = scmp.eq.s32.totalorder %s26, 1
      %p294 = scmp.ne.s32.totalorder %s289, %s291
      %p295 = scmp.eq.s32.totalorder %s26, 0
      %p296 = por %p294, %p295
      %p297 = scmp.ne.s32.totalorder %s289, %s291
      %p298 = scmp.eq.s32.totalorder %s31, 1
      %p299 = por %p297, %p298
      %p300 = scmp.ne.s32.totalorder %s291, %s292
      %p301 = scmp.eq.s32.totalorder %s31, 0
      %p302 = por %p300, %p301
      %p303 = scmp.ne.s32.totalorder %s291, %s292
      %p304 = scmp.eq.s32.totalorder %s32, 1
      %p305 = por %p303, %p304
      %p307 = scmp.ne.s32.totalorder %s292, %s306
      %p308 = scmp.eq.s32.totalorder %s32, 0
      %p309 = por %p307, %p308
      %s311 = sadd.s32 %s310, 1
      %p314 = scmp.eq.s32.totalorder %s26, 1
      %p315 = scmp.ne.s32.totalorder %s310, %s312
      %p316 = scmp.eq.s32.totalorder %s26, 0
      %p317 = por %p315, %p316
      %p318 = scmp.ne.s32.totalorder %s310, %s312
      %p319 = scmp.eq.s32.totalorder %s31, 1
      %p320 = por %p318, %p319
      %p321 = scmp.ne.s32.totalorder %s312, %s313
      %p322 = scmp.eq.s32.totalorder %s31, 0
      %p323 = por %p321, %p322
      %p324 = scmp.ne.s32.totalorder %s312, %s313
      %p325 = scmp.eq.s32.totalorder %s32, 1
      %p326 = por %p324, %p325
      %p328 = scmp.ne.s32.totalorder %s313, %s327
      %p329 = scmp.eq.s32.totalorder %s32, 0
      %p330 = por %p328, %p329
      %s332 = sadd.s32 %s331, 1
      %p335 = scmp.eq.s32.totalorder %s26, 1
      %p336 = scmp.ne.s32.totalorder %s331, %s333
      %p337 = scmp.eq.s32.totalorder %s26, 0
      %p338 = por %p336, %p337
      %p339 = scmp.ne.s32.totalorder %s331, %s333
      %p340 = scmp.eq.s32.totalorder %s31, 1
      %p341 = por %p339, %p340
      %p342 = scmp.ne.s32.totalorder %s333, %s334
      %p343 = scmp.eq.s32.totalorder %s31, 0
      %p344 = por %p342, %p343
      %p345 = scmp.ne.s32.totalorder %s333, %s334
      %p346 = scmp.eq.s32.totalorder %s32, 1
      %p347 = por %p345, %p346
      %p349 = scmp.ne.s32.totalorder %s334, %s348
      %p350 = scmp.eq.s32.totalorder %s32, 0
      %p351 = por %p349, %p350
      %s353 = sadd.s32 %s352, 1
      %p356 = scmp.eq.s32.totalorder %s26, 1
      %p357 = scmp.ne.s32.totalorder %s352, %s354
      %p358 = scmp.eq.s32.totalorder %s26, 0
      %p359 = por %p357, %p358
      %p360 = scmp.ne.s32.totalorder %s352, %s354
      %p361 = scmp.eq.s32.totalorder %s31, 1
      %p362 = por %p360, %p361
      %p363 = scmp.ne.s32.totalorder %s354, %s355
      %p364 = scmp.eq.s32.totalorder %s31, 0
      %p365 = por %p363, %p364
      %p366 = scmp.ne.s32.totalorder %s354, %s355
      %p367 = scmp.eq.s32.totalorder %s32, 1
      %p368 = por %p366, %p367
      %p370 = scmp.ne.s32.totalorder %s355, %s369
      %p371 = scmp.eq.s32.totalorder %s32, 0
      %p372 = por %p370, %p371
      %s374 = sadd.s32 %s373, 1
      %p377 = scmp.eq.s32.totalorder %s26, 1
      %p378 = scmp.ne.s32.totalorder %s373, %s375
      %p379 = scmp.eq.s32.totalorder %s26, 0
      %p380 = por %p378, %p379
      %p381 = scmp.ne.s32.totalorder %s373, %s375
      %p382 = scmp.eq.s32.totalorder %s31, 1
      %p383 = por %p381, %p382
      %p384 = scmp.ne.s32.totalorder %s375, %s376
      %p385 = scmp.eq.s32.totalorder %s31, 0
      %p386 = por %p384, %p385
      %p387 = scmp.ne.s32.totalorder %s375, %s376
      %p388 = scmp.eq.s32.totalorder %s32, 1
      %p389 = por %p387, %p388
      %p391 = scmp.ne.s32.totalorder %s376, %s390
      %p392 = scmp.eq.s32.totalorder %s32, 0
      %p393 = por %p391, %p392
      %s395 = sadd.s32 %s394, 1
      %p398 = scmp.eq.s32.totalorder %s26, 1
      %p399 = scmp.ne.s32.totalorder %s394, %s396
      %p400 = scmp.eq.s32.totalorder %s26, 0
      %p401 = por %p399, %p400
      %p402 = scmp.ne.s32.totalorder %s394, %s396
      %p403 = scmp.eq.s32.totalorder %s31, 1
      %p404 = por %p402, %p403
      %p405 = scmp.ne.s32.totalorder %s396, %s397
      %p406 = scmp.eq.s32.totalorder %s31, 0
      %p407 = por %p405, %p406
      %p408 = scmp.ne.s32.totalorder %s396, %s397
      %p409 = scmp.eq.s32.totalorder %s32, 1
      %p410 = por %p408, %p409
      %p412 = scmp.ne.s32.totalorder %s397, %s411
      %p413 = scmp.eq.s32.totalorder %s32, 0
      %p414 = por %p412, %p413
      %s415 = ssub.s32 %s33, %s45
      %s416 = ssub.s32 %s34, %s41
      %s417 = sor.u32 %s415, %s416
      %p418 = scmp.eq.s32.totalorder %s417, 0
      %s420 = sadd.s32 %s419, 1
      %s421 = scalar_select %p418, %s419, %s420
      %p424 = pneg %p418
      %p425 = scmp.eq.s32.totalorder %s26, 1
      %p426 = por %p424, %p425
      %p427 = scmp.ne.s32.totalorder %s419, %s422
      %p428 = scmp.eq.s32.totalorder %s26, 0
      %p429 = por %p427, %p428
      %p430 = scmp.ne.s32.totalorder %s419, %s422
      %p431 = scmp.eq.s32.totalorder %s31, 1
      %p432 = por %p430, %p431
      %p433 = scmp.ne.s32.totalorder %s422, %s423
      %p434 = scmp.eq.s32.totalorder %s31, 0
      %p435 = por %p433, %p434
      %p436 = scmp.ne.s32.totalorder %s422, %s423
      %p437 = scmp.eq.s32.totalorder %s32, 1
      %p438 = por %p436, %p437
      %p440 = scmp.ne.s32.totalorder %s423, %s439
      %p441 = scmp.eq.s32.totalorder %s32, 0
      %p442 = por %p440, %p441
      %p443 = scmp.le.s32.totalorder 1, %s26
      %p444 = scmp.lt.s32.totalorder %s26, 3
      %p445 = pnand %p443, %p444
      %p446 = pneg %p445
      // Predicated region
      $region9: #{tpu_custom_call.1} parent=5 // pred_check
        _
      $region10: #{tpu_custom_call.1} parent=5 // pred_check_branch
        %448 = sbr.rel (%p445) target = $region12
      $region11: #{tpu_custom_call.1} parent=5 // pred_region
        %s449 = ssub.s32 %s26, 1
        // Predicated region
        $region13: #{tpu_custom_call.1} parent=11 // pred_check
          %p450 = pneg %p113
        $region14: #{tpu_custom_call.1} parent=11 // pred_check_branch
          %452 = sbr.rel (%p450) target = $region16
        $region15: #{tpu_custom_call.1} parent=11 // pred_region
          _
        $region16: #{tpu_custom_call.1} parent=11 // pred_fallthru
          _
        // Predicated region
        $region17: #{tpu_custom_call.1} parent=11 // pred_check
          %p453 = pneg %p134
        $region18: #{tpu_custom_call.1} parent=11 // pred_check_branch
          %455 = sbr.rel (%p453) target = $region20
        $region19: #{tpu_custom_call.1} parent=11 // pred_region
          _
        $region20: #{tpu_custom_call.1} parent=11 // pred_fallthru
          _
        // Predicated region
        $region21: #{tpu_custom_call.1} parent=11 // pred_check
          %p456 = pneg %p155
        $region22: #{tpu_custom_call.1} parent=11 // pred_check_branch
          %458 = sbr.rel (%p456) target = $region24
        $region23: #{tpu_custom_call.1} parent=11 // pred_region
          _
        $region24: #{tpu_custom_call.1} parent=11 // pred_fallthru
          _
        // Predicated region
        $region25: #{tpu_custom_call.1} parent=11 // pred_check
          %p459 = pneg %p176
        $region26: #{tpu_custom_call.1} parent=11 // pred_check_branch
          %461 = sbr.rel (%p459) target = $region28
        $region27: #{tpu_custom_call.1} parent=11 // pred_region
          _
        $region28: #{tpu_custom_call.1} parent=11 // pred_fallthru
          _
        // Predicated region
        $region29: #{tpu_custom_call.1} parent=11 // pred_check
          %p462 = pneg %p197
        $region30: #{tpu_custom_call.1} parent=11 // pred_check_branch
          %464 = sbr.rel (%p462) target = $region32
        $region31: #{tpu_custom_call.1} parent=11 // pred_region
          _
        $region32: #{tpu_custom_call.1} parent=11 // pred_fallthru
          _
        // Predicated region
        $region33: #{tpu_custom_call.1} parent=11 // pred_check
          %p465 = pneg %p218
        $region34: #{tpu_custom_call.1} parent=11 // pred_check_branch
          %467 = sbr.rel (%p465) target = $region36
        $region35: #{tpu_custom_call.1} parent=11 // pred_region
          _
        $region36: #{tpu_custom_call.1} parent=11 // pred_fallthru
          _
        // Predicated region
        $region37: #{tpu_custom_call.1} parent=11 // pred_check
          %p468 = pneg %p239
        $region38: #{tpu_custom_call.1} parent=11 // pred_check_branch
          %470 = sbr.rel (%p468) target = $region40
        $region39: #{tpu_custom_call.1} parent=11 // pred_region
          _
        $region40: #{tpu_custom_call.1} parent=11 // pred_fallthru
          _
        // Predicated region
        $region41: #{tpu_custom_call.1} parent=11 // pred_check
          %p471 = pneg %p260
        $region42: #{tpu_custom_call.1} parent=11 // pred_check_branch
          %473 = sbr.rel (%p471) target = $region44
        $region43: #{tpu_custom_call.1} parent=11 // pred_region
          _
        $region44: #{tpu_custom_call.1} parent=11 // pred_fallthru
          _
        // Predicated region
        $region45: #{tpu_custom_call.1} parent=11 // pred_check
          %p474 = pneg %p281
        $region46: #{tpu_custom_call.1} parent=11 // pred_check_branch
          %476 = sbr.rel (%p474) target = $region48
        $region47: #{tpu_custom_call.1} parent=11 // pred_region
          _
        $region48: #{tpu_custom_call.1} parent=11 // pred_fallthru
          _
        // Predicated region
        $region49: #{tpu_custom_call.1} parent=11 // pred_check
          %p477 = pneg %p302
        $region50: #{tpu_custom_call.1} parent=11 // pred_check_branch
          %479 = sbr.rel (%p477) target = $region52
        $region51: #{tpu_custom_call.1} parent=11 // pred_region
          _
        $region52: #{tpu_custom_call.1} parent=11 // pred_fallthru
          _
        // Predicated region
        $region53: #{tpu_custom_call.1} parent=11 // pred_check
          %p480 = pneg %p323
        $region54: #{tpu_custom_call.1} parent=11 // pred_check_branch
          %482 = sbr.rel (%p480) target = $region56
        $region55: #{tpu_custom_call.1} parent=11 // pred_region
          _
        $region56: #{tpu_custom_call.1} parent=11 // pred_fallthru
          _
        // Predicated region
        $region57: #{tpu_custom_call.1} parent=11 // pred_check
          %p483 = pneg %p344
        $region58: #{tpu_custom_call.1} parent=11 // pred_check_branch
          %485 = sbr.rel (%p483) target = $region60
        $region59: #{tpu_custom_call.1} parent=11 // pred_region
          _
        $region60: #{tpu_custom_call.1} parent=11 // pred_fallthru
          _
        // Predicated region
        $region61: #{tpu_custom_call.1} parent=11 // pred_check
          %p486 = pneg %p365
        $region62: #{tpu_custom_call.1} parent=11 // pred_check_branch
          %488 = sbr.rel (%p486) target = $region64
        $region63: #{tpu_custom_call.1} parent=11 // pred_region
          _
        $region64: #{tpu_custom_call.1} parent=11 // pred_fallthru
          _
        // Predicated region
        $region65: #{tpu_custom_call.1} parent=11 // pred_check
          %p489 = pneg %p386
        $region66: #{tpu_custom_call.1} parent=11 // pred_check_branch
          %491 = sbr.rel (%p489) target = $region68
        $region67: #{tpu_custom_call.1} parent=11 // pred_region
          _
        $region68: #{tpu_custom_call.1} parent=11 // pred_fallthru
          _
        // Predicated region
        $region69: #{tpu_custom_call.1} parent=11 // pred_check
          %p492 = pneg %p407
        $region70: #{tpu_custom_call.1} parent=11 // pred_check_branch
          %494 = sbr.rel (%p492) target = $region72
        $region71: #{tpu_custom_call.1} parent=11 // pred_region
          _
        $region72: #{tpu_custom_call.1} parent=11 // pred_fallthru
          _
      $region12: #{tpu_custom_call.1} parent=5 // pred_fallthru
        _
      %p495 = scmp.lt.s32.totalorder %s26, 2
      // Predicated region
      $region73: #{tpu_custom_call.1} parent=5 // pred_check
        %p496 = pneg %p495
      $region74: #{tpu_custom_call.1} parent=5 // pred_check_branch
        %498 = sbr.rel (%p496) target = $region76
      $region75: #{tpu_custom_call.1} parent=5 // pred_region
        // Predicated region
        $region77: #{tpu_custom_call.1} parent=75 // pred_check
          %p499 = pneg %p60
        $region78: #{tpu_custom_call.1} parent=75 // pred_check_branch
          %501 = sbr.rel (%p499) target = $region80
        $region79: #{tpu_custom_call.1} parent=75 // pred_region
          %s502 = smul.u32 2, %s34
          %p503 = scmp.lt.s32.totalorder %s33, 1
          %s504 = scalar_select %p503, %s33, 1
          %p505 = scmp.lt.s32.totalorder %s502, 1
          %s506 = scalar_select %p505, %s502, 1
          %s507 = smul.addr %s504, 2
          %s508 = sadd.s32 %s506, %s507
          %s509 = smul.addr %s508, 8
          %s510 = scalar_lea.vmem %s0, %s509
          %s511 = smul.u32 2, %s34
        $region80: #{tpu_custom_call.1} parent=75 // pred_fallthru
          _
        // Predicated region
        $region81: #{tpu_custom_call.1} parent=75 // pred_check
          %p512 = pneg %p86
        $region82: #{tpu_custom_call.1} parent=75 // pred_check_branch
          %514 = sbr.rel (%p512) target = $region84
        $region83: #{tpu_custom_call.1} parent=75 // pred_region
          %p515 = scmp.lt.s32.totalorder %s33, 1
          %s516 = scalar_select %p515, %s33, 1
          %s517 = smul.addr %s516, 8
          %s518 = scalar_lea.vmem %s1, %s517
        $region84: #{tpu_custom_call.1} parent=75 // pred_fallthru
          _
      $region76: #{tpu_custom_call.1} parent=5 // pred_fallthru
        _
      %p519 = scmp.le.s32.totalorder 1, %s26
      %p520 = scmp.lt.s32.totalorder %s26, 3
      %p521 = pnand %p519, %p520
      %p522 = pneg %p521
      // Predicated region
      $region85: #{tpu_custom_call.1} parent=5 // pred_check
        _
      $region86: #{tpu_custom_call.1} parent=5 // pred_check_branch
        %524 = sbr.rel (%p521) target = $region88
      $region87: #{tpu_custom_call.1} parent=5 // pred_region
        %s525 = ssub.s32 %s26, 1
        %s526 = smul.u32 2, %s36
        %p527 = scmp.lt.s32.totalorder %s35, 1
        %s528 = scalar_select %p527, %s35, 1
        %p529 = scmp.lt.s32.totalorder %s526, 1
        %s530 = scalar_select %p529, %s526, 1
        %s531 = smul.addr %s528, 2
        %s532 = sadd.s32 %s530, %s531
        %s533 = smul.addr %s532, 8
        %s534 = scalar_lea.vmem %s0, %s533
        %p535 = pneg %p66
        %p536 = pneg %p63
        %p537 = scmp.lt.s32.totalorder %s35, 1
        %s538 = scalar_select %p537, %s35, 1
        %s539 = smul.addr %s538, 8
        %s540 = scalar_lea.vmem %s1, %s539
        %p541 = pneg %p92
        %p542 = pneg %p89
        %p543 = pneg %p113
        %p544 = pneg %p110
        %p545 = pneg %p134
        %p546 = pneg %p131
        %p547 = pneg %p155
        %p548 = pneg %p152
        %p549 = pneg %p176
        %p550 = pneg %p173
        %p551 = pneg %p197
        %p552 = pneg %p194
        %p553 = pneg %p218
        %p554 = pneg %p215
        %p555 = pneg %p239
        %p556 = pneg %p236
        %p557 = pneg %p260
        %p558 = pneg %p257
        %p559 = pneg %p281
        %p560 = pneg %p278
        %p561 = pneg %p302
        %p562 = pneg %p299
        %p563 = pneg %p323
        %p564 = pneg %p320
        %p565 = pneg %p344
        %p566 = pneg %p341
        %p567 = pneg %p365
        %p568 = pneg %p362
        %p569 = pneg %p386
        %p570 = pneg %p383
        %p571 = pneg %p407
        %p572 = pneg %p404
        %p573 = pneg %p435
        %p574 = pneg %p432
        %s575 = sand.u32 %s422, 1
        %s576 = scalar_lea.sflag [#allocation5], %s575
        %s577 = sand.u32 %s422, 1
        %s578 = smul.addr %s577, 16
        %s579 = scalar_lea.vmem [#allocation4], %s578
        %s580 = smul.u32 2, %s36
        %p581 = scmp.lt.s32.totalorder %s35, 1
        %s582 = scalar_select %p581, %s35, 1
        %p583 = scmp.lt.s32.totalorder %s580, 1
        %s584 = scalar_select %p583, %s580, 1
        %s585 = smul.addr %s582, 2
        %s586 = sadd.s32 %s584, %s585
        %s587 = smul.addr %s586, 8
        %s588 = scalar_lea.vmem %s0, %s587
        %s589 = smul.u32 2, %s36
        %p590 = scmp.lt.s32.totalorder %s35, 1
        %s591 = scalar_select %p590, %s35, 1
        %s592 = smul.addr %s591, 8
        %s593 = scalar_lea.vmem %s1, %s592
        %s594 = smul.u32 2, %s36
        %p595 = scmp.eq.s32.totalorder %s36, 0
        // Predicated region
        $region89: #{tpu_custom_call.1} parent=87 // pred_check
          %p596 = pneg %p595
        $region90: #{tpu_custom_call.1} parent=87 // pred_check_branch
          %598 = sbr.rel (%p596) target = $region92
        $region91: #{tpu_custom_call.1} parent=87 // pred_region
          %v599 = vld [vmem:[%s593] sm:$0xff]
          %v600 = vld [vmem:[%s4] sm:$0x1]
          %v601 = vld [vmem:[%s5] sm:$0x1]
          %vm602 = vcmask 523264
          %v603 = vsel %vm602, %v599, 0.0
          %604 = vadd.xlane.f32.xlu0 %v603
          %v605 = vpop.xlane.xlu0 %604
          %v606 = vrcp.pop 64.0
          %v607 = vmul.f32 %v605, %v606
          %v608 = vsub.f32 %v599, %v607
          %v609 = vmul.f32 %v608, %v608
          %v610 = vsel %vm602, %v609, 0.0
          %611 = vadd.xlane.f32.xlu0 %v610
          %v612 = vpop.xlane.xlu0 %611
          %v613 = vmul.f32 %v612, %v606
          %v614 = vadd.f32 %v613, 1e-05
          %v615 = vrsqrt.pop %v614
          %v616 = vmul.f32 %v608, %v615
          %v618 = vlaneseq
          %v619 = vshrl.u32 %v618, 7
          %v620 = vsub.s32 0, %v619
          %v621 = vrot.slane %v600, %v620
          %v623 = vmul.f32 %v616, %v621
          %v625 = vlaneseq
          %v626 = vshrl.u32 %v625, 7
          %v627 = vsub.s32 0, %v626
          %v628 = vrot.slane %v601, %v627
          %v630 = vadd.f32 %v623, %v628
          %v631 = vmul.f32 %v630, 0.5
          %v632 = vmul.f32 %v630, 0.044715
          %v633 = vmul.f32 %v632, %v630
          %v634 = vmul.f32 %v633, %v630
          %v635 = vadd.f32 %v630, %v634
          %v636 = vmul.f32 %v635, 0.7978846
          %v637 = vtanh.pop %v636
          %v638 = vadd.f32 %v637, 1.0
          %v639 = vmul.f32 %v631, %v638
          %v640 = vld [vmem:[%s7] sm:$0xff]
          %v641 = vld [vmem:[%s7 + $0x8] sm:$0xff]
          %v642 = vld [vmem:[%s7 + $0x10] sm:$0xff]
          %v643 = vld [vmem:[%s7 + $0x18] sm:$0xff]
          %v644 = vld [vmem:[%s7 + $0x20] sm:$0xff]
          %v645 = vld [vmem:[%s7 + $0x28] sm:$0xff]
          %v646 = vld [vmem:[%s7 + $0x30] sm:$0xff]
          %v647 = vld [vmem:[%s7 + $0x38] sm:$0xff]
          %v649 = vsel %vm602, %v639, 0
          %651 = vmatprep.subr.mxu0 0.0
          %652 = vmatpush1.msra.mxu0 %v640
          %653 = vmatprep.subr.mxu0 0.0
          %654 = vmatpush1.msra.mxu0 %v641
          %655 = vmatprep.subr.mxu0 0.0
          %656 = vmatpush1.msra.mxu0 %v642
          %657 = vmatprep.subr.mxu0 0.0
          %658 = vmatpush1.msra.mxu0 %v643
          %659 = vmatprep.subr.mxu0 0.0
          %660 = vmatpush1.msra.mxu0 %v644
          %661 = vmatprep.subr.mxu0 0.0
          %662 = vmatpush1.msra.mxu0 %v645
          %663 = vmatprep.subr.mxu0 0.0
          %664 = vmatpush1.msra.mxu0 %v646
          %665 = vmatprep.subr.mxu0 0.0
          %666 = vmatpush1.msra.mxu0 %v647
          %667 = vmatprep.subr.mxu0 0.0
          %668 = vmatpush1.msra.mxu0 0.0
          %669 = vmatprep.subr.mxu0 0.0
          %670 = vmatpush1.msra.mxu0 0.0
          %671 = vmatprep.subr.mxu0 0.0
          %672 = vmatpush1.msra.mxu0 0.0
          %673 = vmatprep.subr.mxu0 0.0
          %674 = vmatpush1.msra.mxu0 0.0
          %675 = vmatprep.subr.mxu0 0.0
          %676 = vmatpush1.msra.mxu0 0.0
          %677 = vmatprep.subr.mxu0 0.0
          %678 = vmatpush1.msra.mxu0 0.0
          %679 = vmatprep.subr.mxu0 0.0
          %680 = vmatpush1.msra.mxu0 0.0
          %681 = vmatprep.subr.mxu0 0.0
          %682 = vmatpush1.msra.mxu0 0.0
          %683 = vmatprep.subr.mxu0 0.0
          %684 = vmatpush1.msra.mxu0 0.0
          %685 = vmatprep.subr.mxu0 0.0
          %686 = vmatpush1.msra.mxu0 0.0
          %687 = vmatprep.subr.mxu0 0.0
          %688 = vmatpush1.msra.mxu0 0.0
          %689 = vmatprep.subr.mxu0 0.0
          %690 = vmatpush1.msra.mxu0 0.0
          %691 = vmatprep.subr.mxu0 0.0
          %692 = vmatpush1.msra.mxu0 0.0
          %693 = vmatprep.subr.mxu0 0.0
          %694 = vmatpush1.msra.mxu0 0.0
          %695 = vmatprep.subr.mxu0 0.0
          %696 = vmatpush1.msra.mxu0 0.0
          %697 = vmatprep.subr.mxu0 0.0
          %698 = vmatpush1.msra.mxu0 0.0
          %699 = vmatprep.subr.mxu0 0.0
          %700 = vmatpush1.msra.mxu0 0.0
          %701 = vmatprep.subr.mxu0 0.0
          %702 = vmatpush1.msra.mxu0 0.0
          %703 = vmatprep.subr.mxu0 0.0
          %704 = vmatpush1.msra.mxu0 0.0
          %705 = vmatprep.subr.mxu0 0.0
          %706 = vmatpush1.msra.mxu0 0.0
          %707 = vmatprep.subr.mxu0 0.0
          %708 = vmatpush1.msra.mxu0 0.0
          %709 = vmatprep.subr.mxu0 0.0
          %710 = vmatpush1.msra.mxu0 0.0
          %711 = vmatprep.subr.mxu0 0.0
          %712 = vmatpush1.msra.mxu0 0.0
          %713 = vmatprep.subr.mxu0 0.0
          %714 = vmatpush1.msra.mxu0 0.0
          %715 = vmatprep.mubr.f32.mxu0 0.0
          %716 = vmatmul.mubr.f32.gmra.mrb[0].mxu0 %v649
          %v717 = vpop.f32.mrb[0].mxu0
          %v718 = vadd.f32 0.0, %v717
          %v719 = vpop.f32.mrb[0].mxu0
          %720 = vdwg.mxu0
          %v721 = vld [vmem:[%s8] sm:$0xff]
          %v722 = vld [vmem:[%s8 + $0x8] sm:$0xff]
          %v723 = vld [vmem:[%s8 + $0x10] sm:$0xff]
          %v724 = vld [vmem:[%s8 + $0x18] sm:$0xff]
          %v725 = vld [vmem:[%s8 + $0x20] sm:$0xff]
          %v726 = vld [vmem:[%s8 + $0x28] sm:$0xff]
          %v727 = vld [vmem:[%s8 + $0x30] sm:$0xff]
          %v728 = vld [vmem:[%s8 + $0x38] sm:$0xff]
          %729 = vmatprep.subr.mxu0 0.0
          %730 = vmatpush1.msra.mxu0 %v721
          %731 = vmatprep.subr.mxu0 0.0
          %732 = vmatpush1.msra.mxu0 %v722
          %733 = vmatprep.subr.mxu0 0.0
          %734 = vmatpush1.msra.mxu0 %v723
          %735 = vmatprep.subr.mxu0 0.0
          %736 = vmatpush1.msra.mxu0 %v724
          %737 = vmatprep.subr.mxu0 0.0
          %738 = vmatpush1.msra.mxu0 %v725
          %739 = vmatprep.subr.mxu0 0.0
          %740 = vmatpush1.msra.mxu0 %v726
          %741 = vmatprep.subr.mxu0 0.0
          %742 = vmatpush1.msra.mxu0 %v727
          %743 = vmatprep.subr.mxu0 0.0
          %744 = vmatpush1.msra.mxu0 %v728
          %745 = vmatprep.subr.mxu0 0.0
          %746 = vmatpush1.msra.mxu0 0.0
          %747 = vmatprep.subr.mxu0 0.0
          %748 = vmatpush1.msra.mxu0 0.0
          %749 = vmatprep.subr.mxu0 0.0
          %750 = vmatpush1.msra.mxu0 0.0
          %751 = vmatprep.subr.mxu0 0.0
          %752 = vmatpush1.msra.mxu0 0.0
          %753 = vmatprep.subr.mxu0 0.0
          %754 = vmatpush1.msra.mxu0 0.0
          %755 = vmatprep.subr.mxu0 0.0
          %756 = vmatpush1.msra.mxu0 0.0
          %757 = vmatprep.subr.mxu0 0.0
          %758 = vmatpush1.msra.mxu0 0.0
          %759 = vmatprep.subr.mxu0 0.0
          %760 = vmatpush1.msra.mxu0 0.0
          %761 = vmatprep.subr.mxu0 0.0
          %762 = vmatpush1.msra.mxu0 0.0
          %763 = vmatprep.subr.mxu0 0.0
          %764 = vmatpush1.msra.mxu0 0.0
          %765 = vmatprep.subr.mxu0 0.0
          %766 = vmatpush1.msra.mxu0 0.0
          %767 = vmatprep.subr.mxu0 0.0
          %768 = vmatpush1.msra.mxu0 0.0
          %769 = vmatprep.subr.mxu0 0.0
          %770 = vmatpush1.msra.mxu0 0.0
          %771 = vmatprep.subr.mxu0 0.0
          %772 = vmatpush1.msra.mxu0 0.0
          %773 = vmatprep.subr.mxu0 0.0
          %774 = vmatpush1.msra.mxu0 0.0
          %775 = vmatprep.subr.mxu0 0.0
          %776 = vmatpush1.msra.mxu0 0.0
          %777 = vmatprep.subr.mxu0 0.0
          %778 = vmatpush1.msra.mxu0 0.0
          %779 = vmatprep.subr.mxu0 0.0
          %780 = vmatpush1.msra.mxu0 0.0
          %781 = vmatprep.subr.mxu0 0.0
          %782 = vmatpush1.msra.mxu0 0.0
          %783 = vmatprep.subr.mxu0 0.0
          %784 = vmatpush1.msra.mxu0 0.0
          %785 = vmatprep.subr.mxu0 0.0
          %786 = vmatpush1.msra.mxu0 0.0
          %787 = vmatprep.subr.mxu0 0.0
          %788 = vmatpush1.msra.mxu0 0.0
          %789 = vmatprep.subr.mxu0 0.0
          %790 = vmatpush1.msra.mxu0 0.0
          %791 = vmatprep.subr.mxu0 0.0
          %792 = vmatpush1.msra.mxu0 0.0
          %793 = vmatprep.mubr.f32.mxu0 0.0
          %794 = vmatmul.mubr.f32.gmra.mrb[0].mxu0 %v649
          %v795 = vpop.f32.mrb[0].mxu0
          %v796 = vadd.f32 0.0, %v795
          %v797 = vpop.f32.mrb[0].mxu0
          %798 = vdwg.mxu0
          %799 = vxpose.xlu0.b32.start [1/16] %v718, 128
          %800 = vxpose.xlu0.b32.cont [2/16] 0.0, 128
          %801 = vxpose.xlu0.b32.cont [3/16] 0.0, 128
          %802 = vxpose.xlu0.b32.cont [4/16] 0.0, 128
          %803 = vxpose.xlu0.b32.cont [5/16] 0.0, 128
          %804 = vxpose.xlu0.b32.cont [6/16] 0.0, 128
          %805 = vxpose.xlu0.b32.cont [7/16] 0.0, 128
          %806 = vxpose.xlu0.b32.cont [8/16] 0.0, 128
          %807 = vxpose.xlu0.b32.cont [9/16] 0.0, 128
          %808 = vxpose.xlu0.b32.cont [10/16] 0.0, 128
          %809 = vxpose.xlu0.b32.cont [11/16] 0.0, 128
          %810 = vxpose.xlu0.b32.cont [12/16] 0.0, 128
          %811 = vxpose.xlu0.b32.cont [13/16] 0.0, 128
          %812 = vxpose.xlu0.b32.cont [14/16] 0.0, 128
          %813 = vxpose.xlu0.b32.cont [15/16] 0.0, 128
          %814 = vxpose.xlu0.b32.end [16/16] 0.0, 128
          %v815 = vpop.trf.xlu0
          %v816 = vpop.trf.xlu0
          %v817 = vpop.trf.xlu0
          %v818 = vpop.trf.xlu0
          %v819 = vpop.trf.xlu0
          %v820 = vpop.trf.xlu0
          %v821 = vpop.trf.xlu0
          %v822 = vpop.trf.xlu0
          %v823 = vpop.trf.xlu0
          %v824 = vpop.trf.xlu0
          %v825 = vpop.trf.xlu0
          %v826 = vpop.trf.xlu0
          %v827 = vpop.trf.xlu0
          %v828 = vpop.trf.xlu0
          %v829 = vpop.trf.xlu0
          %v830 = vpop.trf.xlu0
          %vm831 = vcmask 64512
          %832 = vst.msk [vmem:[#allocation2] sm:$0xff] %vm831, %v815
          %833 = vst.msk [vmem:[#allocation3] sm:$0xff] %vm831, %v796
          %s834 = scalar_lea.vmem %s7, 64
          %v835 = vld [vmem:[%s834] sm:$0xff]
          %v836 = vld [vmem:[%s834 + $0x8] sm:$0xff]
          %v837 = vld [vmem:[%s834 + $0x10] sm:$0xff]
          %v838 = vld [vmem:[%s834 + $0x18] sm:$0xff]
          %v839 = vld [vmem:[%s834 + $0x20] sm:$0xff]
          %v840 = vld [vmem:[%s834 + $0x28] sm:$0xff]
          %v841 = vld [vmem:[%s834 + $0x30] sm:$0xff]
          %v842 = vld [vmem:[%s834 + $0x38] sm:$0xff]
          %843 = vmatprep.subr.mxu0 0.0
          %844 = vmatpush1.msra.mxu0 %v835
          %845 = vmatprep.subr.mxu0 0.0
          %846 = vmatpush1.msra.mxu0 %v836
          %847 = vmatprep.subr.mxu0 0.0
          %848 = vmatpush1.msra.mxu0 %v837
          %849 = vmatprep.subr.mxu0 0.0
          %850 = vmatpush1.msra.mxu0 %v838
          %851 = vmatprep.subr.mxu0 0.0
          %852 = vmatpush1.msra.mxu0 %v839
          %853 = vmatprep.subr.mxu0 0.0
          %854 = vmatpush1.msra.mxu0 %v840
          %855 = vmatprep.subr.mxu0 0.0
          %856 = vmatpush1.msra.mxu0 %v841
          %857 = vmatprep.subr.mxu0 0.0
          %858 = vmatpush1.msra.mxu0 %v842
          %859 = vmatprep.subr.mxu0 0.0
          %860 = vmatpush1.msra.mxu0 0.0
          %861 = vmatprep.subr.mxu0 0.0
          %862 = vmatpush1.msra.mxu0 0.0
          %863 = vmatprep.subr.mxu0 0.0
          %864 = vmatpush1.msra.mxu0 0.0
          %865 = vmatprep.subr.mxu0 0.0
          %866 = vmatpush1.msra.mxu0 0.0
          %867 = vmatprep.subr.mxu0 0.0
          %868 = vmatpush1.msra.mxu0 0.0
          %869 = vmatprep.subr.mxu0 0.0
          %870 = vmatpush1.msra.mxu0 0.0
          %871 = vmatprep.subr.mxu0 0.0
          %872 = vmatpush1.msra.mxu0 0.0
          %873 = vmatprep.subr.mxu0 0.0
          %874 = vmatpush1.msra.mxu0 0.0
          %875 = vmatprep.subr.mxu0 0.0
          %876 = vmatpush1.msra.mxu0 0.0
          %877 = vmatprep.subr.mxu0 0.0
          %878 = vmatpush1.msra.mxu0 0.0
          %879 = vmatprep.subr.mxu0 0.0
          %880 = vmatpush1.msra.mxu0 0.0
          %881 = vmatprep.subr.mxu0 0.0
          %882 = vmatpush1.msra.mxu0 0.0
          %883 = vmatprep.subr.mxu0 0.0
          %884 = vmatpush1.msra.mxu0 0.0
          %885 = vmatprep.subr.mxu0 0.0
          %886 = vmatpush1.msra.mxu0 0.0
          %887 = vmatprep.subr.mxu0 0.0
          %888 = vmatpush1.msra.mxu0 0.0
          %889 = vmatprep.subr.mxu0 0.0
          %890 = vmatpush1.msra.mxu0 0.0
          %891 = vmatprep.subr.mxu0 0.0
          %892 = vmatpush1.msra.mxu0 0.0
          %893 = vmatprep.subr.mxu0 0.0
          %894 = vmatpush1.msra.mxu0 0.0
          %895 = vmatprep.subr.mxu0 0.0
          %896 = vmatpush1.msra.mxu0 0.0
          %897 = vmatprep.subr.mxu0 0.0
          %898 = vmatpush1.msra.mxu0 0.0
          %899 = vmatprep.subr.mxu0 0.0
          %900 = vmatpush1.msra.mxu0 0.0
          %901 = vmatprep.subr.mxu0 0.0
          %902 = vmatpush1.msra.mxu0 0.0
          %903 = vmatprep.subr.mxu0 0.0
          %904 = vmatpush1.msra.mxu0 0.0
          %905 = vmatprep.subr.mxu0 0.0
          %906 = vmatpush1.msra.mxu0 0.0
          %907 = vmatprep.mubr.f32.mxu0 0.0
          %908 = vmatmul.mubr.f32.gmra.mrb[0].mxu0 %v649
          %v909 = vpop.f32.mrb[0].mxu0
          %v910 = vadd.f32 0.0, %v909
          %v911 = vpop.f32.mrb[0].mxu0
          %912 = vdwg.mxu0
          %s913 = scalar_lea.vmem %s8, 64
          %v914 = vld [vmem:[%s913] sm:$0xff]
          %v915 = vld [vmem:[%s913 + $0x8] sm:$0xff]
          %v916 = vld [vmem:[%s913 + $0x10] sm:$0xff]
          %v917 = vld [vmem:[%s913 + $0x18] sm:$0xff]
          %v918 = vld [vmem:[%s913 + $0x20] sm:$0xff]
          %v919 = vld [vmem:[%s913 + $0x28] sm:$0xff]
          %v920 = vld [vmem:[%s913 + $0x30] sm:$0xff]
          %v921 = vld [vmem:[%s913 + $0x38] sm:$0xff]
          %922 = vmatprep.subr.mxu0 0.0
          %923 = vmatpush1.msra.mxu0 %v914
          %924 = vmatprep.subr.mxu0 0.0
          %925 = vmatpush1.msra.mxu0 %v915
          %926 = vmatprep.subr.mxu0 0.0
          %927 = vmatpush1.msra.mxu0 %v916
          %928 = vmatprep.subr.mxu0 0.0
          %929 = vmatpush1.msra.mxu0 %v917
          %930 = vmatprep.subr.mxu0 0.0
          %931 = vmatpush1.msra.mxu0 %v918
          %932 = vmatprep.subr.mxu0 0.0
          %933 = vmatpush1.msra.mxu0 %v919
          %934 = vmatprep.subr.mxu0 0.0
          %935 = vmatpush1.msra.mxu0 %v920
          %936 = vmatprep.subr.mxu0 0.0
          %937 = vmatpush1.msra.mxu0 %v921
          %938 = vmatprep.subr.mxu0 0.0
          %939 = vmatpush1.msra.mxu0 0.0
          %940 = vmatprep.subr.mxu0 0.0
          %941 = vmatpush1.msra.mxu0 0.0
          %942 = vmatprep.subr.mxu0 0.0
          %943 = vmatpush1.msra.mxu0 0.0
          %944 = vmatprep.subr.mxu0 0.0
          %945 = vmatpush1.msra.mxu0 0.0
          %946 = vmatprep.subr.mxu0 0.0
          %947 = vmatpush1.msra.mxu0 0.0
          %948 = vmatprep.subr.mxu0 0.0
          %949 = vmatpush1.msra.mxu0 0.0
          %950 = vmatprep.subr.mxu0 0.0
          %951 = vmatpush1.msra.mxu0 0.0
          %952 = vmatprep.subr.mxu0 0.0
          %953 = vmatpush1.msra.mxu0 0.0
          %954 = vmatprep.subr.mxu0 0.0
          %955 = vmatpush1.msra.mxu0 0.0
          %956 = vmatprep.subr.mxu0 0.0
          %957 = vmatpush1.msra.mxu0 0.0
          %958 = vmatprep.subr.mxu0 0.0
          %959 = vmatpush1.msra.mxu0 0.0
          %960 = vmatprep.subr.mxu0 0.0
          %961 = vmatpush1.msra.mxu0 0.0
          %962 = vmatprep.subr.mxu0 0.0
          %963 = vmatpush1.msra.mxu0 0.0
          %964 = vmatprep.subr.mxu0 0.0
          %965 = vmatpush1.msra.mxu0 0.0
          %966 = vmatprep.subr.mxu0 0.0
          %967 = vmatpush1.msra.mxu0 0.0
          %968 = vmatprep.subr.mxu0 0.0
          %969 = vmatpush1.msra.mxu0 0.0
          %970 = vmatprep.subr.mxu0 0.0
          %971 = vmatpush1.msra.mxu0 0.0
          %972 = vmatprep.subr.mxu0 0.0
          %973 = vmatpush1.msra.mxu0 0.0
          %974 = vmatprep.subr.mxu0 0.0
          %975 = vmatpush1.msra.mxu0 0.0
          %976 = vmatprep.subr.mxu0 0.0
          %977 = vmatpush1.msra.mxu0 0.0
          %978 = vmatprep.subr.mxu0 0.0
          %979 = vmatpush1.msra.mxu0 0.0
          %980 = vmatprep.subr.mxu0 0.0
          %981 = vmatpush1.msra.mxu0 0.0
          %982 = vmatprep.subr.mxu0 0.0
          %983 = vmatpush1.msra.mxu0 0.0
          %984 = vmatprep.subr.mxu0 0.0
          %985 = vmatpush1.msra.mxu0 0.0
          %986 = vmatprep.mubr.f32.mxu0 0.0
          %987 = vmatmul.mubr.f32.gmra.mrb[0].mxu0 %v649
          %v988 = vpop.f32.mrb[0].mxu0
          %v989 = vadd.f32 0.0, %v988
          %v990 = vpop.f32.mrb[0].mxu0
          %991 = vdwg.mxu0
          %992 = vxpose.xlu0.b32.start [1/16] %v910, 128
          %993 = vxpose.xlu0.b32.cont [2/16] 0.0, 128
          %994 = vxpose.xlu0.b32.cont [3/16] 0.0, 128
          %995 = vxpose.xlu0.b32.cont [4/16] 0.0, 128
          %996 = vxpose.xlu0.b32.cont [5/16] 0.0, 128
          %997 = vxpose.xlu0.b32.cont [6/16] 0.0, 128
          %998 = vxpose.xlu0.b32.cont [7/16] 0.0, 128
          %999 = vxpose.xlu0.b32.cont [8/16] 0.0, 128
          %1000 = vxpose.xlu0.b32.cont [9/16] 0.0, 128
          %1001 = vxpose.xlu0.b32.cont [10/16] 0.0, 128
          %1002 = vxpose.xlu0.b32.cont [11/16] 0.0, 128
          %1003 = vxpose.xlu0.b32.cont [12/16] 0.0, 128
          %1004 = vxpose.xlu0.b32.cont [13/16] 0.0, 128
          %1005 = vxpose.xlu0.b32.cont [14/16] 0.0, 128
          %1006 = vxpose.xlu0.b32.cont [15/16] 0.0, 128
          %1007 = vxpose.xlu0.b32.end [16/16] 0.0, 128
          %v1008 = vpop.trf.xlu0
          %v1009 = vpop.trf.xlu0
          %v1010 = vpop.trf.xlu0
          %v1011 = vpop.trf.xlu0
          %v1012 = vpop.trf.xlu0
          %v1013 = vpop.trf.xlu0
          %v1014 = vpop.trf.xlu0
          %v1015 = vpop.trf.xlu0
          %v1016 = vpop.trf.xlu0
          %v1017 = vpop.trf.xlu0
          %v1018 = vpop.trf.xlu0
          %v1019 = vpop.trf.xlu0
          %v1020 = vpop.trf.xlu0
          %v1021 = vpop.trf.xlu0
          %v1022 = vpop.trf.xlu0
          %v1023 = vpop.trf.xlu0
          %s1024 = scalar_lea.vmem [#allocation2], 8
          %1025 = vst.msk [vmem:[%s1024] sm:$0xff] %vm831, %v1008
          %s1026 = scalar_lea.vmem [#allocation3], 8
          %1027 = vst.msk [vmem:[%s1026] sm:$0xff] %vm831, %v989
          %s1028 = scalar_lea.vmem %s7, 128
          %v1029 = vld [vmem:[%s1028] sm:$0xff]
          %v1030 = vld [vmem:[%s1028 + $0x8] sm:$0xff]
          %v1031 = vld [vmem:[%s1028 + $0x10] sm:$0xff]
          %v1032 = vld [vmem:[%s1028 + $0x18] sm:$0xff]
          %v1033 = vld [vmem:[%s1028 + $0x20] sm:$0xff]
          %v1034 = vld [vmem:[%s1028 + $0x28] sm:$0xff]
          %v1035 = vld [vmem:[%s1028 + $0x30] sm:$0xff]
          %v1036 = vld [vmem:[%s1028 + $0x38] sm:$0xff]
          %1037 = vmatprep.subr.mxu0 0.0
          %1038 = vmatpush1.msra.mxu0 %v1029
          %1039 = vmatprep.subr.mxu0 0.0
          %1040 = vmatpush1.msra.mxu0 %v1030
          %1041 = vmatprep.subr.mxu0 0.0
          %1042 = vmatpush1.msra.mxu0 %v1031
          %1043 = vmatprep.subr.mxu0 0.0
          %1044 = vmatpush1.msra.mxu0 %v1032
          %1045 = vmatprep.subr.mxu0 0.0
          %1046 = vmatpush1.msra.mxu0 %v1033
          %1047 = vmatprep.subr.mxu0 0.0
          %1048 = vmatpush1.msra.mxu0 %v1034
          %1049 = vmatprep.subr.mxu0 0.0
          %1050 = vmatpush1.msra.mxu0 %v1035
          %1051 = vmatprep.subr.mxu0 0.0
          %1052 = vmatpush1.msra.mxu0 %v1036
          %1053 = vmatprep.subr.mxu0 0.0
          %1054 = vmatpush1.msra.mxu0 0.0
          %1055 = vmatprep.subr.mxu0 0.0
          %1056 = vmatpush1.msra.mxu0 0.0
          %1057 = vmatprep.subr.mxu0 0.0
          %1058 = vmatpush1.msra.mxu0 0.0
          %1059 = vmatprep.subr.mxu0 0.0
          %1060 = vmatpush1.msra.mxu0 0.0
          %1061 = vmatprep.subr.mxu0 0.0
          %1062 = vmatpush1.msra.mxu0 0.0
          %1063 = vmatprep.subr.mxu0 0.0
          %1064 = vmatpush1.msra.mxu0 0.0
          %1065 = vmatprep.subr.mxu0 0.0
          %1066 = vmatpush1.msra.mxu0 0.0
          %1067 = vmatprep.subr.mxu0 0.0
          %1068 = vmatpush1.msra.mxu0 0.0
          %1069 = vmatprep.subr.mxu0 0.0
          %1070 = vmatpush1.msra.mxu0 0.0
          %1071 = vmatprep.subr.mxu0 0.0
          %1072 = vmatpush1.msra.mxu0 0.0
          %1073 = vmatprep.subr.mxu0 0.0
          %1074 = vmatpush1.msra.mxu0 0.0
          %1075 = vmatprep.subr.mxu0 0.0
          %1076 = vmatpush1.msra.mxu0 0.0
          %1077 = vmatprep.subr.mxu0 0.0
          %1078 = vmatpush1.msra.mxu0 0.0
          %1079 = vmatprep.subr.mxu0 0.0
          %1080 = vmatpush1.msra.mxu0 0.0
          %1081 = vmatprep.subr.mxu0 0.0
          %1082 = vmatpush1.msra.mxu0 0.0
          %1083 = vmatprep.subr.mxu0 0.0
          %1084 = vmatpush1.msra.mxu0 0.0
          %1085 = vmatprep.subr.mxu0 0.0
          %1086 = vmatpush1.msra.mxu0 0.0
          %1087 = vmatprep.subr.mxu0 0.0
          %1088 = vmatpush1.msra.mxu0 0.0
          %1089 = vmatprep.subr.mxu0 0.0
          %1090 = vmatpush1.msra.mxu0 0.0
          %1091 = vmatprep.subr.mxu0 0.0
          %1092 = vmatpush1.msra.mxu0 0.0
          %1093 = vmatprep.subr.mxu0 0.0
          %1094 = vmatpush1.msra.mxu0 0.0
          %1095 = vmatprep.subr.mxu0 0.0
          %1096 = vmatpush1.msra.mxu0 0.0
          %1097 = vmatprep.subr.mxu0 0.0
          %1098 = vmatpush1.msra.mxu0 0.0
          %1099 = vmatprep.subr.mxu0 0.0
          %1100 = vmatpush1.msra.mxu0 0.0
          %1101 = vmatprep.mubr.f32.mxu0 0.0
          %1102 = vmatmul.mubr.f32.gmra.mrb[0].mxu0 %v649
          %v1103 = vpop.f32.mrb[0].mxu0
          %v1104 = vadd.f32 0.0, %v1103
          %v1105 = vpop.f32.mrb[0].mxu0
          %1106 = vdwg.mxu0
          %s1107 = scalar_lea.vmem %s8, 128
          %v1108 = vld [vmem:[%s1107] sm:$0xff]
          %v1109 = vld [vmem:[%s1107 + $0x8] sm:$0xff]
          %v1110 = vld [vmem:[%s1107 + $0x10] sm:$0xff]
          %v1111 = vld [vmem:[%s1107 + $0x18] sm:$0xff]
          %v1112 = vld [vmem:[%s1107 + $0x20] sm:$0xff]
          %v1113 = vld [vmem:[%s1107 + $0x28] sm:$0xff]
          %v1114 = vld [vmem:[%s1107 + $0x30] sm:$0xff]
          %v1115 = vld [vmem:[%s1107 + $0x38] sm:$0xff]
          %1116 = vmatprep.subr.mxu0 0.0
          %1117 = vmatpush1.msra.mxu0 %v1108
          %1118 = vmatprep.subr.mxu0 0.0
          %1119 = vmatpush1.msra.mxu0 %v1109
          %1120 = vmatprep.subr.mxu0 0.0
          %1121 = vmatpush1.msra.mxu0 %v1110
          %1122 = vmatprep.subr.mxu0 0.0
          %1123 = vmatpush1.msra.mxu0 %v1111
          %1124 = vmatprep.subr.mxu0 0.0
          %1125 = vmatpush1.msra.mxu0 %v1112
          %1126 = vmatprep.subr.mxu0 0.0
          %1127 = vmatpush1.msra.mxu0 %v1113
          %1128 = vmatprep.subr.mxu0 0.0
          %1129 = vmatpush1.msra.mxu0 %v1114
          %1130 = vmatprep.subr.mxu0 0.0
          %1131 = vmatpush1.msra.mxu0 %v1115
          %1132 = vmatprep.subr.mxu0 0.0
          %1133 = vmatpush1.msra.mxu0 0.0
          %1134 = vmatprep.subr.mxu0 0.0
          %1135 = vmatpush1.msra.mxu0 0.0
          %1136 = vmatprep.subr.mxu0 0.0
          %1137 = vmatpush1.msra.mxu0 0.0
          %1138 = vmatprep.subr.mxu0 0.0
          %1139 = vmatpush1.msra.mxu0 0.0
          %1140 = vmatprep.subr.mxu0 0.0
          %1141 = vmatpush1.msra.mxu0 0.0
          %1142 = vmatprep.subr.mxu0 0.0
          %1143 = vmatpush1.msra.mxu0 0.0
          %1144 = vmatprep.subr.mxu0 0.0
          %1145 = vmatpush1.msra.mxu0 0.0
          %1146 = vmatprep.subr.mxu0 0.0
          %1147 = vmatpush1.msra.mxu0 0.0
          %1148 = vmatprep.subr.mxu0 0.0
          %1149 = vmatpush1.msra.mxu0 0.0
          %1150 = vmatprep.subr.mxu0 0.0
          %1151 = vmatpush1.msra.mxu0 0.0
          %1152 = vmatprep.subr.mxu0 0.0
          %1153 = vmatpush1.msra.mxu0 0.0
          %1154 = vmatprep.subr.mxu0 0.0
          %1155 = vmatpush1.msra.mxu0 0.0
          %1156 = vmatprep.subr.mxu0 0.0
          %1157 = vmatpush1.msra.mxu0 0.0
          %1158 = vmatprep.subr.mxu0 0.0
          %1159 = vmatpush1.msra.mxu0 0.0
          %1160 = vmatprep.subr.mxu0 0.0
          %1161 = vmatpush1.msra.mxu0 0.0
          %1162 = vmatprep.subr.mxu0 0.0
          %1163 = vmatpush1.msra.mxu0 0.0
          %1164 = vmatprep.subr.mxu0 0.0
          %1165 = vmatpush1.msra.mxu0 0.0
          %1166 = vmatprep.subr.mxu0 0.0
          %1167 = vmatpush1.msra.mxu0 0.0
          %1168 = vmatprep.subr.mxu0 0.0
          %1169 = vmatpush1.msra.mxu0 0.0
          %1170 = vmatprep.subr.mxu0 0.0
          %1171 = vmatpush1.msra.mxu0 0.0
          %1172 = vmatprep.subr.mxu0 0.0
          %1173 = vmatpush1.msra.mxu0 0.0
          %1174 = vmatprep.subr.mxu0 0.0
          %1175 = vmatpush1.msra.mxu0 0.0
          %1176 = vmatprep.subr.mxu0 0.0
          %1177 = vmatpush1.msra.mxu0 0.0
          %1178 = vmatprep.subr.mxu0 0.0
          %1179 = vmatpush1.msra.mxu0 0.0
          %1180 = vmatprep.mubr.f32.mxu0 0.0
          %1181 = vmatmul.mubr.f32.gmra.mrb[0].mxu0 %v649
          %v1182 = vpop.f32.mrb[0].mxu0
          %v1183 = vadd.f32 0.0, %v1182
          %v1184 = vpop.f32.mrb[0].mxu0
          %1185 = vdwg.mxu0
          %1186 = vxpose.xlu0.b32.start [1/16] %v1104, 128
          %1187 = vxpose.xlu0.b32.cont [2/16] 0.0, 128
          %1188 = vxpose.xlu0.b32.cont [3/16] 0.0, 128
          %1189 = vxpose.xlu0.b32.cont [4/16] 0.0, 128
          %1190 = vxpose.xlu0.b32.cont [5/16] 0.0, 128
          %1191 = vxpose.xlu0.b32.cont [6/16] 0.0, 128
          %1192 = vxpose.xlu0.b32.cont [7/16] 0.0, 128
          %1193 = vxpose.xlu0.b32.cont [8/16] 0.0, 128
          %1194 = vxpose.xlu0.b32.cont [9/16] 0.0, 128
          %1195 = vxpose.xlu0.b32.cont [10/16] 0.0, 128
          %1196 = vxpose.xlu0.b32.cont [11/16] 0.0, 128
          %1197 = vxpose.xlu0.b32.cont [12/16] 0.0, 128
          %1198 = vxpose.xlu0.b32.cont [13/16] 0.0, 128
          %1199 = vxpose.xlu0.b32.cont [14/16] 0.0, 128
          %1200 = vxpose.xlu0.b32.cont [15/16] 0.0, 128
          %1201 = vxpose.xlu0.b32.end [16/16] 0.0, 128
          %v1202 = vpop.trf.xlu0
          %v1203 = vpop.trf.xlu0
          %v1204 = vpop.trf.xlu0
          %v1205 = vpop.trf.xlu0
          %v1206 = vpop.trf.xlu0
          %v1207 = vpop.trf.xlu0
          %v1208 = vpop.trf.xlu0
          %v1209 = vpop.trf.xlu0
          %v1210 = vpop.trf.xlu0
          %v1211 = vpop.trf.xlu0
          %v1212 = vpop.trf.xlu0
          %v1213 = vpop.trf.xlu0
          %v1214 = vpop.trf.xlu0
          %v1215 = vpop.trf.xlu0
          %v1216 = vpop.trf.xlu0
          %v1217 = vpop.trf.xlu0
          %s1218 = scalar_lea.vmem [#allocation2], 16
          %1219 = vst.msk [vmem:[%s1218] sm:$0xff] %vm831, %v1202
          %s1220 = scalar_lea.vmem [#allocation3], 16
          %1221 = vst.msk [vmem:[%s1220] sm:$0xff] %vm831, %v1183
          %s1222 = scalar_lea.vmem %s7, 192
          %v1223 = vld [vmem:[%s1222] sm:$0xff]
          %v1224 = vld [vmem:[%s1222 + $0x8] sm:$0xff]
          %v1225 = vld [vmem:[%s1222 + $0x10] sm:$0xff]
          %v1226 = vld [vmem:[%s1222 + $0x18] sm:$0xff]
          %v1227 = vld [vmem:[%s1222 + $0x20] sm:$0xff]
          %v1228 = vld [vmem:[%s1222 + $0x28] sm:$0xff]
          %v1229 = vld [vmem:[%s1222 + $0x30] sm:$0xff]
          %v1230 = vld [vmem:[%s1222 + $0x38] sm:$0xff]
          %1231 = vmatprep.subr.mxu0 0.0
          %1232 = vmatpush1.msra.mxu0 %v1223
          %1233 = vmatprep.subr.mxu0 0.0
          %1234 = vmatpush1.msra.mxu0 %v1224
          %1235 = vmatprep.subr.mxu0 0.0
          %1236 = vmatpush1.msra.mxu0 %v1225
          %1237 = vmatprep.subr.mxu0 0.0
          %1238 = vmatpush1.msra.mxu0 %v1226
          %1239 = vmatprep.subr.mxu0 0.0
          %1240 = vmatpush1.msra.mxu0 %v1227
          %1241 = vmatprep.subr.mxu0 0.0
          %1242 = vmatpush1.msra.mxu0 %v1228
          %1243 = vmatprep.subr.mxu0 0.0
          %1244 = vmatpush1.msra.mxu0 %v1229
          %1245 = vmatprep.subr.mxu0 0.0
          %1246 = vmatpush1.msra.mxu0 %v1230
          %1247 = vmatprep.subr.mxu0 0.0
          %1248 = vmatpush1.msra.mxu0 0.0
          %1249 = vmatprep.subr.mxu0 0.0
          %1250 = vmatpush1.msra.mxu0 0.0
          %1251 = vmatprep.subr.mxu0 0.0
          %1252 = vmatpush1.msra.mxu0 0.0
          %1253 = vmatprep.subr.mxu0 0.0
          %1254 = vmatpush1.msra.mxu0 0.0
          %1255 = vmatprep.subr.mxu0 0.0
          %1256 = vmatpush1.msra.mxu0 0.0
          %1257 = vmatprep.subr.mxu0 0.0
          %1258 = vmatpush1.msra.mxu0 0.0
          %1259 = vmatprep.subr.mxu0 0.0
          %1260 = vmatpush1.msra.mxu0 0.0
          %1261 = vmatprep.subr.mxu0 0.0
          %1262 = vmatpush1.msra.mxu0 0.0
          %1263 = vmatprep.subr.mxu0 0.0
          %1264 = vmatpush1.msra.mxu0 0.0
          %1265 = vmatprep.subr.mxu0 0.0
          %1266 = vmatpush1.msra.mxu0 0.0
          %1267 = vmatprep.subr.mxu0 0.0
          %1268 = vmatpush1.msra.mxu0 0.0
          %1269 = vmatprep.subr.mxu0 0.0
          %1270 = vmatpush1.msra.mxu0 0.0
          %1271 = vmatprep.subr.mxu0 0.0
          %1272 = vmatpush1.msra.mxu0 0.0
          %1273 = vmatprep.subr.mxu0 0.0
          %1274 = vmatpush1.msra.mxu0 0.0
          %1275 = vmatprep.subr.mxu0 0.0
          %1276 = vmatpush1.msra.mxu0 0.0
          %1277 = vmatprep.subr.mxu0 0.0
          %1278 = vmatpush1.msra.mxu0 0.0
          %1279 = vmatprep.subr.mxu0 0.0
          %1280 = vmatpush1.msra.mxu0 0.0
          %1281 = vmatprep.subr.mxu0 0.0
          %1282 = vmatpush1.msra.mxu0 0.0
          %1283 = vmatprep.subr.mxu0 0.0
          %1284 = vmatpush1.msra.mxu0 0.0
          %1285 = vmatprep.subr.mxu0 0.0
          %1286 = vmatpush1.msra.mxu0 0.0
          %1287 = vmatprep.subr.mxu0 0.0
          %1288 = vmatpush1.msra.mxu0 0.0
          %1289 = vmatprep.subr.mxu0 0.0
          %1290 = vmatpush1.msra.mxu0 0.0
          %1291 = vmatprep.subr.mxu0 0.0
          %1292 = vmatpush1.msra.mxu0 0.0
          %1293 = vmatprep.subr.mxu0 0.0
          %1294 = vmatpush1.msra.mxu0 0.0
          %1295 = vmatprep.mubr.f32.mxu0 0.0
          %1296 = vmatmul.mubr.f32.gmra.mrb[0].mxu0 %v649
          %v1297 = vpop.f32.mrb[0].mxu0
          %v1298 = vadd.f32 0.0, %v1297
          %v1299 = vpop.f32.mrb[0].mxu0
          %1300 = vdwg.mxu0
          %s1301 = scalar_lea.vmem %s8, 192
          %v1302 = vld [vmem:[%s1301] sm:$0xff]
          %v1303 = vld [vmem:[%s1301 + $0x8] sm:$0xff]
          %v1304 = vld [vmem:[%s1301 + $0x10] sm:$0xff]
          %v1305 = vld [vmem:[%s1301 + $0x18] sm:$0xff]
          %v1306 = vld [vmem:[%s1301 + $0x20] sm:$0xff]
          %v1307 = vld [vmem:[%s1301 + $0x28] sm:$0xff]
          %v1308 = vld [vmem:[%s1301 + $0x30] sm:$0xff]
          %v1309 = vld [vmem:[%s1301 + $0x38] sm:$0xff]
          %1310 = vmatprep.subr.mxu0 0.0
          %1311 = vmatpush1.msra.mxu0 %v1302
          %1312 = vmatprep.subr.mxu0 0.0
          %1313 = vmatpush1.msra.mxu0 %v1303
          %1314 = vmatprep.subr.mxu0 0.0
          %1315 = vmatpush1.msra.mxu0 %v1304
          %1316 = vmatprep.subr.mxu0 0.0
          %1317 = vmatpush1.msra.mxu0 %v1305
          %1318 = vmatprep.subr.mxu0 0.0
          %1319 = vmatpush1.msra.mxu0 %v1306
          %1320 = vmatprep.subr.mxu0 0.0
          %1321 = vmatpush1.msra.mxu0 %v1307
          %1322 = vmatprep.subr.mxu0 0.0
          %1323 = vmatpush1.msra.mxu0 %v1308
          %1324 = vmatprep.subr.mxu0 0.0
          %1325 = vmatpush1.msra.mxu0 %v1309
          %1326 = vmatprep.subr.mxu0 0.0
          %1327 = vmatpush1.msra.mxu0 0.0
          %1328 = vmatprep.subr.mxu0 0.0
          %1329 = vmatpush1.msra.mxu0 0.0
          %1330 = vmatprep.subr.mxu0 0.0
          %1331 = vmatpush1.msra.mxu0 0.0
          %1332 = vmatprep.subr.mxu0 0.0
          %1333 = vmatpush1.msra.mxu0 0.0
          %1334 = vmatprep.subr.mxu0 0.0
          %1335 = vmatpush1.msra.mxu0 0.0
          %1336 = vmatprep.subr.mxu0 0.0
          %1337 = vmatpush1.msra.mxu0 0.0
          %1338 = vmatprep.subr.mxu0 0.0
          %1339 = vmatpush1.msra.mxu0 0.0
          %1340 = vmatprep.subr.mxu0 0.0
          %1341 = vmatpush1.msra.mxu0 0.0
          %1342 = vmatprep.subr.mxu0 0.0
          %1343 = vmatpush1.msra.mxu0 0.0
          %1344 = vmatprep.subr.mxu0 0.0
          %1345 = vmatpush1.msra.mxu0 0.0
          %1346 = vmatprep.subr.mxu0 0.0
          %1347 = vmatpush1.msra.mxu0 0.0
          %1348 = vmatprep.subr.mxu0 0.0
          %1349 = vmatpush1.msra.mxu0 0.0
          %1350 = vmatprep.subr.mxu0 0.0
          %1351 = vmatpush1.msra.mxu0 0.0
          %1352 = vmatprep.subr.mxu0 0.0
          %1353 = vmatpush1.msra.mxu0 0.0
          %1354 = vmatprep.subr.mxu0 0.0
          %1355 = vmatpush1.msra.mxu0 0.0
          %1356 = vmatprep.subr.mxu0 0.0
          %1357 = vmatpush1.msra.mxu0 0.0
          %1358 = vmatprep.subr.mxu0 0.0
          %1359 = vmatpush1.msra.mxu0 0.0
          %1360 = vmatprep.subr.mxu0 0.0
          %1361 = vmatpush1.msra.mxu0 0.0
          %1362 = vmatprep.subr.mxu0 0.0
          %1363 = vmatpush1.msra.mxu0 0.0
          %1364 = vmatprep.subr.mxu0 0.0
          %1365 = vmatpush1.msra.mxu0 0.0
          %1366 = vmatprep.subr.mxu0 0.0
          %1367 = vmatpush1.msra.mxu0 0.0
          %1368 = vmatprep.subr.mxu0 0.0
          %1369 = vmatpush1.msra.mxu0 0.0
          %1370 = vmatprep.subr.mxu0 0.0
          %1371 = vmatpush1.msra.mxu0 0.0
          %1372 = vmatprep.subr.mxu0 0.0
          %1373 = vmatpush1.msra.mxu0 0.0
          %1374 = vmatprep.mubr.f32.mxu0 0.0
          %1375 = vmatmul.mubr.f32.gmra.mrb[0].mxu0 %v649
          %v1376 = vpop.f32.mrb[0].mxu0
          %v1377 = vadd.f32 0.0, %v1376
          %v1378 = vpop.f32.mrb[0].mxu0
          %1379 = vdwg.mxu0
          %1380 = vxpose.xlu0.b32.start [1/16] %v1298, 128
          %1381 = vxpose.xlu0.b32.cont [2/16] 0.0, 128
          %1382 = vxpose.xlu0.b32.cont [3/16] 0.0, 128
          %1383 = vxpose.xlu0.b32.cont [4/16] 0.0, 128
          %1384 = vxpose.xlu0.b32.cont [5/16] 0.0, 128
          %1385 = vxpose.xlu0.b32.cont [6/16] 0.0, 128
          %1386 = vxpose.xlu0.b32.cont [7/16] 0.0, 128
          %1387 = vxpose.xlu0.b32.cont [8/16] 0.0, 128
          %1388 = vxpose.xlu0.b32.cont [9/16] 0.0, 128
          %1389 = vxpose.xlu0.b32.cont [10/16] 0.0, 128
          %1390 = vxpose.xlu0.b32.cont [11/16] 0.0, 128
          %1391 = vxpose.xlu0.b32.cont [12/16] 0.0, 128
          %1392 = vxpose.xlu0.b32.cont [13/16] 0.0, 128
          %1393 = vxpose.xlu0.b32.cont [14/16] 0.0, 128
          %1394 = vxpose.xlu0.b32.cont [15/16] 0.0, 128
          %1395 = vxpose.xlu0.b32.end [16/16] 0.0, 128
          %v1396 = vpop.trf.xlu0
          %v1397 = vpop.trf.xlu0
          %v1398 = vpop.trf.xlu0
          %v1399 = vpop.trf.xlu0
          %v1400 = vpop.trf.xlu0
          %v1401 = vpop.trf.xlu0
          %v1402 = vpop.trf.xlu0
          %v1403 = vpop.trf.xlu0
          %v1404 = vpop.trf.xlu0
          %v1405 = vpop.trf.xlu0
          %v1406 = vpop.trf.xlu0
          %v1407 = vpop.trf.xlu0
          %v1408 = vpop.trf.xlu0
          %v1409 = vpop.trf.xlu0
          %v1410 = vpop.trf.xlu0
          %v1411 = vpop.trf.xlu0
          %s1412 = scalar_lea.vmem [#allocation2], 24
          %1413 = vst.msk [vmem:[%s1412] sm:$0xff] %vm831, %v1396
          %s1414 = scalar_lea.vmem [#allocation3], 24
          %1415 = vst.msk [vmem:[%s1414] sm:$0xff] %vm831, %v1377
          %s1416 = scalar_lea.vmem %s7, 256
          %v1417 = vld [vmem:[%s1416] sm:$0xff]
          %v1418 = vld [vmem:[%s1416 + $0x8] sm:$0xff]
          %v1419 = vld [vmem:[%s1416 + $0x10] sm:$0xff]
          %v1420 = vld [vmem:[%s1416 + $0x18] sm:$0xff]
          %v1421 = vld [vmem:[%s1416 + $0x20] sm:$0xff]
          %v1422 = vld [vmem:[%s1416 + $0x28] sm:$0xff]
          %v1423 = vld [vmem:[%s1416 + $0x30] sm:$0xff]
          %v1424 = vld [vmem:[%s1416 + $0x38] sm:$0xff]
          %1425 = vmatprep.subr.mxu0 0.0
          %1426 = vmatpush1.msra.mxu0 %v1417
          %1427 = vmatprep.subr.mxu0 0.0
          %1428 = vmatpush1.msra.mxu0 %v1418
          %1429 = vmatprep.subr.mxu0 0.0
          %1430 = vmatpush1.msra.mxu0 %v1419
          %1431 = vmatprep.subr.mxu0 0.0
          %1432 = vmatpush1.msra.mxu0 %v1420
          %1433 = vmatprep.subr.mxu0 0.0
          %1434 = vmatpush1.msra.mxu0 %v1421
          %1435 = vmatprep.subr.mxu0 0.0
          %1436 = vmatpush1.msra.mxu0 %v1422
          %1437 = vmatprep.subr.mxu0 0.0
          %1438 = vmatpush1.msra.mxu0 %v1423
          %1439 = vmatprep.subr.mxu0 0.0
          %1440 = vmatpush1.msra.mxu0 %v1424
          %1441 = vmatprep.subr.mxu0 0.0
          %1442 = vmatpush1.msra.mxu0 0.0
          %1443 = vmatprep.subr.mxu0 0.0
          %1444 = vmatpush1.msra.mxu0 0.0
          %1445 = vmatprep.subr.mxu0 0.0
          %1446 = vmatpush1.msra.mxu0 0.0
          %1447 = vmatprep.subr.mxu0 0.0
          %1448 = vmatpush1.msra.mxu0 0.0
          %1449 = vmatprep.subr.mxu0 0.0
          %1450 = vmatpush1.msra.mxu0 0.0
          %1451 = vmatprep.subr.mxu0 0.0
          %1452 = vmatpush1.msra.mxu0 0.0
          %1453 = vmatprep.subr.mxu0 0.0
          %1454 = vmatpush1.msra.mxu0 0.0
          %1455 = vmatprep.subr.mxu0 0.0
          %1456 = vmatpush1.msra.mxu0 0.0
          %1457 = vmatprep.subr.mxu0 0.0
          %1458 = vmatpush1.msra.mxu0 0.0
          %1459 = vmatprep.subr.mxu0 0.0
          %1460 = vmatpush1.msra.mxu0 0.0
          %1461 = vmatprep.subr.mxu0 0.0
          %1462 = vmatpush1.msra.mxu0 0.0
          %1463 = vmatprep.subr.mxu0 0.0
          %1464 = vmatpush1.msra.mxu0 0.0
          %1465 = vmatprep.subr.mxu0 0.0
          %1466 = vmatpush1.msra.mxu0 0.0
          %1467 = vmatprep.subr.mxu0 0.0
          %1468 = vmatpush1.msra.mxu0 0.0
          %1469 = vmatprep.subr.mxu0 0.0
          %1470 = vmatpush1.msra.mxu0 0.0
          %1471 = vmatprep.subr.mxu0 0.0
          %1472 = vmatpush1.msra.mxu0 0.0
          %1473 = vmatprep.subr.mxu0 0.0
          %1474 = vmatpush1.msra.mxu0 0.0
          %1475 = vmatprep.subr.mxu0 0.0
          %1476 = vmatpush1.msra.mxu0 0.0
          %1477 = vmatprep.subr.mxu0 0.0
          %1478 = vmatpush1.msra.mxu0 0.0
          %1479 = vmatprep.subr.mxu0 0.0
          %1480 = vmatpush1.msra.mxu0 0.0
          %1481 = vmatprep.subr.mxu0 0.0
          %1482 = vmatpush1.msra.mxu0 0.0
          %1483 = vmatprep.subr.mxu0 0.0
          %1484 = vmatpush1.msra.mxu0 0.0
          %1485 = vmatprep.subr.mxu0 0.0
          %1486 = vmatpush1.msra.mxu0 0.0
          %1487 = vmatprep.subr.mxu0 0.0
          %1488 = vmatpush1.msra.mxu0 0.0
          %1489 = vmatprep.mubr.f32.mxu0 0.0
          %1490 = vmatmul.mubr.f32.gmra.mrb[0].mxu0 %v649
          %v1491 = vpop.f32.mrb[0].mxu0
          %v1492 = vadd.f32 0.0, %v1491
          %v1493 = vpop.f32.mrb[0].mxu0
          %1494 = vdwg.mxu0
          %s1495 = scalar_lea.vmem %s8, 256
          %v1496 = vld [vmem:[%s1495] sm:$0xff]
          %v1497 = vld [vmem:[%s1495 + $0x8] sm:$0xff]
          %v1498 = vld [vmem:[%s1495 + $0x10] sm:$0xff]
          %v1499 = vld [vmem:[%s1495 + $0x18] sm:$0xff]
          %v1500 = vld [vmem:[%s1495 + $0x20] sm:$0xff]
          %v1501 = vld [vmem:[%s1495 + $0x28] sm:$0xff]
          %v1502 = vld [vmem:[%s1495 + $0x30] sm:$0xff]
          %v1503 = vld [vmem:[%s1495 + $0x38] sm:$0xff]
          %1504 = vmatprep.subr.mxu0 0.0
          %1505 = vmatpush1.msra.mxu0 %v1496
          %1506 = vmatprep.subr.mxu0 0.0
          %1507 = vmatpush1.msra.mxu0 %v1497
          %1508 = vmatprep.subr.mxu0 0.0
          %1509 = vmatpush1.msra.mxu0 %v1498
          %1510 = vmatprep.subr.mxu0 0.0
          %1511 = vmatpush1.msra.mxu0 %v1499
          %1512 = vmatprep.subr.mxu0 0.0
          %1513 = vmatpush1.msra.mxu0 %v1500
          %1514 = vmatprep.subr.mxu0 0.0
          %1515 = vmatpush1.msra.mxu0 %v1501
          %1516 = vmatprep.subr.mxu0 0.0
          %1517 = vmatpush1.msra.mxu0 %v1502
          %1518 = vmatprep.subr.mxu0 0.0
          %1519 = vmatpush1.msra.mxu0 %v1503
          %1520 = vmatprep.subr.mxu0 0.0
          %1521 = vmatpush1.msra.mxu0 0.0
          %1522 = vmatprep.subr.mxu0 0.0
          %1523 = vmatpush1.msra.mxu0 0.0
          %1524 = vmatprep.subr.mxu0 0.0
          %1525 = vmatpush1.msra.mxu0 0.0
          %1526 = vmatprep.subr.mxu0 0.0
          %1527 = vmatpush1.msra.mxu0 0.0
          %1528 = vmatprep.subr.mxu0 0.0
          %1529 = vmatpush1.msra.mxu0 0.0
          %1530 = vmatprep.subr.mxu0 0.0
          %1531 = vmatpush1.msra.mxu0 0.0
          %1532 = vmatprep.subr.mxu0 0.0
          %1533 = vmatpush1.msra.mxu0 0.0
          %1534 = vmatprep.subr.mxu0 0.0
          %1535 = vmatpush1.msra.mxu0 0.0
          %1536 = vmatprep.subr.mxu0 0.0
          %1537 = vmatpush1.msra.mxu0 0.0
          %1538 = vmatprep.subr.mxu0 0.0
          %1539 = vmatpush1.msra.mxu0 0.0
          %1540 = vmatprep.subr.mxu0 0.0
          %1541 = vmatpush1.msra.mxu0 0.0
          %1542 = vmatprep.subr.mxu0 0.0
          %1543 = vmatpush1.msra.mxu0 0.0
          %1544 = vmatprep.subr.mxu0 0.0
          %1545 = vmatpush1.msra.mxu0 0.0
          %1546 = vmatprep.subr.mxu0 0.0
          %1547 = vmatpush1.msra.mxu0 0.0
          %1548 = vmatprep.subr.mxu0 0.0
          %1549 = vmatpush1.msra.mxu0 0.0
          %1550 = vmatprep.subr.mxu0 0.0
          %1551 = vmatpush1.msra.mxu0 0.0
          %1552 = vmatprep.subr.mxu0 0.0
          %1553 = vmatpush1.msra.mxu0 0.0
          %1554 = vmatprep.subr.mxu0 0.0
          %1555 = vmatpush1.msra.mxu0 0.0
          %1556 = vmatprep.subr.mxu0 0.0
          %1557 = vmatpush1.msra.mxu0 0.0
          %1558 = vmatprep.subr.mxu0 0.0
          %1559 = vmatpush1.msra.mxu0 0.0
          %1560 = vmatprep.subr.mxu0 0.0
          %1561 = vmatpush1.msra.mxu0 0.0
          %1562 = vmatprep.subr.mxu0 0.0
          %1563 = vmatpush1.msra.mxu0 0.0
          %1564 = vmatprep.subr.mxu0 0.0
          %1565 = vmatpush1.msra.mxu0 0.0
          %1566 = vmatprep.subr.mxu0 0.0
          %1567 = vmatpush1.msra.mxu0 0.0
          %1568 = vmatprep.mubr.f32.mxu0 0.0
          %1569 = vmatmul.mubr.f32.gmra.mrb[0].mxu0 %v649
          %v1570 = vpop.f32.mrb[0].mxu0
          %v1571 = vadd.f32 0.0, %v1570
          %v1572 = vpop.f32.mrb[0].mxu0
          %1573 = vdwg.mxu0
          %1574 = vxpose.xlu0.b32.start [1/16] %v1492, 128
          %1575 = vxpose.xlu0.b32.cont [2/16] 0.0, 128
          %1576 = vxpose.xlu0.b32.cont [3/16] 0.0, 128
          %1577 = vxpose.xlu0.b32.cont [4/16] 0.0, 128
          %1578 = vxpose.xlu0.b32.cont [5/16] 0.0, 128
          %1579 = vxpose.xlu0.b32.cont [6/16] 0.0, 128
          %1580 = vxpose.xlu0.b32.cont [7/16] 0.0, 128
          %1581 = vxpose.xlu0.b32.cont [8/16] 0.0, 128
          %1582 = vxpose.xlu0.b32.cont [9/16] 0.0, 128
          %1583 = vxpose.xlu0.b32.cont [10/16] 0.0, 128
          %1584 = vxpose.xlu0.b32.cont [11/16] 0.0, 128
          %1585 = vxpose.xlu0.b32.cont [12/16] 0.0, 128
          %1586 = vxpose.xlu0.b32.cont [13/16] 0.0, 128
          %1587 = vxpose.xlu0.b32.cont [14/16] 0.0, 128
          %1588 = vxpose.xlu0.b32.cont [15/16] 0.0, 128
          %1589 = vxpose.xlu0.b32.end [16/16] 0.0, 128
          %v1590 = vpop.trf.xlu0
          %v1591 = vpop.trf.xlu0
          %v1592 = vpop.trf.xlu0
          %v1593 = vpop.trf.xlu0
          %v1594 = vpop.trf.xlu0
          %v1595 = vpop.trf.xlu0
          %v1596 = vpop.trf.xlu0
          %v1597 = vpop.trf.xlu0
          %v1598 = vpop.trf.xlu0
          %v1599 = vpop.trf.xlu0
          %v1600 = vpop.trf.xlu0
          %v1601 = vpop.trf.xlu0
          %v1602 = vpop.trf.xlu0
          %v1603 = vpop.trf.xlu0
          %v1604 = vpop.trf.xlu0
          %v1605 = vpop.trf.xlu0
          %s1606 = scalar_lea.vmem [#allocation2], 32
          %1607 = vst.msk [vmem:[%s1606] sm:$0xff] %vm831, %v1590
          %s1608 = scalar_lea.vmem [#allocation3], 32
          %1609 = vst.msk [vmem:[%s1608] sm:$0xff] %vm831, %v1571
          %s1610 = scalar_lea.vmem %s7, 320
          %v1611 = vld [vmem:[%s1610] sm:$0xff]
          %v1612 = vld [vmem:[%s1610 + $0x8] sm:$0xff]
          %v1613 = vld [vmem:[%s1610 + $0x10] sm:$0xff]
          %v1614 = vld [vmem:[%s1610 + $0x18] sm:$0xff]
          %v1615 = vld [vmem:[%s1610 + $0x20] sm:$0xff]
          %v1616 = vld [vmem:[%s1610 + $0x28] sm:$0xff]
          %v1617 = vld [vmem:[%s1610 + $0x30] sm:$0xff]
          %v1618 = vld [vmem:[%s1610 + $0x38] sm:$0xff]
          %1619 = vmatprep.subr.mxu0 0.0
          %1620 = vmatpush1.msra.mxu0 %v1611
          %1621 = vmatprep.subr.mxu0 0.0
          %1622 = vmatpush1.msra.mxu0 %v1612
          %1623 = vmatprep.subr.mxu0 0.0
          %1624 = vmatpush1.msra.mxu0 %v1613
          %1625 = vmatprep.subr.mxu0 0.0
          %1626 = vmatpush1.msra.mxu0 %v1614
          %1627 = vmatprep.subr.mxu0 0.0
          %1628 = vmatpush1.msra.mxu0 %v1615
          %1629 = vmatprep.subr.mxu0 0.0
          %1630 = vmatpush1.msra.mxu0 %v1616
          %1631 = vmatprep.subr.mxu0 0.0
          %1632 = vmatpush1.msra.mxu0 %v1617
          %1633 = vmatprep.subr.mxu0 0.0
          %1634 = vmatpush1.msra.mxu0 %v1618
          %1635 = vmatprep.subr.mxu0 0.0
          %1636 = vmatpush1.msra.mxu0 0.0
          %1637 = vmatprep.subr.mxu0 0.0
          %1638 = vmatpush1.msra.mxu0 0.0
          %1639 = vmatprep.subr.mxu0 0.0
          %1640 = vmatpush1.msra.mxu0 0.0
          %1641 = vmatprep.subr.mxu0 0.0
          %1642 = vmatpush1.msra.mxu0 0.0
          %1643 = vmatprep.subr.mxu0 0.0
          %1644 = vmatpush1.msra.mxu0 0.0
          %1645 = vmatprep.subr.mxu0 0.0
          %1646 = vmatpush1.msra.mxu0 0.0
          %1647 = vmatprep.subr.mxu0 0.0
          %1648 = vmatpush1.msra.mxu0 0.0
          %1649 = vmatprep.subr.mxu0 0.0
          %1650 = vmatpush1.msra.mxu0 0.0
          %1651 = vmatprep.subr.mxu0 0.0
          %1652 = vmatpush1.msra.mxu0 0.0
          %1653 = vmatprep.subr.mxu0 0.0
          %1654 = vmatpush1.msra.mxu0 0.0
          %1655 = vmatprep.subr.mxu0 0.0
          %1656 = vmatpush1.msra.mxu0 0.0
          %1657 = vmatprep.subr.mxu0 0.0
          %1658 = vmatpush1.msra.mxu0 0.0
          %1659 = vmatprep.subr.mxu0 0.0
          %1660 = vmatpush1.msra.mxu0 0.0
          %1661 = vmatprep.subr.mxu0 0.0
          %1662 = vmatpush1.msra.mxu0 0.0
          %1663 = vmatprep.subr.mxu0 0.0
          %1664 = vmatpush1.msra.mxu0 0.0
          %1665 = vmatprep.subr.mxu0 0.0
          %1666 = vmatpush1.msra.mxu0 0.0
          %1667 = vmatprep.subr.mxu0 0.0
          %1668 = vmatpush1.msra.mxu0 0.0
          %1669 = vmatprep.subr.mxu0 0.0
          %1670 = vmatpush1.msra.mxu0 0.0
          %1671 = vmatprep.subr.mxu0 0.0
          %1672 = vmatpush1.msra.mxu0 0.0
          %1673 = vmatprep.subr.mxu0 0.0
          %1674 = vmatpush1.msra.mxu0 0.0
          %1675 = vmatprep.subr.mxu0 0.0
          %1676 = vmatpush1.msra.mxu0 0.0
          %1677 = vmatprep.subr.mxu0 0.0
          %1678 = vmatpush1.msra.mxu0 0.0
          %1679 = vmatprep.subr.mxu0 0.0
          %1680 = vmatpush1.msra.mxu0 0.0
          %1681 = vmatprep.subr.mxu0 0.0
          %1682 = vmatpush1.msra.mxu0 0.0
          %1683 = vmatprep.mubr.f32.mxu0 0.0
          %1684 = vmatmul.mubr.f32.gmra.mrb[0].mxu0 %v649
          %v1685 = vpop.f32.mrb[0].mxu0
          %v1686 = vadd.f32 0.0, %v1685
          %v1687 = vpop.f32.mrb[0].mxu0
          %1688 = vdwg.mxu0
          %s1689 = scalar_lea.vmem %s8, 320
          %v1690 = vld [vmem:[%s1689] sm:$0xff]
          %v1691 = vld [vmem:[%s1689 + $0x8] sm:$0xff]
          %v1692 = vld [vmem:[%s1689 + $0x10] sm:$0xff]
          %v1693 = vld [vmem:[%s1689 + $0x18] sm:$0xff]
          %v1694 = vld [vmem:[%s1689 + $0x20] sm:$0xff]
          %v1695 = vld [vmem:[%s1689 + $0x28] sm:$0xff]
          %v1696 = vld [vmem:[%s1689 + $0x30] sm:$0xff]
          %v1697 = vld [vmem:[%s1689 + $0x38] sm:$0xff]
          %1698 = vmatprep.subr.mxu0 0.0
          %1699 = vmatpush1.msra.mxu0 %v1690
          %1700 = vmatprep.subr.mxu0 0.0
          %1701 = vmatpush1.msra.mxu0 %v1691
          %1702 = vmatprep.subr.mxu0 0.0
          %1703 = vmatpush1.msra.mxu0 %v1692
          %1704 = vmatprep.subr.mxu0 0.0
          %1705 = vmatpush1.msra.mxu0 %v1693
          %1706 = vmatprep.subr.mxu0 0.0
          %1707 = vmatpush1.msra.mxu0 %v1694
          %1708 = vmatprep.subr.mxu0 0.0
          %1709 = vmatpush1.msra.mxu0 %v1695
          %1710 = vmatprep.subr.mxu0 0.0
          %1711 = vmatpush1.msra.mxu0 %v1696
          %1712 = vmatprep.subr.mxu0 0.0
          %1713 = vmatpush1.msra.mxu0 %v1697
          %1714 = vmatprep.subr.mxu0 0.0
          %1715 = vmatpush1.msra.mxu0 0.0
          %1716 = vmatprep.subr.mxu0 0.0
          %1717 = vmatpush1.msra.mxu0 0.0
          %1718 = vmatprep.subr.mxu0 0.0
          %1719 = vmatpush1.msra.mxu0 0.0
          %1720 = vmatprep.subr.mxu0 0.0
          %1721 = vmatpush1.msra.mxu0 0.0
          %1722 = vmatprep.subr.mxu0 0.0
          %1723 = vmatpush1.msra.mxu0 0.0
          %1724 = vmatprep.subr.mxu0 0.0
          %1725 = vmatpush1.msra.mxu0 0.0
          %1726 = vmatprep.subr.mxu0 0.0
          %1727 = vmatpush1.msra.mxu0 0.0
          %1728 = vmatprep.subr.mxu0 0.0
          %1729 = vmatpush1.msra.mxu0 0.0
          %1730 = vmatprep.subr.mxu0 0.0
          %1731 = vmatpush1.msra.mxu0 0.0
          %1732 = vmatprep.subr.mxu0 0.0
          %1733 = vmatpush1.msra.mxu0 0.0
          %1734 = vmatprep.subr.mxu0 0.0
          %1735 = vmatpush1.msra.mxu0 0.0
          %1736 = vmatprep.subr.mxu0 0.0
          %1737 = vmatpush1.msra.mxu0 0.0
          %1738 = vmatprep.subr.mxu0 0.0
          %1739 = vmatpush1.msra.mxu0 0.0
          %1740 = vmatprep.subr.mxu0 0.0
          %1741 = vmatpush1.msra.mxu0 0.0
          %1742 = vmatprep.subr.mxu0 0.0
          %1743 = vmatpush1.msra.mxu0 0.0
          %1744 = vmatprep.subr.mxu0 0.0
          %1745 = vmatpush1.msra.mxu0 0.0
          %1746 = vmatprep.subr.mxu0 0.0
          %1747 = vmatpush1.msra.mxu0 0.0
          %1748 = vmatprep.subr.mxu0 0.0
          %1749 = vmatpush1.msra.mxu0 0.0
          %1750 = vmatprep.subr.mxu0 0.0
          %1751 = vmatpush1.msra.mxu0 0.0
          %1752 = vmatprep.subr.mxu0 0.0
          %1753 = vmatpush1.msra.mxu0 0.0
          %1754 = vmatprep.subr.mxu0 0.0
          %1755 = vmatpush1.msra.mxu0 0.0
          %1756 = vmatprep.subr.mxu0 0.0
          %1757 = vmatpush1.msra.mxu0 0.0
          %1758 = vmatprep.subr.mxu0 0.0
          %1759 = vmatpush1.msra.mxu0 0.0
          %1760 = vmatprep.subr.mxu0 0.0
          %1761 = vmatpush1.msra.mxu0 0.0
          %1762 = vmatprep.mubr.f32.mxu0 0.0
          %1763 = vmatmul.mubr.f32.gmra.mrb[0].mxu0 %v649
          %v1764 = vpop.f32.mrb[0].mxu0
          %v1765 = vadd.f32 0.0, %v1764
          %v1766 = vpop.f32.mrb[0].mxu0
          %1767 = vdwg.mxu0
          %1768 = vxpose.xlu0.b32.start [1/16] %v1686, 128
          %1769 = vxpose.xlu0.b32.cont [2/16] 0.0, 128
          %1770 = vxpose.xlu0.b32.cont [3/16] 0.0, 128
          %1771 = vxpose.xlu0.b32.cont [4/16] 0.0, 128
          %1772 = vxpose.xlu0.b32.cont [5/16] 0.0, 128
          %1773 = vxpose.xlu0.b32.cont [6/16] 0.0, 128
          %1774 = vxpose.xlu0.b32.cont [7/16] 0.0, 128
          %1775 = vxpose.xlu0.b32.cont [8/16] 0.0, 128
          %1776 = vxpose.xlu0.b32.cont [9/16] 0.0, 128
          %1777 = vxpose.xlu0.b32.cont [10/16] 0.0, 128
          %1778 = vxpose.xlu0.b32.cont [11/16] 0.0, 128
          %1779 = vxpose.xlu0.b32.cont [12/16] 0.0, 128
          %1780 = vxpose.xlu0.b32.cont [13/16] 0.0, 128
          %1781 = vxpose.xlu0.b32.cont [14/16] 0.0, 128
          %1782 = vxpose.xlu0.b32.cont [15/16] 0.0, 128
          %1783 = vxpose.xlu0.b32.end [16/16] 0.0, 128
          %v1784 = vpop.trf.xlu0
          %v1785 = vpop.trf.xlu0
          %v1786 = vpop.trf.xlu0
          %v1787 = vpop.trf.xlu0
          %v1788 = vpop.trf.xlu0
          %v1789 = vpop.trf.xlu0
          %v1790 = vpop.trf.xlu0
          %v1791 = vpop.trf.xlu0
          %v1792 = vpop.trf.xlu0
          %v1793 = vpop.trf.xlu0
          %v1794 = vpop.trf.xlu0
          %v1795 = vpop.trf.xlu0
          %v1796 = vpop.trf.xlu0
          %v1797 = vpop.trf.xlu0
          %v1798 = vpop.trf.xlu0
          %v1799 = vpop.trf.xlu0
          %s1800 = scalar_lea.vmem [#allocation2], 40
          %1801 = vst.msk [vmem:[%s1800] sm:$0xff] %vm831, %v1784
          %s1802 = scalar_lea.vmem [#allocation3], 40
          %1803 = vst.msk [vmem:[%s1802] sm:$0xff] %vm831, %v1765
          %s1804 = scalar_lea.vmem %s7, 384
          %v1805 = vld [vmem:[%s1804] sm:$0xff]
          %v1806 = vld [vmem:[%s1804 + $0x8] sm:$0xff]
          %v1807 = vld [vmem:[%s1804 + $0x10] sm:$0xff]
          %v1808 = vld [vmem:[%s1804 + $0x18] sm:$0xff]
          %v1809 = vld [vmem:[%s1804 + $0x20] sm:$0xff]
          %v1810 = vld [vmem:[%s1804 + $0x28] sm:$0xff]
          %v1811 = vld [vmem:[%s1804 + $0x30] sm:$0xff]
          %v1812 = vld [vmem:[%s1804 + $0x38] sm:$0xff]
          %1813 = vmatprep.subr.mxu0 0.0
          %1814 = vmatpush1.msra.mxu0 %v1805
          %1815 = vmatprep.subr.mxu0 0.0
          %1816 = vmatpush1.msra.mxu0 %v1806
          %1817 = vmatprep.subr.mxu0 0.0
          %1818 = vmatpush1.msra.mxu0 %v1807
          %1819 = vmatprep.subr.mxu0 0.0
          %1820 = vmatpush1.msra.mxu0 %v1808
          %1821 = vmatprep.subr.mxu0 0.0
          %1822 = vmatpush1.msra.mxu0 %v1809
          %1823 = vmatprep.subr.mxu0 0.0
          %1824 = vmatpush1.msra.mxu0 %v1810
          %1825 = vmatprep.subr.mxu0 0.0
          %1826 = vmatpush1.msra.mxu0 %v1811
          %1827 = vmatprep.subr.mxu0 0.0
          %1828 = vmatpush1.msra.mxu0 %v1812
          %1829 = vmatprep.subr.mxu0 0.0
          %1830 = vmatpush1.msra.mxu0 0.0
          %1831 = vmatprep.subr.mxu0 0.0
          %1832 = vmatpush1.msra.mxu0 0.0
          %1833 = vmatprep.subr.mxu0 0.0
          %1834 = vmatpush1.msra.mxu0 0.0
          %1835 = vmatprep.subr.mxu0 0.0
          %1836 = vmatpush1.msra.mxu0 0.0
          %1837 = vmatprep.subr.mxu0 0.0
          %1838 = vmatpush1.msra.mxu0 0.0
          %1839 = vmatprep.subr.mxu0 0.0
          %1840 = vmatpush1.msra.mxu0 0.0
          %1841 = vmatprep.subr.mxu0 0.0
          %1842 = vmatpush1.msra.mxu0 0.0
          %1843 = vmatprep.subr.mxu0 0.0
          %1844 = vmatpush1.msra.mxu0 0.0
          %1845 = vmatprep.subr.mxu0 0.0
          %1846 = vmatpush1.msra.mxu0 0.0
          %1847 = vmatprep.subr.mxu0 0.0
          %1848 = vmatpush1.msra.mxu0 0.0
          %1849 = vmatprep.subr.mxu0 0.0
          %1850 = vmatpush1.msra.mxu0 0.0
          %1851 = vmatprep.subr.mxu0 0.0
          %1852 = vmatpush1.msra.mxu0 0.0
          %1853 = vmatprep.subr.mxu0 0.0
          %1854 = vmatpush1.msra.mxu0 0.0
          %1855 = vmatprep.subr.mxu0 0.0
          %1856 = vmatpush1.msra.mxu0 0.0
          %1857 = vmatprep.subr.mxu0 0.0
          %1858 = vmatpush1.msra.mxu0 0.0
          %1859 = vmatprep.subr.mxu0 0.0
          %1860 = vmatpush1.msra.mxu0 0.0
          %1861 = vmatprep.subr.mxu0 0.0
          %1862 = vmatpush1.msra.mxu0 0.0
          %1863 = vmatprep.subr.mxu0 0.0
          %1864 = vmatpush1.msra.mxu0 0.0
          %1865 = vmatprep.subr.mxu0 0.0
          %1866 = vmatpush1.msra.mxu0 0.0
          %1867 = vmatprep.subr.mxu0 0.0
          %1868 = vmatpush1.msra.mxu0 0.0
          %1869 = vmatprep.subr.mxu0 0.0
          %1870 = vmatpush1.msra.mxu0 0.0
          %1871 = vmatprep.subr.mxu0 0.0
          %1872 = vmatpush1.msra.mxu0 0.0
          %1873 = vmatprep.subr.mxu0 0.0
          %1874 = vmatpush1.msra.mxu0 0.0
          %1875 = vmatprep.subr.mxu0 0.0
          %1876 = vmatpush1.msra.mxu0 0.0
          %1877 = vmatprep.mubr.f32.mxu0 0.0
          %1878 = vmatmul.mubr.f32.gmra.mrb[0].mxu0 %v649
          %v1879 = vpop.f32.mrb[0].mxu0
          %v1880 = vadd.f32 0.0, %v1879
          %v1881 = vpop.f32.mrb[0].mxu0
          %1882 = vdwg.mxu0
          %s1883 = scalar_lea.vmem %s8, 384
          %v1884 = vld [vmem:[%s1883] sm:$0xff]
          %v1885 = vld [vmem:[%s1883 + $0x8] sm:$0xff]
          %v1886 = vld [vmem:[%s1883 + $0x10] sm:$0xff]
          %v1887 = vld [vmem:[%s1883 + $0x18] sm:$0xff]
          %v1888 = vld [vmem:[%s1883 + $0x20] sm:$0xff]
          %v1889 = vld [vmem:[%s1883 + $0x28] sm:$0xff]
          %v1890 = vld [vmem:[%s1883 + $0x30] sm:$0xff]
          %v1891 = vld [vmem:[%s1883 + $0x38] sm:$0xff]
          %1892 = vmatprep.subr.mxu0 0.0
          %1893 = vmatpush1.msra.mxu0 %v1884
          %1894 = vmatprep.subr.mxu0 0.0
          %1895 = vmatpush1.msra.mxu0 %v1885
          %1896 = vmatprep.subr.mxu0 0.0
          %1897 = vmatpush1.msra.mxu0 %v1886
          %1898 = vmatprep.subr.mxu0 0.0
          %1899 = vmatpush1.msra.mxu0 %v1887
          %1900 = vmatprep.subr.mxu0 0.0
          %1901 = vmatpush1.msra.mxu0 %v1888
          %1902 = vmatprep.subr.mxu0 0.0
          %1903 = vmatpush1.msra.mxu0 %v1889
          %1904 = vmatprep.subr.mxu0 0.0
          %1905 = vmatpush1.msra.mxu0 %v1890
          %1906 = vmatprep.subr.mxu0 0.0
          %1907 = vmatpush1.msra.mxu0 %v1891
          %1908 = vmatprep.subr.mxu0 0.0
          %1909 = vmatpush1.msra.mxu0 0.0
          %1910 = vmatprep.subr.mxu0 0.0
          %1911 = vmatpush1.msra.mxu0 0.0
          %1912 = vmatprep.subr.mxu0 0.0
          %1913 = vmatpush1.msra.mxu0 0.0
          %1914 = vmatprep.subr.mxu0 0.0
          %1915 = vmatpush1.msra.mxu0 0.0
          %1916 = vmatprep.subr.mxu0 0.0
          %1917 = vmatpush1.msra.mxu0 0.0
          %1918 = vmatprep.subr.mxu0 0.0
          %1919 = vmatpush1.msra.mxu0 0.0
          %1920 = vmatprep.subr.mxu0 0.0
          %1921 = vmatpush1.msra.mxu0 0.0
          %1922 = vmatprep.subr.mxu0 0.0
          %1923 = vmatpush1.msra.mxu0 0.0
          %1924 = vmatprep.subr.mxu0 0.0
          %1925 = vmatpush1.msra.mxu0 0.0
          %1926 = vmatprep.subr.mxu0 0.0
          %1927 = vmatpush1.msra.mxu0 0.0
          %1928 = vmatprep.subr.mxu0 0.0
          %1929 = vmatpush1.msra.mxu0 0.0
          %1930 = vmatprep.subr.mxu0 0.0
          %1931 = vmatpush1.msra.mxu0 0.0
          %1932 = vmatprep.subr.mxu0 0.0
          %1933 = vmatpush1.msra.mxu0 0.0
          %1934 = vmatprep.subr.mxu0 0.0
          %1935 = vmatpush1.msra.mxu0 0.0
          %1936 = vmatprep.subr.mxu0 0.0
          %1937 = vmatpush1.msra.mxu0 0.0
          %1938 = vmatprep.subr.mxu0 0.0
          %1939 = vmatpush1.msra.mxu0 0.0
          %1940 = vmatprep.subr.mxu0 0.0
          %1941 = vmatpush1.msra.mxu0 0.0
          %1942 = vmatprep.subr.mxu0 0.0
          %1943 = vmatpush1.msra.mxu0 0.0
          %1944 = vmatprep.subr.mxu0 0.0
          %1945 = vmatpush1.msra.mxu0 0.0
          %1946 = vmatprep.subr.mxu0 0.0
          %1947 = vmatpush1.msra.mxu0 0.0
          %1948 = vmatprep.subr.mxu0 0.0
          %1949 = vmatpush1.msra.mxu0 0.0
          %1950 = vmatprep.subr.mxu0 0.0
          %1951 = vmatpush1.msra.mxu0 0.0
          %1952 = vmatprep.subr.mxu0 0.0
          %1953 = vmatpush1.msra.mxu0 0.0
          %1954 = vmatprep.subr.mxu0 0.0
          %1955 = vmatpush1.msra.mxu0 0.0
          %1956 = vmatprep.mubr.f32.mxu0 0.0
          %1957 = vmatmul.mubr.f32.gmra.mrb[0].mxu0 %v649
          %v1958 = vpop.f32.mrb[0].mxu0
          %v1959 = vadd.f32 0.0, %v1958
          %v1960 = vpop.f32.mrb[0].mxu0
          %1961 = vdwg.mxu0
          %1962 = vxpose.xlu0.b32.start [1/16] %v1880, 128
          %1963 = vxpose.xlu0.b32.cont [2/16] 0.0, 128
          %1964 = vxpose.xlu0.b32.cont [3/16] 0.0, 128
          %1965 = vxpose.xlu0.b32.cont [4/16] 0.0, 128
          %1966 = vxpose.xlu0.b32.cont [5/16] 0.0, 128
          %1967 = vxpose.xlu0.b32.cont [6/16] 0.0, 128
          %1968 = vxpose.xlu0.b32.cont [7/16] 0.0, 128
          %1969 = vxpose.xlu0.b32.cont [8/16] 0.0, 128
          %1970 = vxpose.xlu0.b32.cont [9/16] 0.0, 128
          %1971 = vxpose.xlu0.b32.cont [10/16] 0.0, 128
          %1972 = vxpose.xlu0.b32.cont [11/16] 0.0, 128
          %1973 = vxpose.xlu0.b32.cont [12/16] 0.0, 128
          %1974 = vxpose.xlu0.b32.cont [13/16] 0.0, 128
          %1975 = vxpose.xlu0.b32.cont [14/16] 0.0, 128
          %1976 = vxpose.xlu0.b32.cont [15/16] 0.0, 128
          %1977 = vxpose.xlu0.b32.end [16/16] 0.0, 128
          %v1978 = vpop.trf.xlu0
          %v1979 = vpop.trf.xlu0
          %v1980 = vpop.trf.xlu0
          %v1981 = vpop.trf.xlu0
          %v1982 = vpop.trf.xlu0
          %v1983 = vpop.trf.xlu0
          %v1984 = vpop.trf.xlu0
          %v1985 = vpop.trf.xlu0
          %v1986 = vpop.trf.xlu0
          %v1987 = vpop.trf.xlu0
          %v1988 = vpop.trf.xlu0
          %v1989 = vpop.trf.xlu0
          %v1990 = vpop.trf.xlu0
          %v1991 = vpop.trf.xlu0
          %v1992 = vpop.trf.xlu0
          %v1993 = vpop.trf.xlu0
          %s1994 = scalar_lea.vmem [#allocation2], 48
          %1995 = vst.msk [vmem:[%s1994] sm:$0xff] %vm831, %v1978
          %s1996 = scalar_lea.vmem [#allocation3], 48
          %1997 = vst.msk [vmem:[%s1996] sm:$0xff] %vm831, %v1959
          %s1998 = scalar_lea.vmem %s7, 448
          %v1999 = vld [vmem:[%s1998] sm:$0xff]
          %v2000 = vld [vmem:[%s1998 + $0x8] sm:$0xff]
          %v2001 = vld [vmem:[%s1998 + $0x10] sm:$0xff]
          %v2002 = vld [vmem:[%s1998 + $0x18] sm:$0xff]
          %v2003 = vld [vmem:[%s1998 + $0x20] sm:$0xff]
          %v2004 = vld [vmem:[%s1998 + $0x28] sm:$0xff]
          %v2005 = vld [vmem:[%s1998 + $0x30] sm:$0xff]
          %v2006 = vld [vmem:[%s1998 + $0x38] sm:$0xff]
          %2007 = vmatprep.subr.mxu0 0.0
          %2008 = vmatpush1.msra.mxu0 %v1999
          %2009 = vmatprep.subr.mxu0 0.0
          %2010 = vmatpush1.msra.mxu0 %v2000
          %2011 = vmatprep.subr.mxu0 0.0
          %2012 = vmatpush1.msra.mxu0 %v2001
          %2013 = vmatprep.subr.mxu0 0.0
          %2014 = vmatpush1.msra.mxu0 %v2002
          %2015 = vmatprep.subr.mxu0 0.0
          %2016 = vmatpush1.msra.mxu0 %v2003
          %2017 = vmatprep.subr.mxu0 0.0
          %2018 = vmatpush1.msra.mxu0 %v2004
          %2019 = vmatprep.subr.mxu0 0.0
          %2020 = vmatpush1.msra.mxu0 %v2005
          %2021 = vmatprep.subr.mxu0 0.0
          %2022 = vmatpush1.msra.mxu0 %v2006
          %2023 = vmatprep.subr.mxu0 0.0
          %2024 = vmatpush1.msra.mxu0 0.0
          %2025 = vmatprep.subr.mxu0 0.0
          %2026 = vmatpush1.msra.mxu0 0.0
          %2027 = vmatprep.subr.mxu0 0.0
          %2028 = vmatpush1.msra.mxu0 0.0
          %2029 = vmatprep.subr.mxu0 0.0
          %2030 = vmatpush1.msra.mxu0 0.0
          %2031 = vmatprep.subr.mxu0 0.0
          %2032 = vmatpush1.msra.mxu0 0.0
          %2033 = vmatprep.subr.mxu0 0.0
          %2034 = vmatpush1.msra.mxu0 0.0
          %2035 = vmatprep.subr.mxu0 0.0
          %2036 = vmatpush1.msra.mxu0 0.0
          %2037 = vmatprep.subr.mxu0 0.0
          %2038 = vmatpush1.msra.mxu0 0.0
          %2039 = vmatprep.subr.mxu0 0.0
          %2040 = vmatpush1.msra.mxu0 0.0
          %2041 = vmatprep.subr.mxu0 0.0
          %2042 = vmatpush1.msra.mxu0 0.0
          %2043 = vmatprep.subr.mxu0 0.0
          %2044 = vmatpush1.msra.mxu0 0.0
          %2045 = vmatprep.subr.mxu0 0.0
          %2046 = vmatpush1.msra.mxu0 0.0
          %2047 = vmatprep.subr.mxu0 0.0
          %2048 = vmatpush1.msra.mxu0 0.0
          %2049 = vmatprep.subr.mxu0 0.0
          %2050 = vmatpush1.msra.mxu0 0.0
          %2051 = vmatprep.subr.mxu0 0.0
          %2052 = vmatpush1.msra.mxu0 0.0
          %2053 = vmatprep.subr.mxu0 0.0
          %2054 = vmatpush1.msra.mxu0 0.0
          %2055 = vmatprep.subr.mxu0 0.0
          %2056 = vmatpush1.msra.mxu0 0.0
          %2057 = vmatprep.subr.mxu0 0.0
          %2058 = vmatpush1.msra.mxu0 0.0
          %2059 = vmatprep.subr.mxu0 0.0
          %2060 = vmatpush1.msra.mxu0 0.0
          %2061 = vmatprep.subr.mxu0 0.0
          %2062 = vmatpush1.msra.mxu0 0.0
          %2063 = vmatprep.subr.mxu0 0.0
          %2064 = vmatpush1.msra.mxu0 0.0
          %2065 = vmatprep.subr.mxu0 0.0
          %2066 = vmatpush1.msra.mxu0 0.0
          %2067 = vmatprep.subr.mxu0 0.0
          %2068 = vmatpush1.msra.mxu0 0.0
          %2069 = vmatprep.subr.mxu0 0.0
          %2070 = vmatpush1.msra.mxu0 0.0
          %2071 = vmatprep.mubr.f32.mxu0 0.0
          %2072 = vmatmul.mubr.f32.gmra.mrb[0].mxu0 %v649
          %v2073 = vpop.f32.mrb[0].mxu0
          %v2074 = vadd.f32 0.0, %v2073
          %v2075 = vpop.f32.mrb[0].mxu0
          %2076 = vdwg.mxu0
          %s2077 = scalar_lea.vmem %s8, 448
          %v2078 = vld [vmem:[%s2077] sm:$0xff]
          %v2079 = vld [vmem:[%s2077 + $0x8] sm:$0xff]
          %v2080 = vld [vmem:[%s2077 + $0x10] sm:$0xff]
          %v2081 = vld [vmem:[%s2077 + $0x18] sm:$0xff]
          %v2082 = vld [vmem:[%s2077 + $0x20] sm:$0xff]
          %v2083 = vld [vmem:[%s2077 + $0x28] sm:$0xff]
          %v2084 = vld [vmem:[%s2077 + $0x30] sm:$0xff]
          %v2085 = vld [vmem:[%s2077 + $0x38] sm:$0xff]
          %2086 = vmatprep.subr.mxu0 0.0
          %2087 = vmatpush1.msra.mxu0 %v2078
          %2088 = vmatprep.subr.mxu0 0.0
          %2089 = vmatpush1.msra.mxu0 %v2079
          %2090 = vmatprep.subr.mxu0 0.0
          %2091 = vmatpush1.msra.mxu0 %v2080
          %2092 = vmatprep.subr.mxu0 0.0
          %2093 = vmatpush1.msra.mxu0 %v2081
          %2094 = vmatprep.subr.mxu0 0.0
          %2095 = vmatpush1.msra.mxu0 %v2082
          %2096 = vmatprep.subr.mxu0 0.0
          %2097 = vmatpush1.msra.mxu0 %v2083
          %2098 = vmatprep.subr.mxu0 0.0
          %2099 = vmatpush1.msra.mxu0 %v2084
          %2100 = vmatprep.subr.mxu0 0.0
          %2101 = vmatpush1.msra.mxu0 %v2085
          %2102 = vmatprep.subr.mxu0 0.0
          %2103 = vmatpush1.msra.mxu0 0.0
          %2104 = vmatprep.subr.mxu0 0.0
          %2105 = vmatpush1.msra.mxu0 0.0
          %2106 = vmatprep.subr.mxu0 0.0
          %2107 = vmatpush1.msra.mxu0 0.0
          %2108 = vmatprep.subr.mxu0 0.0
          %2109 = vmatpush1.msra.mxu0 0.0
          %2110 = vmatprep.subr.mxu0 0.0
          %2111 = vmatpush1.msra.mxu0 0.0
          %2112 = vmatprep.subr.mxu0 0.0
          %2113 = vmatpush1.msra.mxu0 0.0
          %2114 = vmatprep.subr.mxu0 0.0
          %2115 = vmatpush1.msra.mxu0 0.0
          %2116 = vmatprep.subr.mxu0 0.0
          %2117 = vmatpush1.msra.mxu0 0.0
          %2118 = vmatprep.subr.mxu0 0.0
          %2119 = vmatpush1.msra.mxu0 0.0
          %2120 = vmatprep.subr.mxu0 0.0
          %2121 = vmatpush1.msra.mxu0 0.0
          %2122 = vmatprep.subr.mxu0 0.0
          %2123 = vmatpush1.msra.mxu0 0.0
          %2124 = vmatprep.subr.mxu0 0.0
          %2125 = vmatpush1.msra.mxu0 0.0
          %2126 = vmatprep.subr.mxu0 0.0
          %2127 = vmatpush1.msra.mxu0 0.0
          %2128 = vmatprep.subr.mxu0 0.0
          %2129 = vmatpush1.msra.mxu0 0.0
          %2130 = vmatprep.subr.mxu0 0.0
          %2131 = vmatpush1.msra.mxu0 0.0
          %2132 = vmatprep.subr.mxu0 0.0
          %2133 = vmatpush1.msra.mxu0 0.0
          %2134 = vmatprep.subr.mxu0 0.0
          %2135 = vmatpush1.msra.mxu0 0.0
          %2136 = vmatprep.subr.mxu0 0.0
          %2137 = vmatpush1.msra.mxu0 0.0
          %2138 = vmatprep.subr.mxu0 0.0
          %2139 = vmatpush1.msra.mxu0 0.0
          %2140 = vmatprep.subr.mxu0 0.0
          %2141 = vmatpush1.msra.mxu0 0.0
          %2142 = vmatprep.subr.mxu0 0.0
          %2143 = vmatpush1.msra.mxu0 0.0
          %2144 = vmatprep.subr.mxu0 0.0
          %2145 = vmatpush1.msra.mxu0 0.0
          %2146 = vmatprep.subr.mxu0 0.0
          %2147 = vmatpush1.msra.mxu0 0.0
          %2148 = vmatprep.subr.mxu0 0.0
          %2149 = vmatpush1.msra.mxu0 0.0
          %2150 = vmatprep.mubr.f32.mxu0 0.0
          %2151 = vmatmul.mubr.f32.gmra.mrb[0].mxu0 %v649
          %v2152 = vpop.f32.mrb[0].mxu0
          %v2153 = vadd.f32 0.0, %v2152
          %v2154 = vpop.f32.mrb[0].mxu0
          %2155 = vdwg.mxu0
          %2156 = vxpose.xlu0.b32.start [1/16] %v2074, 128
          %2157 = vxpose.xlu0.b32.cont [2/16] 0.0, 128
          %2158 = vxpose.xlu0.b32.cont [3/16] 0.0, 128
          %2159 = vxpose.xlu0.b32.cont [4/16] 0.0, 128
          %2160 = vxpose.xlu0.b32.cont [5/16] 0.0, 128
          %2161 = vxpose.xlu0.b32.cont [6/16] 0.0, 128
          %2162 = vxpose.xlu0.b32.cont [7/16] 0.0, 128
          %2163 = vxpose.xlu0.b32.cont [8/16] 0.0, 128
          %2164 = vxpose.xlu0.b32.cont [9/16] 0.0, 128
          %2165 = vxpose.xlu0.b32.cont [10/16] 0.0, 128
          %2166 = vxpose.xlu0.b32.cont [11/16] 0.0, 128
          %2167 = vxpose.xlu0.b32.cont [12/16] 0.0, 128
          %2168 = vxpose.xlu0.b32.cont [13/16] 0.0, 128
          %2169 = vxpose.xlu0.b32.cont [14/16] 0.0, 128
          %2170 = vxpose.xlu0.b32.cont [15/16] 0.0, 128
          %2171 = vxpose.xlu0.b32.end [16/16] 0.0, 128
          %v2172 = vpop.trf.xlu0
          %v2173 = vpop.trf.xlu0
          %v2174 = vpop.trf.xlu0
          %v2175 = vpop.trf.xlu0
          %v2176 = vpop.trf.xlu0
          %v2177 = vpop.trf.xlu0
          %v2178 = vpop.trf.xlu0
          %v2179 = vpop.trf.xlu0
          %v2180 = vpop.trf.xlu0
          %v2181 = vpop.trf.xlu0
          %v2182 = vpop.trf.xlu0
          %v2183 = vpop.trf.xlu0
          %v2184 = vpop.trf.xlu0
          %v2185 = vpop.trf.xlu0
          %v2186 = vpop.trf.xlu0
          %v2187 = vpop.trf.xlu0
          %s2188 = scalar_lea.vmem [#allocation2], 56
          %2189 = vst.msk [vmem:[%s2188] sm:$0xff] %vm831, %v2172
          %s2190 = scalar_lea.vmem [#allocation3], 56
          %2191 = vst.msk [vmem:[%s2190] sm:$0xff] %vm831, %v2153
        $region92: #{tpu_custom_call.1} parent=87 // pred_fallthru
          _
        %v2192 = vld [vmem:[%s588] sm:$0xff]
        %v2193 = vld [vmem:[%s588 + $0x8] sm:$0xff]
        %v2194 = vld [vmem:[%s2] sm:$0x1]
        %v2195 = vld [vmem:[%s3] sm:$0x1]
        %vm2196 = vcmask 523264
        %v2197 = vsel %vm2196, %v2192, 0.0
        %2198 = vadd.xlane.f32.xlu0 %v2197
        %v2199 = vpop.xlane.xlu0 %2198
        %v2200 = vsel %vm2196, %v2193, 0.0
        %2201 = vadd.xlane.f32.xlu0 %v2200
        %v2202 = vpop.xlane.xlu0 %2201
        %v2203 = vrcp.pop 64.0
        %v2204 = vmul.f32 %v2199, %v2203
        %v2205 = vmul.f32 %v2202, %v2203
        %v2206 = vsub.f32 %v2192, %v2204
        %v2207 = vsub.f32 %v2193, %v2205
        %v2208 = vmul.f32 %v2206, %v2206
        %v2209 = vmul.f32 %v2207, %v2207
        %v2210 = vsel %vm2196, %v2208, 0.0
        %2211 = vadd.xlane.f32.xlu0 %v2210
        %v2212 = vpop.xlane.xlu0 %2211
        %v2213 = vsel %vm2196, %v2209, 0.0
        %2214 = vadd.xlane.f32.xlu0 %v2213
        %v2215 = vpop.xlane.xlu0 %2214
        %v2216 = vmul.f32 %v2212, %v2203
        %v2217 = vmul.f32 %v2215, %v2203
        %v2218 = vadd.f32 %v2216, 1e-05
        %v2219 = vadd.f32 %v2217, 1e-05
        %v2220 = vrsqrt.pop %v2218
        %v2221 = vrsqrt.pop %v2219
        %v2222 = vmul.f32 %v2206, %v2220
        %v2223 = vmul.f32 %v2207, %v2221
        %v2225 = vlaneseq
        %v2226 = vshrl.u32 %v2225, 7
        %v2227 = vsub.s32 0, %v2226
        %v2228 = vrot.slane %v2194, %v2227
        %v2230 = vmul.f32 %v2222, %v2228
        %v2231 = vmul.f32 %v2223, %v2228
        %v2233 = vlaneseq
        %v2234 = vshrl.u32 %v2233, 7
        %v2235 = vsub.s32 0, %v2234
        %v2236 = vrot.slane %v2195, %v2235
        %v2238 = vadd.f32 %v2230, %v2236
        %v2239 = vadd.f32 %v2231, %v2236
        %v2240 = vld [vmem:[%s6] sm:$0xff]
        %v2241 = vld [vmem:[%s6 + $0x8] sm:$0xff]
        %v2242 = vld [vmem:[%s6 + $0x10] sm:$0xff]
        %v2243 = vld [vmem:[%s6 + $0x18] sm:$0xff]
        %v2244 = vld [vmem:[%s6 + $0x20] sm:$0xff]
        %v2245 = vld [vmem:[%s6 + $0x28] sm:$0xff]
        %v2246 = vld [vmem:[%s6 + $0x30] sm:$0xff]
        %v2247 = vld [vmem:[%s6 + $0x38] sm:$0xff]
        %v2249 = vsel %vm2196, %v2238, 0
        %v2252 = vsel %vm2196, %v2239, 0
        %2254 = vmatprep.subr.mxu0 0.0
        %2255 = vmatpush1.msra.mxu0 %v2240
        %2256 = vmatprep.subr.mxu0 0.0
        %2257 = vmatpush1.msra.mxu0 %v2241
        %2258 = vmatprep.subr.mxu0 0.0
        %2259 = vmatpush1.msra.mxu0 %v2242
        %2260 = vmatprep.subr.mxu0 0.0
        %2261 = vmatpush1.msra.mxu0 %v2243
        %2262 = vmatprep.subr.mxu0 0.0
        %2263 = vmatpush1.msra.mxu0 %v2244
        %2264 = vmatprep.subr.mxu0 0.0
        %2265 = vmatpush1.msra.mxu0 %v2245
        %2266 = vmatprep.subr.mxu0 0.0
        %2267 = vmatpush1.msra.mxu0 %v2246
        %2268 = vmatprep.subr.mxu0 0.0
        %2269 = vmatpush1.msra.mxu0 %v2247
        %2270 = vmatprep.subr.mxu0 0.0
        %2271 = vmatpush1.msra.mxu0 0.0
        %2272 = vmatprep.subr.mxu0 0.0
        %2273 = vmatpush1.msra.mxu0 0.0
        %2274 = vmatprep.subr.mxu0 0.0
        %2275 = vmatpush1.msra.mxu0 0.0
        %2276 = vmatprep.subr.mxu0 0.0
        %2277 = vmatpush1.msra.mxu0 0.0
        %2278 = vmatprep.subr.mxu0 0.0
        %2279 = vmatpush1.msra.mxu0 0.0
        %2280 = vmatprep.subr.mxu0 0.0
        %2281 = vmatpush1.msra.mxu0 0.0
        %2282 = vmatprep.subr.mxu0 0.0
        %2283 = vmatpush1.msra.mxu0 0.0
        %2284 = vmatprep.subr.mxu0 0.0
        %2285 = vmatpush1.msra.mxu0 0.0
        %2286 = vmatprep.subr.mxu0 0.0
        %2287 = vmatpush1.msra.mxu0 0.0
        %2288 = vmatprep.subr.mxu0 0.0
        %2289 = vmatpush1.msra.mxu0 0.0
        %2290 = vmatprep.subr.mxu0 0.0
        %2291 = vmatpush1.msra.mxu0 0.0
        %2292 = vmatprep.subr.mxu0 0.0
        %2293 = vmatpush1.msra.mxu0 0.0
        %2294 = vmatprep.subr.mxu0 0.0
        %2295 = vmatpush1.msra.mxu0 0.0
        %2296 = vmatprep.subr.mxu0 0.0
        %2297 = vmatpush1.msra.mxu0 0.0
        %2298 = vmatprep.subr.mxu0 0.0
        %2299 = vmatpush1.msra.mxu0 0.0
        %2300 = vmatprep.subr.mxu0 0.0
        %2301 = vmatpush1.msra.mxu0 0.0
        %2302 = vmatprep.subr.mxu0 0.0
        %2303 = vmatpush1.msra.mxu0 0.0
        %2304 = vmatprep.subr.mxu0 0.0
        %2305 = vmatpush1.msra.mxu0 0.0
        %2306 = vmatprep.subr.mxu0 0.0
        %2307 = vmatpush1.msra.mxu0 0.0
        %2308 = vmatprep.subr.mxu0 0.0
        %2309 = vmatpush1.msra.mxu0 0.0
        %2310 = vmatprep.subr.mxu0 0.0
        %2311 = vmatpush1.msra.mxu0 0.0
        %2312 = vmatprep.subr.mxu0 0.0
        %2313 = vmatpush1.msra.mxu0 0.0
        %2314 = vmatprep.subr.mxu0 0.0
        %2315 = vmatpush1.msra.mxu0 0.0
        %2316 = vmatprep.subr.mxu0 0.0
        %2317 = vmatpush1.msra.mxu0 0.0
        %2318 = vmatprep.mubr.f32.mxu0 0.0
        %2319 = vmatmul.mubr.f32.gmra.mrb[0].mxu0 %v2249
        %v2320 = vpop.f32.mrb[0].mxu0
        %v2321 = vadd.f32 0.0, %v2320
        %v2322 = vpop.f32.mrb[0].mxu0
        %2323 = vmatprep.mubr.f32.mxu0 0.0
        %2324 = vmatmul.mubr.f32.gmra.mrb[0].mxu0 %v2252
        %v2325 = vpop.f32.mrb[0].mxu0
        %v2326 = vadd.f32 0.0, %v2325
        %v2327 = vpop.f32.mrb[0].mxu0
        %2328 = vdwg.mxu0
        %v2329 = vld [vmem:[#allocation2] sm:$0xff]
        %vm2330 = vcmask 64512
        %v2332 = vsel %vm2330, %v2321, 0
        %v2335 = vsel %vm2330, %v2326, 0
        %2337 = vmatprep.subr.mxu0 0.0
        %2338 = vmatpush1.msra.mxu0 %v2329
        %2339 = vmatprep.subr.mxu0 0.0
        %2340 = vmatpush1.msra.mxu0 0.0
        %2341 = vmatprep.subr.mxu0 0.0
        %2342 = vmatpush1.msra.mxu0 0.0
        %2343 = vmatprep.subr.mxu0 0.0
        %2344 = vmatpush1.msra.mxu0 0.0
        %2345 = vmatprep.subr.mxu0 0.0
        %2346 = vmatpush1.msra.mxu0 0.0
        %2347 = vmatprep.subr.mxu0 0.0
        %2348 = vmatpush1.msra.mxu0 0.0
        %2349 = vmatprep.subr.mxu0 0.0
        %2350 = vmatpush1.msra.mxu0 0.0
        %2351 = vmatprep.subr.mxu0 0.0
        %2352 = vmatpush1.msra.mxu0 0.0
        %2353 = vmatprep.subr.mxu0 0.0
        %2354 = vmatpush1.msra.mxu0 0.0
        %2355 = vmatprep.subr.mxu0 0.0
        %2356 = vmatpush1.msra.mxu0 0.0
        %2357 = vmatprep.subr.mxu0 0.0
        %2358 = vmatpush1.msra.mxu0 0.0
        %2359 = vmatprep.subr.mxu0 0.0
        %2360 = vmatpush1.msra.mxu0 0.0
        %2361 = vmatprep.subr.mxu0 0.0
        %2362 = vmatpush1.msra.mxu0 0.0
        %2363 = vmatprep.subr.mxu0 0.0
        %2364 = vmatpush1.msra.mxu0 0.0
        %2365 = vmatprep.subr.mxu0 0.0
        %2366 = vmatpush1.msra.mxu0 0.0
        %2367 = vmatprep.subr.mxu0 0.0
        %2368 = vmatpush1.msra.mxu0 0.0
        %2369 = vmatprep.subr.mxu0 0.0
        %2370 = vmatpush1.msra.mxu0 0.0
        %2371 = vmatprep.subr.mxu0 0.0
        %2372 = vmatpush1.msra.mxu0 0.0
        %2373 = vmatprep.subr.mxu0 0.0
        %2374 = vmatpush1.msra.mxu0 0.0
        %2375 = vmatprep.subr.mxu0 0.0
        %2376 = vmatpush1.msra.mxu0 0.0
        %2377 = vmatprep.subr.mxu0 0.0
        %2378 = vmatpush1.msra.mxu0 0.0
        %2379 = vmatprep.subr.mxu0 0.0
        %2380 = vmatpush1.msra.mxu0 0.0
        %2381 = vmatprep.subr.mxu0 0.0
        %2382 = vmatpush1.msra.mxu0 0.0
        %2383 = vmatprep.subr.mxu0 0.0
        %2384 = vmatpush1.msra.mxu0 0.0
        %2385 = vmatprep.subr.mxu0 0.0
        %2386 = vmatpush1.msra.mxu0 0.0
        %2387 = vmatprep.subr.mxu0 0.0
        %2388 = vmatpush1.msra.mxu0 0.0
        %2389 = vmatprep.subr.mxu0 0.0
        %2390 = vmatpush1.msra.mxu0 0.0
        %2391 = vmatprep.subr.mxu0 0.0
        %2392 = vmatpush1.msra.mxu0 0.0
        %2393 = vmatprep.subr.mxu0 0.0
        %2394 = vmatpush1.msra.mxu0 0.0
        %2395 = vmatprep.subr.mxu0 0.0
        %2396 = vmatpush1.msra.mxu0 0.0
        %2397 = vmatprep.subr.mxu0 0.0
        %2398 = vmatpush1.msra.mxu0 0.0
        %2399 = vmatprep.subr.mxu0 0.0
        %2400 = vmatpush1.msra.mxu0 0.0
        %2401 = vmatprep.mubr.f32.mxu0 0.0
        %2402 = vmatmul.mubr.f32.gmra.mrb[0].mxu0 %v2332
        %v2403 = vpop.f32.mrb[0].mxu0
        %v2404 = vadd.f32 0.0, %v2403
        %v2405 = vpop.f32.mrb[0].mxu0
        %2406 = vmatprep.mubr.f32.mxu0 0.0
        %2407 = vmatmul.mubr.f32.gmra.mrb[0].mxu0 %v2335
        %v2408 = vpop.f32.mrb[0].mxu0
        %v2409 = vadd.f32 0.0, %v2408
        %v2410 = vpop.f32.mrb[0].mxu0
        %2411 = vdwg.mxu0
        %v2412 = vsel %vm2330, %v2404, -inf
        %2413 = vmax.xlane.f32.xlu0 %v2412
        %v2414 = vpop.xlane.xlu0 %2413
        %v2415 = vsel %vm2330, %v2409, -inf
        %2416 = vmax.xlane.f32.xlu0 %v2415
        %v2417 = vpop.xlane.xlu0 %2416
        %v2418 = vsub.f32 %v2404, %v2414
        %v2419 = vsub.f32 %v2409, %v2417
        %v2420 = vmul.f32 %v2418, 1.442695
        %v2421 = vpow.pop %v2420
        %v2422 = vmul.f32 %v2419, 1.442695
        %v2423 = vpow.pop %v2422
        %v2424 = vsel %vm2330, %v2421, 0.0
        %2425 = vadd.xlane.f32.xlu0 %v2424
        %v2426 = vpop.xlane.xlu0 %2425
        %v2427 = vsel %vm2330, %v2423, 0.0
        %2428 = vadd.xlane.f32.xlu0 %v2427
        %v2429 = vpop.xlane.xlu0 %2428
        %v2430 = vrcp.pop %v2426
        %v2431 = vmul.f32 1.0, %v2430
        %v2432 = vrcp.pop %v2429
        %v2433 = vmul.f32 1.0, %v2432
        %v2434 = vmul.f32 %v2421, %v2431
        %v2435 = vmul.f32 %v2423, %v2433
        %v2436 = vld [vmem:[#allocation3] sm:$0xff]
        %v2438 = vsel %vm2330, %v2434, 0
        %v2441 = vsel %vm2330, %v2435, 0
        %2443 = vmatprep.subr.mxu0 0.0
        %2444 = vmatpush1.msra.mxu0 %v2436
        %2445 = vmatprep.subr.mxu0 0.0
        %2446 = vmatpush1.msra.mxu0 0.0
        %2447 = vmatprep.subr.mxu0 0.0
        %2448 = vmatpush1.msra.mxu0 0.0
        %2449 = vmatprep.subr.mxu0 0.0
        %2450 = vmatpush1.msra.mxu0 0.0
        %2451 = vmatprep.subr.mxu0 0.0
        %2452 = vmatpush1.msra.mxu0 0.0
        %2453 = vmatprep.subr.mxu0 0.0
        %2454 = vmatpush1.msra.mxu0 0.0
        %2455 = vmatprep.subr.mxu0 0.0
        %2456 = vmatpush1.msra.mxu0 0.0
        %2457 = vmatprep.subr.mxu0 0.0
        %2458 = vmatpush1.msra.mxu0 0.0
        %2459 = vmatprep.subr.mxu0 0.0
        %2460 = vmatpush1.msra.mxu0 0.0
        %2461 = vmatprep.subr.mxu0 0.0
        %2462 = vmatpush1.msra.mxu0 0.0
        %2463 = vmatprep.subr.mxu0 0.0
        %2464 = vmatpush1.msra.mxu0 0.0
        %2465 = vmatprep.subr.mxu0 0.0
        %2466 = vmatpush1.msra.mxu0 0.0
        %2467 = vmatprep.subr.mxu0 0.0
        %2468 = vmatpush1.msra.mxu0 0.0
        %2469 = vmatprep.subr.mxu0 0.0
        %2470 = vmatpush1.msra.mxu0 0.0
        %2471 = vmatprep.subr.mxu0 0.0
        %2472 = vmatpush1.msra.mxu0 0.0
        %2473 = vmatprep.subr.mxu0 0.0
        %2474 = vmatpush1.msra.mxu0 0.0
        %2475 = vmatprep.subr.mxu0 0.0
        %2476 = vmatpush1.msra.mxu0 0.0
        %2477 = vmatprep.subr.mxu0 0.0
        %2478 = vmatpush1.msra.mxu0 0.0
        %2479 = vmatprep.subr.mxu0 0.0
        %2480 = vmatpush1.msra.mxu0 0.0
        %2481 = vmatprep.subr.mxu0 0.0
        %2482 = vmatpush1.msra.mxu0 0.0
        %2483 = vmatprep.subr.mxu0 0.0
        %2484 = vmatpush1.msra.mxu0 0.0
        %2485 = vmatprep.subr.mxu0 0.0
        %2486 = vmatpush1.msra.mxu0 0.0
        %2487 = vmatprep.subr.mxu0 0.0
        %2488 = vmatpush1.msra.mxu0 0.0
        %2489 = vmatprep.subr.mxu0 0.0
        %2490 = vmatpush1.msra.mxu0 0.0
        %2491 = vmatprep.subr.mxu0 0.0
        %2492 = vmatpush1.msra.mxu0 0.0
        %2493 = vmatprep.subr.mxu0 0.0
        %2494 = vmatpush1.msra.mxu0 0.0
        %2495 = vmatprep.subr.mxu0 0.0
        %2496 = vmatpush1.msra.mxu0 0.0
        %2497 = vmatprep.subr.mxu0 0.0
        %2498 = vmatpush1.msra.mxu0 0.0
        %2499 = vmatprep.subr.mxu0 0.0
        %2500 = vmatpush1.msra.mxu0 0.0
        %2501 = vmatprep.subr.mxu0 0.0
        %2502 = vmatpush1.msra.mxu0 0.0
        %2503 = vmatprep.subr.mxu0 0.0
        %2504 = vmatpush1.msra.mxu0 0.0
        %2505 = vmatprep.subr.mxu0 0.0
        %2506 = vmatpush1.msra.mxu0 0.0
        %2507 = vmatprep.mubr.f32.mxu0 0.0
        %2508 = vmatmul.mubr.f32.gmra.mrb[0].mxu0 %v2438
        %v2509 = vpop.f32.mrb[0].mxu0
        %v2510 = vadd.f32 0.0, %v2509
        %v2511 = vpop.f32.mrb[0].mxu0
        %2512 = vmatprep.mubr.f32.mxu0 0.0
        %2513 = vmatmul.mubr.f32.gmra.mrb[0].mxu0 %v2441
        %v2514 = vpop.f32.mrb[0].mxu0
        %v2515 = vadd.f32 0.0, %v2514
        %v2516 = vpop.f32.mrb[0].mxu0
        %2517 = vdwg.mxu0
        %v2518 = vld [vmem:[%s9] sm:$0xff]
        %s2519 = scalar_lea.vmem %s6, 64
        %v2520 = vld [vmem:[%s2519] sm:$0xff]
        %v2521 = vld [vmem:[%s2519 + $0x8] sm:$0xff]
        %v2522 = vld [vmem:[%s2519 + $0x10] sm:$0xff]
        %v2523 = vld [vmem:[%s2519 + $0x18] sm:$0xff]
        %v2524 = vld [vmem:[%s2519 + $0x20] sm:$0xff]
        %v2525 = vld [vmem:[%s2519 + $0x28] sm:$0xff]
        %v2526 = vld [vmem:[%s2519 + $0x30] sm:$0xff]
        %v2527 = vld [vmem:[%s2519 + $0x38] sm:$0xff]
        %2528 = vmatprep.subr.mxu0 0.0
        %2529 = vmatpush1.msra.mxu0 %v2520
        %2530 = vmatprep.subr.mxu0 0.0
        %2531 = vmatpush1.msra.mxu0 %v2521
        %2532 = vmatprep.subr.mxu0 0.0
        %2533 = vmatpush1.msra.mxu0 %v2522
        %2534 = vmatprep.subr.mxu0 0.0
        %2535 = vmatpush1.msra.mxu0 %v2523
        %2536 = vmatprep.subr.mxu0 0.0
        %2537 = vmatpush1.msra.mxu0 %v2524
        %2538 = vmatprep.subr.mxu0 0.0
        %2539 = vmatpush1.msra.mxu0 %v2525
        %2540 = vmatprep.subr.mxu0 0.0
        %2541 = vmatpush1.msra.mxu0 %v2526
        %2542 = vmatprep.subr.mxu0 0.0
        %2543 = vmatpush1.msra.mxu0 %v2527
        %2544 = vmatprep.subr.mxu0 0.0
        %2545 = vmatpush1.msra.mxu0 0.0
        %2546 = vmatprep.subr.mxu0 0.0
        %2547 = vmatpush1.msra.mxu0 0.0
        %2548 = vmatprep.subr.mxu0 0.0
        %2549 = vmatpush1.msra.mxu0 0.0
        %2550 = vmatprep.subr.mxu0 0.0
        %2551 = vmatpush1.msra.mxu0 0.0
        %2552 = vmatprep.subr.mxu0 0.0
        %2553 = vmatpush1.msra.mxu0 0.0
        %2554 = vmatprep.subr.mxu0 0.0
        %2555 = vmatpush1.msra.mxu0 0.0
        %2556 = vmatprep.subr.mxu0 0.0
        %2557 = vmatpush1.msra.mxu0 0.0
        %2558 = vmatprep.subr.mxu0 0.0
        %2559 = vmatpush1.msra.mxu0 0.0
        %2560 = vmatprep.subr.mxu0 0.0
        %2561 = vmatpush1.msra.mxu0 0.0
        %2562 = vmatprep.subr.mxu0 0.0
        %2563 = vmatpush1.msra.mxu0 0.0
        %2564 = vmatprep.subr.mxu0 0.0
        %2565 = vmatpush1.msra.mxu0 0.0
        %2566 = vmatprep.subr.mxu0 0.0
        %2567 = vmatpush1.msra.mxu0 0.0
        %2568 = vmatprep.subr.mxu0 0.0
        %2569 = vmatpush1.msra.mxu0 0.0
        %2570 = vmatprep.subr.mxu0 0.0
        %2571 = vmatpush1.msra.mxu0 0.0
        %2572 = vmatprep.subr.mxu0 0.0
        %2573 = vmatpush1.msra.mxu0 0.0
        %2574 = vmatprep.subr.mxu0 0.0
        %2575 = vmatpush1.msra.mxu0 0.0
        %2576 = vmatprep.subr.mxu0 0.0
        %2577 = vmatpush1.msra.mxu0 0.0
        %2578 = vmatprep.subr.mxu0 0.0
        %2579 = vmatpush1.msra.mxu0 0.0
        %2580 = vmatprep.subr.mxu0 0.0
        %2581 = vmatpush1.msra.mxu0 0.0
        %2582 = vmatprep.subr.mxu0 0.0
        %2583 = vmatpush1.msra.mxu0 0.0
        %2584 = vmatprep.subr.mxu0 0.0
        %2585 = vmatpush1.msra.mxu0 0.0
        %2586 = vmatprep.subr.mxu0 0.0
        %2587 = vmatpush1.msra.mxu0 0.0
        %2588 = vmatprep.subr.mxu0 0.0
        %2589 = vmatpush1.msra.mxu0 0.0
        %2590 = vmatprep.subr.mxu0 0.0
        %2591 = vmatpush1.msra.mxu0 0.0
        %2592 = vmatprep.mubr.f32.mxu0 0.0
        %2593 = vmatmul.mubr.f32.gmra.mrb[0].mxu0 %v2249
        %v2594 = vpop.f32.mrb[0].mxu0
        %v2595 = vadd.f32 0.0, %v2594
        %v2596 = vpop.f32.mrb[0].mxu0
        %2597 = vmatprep.mubr.f32.mxu0 0.0
        %2598 = vmatmul.mubr.f32.gmra.mrb[0].mxu0 %v2252
        %v2599 = vpop.f32.mrb[0].mxu0
        %v2600 = vadd.f32 0.0, %v2599
        %v2601 = vpop.f32.mrb[0].mxu0
        %2602 = vdwg.mxu0
        %s2603 = scalar_lea.vmem [#allocation2], 8
        %v2604 = vld [vmem:[%s2603] sm:$0xff]
        %v2606 = vsel %vm2330, %v2595, 0
        %v2609 = vsel %vm2330, %v2600, 0
        %2611 = vmatprep.subr.mxu0 0.0
        %2612 = vmatpush1.msra.mxu0 %v2604
        %2613 = vmatprep.subr.mxu0 0.0
        %2614 = vmatpush1.msra.mxu0 0.0
        %2615 = vmatprep.subr.mxu0 0.0
        %2616 = vmatpush1.msra.mxu0 0.0
        %2617 = vmatprep.subr.mxu0 0.0
        %2618 = vmatpush1.msra.mxu0 0.0
        %2619 = vmatprep.subr.mxu0 0.0
        %2620 = vmatpush1.msra.mxu0 0.0
        %2621 = vmatprep.subr.mxu0 0.0
        %2622 = vmatpush1.msra.mxu0 0.0
        %2623 = vmatprep.subr.mxu0 0.0
        %2624 = vmatpush1.msra.mxu0 0.0
        %2625 = vmatprep.subr.mxu0 0.0
        %2626 = vmatpush1.msra.mxu0 0.0
        %2627 = vmatprep.subr.mxu0 0.0
        %2628 = vmatpush1.msra.mxu0 0.0
        %2629 = vmatprep.subr.mxu0 0.0
        %2630 = vmatpush1.msra.mxu0 0.0
        %2631 = vmatprep.subr.mxu0 0.0
        %2632 = vmatpush1.msra.mxu0 0.0
        %2633 = vmatprep.subr.mxu0 0.0
        %2634 = vmatpush1.msra.mxu0 0.0
        %2635 = vmatprep.subr.mxu0 0.0
        %2636 = vmatpush1.msra.mxu0 0.0
        %2637 = vmatprep.subr.mxu0 0.0
        %2638 = vmatpush1.msra.mxu0 0.0
        %2639 = vmatprep.subr.mxu0 0.0
        %2640 = vmatpush1.msra.mxu0 0.0
        %2641 = vmatprep.subr.mxu0 0.0
        %2642 = vmatpush1.msra.mxu0 0.0
        %2643 = vmatprep.subr.mxu0 0.0
        %2644 = vmatpush1.msra.mxu0 0.0
        %2645 = vmatprep.subr.mxu0 0.0
        %2646 = vmatpush1.msra.mxu0 0.0
        %2647 = vmatprep.subr.mxu0 0.0
        %2648 = vmatpush1.msra.mxu0 0.0
        %2649 = vmatprep.subr.mxu0 0.0
        %2650 = vmatpush1.msra.mxu0 0.0
        %2651 = vmatprep.subr.mxu0 0.0
        %2652 = vmatpush1.msra.mxu0 0.0
        %2653 = vmatprep.subr.mxu0 0.0
        %2654 = vmatpush1.msra.mxu0 0.0
        %2655 = vmatprep.subr.mxu0 0.0
        %2656 = vmatpush1.msra.mxu0 0.0
        %2657 = vmatprep.subr.mxu0 0.0
        %2658 = vmatpush1.msra.mxu0 0.0
        %2659 = vmatprep.subr.mxu0 0.0
        %2660 = vmatpush1.msra.mxu0 0.0
        %2661 = vmatprep.subr.mxu0 0.0
        %2662 = vmatpush1.msra.mxu0 0.0
        %2663 = vmatprep.subr.mxu0 0.0
        %2664 = vmatpush1.msra.mxu0 0.0
        %2665 = vmatprep.subr.mxu0 0.0
        %2666 = vmatpush1.msra.mxu0 0.0
        %2667 = vmatprep.subr.mxu0 0.0
        %2668 = vmatpush1.msra.mxu0 0.0
        %2669 = vmatprep.subr.mxu0 0.0
        %2670 = vmatpush1.msra.mxu0 0.0
        %2671 = vmatprep.subr.mxu0 0.0
        %2672 = vmatpush1.msra.mxu0 0.0
        %2673 = vmatprep.subr.mxu0 0.0
        %2674 = vmatpush1.msra.mxu0 0.0
        %2675 = vmatprep.mubr.f32.mxu0 0.0
        %2676 = vmatmul.mubr.f32.gmra.mrb[0].mxu0 %v2606
        %v2677 = vpop.f32.mrb[0].mxu0
        %v2678 = vadd.f32 0.0, %v2677
        %v2679 = vpop.f32.mrb[0].mxu0
        %2680 = vmatprep.mubr.f32.mxu0 0.0
        %2681 = vmatmul.mubr.f32.gmra.mrb[0].mxu0 %v2609
        %v2682 = vpop.f32.mrb[0].mxu0
        %v2683 = vadd.f32 0.0, %v2682
        %v2684 = vpop.f32.mrb[0].mxu0
        %2685 = vdwg.mxu0
        %v2686 = vsel %vm2330, %v2678, -inf
        %2687 = vmax.xlane.f32.xlu0 %v2686
        %v2688 = vpop.xlane.xlu0 %2687
        %v2689 = vsel %vm2330, %v2683, -inf
        %2690 = vmax.xlane.f32.xlu0 %v2689
        %v2691 = vpop.xlane.xlu0 %2690
        %v2692 = vsub.f32 %v2678, %v2688
        %v2693 = vsub.f32 %v2683, %v2691
        %v2694 = vmul.f32 %v2692, 1.442695
        %v2695 = vpow.pop %v2694
        %v2696 = vmul.f32 %v2693, 1.442695
        %v2697 = vpow.pop %v2696
        %v2698 = vsel %vm2330, %v2695, 0.0
        %2699 = vadd.xlane.f32.xlu0 %v2698
        %v2700 = vpop.xlane.xlu0 %2699
        %v2701 = vsel %vm2330, %v2697, 0.0
        %2702 = vadd.xlane.f32.xlu0 %v2701
        %v2703 = vpop.xlane.xlu0 %2702
        %v2704 = vrcp.pop %v2700
        %v2705 = vmul.f32 1.0, %v2704
        %v2706 = vrcp.pop %v2703
        %v2707 = vmul.f32 1.0, %v2706
        %v2708 = vmul.f32 %v2695, %v2705
        %v2709 = vmul.f32 %v2697, %v2707
        %s2710 = scalar_lea.vmem [#allocation3], 8
        %v2711 = vld [vmem:[%s2710] sm:$0xff]
        %v2713 = vsel %vm2330, %v2708, 0
        %v2716 = vsel %vm2330, %v2709, 0
        %2718 = vmatprep.subr.mxu0 0.0
        %2719 = vmatpush1.msra.mxu0 %v2711
        %2720 = vmatprep.subr.mxu0 0.0
        %2721 = vmatpush1.msra.mxu0 0.0
        %2722 = vmatprep.subr.mxu0 0.0
        %2723 = vmatpush1.msra.mxu0 0.0
        %2724 = vmatprep.subr.mxu0 0.0
        %2725 = vmatpush1.msra.mxu0 0.0
        %2726 = vmatprep.subr.mxu0 0.0
        %2727 = vmatpush1.msra.mxu0 0.0
        %2728 = vmatprep.subr.mxu0 0.0
        %2729 = vmatpush1.msra.mxu0 0.0
        %2730 = vmatprep.subr.mxu0 0.0
        %2731 = vmatpush1.msra.mxu0 0.0
        %2732 = vmatprep.subr.mxu0 0.0
        %2733 = vmatpush1.msra.mxu0 0.0
        %2734 = vmatprep.subr.mxu0 0.0
        %2735 = vmatpush1.msra.mxu0 0.0
        %2736 = vmatprep.subr.mxu0 0.0
        %2737 = vmatpush1.msra.mxu0 0.0
        %2738 = vmatprep.subr.mxu0 0.0
        %2739 = vmatpush1.msra.mxu0 0.0
        %2740 = vmatprep.subr.mxu0 0.0
        %2741 = vmatpush1.msra.mxu0 0.0
        %2742 = vmatprep.subr.mxu0 0.0
        %2743 = vmatpush1.msra.mxu0 0.0
        %2744 = vmatprep.subr.mxu0 0.0
        %2745 = vmatpush1.msra.mxu0 0.0
        %2746 = vmatprep.subr.mxu0 0.0
        %2747 = vmatpush1.msra.mxu0 0.0
        %2748 = vmatprep.subr.mxu0 0.0
        %2749 = vmatpush1.msra.mxu0 0.0
        %2750 = vmatprep.subr.mxu0 0.0
        %2751 = vmatpush1.msra.mxu0 0.0
        %2752 = vmatprep.subr.mxu0 0.0
        %2753 = vmatpush1.msra.mxu0 0.0
        %2754 = vmatprep.subr.mxu0 0.0
        %2755 = vmatpush1.msra.mxu0 0.0
        %2756 = vmatprep.subr.mxu0 0.0
        %2757 = vmatpush1.msra.mxu0 0.0
        %2758 = vmatprep.subr.mxu0 0.0
        %2759 = vmatpush1.msra.mxu0 0.0
        %2760 = vmatprep.subr.mxu0 0.0
        %2761 = vmatpush1.msra.mxu0 0.0
        %2762 = vmatprep.subr.mxu0 0.0
        %2763 = vmatpush1.msra.mxu0 0.0
        %2764 = vmatprep.subr.mxu0 0.0
        %2765 = vmatpush1.msra.mxu0 0.0
        %2766 = vmatprep.subr.mxu0 0.0
        %2767 = vmatpush1.msra.mxu0 0.0
        %2768 = vmatprep.subr.mxu0 0.0
        %2769 = vmatpush1.msra.mxu0 0.0
        %2770 = vmatprep.subr.mxu0 0.0
        %2771 = vmatpush1.msra.mxu0 0.0
        %2772 = vmatprep.subr.mxu0 0.0
        %2773 = vmatpush1.msra.mxu0 0.0
        %2774 = vmatprep.subr.mxu0 0.0
        %2775 = vmatpush1.msra.mxu0 0.0
        %2776 = vmatprep.subr.mxu0 0.0
        %2777 = vmatpush1.msra.mxu0 0.0
        %2778 = vmatprep.subr.mxu0 0.0
        %2779 = vmatpush1.msra.mxu0 0.0
        %2780 = vmatprep.subr.mxu0 0.0
        %2781 = vmatpush1.msra.mxu0 0.0
        %2782 = vmatprep.mubr.f32.mxu0 0.0
        %2783 = vmatmul.mubr.f32.gmra.mrb[0].mxu0 %v2713
        %v2784 = vpop.f32.mrb[0].mxu0
        %v2785 = vadd.f32 0.0, %v2784
        %v2786 = vpop.f32.mrb[0].mxu0
        %2787 = vmatprep.mubr.f32.mxu0 0.0
        %2788 = vmatmul.mubr.f32.gmra.mrb[0].mxu0 %v2716
        %v2789 = vpop.f32.mrb[0].mxu0
        %v2790 = vadd.f32 0.0, %v2789
        %v2791 = vpop.f32.mrb[0].mxu0
        %2792 = vdwg.mxu0
        %s2793 = scalar_lea.vmem %s9, 8
        %v2794 = vld [vmem:[%s2793] sm:$0xff]
        %v2796 = vsel %vm2330, %v2785, 0
        %v2799 = vsel %vm2330, %v2790, 0
        %2801 = vmatprep.subr.mxu0 0.0
        %2802 = vmatpush1.msra.mxu0 %v2794
        %2803 = vmatprep.subr.mxu0 0.0
        %2804 = vmatpush1.msra.mxu0 0.0
        %2805 = vmatprep.subr.mxu0 0.0
        %2806 = vmatpush1.msra.mxu0 0.0
        %2807 = vmatprep.subr.mxu0 0.0
        %2808 = vmatpush1.msra.mxu0 0.0
        %2809 = vmatprep.subr.mxu0 0.0
        %2810 = vmatpush1.msra.mxu0 0.0
        %2811 = vmatprep.subr.mxu0 0.0
        %2812 = vmatpush1.msra.mxu0 0.0
        %2813 = vmatprep.subr.mxu0 0.0
        %2814 = vmatpush1.msra.mxu0 0.0
        %2815 = vmatprep.subr.mxu0 0.0
        %2816 = vmatpush1.msra.mxu0 0.0
        %2817 = vmatprep.subr.mxu0 0.0
        %2818 = vmatpush1.msra.mxu0 0.0
        %2819 = vmatprep.subr.mxu0 0.0
        %2820 = vmatpush1.msra.mxu0 0.0
        %2821 = vmatprep.subr.mxu0 0.0
        %2822 = vmatpush1.msra.mxu0 0.0
        %2823 = vmatprep.subr.mxu0 0.0
        %2824 = vmatpush1.msra.mxu0 0.0
        %2825 = vmatprep.subr.mxu0 0.0
        %2826 = vmatpush1.msra.mxu0 0.0
        %2827 = vmatprep.subr.mxu0 0.0
        %2828 = vmatpush1.msra.mxu0 0.0
        %2829 = vmatprep.subr.mxu0 0.0
        %2830 = vmatpush1.msra.mxu0 0.0
        %2831 = vmatprep.subr.mxu0 0.0
        %2832 = vmatpush1.msra.mxu0 0.0
        %2833 = vmatprep.subr.mxu0 0.0
        %2834 = vmatpush1.msra.mxu0 0.0
        %2835 = vmatprep.subr.mxu0 0.0
        %2836 = vmatpush1.msra.mxu0 0.0
        %2837 = vmatprep.subr.mxu0 0.0
        %2838 = vmatpush1.msra.mxu0 0.0
        %2839 = vmatprep.subr.mxu0 0.0
        %2840 = vmatpush1.msra.mxu0 0.0
        %2841 = vmatprep.subr.mxu0 0.0
        %2842 = vmatpush1.msra.mxu0 0.0
        %2843 = vmatprep.subr.mxu0 0.0
        %2844 = vmatpush1.msra.mxu0 0.0
        %2845 = vmatprep.subr.mxu0 0.0
        %2846 = vmatpush1.msra.mxu0 0.0
        %2847 = vmatprep.subr.mxu0 0.0
        %2848 = vmatpush1.msra.mxu0 0.0
        %2849 = vmatprep.subr.mxu0 0.0
        %2850 = vmatpush1.msra.mxu0 0.0
        %2851 = vmatprep.subr.mxu0 0.0
        %2852 = vmatpush1.msra.mxu0 0.0
        %2853 = vmatprep.subr.mxu0 0.0
        %2854 = vmatpush1.msra.mxu0 0.0
        %2855 = vmatprep.subr.mxu0 0.0
        %2856 = vmatpush1.msra.mxu0 0.0
        %2857 = vmatprep.subr.mxu0 0.0
        %2858 = vmatpush1.msra.mxu0 0.0
        %2859 = vmatprep.subr.mxu0 0.0
        %2860 = vmatpush1.msra.mxu0 0.0
        %2861 = vmatprep.subr.mxu0 0.0
        %2862 = vmatpush1.msra.mxu0 0.0
        %2863 = vmatprep.subr.mxu0 0.0
        %2864 = vmatpush1.msra.mxu0 0.0
        %2865 = vmatprep.mubr.f32.mxu0 0.0
        %2866 = vmatmul.mubr.f32.gmra.mrb[0].mxu0 %v2796
        %v2867 = vpop.f32.mrb[0].mxu0
        %v2868 = vadd.f32 0.0, %v2867
        %v2869 = vpop.f32.mrb[0].mxu0
        %2870 = vmatprep.mubr.f32.mxu0 0.0
        %2871 = vmatmul.mubr.f32.gmra.mrb[0].mxu0 %v2799
        %v2872 = vpop.f32.mrb[0].mxu0
        %v2873 = vadd.f32 0.0, %v2872
        %v2874 = vpop.f32.mrb[0].mxu0
        %2875 = vdwg.mxu0
        %v2877 = vsel %vm2330, %v2510, 0
        %v2880 = vsel %vm2330, %v2515, 0
        %2882 = vmatprep.subr.mxu0 0.0
        %2883 = vmatpush1.msra.mxu0 %v2518
        %2884 = vmatprep.subr.mxu0 0.0
        %2885 = vmatpush1.msra.mxu0 0.0
        %2886 = vmatprep.subr.mxu0 0.0
        %2887 = vmatpush1.msra.mxu0 0.0
        %2888 = vmatprep.subr.mxu0 0.0
        %2889 = vmatpush1.msra.mxu0 0.0
        %2890 = vmatprep.subr.mxu0 0.0
        %2891 = vmatpush1.msra.mxu0 0.0
        %2892 = vmatprep.subr.mxu0 0.0
        %2893 = vmatpush1.msra.mxu0 0.0
        %2894 = vmatprep.subr.mxu0 0.0
        %2895 = vmatpush1.msra.mxu0 0.0
        %2896 = vmatprep.subr.mxu0 0.0
        %2897 = vmatpush1.msra.mxu0 0.0
        %2898 = vmatprep.subr.mxu0 0.0
        %2899 = vmatpush1.msra.mxu0 0.0
        %2900 = vmatprep.subr.mxu0 0.0
        %2901 = vmatpush1.msra.mxu0 0.0
        %2902 = vmatprep.subr.mxu0 0.0
        %2903 = vmatpush1.msra.mxu0 0.0
        %2904 = vmatprep.subr.mxu0 0.0
        %2905 = vmatpush1.msra.mxu0 0.0
        %2906 = vmatprep.subr.mxu0 0.0
        %2907 = vmatpush1.msra.mxu0 0.0
        %2908 = vmatprep.subr.mxu0 0.0
        %2909 = vmatpush1.msra.mxu0 0.0
        %2910 = vmatprep.subr.mxu0 0.0
        %2911 = vmatpush1.msra.mxu0 0.0
        %2912 = vmatprep.subr.mxu0 0.0
        %2913 = vmatpush1.msra.mxu0 0.0
        %2914 = vmatprep.subr.mxu0 0.0
        %2915 = vmatpush1.msra.mxu0 0.0
        %2916 = vmatprep.subr.mxu0 0.0
        %2917 = vmatpush1.msra.mxu0 0.0
        %2918 = vmatprep.subr.mxu0 0.0
        %2919 = vmatpush1.msra.mxu0 0.0
        %2920 = vmatprep.subr.mxu0 0.0
        %2921 = vmatpush1.msra.mxu0 0.0
        %2922 = vmatprep.subr.mxu0 0.0
        %2923 = vmatpush1.msra.mxu0 0.0
        %2924 = vmatprep.subr.mxu0 0.0
        %2925 = vmatpush1.msra.mxu0 0.0
        %2926 = vmatprep.subr.mxu0 0.0
        %2927 = vmatpush1.msra.mxu0 0.0
        %2928 = vmatprep.subr.mxu0 0.0
        %2929 = vmatpush1.msra.mxu0 0.0
        %2930 = vmatprep.subr.mxu0 0.0
        %2931 = vmatpush1.msra.mxu0 0.0
        %2932 = vmatprep.subr.mxu0 0.0
        %2933 = vmatpush1.msra.mxu0 0.0
        %2934 = vmatprep.subr.mxu0 0.0
        %2935 = vmatpush1.msra.mxu0 0.0
        %2936 = vmatprep.subr.mxu0 0.0
        %2937 = vmatpush1.msra.mxu0 0.0
        %2938 = vmatprep.subr.mxu0 0.0
        %2939 = vmatpush1.msra.mxu0 0.0
        %2940 = vmatprep.subr.mxu0 0.0
        %2941 = vmatpush1.msra.mxu0 0.0
        %2942 = vmatprep.subr.mxu0 0.0
        %2943 = vmatpush1.msra.mxu0 0.0
        %2944 = vmatprep.subr.mxu0 0.0
        %2945 = vmatpush1.msra.mxu0 0.0
        %2946 = vmatprep.mubr.f32.mxu0 0.0
        %2947 = vmatmul.mubr.f32.gmra.mrb[0].mxu0 %v2877
        %v2948 = vpop.f32.mrb[0].mxu0
        %v2949 = vadd.f32 %v2868, %v2948
        %v2950 = vpop.f32.mrb[0].mxu0
        %2951 = vmatprep.mubr.f32.mxu0 0.0
        %2952 = vmatmul.mubr.f32.gmra.mrb[0].mxu0 %v2880
        %v2953 = vpop.f32.mrb[0].mxu0
        %v2954 = vadd.f32 %v2873, %v2953
        %v2955 = vpop.f32.mrb[0].mxu0
        %2956 = vdwg.mxu0
        %s2957 = scalar_lea.vmem %s6, 128
        %v2958 = vld [vmem:[%s2957] sm:$0xff]
        %v2959 = vld [vmem:[%s2957 + $0x8] sm:$0xff]
        %v2960 = vld [vmem:[%s2957 + $0x10] sm:$0xff]
        %v2961 = vld [vmem:[%s2957 + $0x18] sm:$0xff]
        %v2962 = vld [vmem:[%s2957 + $0x20] sm:$0xff]
        %v2963 = vld [vmem:[%s2957 + $0x28] sm:$0xff]
        %v2964 = vld [vmem:[%s2957 + $0x30] sm:$0xff]
        %v2965 = vld [vmem:[%s2957 + $0x38] sm:$0xff]
        %2966 = vmatprep.subr.mxu0 0.0
        %2967 = vmatpush1.msra.mxu0 %v2958
        %2968 = vmatprep.subr.mxu0 0.0
        %2969 = vmatpush1.msra.mxu0 %v2959
        %2970 = vmatprep.subr.mxu0 0.0
        %2971 = vmatpush1.msra.mxu0 %v2960
        %2972 = vmatprep.subr.mxu0 0.0
        %2973 = vmatpush1.msra.mxu0 %v2961
        %2974 = vmatprep.subr.mxu0 0.0
        %2975 = vmatpush1.msra.mxu0 %v2962
        %2976 = vmatprep.subr.mxu0 0.0
        %2977 = vmatpush1.msra.mxu0 %v2963
        %2978 = vmatprep.subr.mxu0 0.0
        %2979 = vmatpush1.msra.mxu0 %v2964
        %2980 = vmatprep.subr.mxu0 0.0
        %2981 = vmatpush1.msra.mxu0 %v2965
        %2982 = vmatprep.subr.mxu0 0.0
        %2983 = vmatpush1.msra.mxu0 0.0
        %2984 = vmatprep.subr.mxu0 0.0
        %2985 = vmatpush1.msra.mxu0 0.0
        %2986 = vmatprep.subr.mxu0 0.0
        %2987 = vmatpush1.msra.mxu0 0.0
        %2988 = vmatprep.subr.mxu0 0.0
        %2989 = vmatpush1.msra.mxu0 0.0
        %2990 = vmatprep.subr.mxu0 0.0
        %2991 = vmatpush1.msra.mxu0 0.0
        %2992 = vmatprep.subr.mxu0 0.0
        %2993 = vmatpush1.msra.mxu0 0.0
        %2994 = vmatprep.subr.mxu0 0.0
        %2995 = vmatpush1.msra.mxu0 0.0
        %2996 = vmatprep.subr.mxu0 0.0
        %2997 = vmatpush1.msra.mxu0 0.0
        %2998 = vmatprep.subr.mxu0 0.0
        %2999 = vmatpush1.msra.mxu0 0.0
        %3000 = vmatprep.subr.mxu0 0.0
        %3001 = vmatpush1.msra.mxu0 0.0
        %3002 = vmatprep.subr.mxu0 0.0
        %3003 = vmatpush1.msra.mxu0 0.0
        %3004 = vmatprep.subr.mxu0 0.0
        %3005 = vmatpush1.msra.mxu0 0.0
        %3006 = vmatprep.subr.mxu0 0.0
        %3007 = vmatpush1.msra.mxu0 0.0
        %3008 = vmatprep.subr.mxu0 0.0
        %3009 = vmatpush1.msra.mxu0 0.0
        %3010 = vmatprep.subr.mxu0 0.0
        %3011 = vmatpush1.msra.mxu0 0.0
        %3012 = vmatprep.subr.mxu0 0.0
        %3013 = vmatpush1.msra.mxu0 0.0
        %3014 = vmatprep.subr.mxu0 0.0
        %3015 = vmatpush1.msra.mxu0 0.0
        %3016 = vmatprep.subr.mxu0 0.0
        %3017 = vmatpush1.msra.mxu0 0.0
        %3018 = vmatprep.subr.mxu0 0.0
        %3019 = vmatpush1.msra.mxu0 0.0
        %3020 = vmatprep.subr.mxu0 0.0
        %3021 = vmatpush1.msra.mxu0 0.0
        %3022 = vmatprep.subr.mxu0 0.0
        %3023 = vmatpush1.msra.mxu0 0.0
        %3024 = vmatprep.subr.mxu0 0.0
        %3025 = vmatpush1.msra.mxu0 0.0
        %3026 = vmatprep.subr.mxu0 0.0
        %3027 = vmatpush1.msra.mxu0 0.0
        %3028 = vmatprep.subr.mxu0 0.0
        %3029 = vmatpush1.msra.mxu0 0.0
        %3030 = vmatprep.mubr.f32.mxu0 0.0
        %3031 = vmatmul.mubr.f32.gmra.mrb[0].mxu0 %v2249
        %v3032 = vpop.f32.mrb[0].mxu0
        %v3033 = vadd.f32 0.0, %v3032
        %v3034 = vpop.f32.mrb[0].mxu0
        %3035 = vmatprep.mubr.f32.mxu0 0.0
        %3036 = vmatmul.mubr.f32.gmra.mrb[0].mxu0 %v2252
        %v3037 = vpop.f32.mrb[0].mxu0
        %v3038 = vadd.f32 0.0, %v3037
        %v3039 = vpop.f32.mrb[0].mxu0
        %3040 = vdwg.mxu0
        %s3041 = scalar_lea.vmem [#allocation2], 16
        %v3042 = vld [vmem:[%s3041] sm:$0xff]
        %v3044 = vsel %vm2330, %v3033, 0
        %v3047 = vsel %vm2330, %v3038, 0
        %3049 = vmatprep.subr.mxu0 0.0
        %3050 = vmatpush1.msra.mxu0 %v3042
        %3051 = vmatprep.subr.mxu0 0.0
        %3052 = vmatpush1.msra.mxu0 0.0
        %3053 = vmatprep.subr.mxu0 0.0
        %3054 = vmatpush1.msra.mxu0 0.0
        %3055 = vmatprep.subr.mxu0 0.0
        %3056 = vmatpush1.msra.mxu0 0.0
        %3057 = vmatprep.subr.mxu0 0.0
        %3058 = vmatpush1.msra.mxu0 0.0
        %3059 = vmatprep.subr.mxu0 0.0
        %3060 = vmatpush1.msra.mxu0 0.0
        %3061 = vmatprep.subr.mxu0 0.0
        %3062 = vmatpush1.msra.mxu0 0.0
        %3063 = vmatprep.subr.mxu0 0.0
        %3064 = vmatpush1.msra.mxu0 0.0
        %3065 = vmatprep.subr.mxu0 0.0
        %3066 = vmatpush1.msra.mxu0 0.0
        %3067 = vmatprep.subr.mxu0 0.0
        %3068 = vmatpush1.msra.mxu0 0.0
        %3069 = vmatprep.subr.mxu0 0.0
        %3070 = vmatpush1.msra.mxu0 0.0
        %3071 = vmatprep.subr.mxu0 0.0
        %3072 = vmatpush1.msra.mxu0 0.0
        %3073 = vmatprep.subr.mxu0 0.0
        %3074 = vmatpush1.msra.mxu0 0.0
        %3075 = vmatprep.subr.mxu0 0.0
        %3076 = vmatpush1.msra.mxu0 0.0
        %3077 = vmatprep.subr.mxu0 0.0
        %3078 = vmatpush1.msra.mxu0 0.0
        %3079 = vmatprep.subr.mxu0 0.0
        %3080 = vmatpush1.msra.mxu0 0.0
        %3081 = vmatprep.subr.mxu0 0.0
        %3082 = vmatpush1.msra.mxu0 0.0
        %3083 = vmatprep.subr.mxu0 0.0
        %3084 = vmatpush1.msra.mxu0 0.0
        %3085 = vmatprep.subr.mxu0 0.0
        %3086 = vmatpush1.msra.mxu0 0.0
        %3087 = vmatprep.subr.mxu0 0.0
        %3088 = vmatpush1.msra.mxu0 0.0
        %3089 = vmatprep.subr.mxu0 0.0
        %3090 = vmatpush1.msra.mxu0 0.0
        %3091 = vmatprep.subr.mxu0 0.0
        %3092 = vmatpush1.msra.mxu0 0.0
        %3093 = vmatprep.subr.mxu0 0.0
        %3094 = vmatpush1.msra.mxu0 0.0
        %3095 = vmatprep.subr.mxu0 0.0
        %3096 = vmatpush1.msra.mxu0 0.0
        %3097 = vmatprep.subr.mxu0 0.0
        %3098 = vmatpush1.msra.mxu0 0.0
        %3099 = vmatprep.subr.mxu0 0.0
        %3100 = vmatpush1.msra.mxu0 0.0
        %3101 = vmatprep.subr.mxu0 0.0
        %3102 = vmatpush1.msra.mxu0 0.0
        %3103 = vmatprep.subr.mxu0 0.0
        %3104 = vmatpush1.msra.mxu0 0.0
        %3105 = vmatprep.subr.mxu0 0.0
        %3106 = vmatpush1.msra.mxu0 0.0
        %3107 = vmatprep.subr.mxu0 0.0
        %3108 = vmatpush1.msra.mxu0 0.0
        %3109 = vmatprep.subr.mxu0 0.0
        %3110 = vmatpush1.msra.mxu0 0.0
        %3111 = vmatprep.subr.mxu0 0.0
        %3112 = vmatpush1.msra.mxu0 0.0
        %3113 = vmatprep.mubr.f32.mxu0 0.0
        %3114 = vmatmul.mubr.f32.gmra.mrb[0].mxu0 %v3044
        %v3115 = vpop.f32.mrb[0].mxu0
        %v3116 = vadd.f32 0.0, %v3115
        %v3117 = vpop.f32.mrb[0].mxu0
        %3118 = vmatprep.mubr.f32.mxu0 0.0
        %3119 = vmatmul.mubr.f32.gmra.mrb[0].mxu0 %v3047
        %v3120 = vpop.f32.mrb[0].mxu0
        %v3121 = vadd.f32 0.0, %v3120
        %v3122 = vpop.f32.mrb[0].mxu0
        %3123 = vdwg.mxu0
        %v3124 = vsel %vm2330, %v3116, -inf
        %3125 = vmax.xlane.f32.xlu0 %v3124
        %v3126 = vpop.xlane.xlu0 %3125
        %v3127 = vsel %vm2330, %v3121, -inf
        %3128 = vmax.xlane.f32.xlu0 %v3127
        %v3129 = vpop.xlane.xlu0 %3128
        %v3130 = vsub.f32 %v3116, %v3126
        %v3131 = vsub.f32 %v3121, %v3129
        %v3132 = vmul.f32 %v3130, 1.442695
        %v3133 = vpow.pop %v3132
        %v3134 = vmul.f32 %v3131, 1.442695
        %v3135 = vpow.pop %v3134
        %v3136 = vsel %vm2330, %v3133, 0.0
        %3137 = vadd.xlane.f32.xlu0 %v3136
        %v3138 = vpop.xlane.xlu0 %3137
        %v3139 = vsel %vm2330, %v3135, 0.0
        %3140 = vadd.xlane.f32.xlu0 %v3139
        %v3141 = vpop.xlane.xlu0 %3140
        %v3142 = vrcp.pop %v3138
        %v3143 = vmul.f32 1.0, %v3142
        %v3144 = vrcp.pop %v3141
        %v3145 = vmul.f32 1.0, %v3144
        %v3146 = vmul.f32 %v3133, %v3143
        %v3147 = vmul.f32 %v3135, %v3145
        %s3148 = scalar_lea.vmem [#allocation3], 16
        %v3149 = vld [vmem:[%s3148] sm:$0xff]
        %v3151 = vsel %vm2330, %v3146, 0
        %v3154 = vsel %vm2330, %v3147, 0
        %3156 = vmatprep.subr.mxu0 0.0
        %3157 = vmatpush1.msra.mxu0 %v3149
        %3158 = vmatprep.subr.mxu0 0.0
        %3159 = vmatpush1.msra.mxu0 0.0
        %3160 = vmatprep.subr.mxu0 0.0
        %3161 = vmatpush1.msra.mxu0 0.0
        %3162 = vmatprep.subr.mxu0 0.0
        %3163 = vmatpush1.msra.mxu0 0.0
        %3164 = vmatprep.subr.mxu0 0.0
        %3165 = vmatpush1.msra.mxu0 0.0
        %3166 = vmatprep.subr.mxu0 0.0
        %3167 = vmatpush1.msra.mxu0 0.0
        %3168 = vmatprep.subr.mxu0 0.0
        %3169 = vmatpush1.msra.mxu0 0.0
        %3170 = vmatprep.subr.mxu0 0.0
        %3171 = vmatpush1.msra.mxu0 0.0
        %3172 = vmatprep.subr.mxu0 0.0
        %3173 = vmatpush1.msra.mxu0 0.0
        %3174 = vmatprep.subr.mxu0 0.0
        %3175 = vmatpush1.msra.mxu0 0.0
        %3176 = vmatprep.subr.mxu0 0.0
        %3177 = vmatpush1.msra.mxu0 0.0
        %3178 = vmatprep.subr.mxu0 0.0
        %3179 = vmatpush1.msra.mxu0 0.0
        %3180 = vmatprep.subr.mxu0 0.0
        %3181 = vmatpush1.msra.mxu0 0.0
        %3182 = vmatprep.subr.mxu0 0.0
        %3183 = vmatpush1.msra.mxu0 0.0
        %3184 = vmatprep.subr.mxu0 0.0
        %3185 = vmatpush1.msra.mxu0 0.0
        %3186 = vmatprep.subr.mxu0 0.0
        %3187 = vmatpush1.msra.mxu0 0.0
        %3188 = vmatprep.subr.mxu0 0.0
        %3189 = vmatpush1.msra.mxu0 0.0
        %3190 = vmatprep.subr.mxu0 0.0
        %3191 = vmatpush1.msra.mxu0 0.0
        %3192 = vmatprep.subr.mxu0 0.0
        %3193 = vmatpush1.msra.mxu0 0.0
        %3194 = vmatprep.subr.mxu0 0.0
        %3195 = vmatpush1.msra.mxu0 0.0
        %3196 = vmatprep.subr.mxu0 0.0
        %3197 = vmatpush1.msra.mxu0 0.0
        %3198 = vmatprep.subr.mxu0 0.0
        %3199 = vmatpush1.msra.mxu0 0.0
        %3200 = vmatprep.subr.mxu0 0.0
        %3201 = vmatpush1.msra.mxu0 0.0
        %3202 = vmatprep.subr.mxu0 0.0
        %3203 = vmatpush1.msra.mxu0 0.0
        %3204 = vmatprep.subr.mxu0 0.0
        %3205 = vmatpush1.msra.mxu0 0.0
        %3206 = vmatprep.subr.mxu0 0.0
        %3207 = vmatpush1.msra.mxu0 0.0
        %3208 = vmatprep.subr.mxu0 0.0
        %3209 = vmatpush1.msra.mxu0 0.0
        %3210 = vmatprep.subr.mxu0 0.0
        %3211 = vmatpush1.msra.mxu0 0.0
        %3212 = vmatprep.subr.mxu0 0.0
        %3213 = vmatpush1.msra.mxu0 0.0
        %3214 = vmatprep.subr.mxu0 0.0
        %3215 = vmatpush1.msra.mxu0 0.0
        %3216 = vmatprep.subr.mxu0 0.0
        %3217 = vmatpush1.msra.mxu0 0.0
        %3218 = vmatprep.subr.mxu0 0.0
        %3219 = vmatpush1.msra.mxu0 0.0
        %3220 = vmatprep.mubr.f32.mxu0 0.0
        %3221 = vmatmul.mubr.f32.gmra.mrb[0].mxu0 %v3151
        %v3222 = vpop.f32.mrb[0].mxu0
        %v3223 = vadd.f32 0.0, %v3222
        %v3224 = vpop.f32.mrb[0].mxu0
        %3225 = vmatprep.mubr.f32.mxu0 0.0
        %3226 = vmatmul.mubr.f32.gmra.mrb[0].mxu0 %v3154
        %v3227 = vpop.f32.mrb[0].mxu0
        %v3228 = vadd.f32 0.0, %v3227
        %v3229 = vpop.f32.mrb[0].mxu0
        %3230 = vdwg.mxu0
        %s3231 = scalar_lea.vmem %s9, 16
        %v3232 = vld [vmem:[%s3231] sm:$0xff]
        %v3234 = vsel %vm2330, %v3223, 0
        %v3237 = vsel %vm2330, %v3228, 0
        %3239 = vmatprep.subr.mxu0 0.0
        %3240 = vmatpush1.msra.mxu0 %v3232
        %3241 = vmatprep.subr.mxu0 0.0
        %3242 = vmatpush1.msra.mxu0 0.0
        %3243 = vmatprep.subr.mxu0 0.0
        %3244 = vmatpush1.msra.mxu0 0.0
        %3245 = vmatprep.subr.mxu0 0.0
        %3246 = vmatpush1.msra.mxu0 0.0
        %3247 = vmatprep.subr.mxu0 0.0
        %3248 = vmatpush1.msra.mxu0 0.0
        %3249 = vmatprep.subr.mxu0 0.0
        %3250 = vmatpush1.msra.mxu0 0.0
        %3251 = vmatprep.subr.mxu0 0.0
        %3252 = vmatpush1.msra.mxu0 0.0
        %3253 = vmatprep.subr.mxu0 0.0
        %3254 = vmatpush1.msra.mxu0 0.0
        %3255 = vmatprep.subr.mxu0 0.0
        %3256 = vmatpush1.msra.mxu0 0.0
        %3257 = vmatprep.subr.mxu0 0.0
        %3258 = vmatpush1.msra.mxu0 0.0
        %3259 = vmatprep.subr.mxu0 0.0
        %3260 = vmatpush1.msra.mxu0 0.0
        %3261 = vmatprep.subr.mxu0 0.0
        %3262 = vmatpush1.msra.mxu0 0.0
        %3263 = vmatprep.subr.mxu0 0.0
        %3264 = vmatpush1.msra.mxu0 0.0
        %3265 = vmatprep.subr.mxu0 0.0
        %3266 = vmatpush1.msra.mxu0 0.0
        %3267 = vmatprep.subr.mxu0 0.0
        %3268 = vmatpush1.msra.mxu0 0.0
        %3269 = vmatprep.subr.mxu0 0.0
        %3270 = vmatpush1.msra.mxu0 0.0
        %3271 = vmatprep.subr.mxu0 0.0
        %3272 = vmatpush1.msra.mxu0 0.0
        %3273 = vmatprep.subr.mxu0 0.0
        %3274 = vmatpush1.msra.mxu0 0.0
        %3275 = vmatprep.subr.mxu0 0.0
        %3276 = vmatpush1.msra.mxu0 0.0
        %3277 = vmatprep.subr.mxu0 0.0
        %3278 = vmatpush1.msra.mxu0 0.0
        %3279 = vmatprep.subr.mxu0 0.0
        %3280 = vmatpush1.msra.mxu0 0.0
        %3281 = vmatprep.subr.mxu0 0.0
        %3282 = vmatpush1.msra.mxu0 0.0
        %3283 = vmatprep.subr.mxu0 0.0
        %3284 = vmatpush1.msra.mxu0 0.0
        %3285 = vmatprep.subr.mxu0 0.0
        %3286 = vmatpush1.msra.mxu0 0.0
        %3287 = vmatprep.subr.mxu0 0.0
        %3288 = vmatpush1.msra.mxu0 0.0
        %3289 = vmatprep.subr.mxu0 0.0
        %3290 = vmatpush1.msra.mxu0 0.0
        %3291 = vmatprep.subr.mxu0 0.0
        %3292 = vmatpush1.msra.mxu0 0.0
        %3293 = vmatprep.subr.mxu0 0.0
        %3294 = vmatpush1.msra.mxu0 0.0
        %3295 = vmatprep.subr.mxu0 0.0
        %3296 = vmatpush1.msra.mxu0 0.0
        %3297 = vmatprep.subr.mxu0 0.0
        %3298 = vmatpush1.msra.mxu0 0.0
        %3299 = vmatprep.subr.mxu0 0.0
        %3300 = vmatpush1.msra.mxu0 0.0
        %3301 = vmatprep.subr.mxu0 0.0
        %3302 = vmatpush1.msra.mxu0 0.0
        %3303 = vmatprep.mubr.f32.mxu0 0.0
        %3304 = vmatmul.mubr.f32.gmra.mrb[0].mxu0 %v3234
        %v3305 = vpop.f32.mrb[0].mxu0
        %v3306 = vadd.f32 0.0, %v3305
        %v3307 = vpop.f32.mrb[0].mxu0
        %3308 = vmatprep.mubr.f32.mxu0 0.0
        %3309 = vmatmul.mubr.f32.gmra.mrb[0].mxu0 %v3237
        %v3310 = vpop.f32.mrb[0].mxu0
        %v3311 = vadd.f32 0.0, %v3310
        %v3312 = vpop.f32.mrb[0].mxu0
        %3313 = vdwg.mxu0
        %v3314 = vadd.f32 %v2949, %v3306
        %v3315 = vadd.f32 %v2954, %v3311
        %s3316 = scalar_lea.vmem %s6, 192
        %v3317 = vld [vmem:[%s3316] sm:$0xff]
        %v3318 = vld [vmem:[%s3316 + $0x8] sm:$0xff]
        %v3319 = vld [vmem:[%s3316 + $0x10] sm:$0xff]
        %v3320 = vld [vmem:[%s3316 + $0x18] sm:$0xff]
        %v3321 = vld [vmem:[%s3316 + $0x20] sm:$0xff]
        %v3322 = vld [vmem:[%s3316 + $0x28] sm:$0xff]
        %v3323 = vld [vmem:[%s3316 + $0x30] sm:$0xff]
        %v3324 = vld [vmem:[%s3316 + $0x38] sm:$0xff]
        %3325 = vmatprep.subr.mxu0 0.0
        %3326 = vmatpush1.msra.mxu0 %v3317
        %3327 = vmatprep.subr.mxu0 0.0
        %3328 = vmatpush1.msra.mxu0 %v3318
        %3329 = vmatprep.subr.mxu0 0.0
        %3330 = vmatpush1.msra.mxu0 %v3319
        %3331 = vmatprep.subr.mxu0 0.0
        %3332 = vmatpush1.msra.mxu0 %v3320
        %3333 = vmatprep.subr.mxu0 0.0
        %3334 = vmatpush1.msra.mxu0 %v3321
        %3335 = vmatprep.subr.mxu0 0.0
        %3336 = vmatpush1.msra.mxu0 %v3322
        %3337 = vmatprep.subr.mxu0 0.0
        %3338 = vmatpush1.msra.mxu0 %v3323
        %3339 = vmatprep.subr.mxu0 0.0
        %3340 = vmatpush1.msra.mxu0 %v3324
        %3341 = vmatprep.subr.mxu0 0.0
        %3342 = vmatpush1.msra.mxu0 0.0
        %3343 = vmatprep.subr.mxu0 0.0
        %3344 = vmatpush1.msra.mxu0 0.0
        %3345 = vmatprep.subr.mxu0 0.0
        %3346 = vmatpush1.msra.mxu0 0.0
        %3347 = vmatprep.subr.mxu0 0.0
        %3348 = vmatpush1.msra.mxu0 0.0
        %3349 = vmatprep.subr.mxu0 0.0
        %3350 = vmatpush1.msra.mxu0 0.0
        %3351 = vmatprep.subr.mxu0 0.0
        %3352 = vmatpush1.msra.mxu0 0.0
        %3353 = vmatprep.subr.mxu0 0.0
        %3354 = vmatpush1.msra.mxu0 0.0
        %3355 = vmatprep.subr.mxu0 0.0
        %3356 = vmatpush1.msra.mxu0 0.0
        %3357 = vmatprep.subr.mxu0 0.0
        %3358 = vmatpush1.msra.mxu0 0.0
        %3359 = vmatprep.subr.mxu0 0.0
        %3360 = vmatpush1.msra.mxu0 0.0
        %3361 = vmatprep.subr.mxu0 0.0
        %3362 = vmatpush1.msra.mxu0 0.0
        %3363 = vmatprep.subr.mxu0 0.0
        %3364 = vmatpush1.msra.mxu0 0.0
        %3365 = vmatprep.subr.mxu0 0.0
        %3366 = vmatpush1.msra.mxu0 0.0
        %3367 = vmatprep.subr.mxu0 0.0
        %3368 = vmatpush1.msra.mxu0 0.0
        %3369 = vmatprep.subr.mxu0 0.0
        %3370 = vmatpush1.msra.mxu0 0.0
        %3371 = vmatprep.subr.mxu0 0.0
        %3372 = vmatpush1.msra.mxu0 0.0
        %3373 = vmatprep.subr.mxu0 0.0
        %3374 = vmatpush1.msra.mxu0 0.0
        %3375 = vmatprep.subr.mxu0 0.0
        %3376 = vmatpush1.msra.mxu0 0.0
        %3377 = vmatprep.subr.mxu0 0.0
        %3378 = vmatpush1.msra.mxu0 0.0
        %3379 = vmatprep.subr.mxu0 0.0
        %3380 = vmatpush1.msra.mxu0 0.0
        %3381 = vmatprep.subr.mxu0 0.0
        %3382 = vmatpush1.msra.mxu0 0.0
        %3383 = vmatprep.subr.mxu0 0.0
        %3384 = vmatpush1.msra.mxu0 0.0
        %3385 = vmatprep.subr.mxu0 0.0
        %3386 = vmatpush1.msra.mxu0 0.0
        %3387 = vmatprep.subr.mxu0 0.0
        %3388 = vmatpush1.msra.mxu0 0.0
        %3389 = vmatprep.mubr.f32.mxu0 0.0
        %3390 = vmatmul.mubr.f32.gmra.mrb[0].mxu0 %v2249
        %v3391 = vpop.f32.mrb[0].mxu0
        %v3392 = vadd.f32 0.0, %v3391
        %v3393 = vpop.f32.mrb[0].mxu0
        %3394 = vmatprep.mubr.f32.mxu0 0.0
        %3395 = vmatmul.mubr.f32.gmra.mrb[0].mxu0 %v2252
        %v3396 = vpop.f32.mrb[0].mxu0
        %v3397 = vadd.f32 0.0, %v3396
        %v3398 = vpop.f32.mrb[0].mxu0
        %3399 = vdwg.mxu0
        %s3400 = scalar_lea.vmem [#allocation2], 24
        %v3401 = vld [vmem:[%s3400] sm:$0xff]
        %v3403 = vsel %vm2330, %v3392, 0
        %v3406 = vsel %vm2330, %v3397, 0
        %3408 = vmatprep.subr.mxu0 0.0
        %3409 = vmatpush1.msra.mxu0 %v3401
        %3410 = vmatprep.subr.mxu0 0.0
        %3411 = vmatpush1.msra.mxu0 0.0
        %3412 = vmatprep.subr.mxu0 0.0
        %3413 = vmatpush1.msra.mxu0 0.0
        %3414 = vmatprep.subr.mxu0 0.0
        %3415 = vmatpush1.msra.mxu0 0.0
        %3416 = vmatprep.subr.mxu0 0.0
        %3417 = vmatpush1.msra.mxu0 0.0
        %3418 = vmatprep.subr.mxu0 0.0
        %3419 = vmatpush1.msra.mxu0 0.0
        %3420 = vmatprep.subr.mxu0 0.0
        %3421 = vmatpush1.msra.mxu0 0.0
        %3422 = vmatprep.subr.mxu0 0.0
        %3423 = vmatpush1.msra.mxu0 0.0
        %3424 = vmatprep.subr.mxu0 0.0
        %3425 = vmatpush1.msra.mxu0 0.0
        %3426 = vmatprep.subr.mxu0 0.0
        %3427 = vmatpush1.msra.mxu0 0.0
        %3428 = vmatprep.subr.mxu0 0.0
        %3429 = vmatpush1.msra.mxu0 0.0
        %3430 = vmatprep.subr.mxu0 0.0
        %3431 = vmatpush1.msra.mxu0 0.0
        %3432 = vmatprep.subr.mxu0 0.0
        %3433 = vmatpush1.msra.mxu0 0.0
        %3434 = vmatprep.subr.mxu0 0.0
        %3435 = vmatpush1.msra.mxu0 0.0
        %3436 = vmatprep.subr.mxu0 0.0
        %3437 = vmatpush1.msra.mxu0 0.0
        %3438 = vmatprep.subr.mxu0 0.0
        %3439 = vmatpush1.msra.mxu0 0.0
        %3440 = vmatprep.subr.mxu0 0.0
        %3441 = vmatpush1.msra.mxu0 0.0
        %3442 = vmatprep.subr.mxu0 0.0
        %3443 = vmatpush1.msra.mxu0 0.0
        %3444 = vmatprep.subr.mxu0 0.0
        %3445 = vmatpush1.msra.mxu0 0.0
        %3446 = vmatprep.subr.mxu0 0.0
        %3447 = vmatpush1.msra.mxu0 0.0
        %3448 = vmatprep.subr.mxu0 0.0
        %3449 = vmatpush1.msra.mxu0 0.0
        %3450 = vmatprep.subr.mxu0 0.0
        %3451 = vmatpush1.msra.mxu0 0.0
        %3452 = vmatprep.subr.mxu0 0.0
        %3453 = vmatpush1.msra.mxu0 0.0
        %3454 = vmatprep.subr.mxu0 0.0
        %3455 = vmatpush1.msra.mxu0 0.0
        %3456 = vmatprep.subr.mxu0 0.0
        %3457 = vmatpush1.msra.mxu0 0.0
        %3458 = vmatprep.subr.mxu0 0.0
        %3459 = vmatpush1.msra.mxu0 0.0
        %3460 = vmatprep.subr.mxu0 0.0
        %3461 = vmatpush1.msra.mxu0 0.0
        %3462 = vmatprep.subr.mxu0 0.0
        %3463 = vmatpush1.msra.mxu0 0.0
        %3464 = vmatprep.subr.mxu0 0.0
        %3465 = vmatpush1.msra.mxu0 0.0
        %3466 = vmatprep.subr.mxu0 0.0
        %3467 = vmatpush1.msra.mxu0 0.0
        %3468 = vmatprep.subr.mxu0 0.0
        %3469 = vmatpush1.msra.mxu0 0.0
        %3470 = vmatprep.subr.mxu0 0.0
        %3471 = vmatpush1.msra.mxu0 0.0
        %3472 = vmatprep.mubr.f32.mxu0 0.0
        %3473 = vmatmul.mubr.f32.gmra.mrb[0].mxu0 %v3403
        %v3474 = vpop.f32.mrb[0].mxu0
        %v3475 = vadd.f32 0.0, %v3474
        %v3476 = vpop.f32.mrb[0].mxu0
        %3477 = vmatprep.mubr.f32.mxu0 0.0
        %3478 = vmatmul.mubr.f32.gmra.mrb[0].mxu0 %v3406
        %v3479 = vpop.f32.mrb[0].mxu0
        %v3480 = vadd.f32 0.0, %v3479
        %v3481 = vpop.f32.mrb[0].mxu0
        %3482 = vdwg.mxu0
        %v3483 = vsel %vm2330, %v3475, -inf
        %3484 = vmax.xlane.f32.xlu0 %v3483
        %v3485 = vpop.xlane.xlu0 %3484
        %v3486 = vsel %vm2330, %v3480, -inf
        %3487 = vmax.xlane.f32.xlu0 %v3486
        %v3488 = vpop.xlane.xlu0 %3487
        %v3489 = vsub.f32 %v3475, %v3485
        %v3490 = vsub.f32 %v3480, %v3488
        %v3491 = vmul.f32 %v3489, 1.442695
        %v3492 = vpow.pop %v3491
        %v3493 = vmul.f32 %v3490, 1.442695
        %v3494 = vpow.pop %v3493
        %v3495 = vsel %vm2330, %v3492, 0.0
        %3496 = vadd.xlane.f32.xlu0 %v3495
        %v3497 = vpop.xlane.xlu0 %3496
        %v3498 = vsel %vm2330, %v3494, 0.0
        %3499 = vadd.xlane.f32.xlu0 %v3498
        %v3500 = vpop.xlane.xlu0 %3499
        %v3501 = vrcp.pop %v3497
        %v3502 = vmul.f32 1.0, %v3501
        %v3503 = vrcp.pop %v3500
        %v3504 = vmul.f32 1.0, %v3503
        %v3505 = vmul.f32 %v3492, %v3502
        %v3506 = vmul.f32 %v3494, %v3504
        %s3507 = scalar_lea.vmem [#allocation3], 24
        %v3508 = vld [vmem:[%s3507] sm:$0xff]
        %v3510 = vsel %vm2330, %v3505, 0
        %v3513 = vsel %vm2330, %v3506, 0
        %3515 = vmatprep.subr.mxu0 0.0
        %3516 = vmatpush1.msra.mxu0 %v3508
        %3517 = vmatprep.subr.mxu0 0.0
        %3518 = vmatpush1.msra.mxu0 0.0
        %3519 = vmatprep.subr.mxu0 0.0
        %3520 = vmatpush1.msra.mxu0 0.0
        %3521 = vmatprep.subr.mxu0 0.0
        %3522 = vmatpush1.msra.mxu0 0.0
        %3523 = vmatprep.subr.mxu0 0.0
        %3524 = vmatpush1.msra.mxu0 0.0
        %3525 = vmatprep.subr.mxu0 0.0
        %3526 = vmatpush1.msra.mxu0 0.0
        %3527 = vmatprep.subr.mxu0 0.0
        %3528 = vmatpush1.msra.mxu0 0.0
        %3529 = vmatprep.subr.mxu0 0.0
        %3530 = vmatpush1.msra.mxu0 0.0
        %3531 = vmatprep.subr.mxu0 0.0
        %3532 = vmatpush1.msra.mxu0 0.0
        %3533 = vmatprep.subr.mxu0 0.0
        %3534 = vmatpush1.msra.mxu0 0.0
        %3535 = vmatprep.subr.mxu0 0.0
        %3536 = vmatpush1.msra.mxu0 0.0
        %3537 = vmatprep.subr.mxu0 0.0
        %3538 = vmatpush1.msra.mxu0 0.0
        %3539 = vmatprep.subr.mxu0 0.0
        %3540 = vmatpush1.msra.mxu0 0.0
        %3541 = vmatprep.subr.mxu0 0.0
        %3542 = vmatpush1.msra.mxu0 0.0
        %3543 = vmatprep.subr.mxu0 0.0
        %3544 = vmatpush1.msra.mxu0 0.0
        %3545 = vmatprep.subr.mxu0 0.0
        %3546 = vmatpush1.msra.mxu0 0.0
        %3547 = vmatprep.subr.mxu0 0.0
        %3548 = vmatpush1.msra.mxu0 0.0
        %3549 = vmatprep.subr.mxu0 0.0
        %3550 = vmatpush1.msra.mxu0 0.0
        %3551 = vmatprep.subr.mxu0 0.0
        %3552 = vmatpush1.msra.mxu0 0.0
        %3553 = vmatprep.subr.mxu0 0.0
        %3554 = vmatpush1.msra.mxu0 0.0
        %3555 = vmatprep.subr.mxu0 0.0
        %3556 = vmatpush1.msra.mxu0 0.0
        %3557 = vmatprep.subr.mxu0 0.0
        %3558 = vmatpush1.msra.mxu0 0.0
        %3559 = vmatprep.subr.mxu0 0.0
        %3560 = vmatpush1.msra.mxu0 0.0
        %3561 = vmatprep.subr.mxu0 0.0
        %3562 = vmatpush1.msra.mxu0 0.0
        %3563 = vmatprep.subr.mxu0 0.0
        %3564 = vmatpush1.msra.mxu0 0.0
        %3565 = vmatprep.subr.mxu0 0.0
        %3566 = vmatpush1.msra.mxu0 0.0
        %3567 = vmatprep.subr.mxu0 0.0
        %3568 = vmatpush1.msra.mxu0 0.0
        %3569 = vmatprep.subr.mxu0 0.0
        %3570 = vmatpush1.msra.mxu0 0.0
        %3571 = vmatprep.subr.mxu0 0.0
        %3572 = vmatpush1.msra.mxu0 0.0
        %3573 = vmatprep.subr.mxu0 0.0
        %3574 = vmatpush1.msra.mxu0 0.0
        %3575 = vmatprep.subr.mxu0 0.0
        %3576 = vmatpush1.msra.mxu0 0.0
        %3577 = vmatprep.subr.mxu0 0.0
        %3578 = vmatpush1.msra.mxu0 0.0
        %3579 = vmatprep.mubr.f32.mxu0 0.0
        %3580 = vmatmul.mubr.f32.gmra.mrb[0].mxu0 %v3510
        %v3581 = vpop.f32.mrb[0].mxu0
        %v3582 = vadd.f32 0.0, %v3581
        %v3583 = vpop.f32.mrb[0].mxu0
        %3584 = vmatprep.mubr.f32.mxu0 0.0
        %3585 = vmatmul.mubr.f32.gmra.mrb[0].mxu0 %v3513
        %v3586 = vpop.f32.mrb[0].mxu0
        %v3587 = vadd.f32 0.0, %v3586
        %v3588 = vpop.f32.mrb[0].mxu0
        %3589 = vdwg.mxu0
        %s3590 = scalar_lea.vmem %s9, 24
        %v3591 = vld [vmem:[%s3590] sm:$0xff]
        %v3593 = vsel %vm2330, %v3582, 0
        %v3596 = vsel %vm2330, %v3587, 0
        %3598 = vmatprep.subr.mxu0 0.0
        %3599 = vmatpush1.msra.mxu0 %v3591
        %3600 = vmatprep.subr.mxu0 0.0
        %3601 = vmatpush1.msra.mxu0 0.0
        %3602 = vmatprep.subr.mxu0 0.0
        %3603 = vmatpush1.msra.mxu0 0.0
        %3604 = vmatprep.subr.mxu0 0.0
        %3605 = vmatpush1.msra.mxu0 0.0
        %3606 = vmatprep.subr.mxu0 0.0
        %3607 = vmatpush1.msra.mxu0 0.0
        %3608 = vmatprep.subr.mxu0 0.0
        %3609 = vmatpush1.msra.mxu0 0.0
        %3610 = vmatprep.subr.mxu0 0.0
        %3611 = vmatpush1.msra.mxu0 0.0
        %3612 = vmatprep.subr.mxu0 0.0
        %3613 = vmatpush1.msra.mxu0 0.0
        %3614 = vmatprep.subr.mxu0 0.0
        %3615 = vmatpush1.msra.mxu0 0.0
        %3616 = vmatprep.subr.mxu0 0.0
        %3617 = vmatpush1.msra.mxu0 0.0
        %3618 = vmatprep.subr.mxu0 0.0
        %3619 = vmatpush1.msra.mxu0 0.0
        %3620 = vmatprep.subr.mxu0 0.0
        %3621 = vmatpush1.msra.mxu0 0.0
        %3622 = vmatprep.subr.mxu0 0.0
        %3623 = vmatpush1.msra.mxu0 0.0
        %3624 = vmatprep.subr.mxu0 0.0
        %3625 = vmatpush1.msra.mxu0 0.0
        %3626 = vmatprep.subr.mxu0 0.0
        %3627 = vmatpush1.msra.mxu0 0.0
        %3628 = vmatprep.subr.mxu0 0.0
        %3629 = vmatpush1.msra.mxu0 0.0
        %3630 = vmatprep.subr.mxu0 0.0
        %3631 = vmatpush1.msra.mxu0 0.0
        %3632 = vmatprep.subr.mxu0 0.0
        %3633 = vmatpush1.msra.mxu0 0.0
        %3634 = vmatprep.subr.mxu0 0.0
        %3635 = vmatpush1.msra.mxu0 0.0
        %3636 = vmatprep.subr.mxu0 0.0
        %3637 = vmatpush1.msra.mxu0 0.0
        %3638 = vmatprep.subr.mxu0 0.0
        %3639 = vmatpush1.msra.mxu0 0.0
        %3640 = vmatprep.subr.mxu0 0.0
        %3641 = vmatpush1.msra.mxu0 0.0
        %3642 = vmatprep.subr.mxu0 0.0
        %3643 = vmatpush1.msra.mxu0 0.0
        %3644 = vmatprep.subr.mxu0 0.0
        %3645 = vmatpush1.msra.mxu0 0.0
        %3646 = vmatprep.subr.mxu0 0.0
        %3647 = vmatpush1.msra.mxu0 0.0
        %3648 = vmatprep.subr.mxu0 0.0
        %3649 = vmatpush1.msra.mxu0 0.0
        %3650 = vmatprep.subr.mxu0 0.0
        %3651 = vmatpush1.msra.mxu0 0.0
        %3652 = vmatprep.subr.mxu0 0.0
        %3653 = vmatpush1.msra.mxu0 0.0
        %3654 = vmatprep.subr.mxu0 0.0
        %3655 = vmatpush1.msra.mxu0 0.0
        %3656 = vmatprep.subr.mxu0 0.0
        %3657 = vmatpush1.msra.mxu0 0.0
        %3658 = vmatprep.subr.mxu0 0.0
        %3659 = vmatpush1.msra.mxu0 0.0
        %3660 = vmatprep.subr.mxu0 0.0
        %3661 = vmatpush1.msra.mxu0 0.0
        %3662 = vmatprep.mubr.f32.mxu0 0.0
        %3663 = vmatmul.mubr.f32.gmra.mrb[0].mxu0 %v3593
        %v3664 = vpop.f32.mrb[0].mxu0
        %v3665 = vadd.f32 0.0, %v3664
        %v3666 = vpop.f32.mrb[0].mxu0
        %3667 = vmatprep.mubr.f32.mxu0 0.0
        %3668 = vmatmul.mubr.f32.gmra.mrb[0].mxu0 %v3596
        %v3669 = vpop.f32.mrb[0].mxu0
        %v3670 = vadd.f32 0.0, %v3669
        %v3671 = vpop.f32.mrb[0].mxu0
        %3672 = vdwg.mxu0
        %v3673 = vadd.f32 %v3314, %v3665
        %v3674 = vadd.f32 %v3315, %v3670
        %s3675 = scalar_lea.vmem %s6, 256
        %v3676 = vld [vmem:[%s3675] sm:$0xff]
        %v3677 = vld [vmem:[%s3675 + $0x8] sm:$0xff]
        %v3678 = vld [vmem:[%s3675 + $0x10] sm:$0xff]
        %v3679 = vld [vmem:[%s3675 + $0x18] sm:$0xff]
        %v3680 = vld [vmem:[%s3675 + $0x20] sm:$0xff]
        %v3681 = vld [vmem:[%s3675 + $0x28] sm:$0xff]
        %v3682 = vld [vmem:[%s3675 + $0x30] sm:$0xff]
        %v3683 = vld [vmem:[%s3675 + $0x38] sm:$0xff]
        %3684 = vmatprep.subr.mxu0 0.0
        %3685 = vmatpush1.msra.mxu0 %v3676
        %3686 = vmatprep.subr.mxu0 0.0
        %3687 = vmatpush1.msra.mxu0 %v3677
        %3688 = vmatprep.subr.mxu0 0.0
        %3689 = vmatpush1.msra.mxu0 %v3678
        %3690 = vmatprep.subr.mxu0 0.0
        %3691 = vmatpush1.msra.mxu0 %v3679
        %3692 = vmatprep.subr.mxu0 0.0
        %3693 = vmatpush1.msra.mxu0 %v3680
        %3694 = vmatprep.subr.mxu0 0.0
        %3695 = vmatpush1.msra.mxu0 %v3681
        %3696 = vmatprep.subr.mxu0 0.0
        %3697 = vmatpush1.msra.mxu0 %v3682
        %3698 = vmatprep.subr.mxu0 0.0
        %3699 = vmatpush1.msra.mxu0 %v3683
        %3700 = vmatprep.subr.mxu0 0.0
        %3701 = vmatpush1.msra.mxu0 0.0
        %3702 = vmatprep.subr.mxu0 0.0
        %3703 = vmatpush1.msra.mxu0 0.0
        %3704 = vmatprep.subr.mxu0 0.0
        %3705 = vmatpush1.msra.mxu0 0.0
        %3706 = vmatprep.subr.mxu0 0.0
        %3707 = vmatpush1.msra.mxu0 0.0
        %3708 = vmatprep.subr.mxu0 0.0
        %3709 = vmatpush1.msra.mxu0 0.0
        %3710 = vmatprep.subr.mxu0 0.0
        %3711 = vmatpush1.msra.mxu0 0.0
        %3712 = vmatprep.subr.mxu0 0.0
        %3713 = vmatpush1.msra.mxu0 0.0
        %3714 = vmatprep.subr.mxu0 0.0
        %3715 = vmatpush1.msra.mxu0 0.0
        %3716 = vmatprep.subr.mxu0 0.0
        %3717 = vmatpush1.msra.mxu0 0.0
        %3718 = vmatprep.subr.mxu0 0.0
        %3719 = vmatpush1.msra.mxu0 0.0
        %3720 = vmatprep.subr.mxu0 0.0
        %3721 = vmatpush1.msra.mxu0 0.0
        %3722 = vmatprep.subr.mxu0 0.0
        %3723 = vmatpush1.msra.mxu0 0.0
        %3724 = vmatprep.subr.mxu0 0.0
        %3725 = vmatpush1.msra.mxu0 0.0
        %3726 = vmatprep.subr.mxu0 0.0
        %3727 = vmatpush1.msra.mxu0 0.0
        %3728 = vmatprep.subr.mxu0 0.0
        %3729 = vmatpush1.msra.mxu0 0.0
        %3730 = vmatprep.subr.mxu0 0.0
        %3731 = vmatpush1.msra.mxu0 0.0
        %3732 = vmatprep.subr.mxu0 0.0
        %3733 = vmatpush1.msra.mxu0 0.0
        %3734 = vmatprep.subr.mxu0 0.0
        %3735 = vmatpush1.msra.mxu0 0.0
        %3736 = vmatprep.subr.mxu0 0.0
        %3737 = vmatpush1.msra.mxu0 0.0
        %3738 = vmatprep.subr.mxu0 0.0
        %3739 = vmatpush1.msra.mxu0 0.0
        %3740 = vmatprep.subr.mxu0 0.0
        %3741 = vmatpush1.msra.mxu0 0.0
        %3742 = vmatprep.subr.mxu0 0.0
        %3743 = vmatpush1.msra.mxu0 0.0
        %3744 = vmatprep.subr.mxu0 0.0
        %3745 = vmatpush1.msra.mxu0 0.0
        %3746 = vmatprep.subr.mxu0 0.0
        %3747 = vmatpush1.msra.mxu0 0.0
        %3748 = vmatprep.mubr.f32.mxu0 0.0
        %3749 = vmatmul.mubr.f32.gmra.mrb[0].mxu0 %v2249
        %v3750 = vpop.f32.mrb[0].mxu0
        %v3751 = vadd.f32 0.0, %v3750
        %v3752 = vpop.f32.mrb[0].mxu0
        %3753 = vmatprep.mubr.f32.mxu0 0.0
        %3754 = vmatmul.mubr.f32.gmra.mrb[0].mxu0 %v2252
        %v3755 = vpop.f32.mrb[0].mxu0
        %v3756 = vadd.f32 0.0, %v3755
        %v3757 = vpop.f32.mrb[0].mxu0
        %3758 = vdwg.mxu0
        %s3759 = scalar_lea.vmem [#allocation2], 32
        %v3760 = vld [vmem:[%s3759] sm:$0xff]
        %v3762 = vsel %vm2330, %v3751, 0
        %v3765 = vsel %vm2330, %v3756, 0
        %3767 = vmatprep.subr.mxu0 0.0
        %3768 = vmatpush1.msra.mxu0 %v3760
        %3769 = vmatprep.subr.mxu0 0.0
        %3770 = vmatpush1.msra.mxu0 0.0
        %3771 = vmatprep.subr.mxu0 0.0
        %3772 = vmatpush1.msra.mxu0 0.0
        %3773 = vmatprep.subr.mxu0 0.0
        %3774 = vmatpush1.msra.mxu0 0.0
        %3775 = vmatprep.subr.mxu0 0.0
        %3776 = vmatpush1.msra.mxu0 0.0
        %3777 = vmatprep.subr.mxu0 0.0
        %3778 = vmatpush1.msra.mxu0 0.0
        %3779 = vmatprep.subr.mxu0 0.0
        %3780 = vmatpush1.msra.mxu0 0.0
        %3781 = vmatprep.subr.mxu0 0.0
        %3782 = vmatpush1.msra.mxu0 0.0
        %3783 = vmatprep.subr.mxu0 0.0
        %3784 = vmatpush1.msra.mxu0 0.0
        %3785 = vmatprep.subr.mxu0 0.0
        %3786 = vmatpush1.msra.mxu0 0.0
        %3787 = vmatprep.subr.mxu0 0.0
        %3788 = vmatpush1.msra.mxu0 0.0
        %3789 = vmatprep.subr.mxu0 0.0
        %3790 = vmatpush1.msra.mxu0 0.0
        %3791 = vmatprep.subr.mxu0 0.0
        %3792 = vmatpush1.msra.mxu0 0.0
        %3793 = vmatprep.subr.mxu0 0.0
        %3794 = vmatpush1.msra.mxu0 0.0
        %3795 = vmatprep.subr.mxu0 0.0
        %3796 = vmatpush1.msra.mxu0 0.0
        %3797 = vmatprep.subr.mxu0 0.0
        %3798 = vmatpush1.msra.mxu0 0.0
        %3799 = vmatprep.subr.mxu0 0.0
        %3800 = vmatpush1.msra.mxu0 0.0
        %3801 = vmatprep.subr.mxu0 0.0
        %3802 = vmatpush1.msra.mxu0 0.0
        %3803 = vmatprep.subr.mxu0 0.0
        %3804 = vmatpush1.msra.mxu0 0.0
        %3805 = vmatprep.subr.mxu0 0.0
        %3806 = vmatpush1.msra.mxu0 0.0
        %3807 = vmatprep.subr.mxu0 0.0
        %3808 = vmatpush1.msra.mxu0 0.0
        %3809 = vmatprep.subr.mxu0 0.0
        %3810 = vmatpush1.msra.mxu0 0.0
        %3811 = vmatprep.subr.mxu0 0.0
        %3812 = vmatpush1.msra.mxu0 0.0
        %3813 = vmatprep.subr.mxu0 0.0
        %3814 = vmatpush1.msra.mxu0 0.0
        %3815 = vmatprep.subr.mxu0 0.0
        %3816 = vmatpush1.msra.mxu0 0.0
        %3817 = vmatprep.subr.mxu0 0.0
        %3818 = vmatpush1.msra.mxu0 0.0
        %3819 = vmatprep.subr.mxu0 0.0
        %3820 = vmatpush1.msra.mxu0 0.0
        %3821 = vmatprep.subr.mxu0 0.0
        %3822 = vmatpush1.msra.mxu0 0.0
        %3823 = vmatprep.subr.mxu0 0.0
        %3824 = vmatpush1.msra.mxu0 0.0
        %3825 = vmatprep.subr.mxu0 0.0
        %3826 = vmatpush1.msra.mxu0 0.0
        %3827 = vmatprep.subr.mxu0 0.0
        %3828 = vmatpush1.msra.mxu0 0.0
        %3829 = vmatprep.subr.mxu0 0.0
        %3830 = vmatpush1.msra.mxu0 0.0
        %3831 = vmatprep.mubr.f32.mxu0 0.0
        %3832 = vmatmul.mubr.f32.gmra.mrb[0].mxu0 %v3762
        %v3833 = vpop.f32.mrb[0].mxu0
        %v3834 = vadd.f32 0.0, %v3833
        %v3835 = vpop.f32.mrb[0].mxu0
        %3836 = vmatprep.mubr.f32.mxu0 0.0
        %3837 = vmatmul.mubr.f32.gmra.mrb[0].mxu0 %v3765
        %v3838 = vpop.f32.mrb[0].mxu0
        %v3839 = vadd.f32 0.0, %v3838
        %v3840 = vpop.f32.mrb[0].mxu0
        %3841 = vdwg.mxu0
        %v3842 = vsel %vm2330, %v3834, -inf
        %3843 = vmax.xlane.f32.xlu0 %v3842
        %v3844 = vpop.xlane.xlu0 %3843
        %v3845 = vsel %vm2330, %v3839, -inf
        %3846 = vmax.xlane.f32.xlu0 %v3845
        %v3847 = vpop.xlane.xlu0 %3846
        %v3848 = vsub.f32 %v3834, %v3844
        %v3849 = vsub.f32 %v3839, %v3847
        %v3850 = vmul.f32 %v3848, 1.442695
        %v3851 = vpow.pop %v3850
        %v3852 = vmul.f32 %v3849, 1.442695
        %v3853 = vpow.pop %v3852
        %v3854 = vsel %vm2330, %v3851, 0.0
        %3855 = vadd.xlane.f32.xlu0 %v3854
        %v3856 = vpop.xlane.xlu0 %3855
        %v3857 = vsel %vm2330, %v3853, 0.0
        %3858 = vadd.xlane.f32.xlu0 %v3857
        %v3859 = vpop.xlane.xlu0 %3858
        %v3860 = vrcp.pop %v3856
        %v3861 = vmul.f32 1.0, %v3860
        %v3862 = vrcp.pop %v3859
        %v3863 = vmul.f32 1.0, %v3862
        %v3864 = vmul.f32 %v3851, %v3861
        %v3865 = vmul.f32 %v3853, %v3863
        %s3866 = scalar_lea.vmem [#allocation3], 32
        %v3867 = vld [vmem:[%s3866] sm:$0xff]
        %v3869 = vsel %vm2330, %v3864, 0
        %v3872 = vsel %vm2330, %v3865, 0
        %3874 = vmatprep.subr.mxu0 0.0
        %3875 = vmatpush1.msra.mxu0 %v3867
        %3876 = vmatprep.subr.mxu0 0.0
        %3877 = vmatpush1.msra.mxu0 0.0
        %3878 = vmatprep.subr.mxu0 0.0
        %3879 = vmatpush1.msra.mxu0 0.0
        %3880 = vmatprep.subr.mxu0 0.0
        %3881 = vmatpush1.msra.mxu0 0.0
        %3882 = vmatprep.subr.mxu0 0.0
        %3883 = vmatpush1.msra.mxu0 0.0
        %3884 = vmatprep.subr.mxu0 0.0
        %3885 = vmatpush1.msra.mxu0 0.0
        %3886 = vmatprep.subr.mxu0 0.0
        %3887 = vmatpush1.msra.mxu0 0.0
        %3888 = vmatprep.subr.mxu0 0.0
        %3889 = vmatpush1.msra.mxu0 0.0
        %3890 = vmatprep.subr.mxu0 0.0
        %3891 = vmatpush1.msra.mxu0 0.0
        %3892 = vmatprep.subr.mxu0 0.0
        %3893 = vmatpush1.msra.mxu0 0.0
        %3894 = vmatprep.subr.mxu0 0.0
        %3895 = vmatpush1.msra.mxu0 0.0
        %3896 = vmatprep.subr.mxu0 0.0
        %3897 = vmatpush1.msra.mxu0 0.0
        %3898 = vmatprep.subr.mxu0 0.0
        %3899 = vmatpush1.msra.mxu0 0.0
        %3900 = vmatprep.subr.mxu0 0.0
        %3901 = vmatpush1.msra.mxu0 0.0
        %3902 = vmatprep.subr.mxu0 0.0
        %3903 = vmatpush1.msra.mxu0 0.0
        %3904 = vmatprep.subr.mxu0 0.0
        %3905 = vmatpush1.msra.mxu0 0.0
        %3906 = vmatprep.subr.mxu0 0.0
        %3907 = vmatpush1.msra.mxu0 0.0
        %3908 = vmatprep.subr.mxu0 0.0
        %3909 = vmatpush1.msra.mxu0 0.0
        %3910 = vmatprep.subr.mxu0 0.0
        %3911 = vmatpush1.msra.mxu0 0.0
        %3912 = vmatprep.subr.mxu0 0.0
        %3913 = vmatpush1.msra.mxu0 0.0
        %3914 = vmatprep.subr.mxu0 0.0
        %3915 = vmatpush1.msra.mxu0 0.0
        %3916 = vmatprep.subr.mxu0 0.0
        %3917 = vmatpush1.msra.mxu0 0.0
        %3918 = vmatprep.subr.mxu0 0.0
        %3919 = vmatpush1.msra.mxu0 0.0
        %3920 = vmatprep.subr.mxu0 0.0
        %3921 = vmatpush1.msra.mxu0 0.0
        %3922 = vmatprep.subr.mxu0 0.0
        %3923 = vmatpush1.msra.mxu0 0.0
        %3924 = vmatprep.subr.mxu0 0.0
        %3925 = vmatpush1.msra.mxu0 0.0
        %3926 = vmatprep.subr.mxu0 0.0
        %3927 = vmatpush1.msra.mxu0 0.0
        %3928 = vmatprep.subr.mxu0 0.0
        %3929 = vmatpush1.msra.mxu0 0.0
        %3930 = vmatprep.subr.mxu0 0.0
        %3931 = vmatpush1.msra.mxu0 0.0
        %3932 = vmatprep.subr.mxu0 0.0
        %3933 = vmatpush1.msra.mxu0 0.0
        %3934 = vmatprep.subr.mxu0 0.0
        %3935 = vmatpush1.msra.mxu0 0.0
        %3936 = vmatprep.subr.mxu0 0.0
        %3937 = vmatpush1.msra.mxu0 0.0
        %3938 = vmatprep.mubr.f32.mxu0 0.0
        %3939 = vmatmul.mubr.f32.gmra.mrb[0].mxu0 %v3869
        %v3940 = vpop.f32.mrb[0].mxu0
        %v3941 = vadd.f32 0.0, %v3940
        %v3942 = vpop.f32.mrb[0].mxu0
        %3943 = vmatprep.mubr.f32.mxu0 0.0
        %3944 = vmatmul.mubr.f32.gmra.mrb[0].mxu0 %v3872
        %v3945 = vpop.f32.mrb[0].mxu0
        %v3946 = vadd.f32 0.0, %v3945
        %v3947 = vpop.f32.mrb[0].mxu0
        %3948 = vdwg.mxu0
        %s3949 = scalar_lea.vmem %s9, 32
        %v3950 = vld [vmem:[%s3949] sm:$0xff]
        %v3952 = vsel %vm2330, %v3941, 0
        %v3955 = vsel %vm2330, %v3946, 0
        %3957 = vmatprep.subr.mxu0 0.0
        %3958 = vmatpush1.msra.mxu0 %v3950
        %3959 = vmatprep.subr.mxu0 0.0
        %3960 = vmatpush1.msra.mxu0 0.0
        %3961 = vmatprep.subr.mxu0 0.0
        %3962 = vmatpush1.msra.mxu0 0.0
        %3963 = vmatprep.subr.mxu0 0.0
        %3964 = vmatpush1.msra.mxu0 0.0
        %3965 = vmatprep.subr.mxu0 0.0
        %3966 = vmatpush1.msra.mxu0 0.0
        %3967 = vmatprep.subr.mxu0 0.0
        %3968 = vmatpush1.msra.mxu0 0.0
        %3969 = vmatprep.subr.mxu0 0.0
        %3970 = vmatpush1.msra.mxu0 0.0
        %3971 = vmatprep.subr.mxu0 0.0
        %3972 = vmatpush1.msra.mxu0 0.0
        %3973 = vmatprep.subr.mxu0 0.0
        %3974 = vmatpush1.msra.mxu0 0.0
        %3975 = vmatprep.subr.mxu0 0.0
        %3976 = vmatpush1.msra.mxu0 0.0
        %3977 = vmatprep.subr.mxu0 0.0
        %3978 = vmatpush1.msra.mxu0 0.0
        %3979 = vmatprep.subr.mxu0 0.0
        %3980 = vmatpush1.msra.mxu0 0.0
        %3981 = vmatprep.subr.mxu0 0.0
        %3982 = vmatpush1.msra.mxu0 0.0
        %3983 = vmatprep.subr.mxu0 0.0
        %3984 = vmatpush1.msra.mxu0 0.0
        %3985 = vmatprep.subr.mxu0 0.0
        %3986 = vmatpush1.msra.mxu0 0.0
        %3987 = vmatprep.subr.mxu0 0.0
        %3988 = vmatpush1.msra.mxu0 0.0
        %3989 = vmatprep.subr.mxu0 0.0
        %3990 = vmatpush1.msra.mxu0 0.0
        %3991 = vmatprep.subr.mxu0 0.0
        %3992 = vmatpush1.msra.mxu0 0.0
        %3993 = vmatprep.subr.mxu0 0.0
        %3994 = vmatpush1.msra.mxu0 0.0
        %3995 = vmatprep.subr.mxu0 0.0
        %3996 = vmatpush1.msra.mxu0 0.0
        %3997 = vmatprep.subr.mxu0 0.0
        %3998 = vmatpush1.msra.mxu0 0.0
        %3999 = vmatprep.subr.mxu0 0.0
        %4000 = vmatpush1.msra.mxu0 0.0
        %4001 = vmatprep.subr.mxu0 0.0
        %4002 = vmatpush1.msra.mxu0 0.0
        %4003 = vmatprep.subr.mxu0 0.0
        %4004 = vmatpush1.msra.mxu0 0.0
        %4005 = vmatprep.subr.mxu0 0.0
        %4006 = vmatpush1.msra.mxu0 0.0
        %4007 = vmatprep.subr.mxu0 0.0
        %4008 = vmatpush1.msra.mxu0 0.0
        %4009 = vmatprep.subr.mxu0 0.0
        %4010 = vmatpush1.msra.mxu0 0.0
        %4011 = vmatprep.subr.mxu0 0.0
        %4012 = vmatpush1.msra.mxu0 0.0
        %4013 = vmatprep.subr.mxu0 0.0
        %4014 = vmatpush1.msra.mxu0 0.0
        %4015 = vmatprep.subr.mxu0 0.0
        %4016 = vmatpush1.msra.mxu0 0.0
        %4017 = vmatprep.subr.mxu0 0.0
        %4018 = vmatpush1.msra.mxu0 0.0
        %4019 = vmatprep.subr.mxu0 0.0
        %4020 = vmatpush1.msra.mxu0 0.0
        %4021 = vmatprep.mubr.f32.mxu0 0.0
        %4022 = vmatmul.mubr.f32.gmra.mrb[0].mxu0 %v3952
        %v4023 = vpop.f32.mrb[0].mxu0
        %v4024 = vadd.f32 0.0, %v4023
        %v4025 = vpop.f32.mrb[0].mxu0
        %4026 = vmatprep.mubr.f32.mxu0 0.0
        %4027 = vmatmul.mubr.f32.gmra.mrb[0].mxu0 %v3955
        %v4028 = vpop.f32.mrb[0].mxu0
        %v4029 = vadd.f32 0.0, %v4028
        %v4030 = vpop.f32.mrb[0].mxu0
        %4031 = vdwg.mxu0
        %v4032 = vadd.f32 %v3673, %v4024
        %v4033 = vadd.f32 %v3674, %v4029
        %s4034 = scalar_lea.vmem %s6, 320
        %v4035 = vld [vmem:[%s4034] sm:$0xff]
        %v4036 = vld [vmem:[%s4034 + $0x8] sm:$0xff]
        %v4037 = vld [vmem:[%s4034 + $0x10] sm:$0xff]
        %v4038 = vld [vmem:[%s4034 + $0x18] sm:$0xff]
        %v4039 = vld [vmem:[%s4034 + $0x20] sm:$0xff]
        %v4040 = vld [vmem:[%s4034 + $0x28] sm:$0xff]
        %v4041 = vld [vmem:[%s4034 + $0x30] sm:$0xff]
        %v4042 = vld [vmem:[%s4034 + $0x38] sm:$0xff]
        %4043 = vmatprep.subr.mxu0 0.0
        %4044 = vmatpush1.msra.mxu0 %v4035
        %4045 = vmatprep.subr.mxu0 0.0
        %4046 = vmatpush1.msra.mxu0 %v4036
        %4047 = vmatprep.subr.mxu0 0.0
        %4048 = vmatpush1.msra.mxu0 %v4037
        %4049 = vmatprep.subr.mxu0 0.0
        %4050 = vmatpush1.msra.mxu0 %v4038
        %4051 = vmatprep.subr.mxu0 0.0
        %4052 = vmatpush1.msra.mxu0 %v4039
        %4053 = vmatprep.subr.mxu0 0.0
        %4054 = vmatpush1.msra.mxu0 %v4040
        %4055 = vmatprep.subr.mxu0 0.0
        %4056 = vmatpush1.msra.mxu0 %v4041
        %4057 = vmatprep.subr.mxu0 0.0
        %4058 = vmatpush1.msra.mxu0 %v4042
        %4059 = vmatprep.subr.mxu0 0.0
        %4060 = vmatpush1.msra.mxu0 0.0
        %4061 = vmatprep.subr.mxu0 0.0
        %4062 = vmatpush1.msra.mxu0 0.0
        %4063 = vmatprep.subr.mxu0 0.0
        %4064 = vmatpush1.msra.mxu0 0.0
        %4065 = vmatprep.subr.mxu0 0.0
        %4066 = vmatpush1.msra.mxu0 0.0
        %4067 = vmatprep.subr.mxu0 0.0
        %4068 = vmatpush1.msra.mxu0 0.0
        %4069 = vmatprep.subr.mxu0 0.0
        %4070 = vmatpush1.msra.mxu0 0.0
        %4071 = vmatprep.subr.mxu0 0.0
        %4072 = vmatpush1.msra.mxu0 0.0
        %4073 = vmatprep.subr.mxu0 0.0
        %4074 = vmatpush1.msra.mxu0 0.0
        %4075 = vmatprep.subr.mxu0 0.0
        %4076 = vmatpush1.msra.mxu0 0.0
        %4077 = vmatprep.subr.mxu0 0.0
        %4078 = vmatpush1.msra.mxu0 0.0
        %4079 = vmatprep.subr.mxu0 0.0
        %4080 = vmatpush1.msra.mxu0 0.0
        %4081 = vmatprep.subr.mxu0 0.0
        %4082 = vmatpush1.msra.mxu0 0.0
        %4083 = vmatprep.subr.mxu0 0.0
        %4084 = vmatpush1.msra.mxu0 0.0
        %4085 = vmatprep.subr.mxu0 0.0
        %4086 = vmatpush1.msra.mxu0 0.0
        %4087 = vmatprep.subr.mxu0 0.0
        %4088 = vmatpush1.msra.mxu0 0.0
        %4089 = vmatprep.subr.mxu0 0.0
        %4090 = vmatpush1.msra.mxu0 0.0
        %4091 = vmatprep.subr.mxu0 0.0
        %4092 = vmatpush1.msra.mxu0 0.0
        %4093 = vmatprep.subr.mxu0 0.0
        %4094 = vmatpush1.msra.mxu0 0.0
        %4095 = vmatprep.subr.mxu0 0.0
        %4096 = vmatpush1.msra.mxu0 0.0
        %4097 = vmatprep.subr.mxu0 0.0
        %4098 = vmatpush1.msra.mxu0 0.0
        %4099 = vmatprep.subr.mxu0 0.0
        %4100 = vmatpush1.msra.mxu0 0.0
        %4101 = vmatprep.subr.mxu0 0.0
        %4102 = vmatpush1.msra.mxu0 0.0
        %4103 = vmatprep.subr.mxu0 0.0
        %4104 = vmatpush1.msra.mxu0 0.0
        %4105 = vmatprep.subr.mxu0 0.0
        %4106 = vmatpush1.msra.mxu0 0.0
        %4107 = vmatprep.mubr.f32.mxu0 0.0
        %4108 = vmatmul.mubr.f32.gmra.mrb[0].mxu0 %v2249
        %v4109 = vpop.f32.mrb[0].mxu0
        %v4110 = vadd.f32 0.0, %v4109
        %v4111 = vpop.f32.mrb[0].mxu0
        %4112 = vmatprep.mubr.f32.mxu0 0.0
        %4113 = vmatmul.mubr.f32.gmra.mrb[0].mxu0 %v2252
        %v4114 = vpop.f32.mrb[0].mxu0
        %v4115 = vadd.f32 0.0, %v4114
        %v4116 = vpop.f32.mrb[0].mxu0
        %4117 = vdwg.mxu0
        %s4118 = scalar_lea.vmem [#allocation2], 40
        %v4119 = vld [vmem:[%s4118] sm:$0xff]
        %v4121 = vsel %vm2330, %v4110, 0
        %v4124 = vsel %vm2330, %v4115, 0
        %4126 = vmatprep.subr.mxu0 0.0
        %4127 = vmatpush1.msra.mxu0 %v4119
        %4128 = vmatprep.subr.mxu0 0.0
        %4129 = vmatpush1.msra.mxu0 0.0
        %4130 = vmatprep.subr.mxu0 0.0
        %4131 = vmatpush1.msra.mxu0 0.0
        %4132 = vmatprep.subr.mxu0 0.0
        %4133 = vmatpush1.msra.mxu0 0.0
        %4134 = vmatprep.subr.mxu0 0.0
        %4135 = vmatpush1.msra.mxu0 0.0
        %4136 = vmatprep.subr.mxu0 0.0
        %4137 = vmatpush1.msra.mxu0 0.0
        %4138 = vmatprep.subr.mxu0 0.0
        %4139 = vmatpush1.msra.mxu0 0.0
        %4140 = vmatprep.subr.mxu0 0.0
        %4141 = vmatpush1.msra.mxu0 0.0
        %4142 = vmatprep.subr.mxu0 0.0
        %4143 = vmatpush1.msra.mxu0 0.0
        %4144 = vmatprep.subr.mxu0 0.0
        %4145 = vmatpush1.msra.mxu0 0.0
        %4146 = vmatprep.subr.mxu0 0.0
        %4147 = vmatpush1.msra.mxu0 0.0
        %4148 = vmatprep.subr.mxu0 0.0
        %4149 = vmatpush1.msra.mxu0 0.0
        %4150 = vmatprep.subr.mxu0 0.0
        %4151 = vmatpush1.msra.mxu0 0.0
        %4152 = vmatprep.subr.mxu0 0.0
        %4153 = vmatpush1.msra.mxu0 0.0
        %4154 = vmatprep.subr.mxu0 0.0
        %4155 = vmatpush1.msra.mxu0 0.0
        %4156 = vmatprep.subr.mxu0 0.0
        %4157 = vmatpush1.msra.mxu0 0.0
        %4158 = vmatprep.subr.mxu0 0.0
        %4159 = vmatpush1.msra.mxu0 0.0
        %4160 = vmatprep.subr.mxu0 0.0
        %4161 = vmatpush1.msra.mxu0 0.0
        %4162 = vmatprep.subr.mxu0 0.0
        %4163 = vmatpush1.msra.mxu0 0.0
        %4164 = vmatprep.subr.mxu0 0.0
        %4165 = vmatpush1.msra.mxu0 0.0
        %4166 = vmatprep.subr.mxu0 0.0
        %4167 = vmatpush1.msra.mxu0 0.0
        %4168 = vmatprep.subr.mxu0 0.0
        %4169 = vmatpush1.msra.mxu0 0.0
        %4170 = vmatprep.subr.mxu0 0.0
        %4171 = vmatpush1.msra.mxu0 0.0
        %4172 = vmatprep.subr.mxu0 0.0
        %4173 = vmatpush1.msra.mxu0 0.0
        %4174 = vmatprep.subr.mxu0 0.0
        %4175 = vmatpush1.msra.mxu0 0.0
        %4176 = vmatprep.subr.mxu0 0.0
        %4177 = vmatpush1.msra.mxu0 0.0
        %4178 = vmatprep.subr.mxu0 0.0
        %4179 = vmatpush1.msra.mxu0 0.0
        %4180 = vmatprep.subr.mxu0 0.0
        %4181 = vmatpush1.msra.mxu0 0.0
        %4182 = vmatprep.subr.mxu0 0.0
        %4183 = vmatpush1.msra.mxu0 0.0
        %4184 = vmatprep.subr.mxu0 0.0
        %4185 = vmatpush1.msra.mxu0 0.0
        %4186 = vmatprep.subr.mxu0 0.0
        %4187 = vmatpush1.msra.mxu0 0.0
        %4188 = vmatprep.subr.mxu0 0.0
        %4189 = vmatpush1.msra.mxu0 0.0
        %4190 = vmatprep.mubr.f32.mxu0 0.0
        %4191 = vmatmul.mubr.f32.gmra.mrb[0].mxu0 %v4121
        %v4192 = vpop.f32.mrb[0].mxu0
        %v4193 = vadd.f32 0.0, %v4192
        %v4194 = vpop.f32.mrb[0].mxu0
        %4195 = vmatprep.mubr.f32.mxu0 0.0
        %4196 = vmatmul.mubr.f32.gmra.mrb[0].mxu0 %v4124
        %v4197 = vpop.f32.mrb[0].mxu0
        %v4198 = vadd.f32 0.0, %v4197
        %v4199 = vpop.f32.mrb[0].mxu0
        %4200 = vdwg.mxu0
        %v4201 = vsel %vm2330, %v4193, -inf
        %4202 = vmax.xlane.f32.xlu0 %v4201
        %v4203 = vpop.xlane.xlu0 %4202
        %v4204 = vsel %vm2330, %v4198, -inf
        %4205 = vmax.xlane.f32.xlu0 %v4204
        %v4206 = vpop.xlane.xlu0 %4205
        %v4207 = vsub.f32 %v4193, %v4203
        %v4208 = vsub.f32 %v4198, %v4206
        %v4209 = vmul.f32 %v4207, 1.442695
        %v4210 = vpow.pop %v4209
        %v4211 = vmul.f32 %v4208, 1.442695
        %v4212 = vpow.pop %v4211
        %v4213 = vsel %vm2330, %v4210, 0.0
        %4214 = vadd.xlane.f32.xlu0 %v4213
        %v4215 = vpop.xlane.xlu0 %4214
        %v4216 = vsel %vm2330, %v4212, 0.0
        %4217 = vadd.xlane.f32.xlu0 %v4216
        %v4218 = vpop.xlane.xlu0 %4217
        %v4219 = vrcp.pop %v4215
        %v4220 = vmul.f32 1.0, %v4219
        %v4221 = vrcp.pop %v4218
        %v4222 = vmul.f32 1.0, %v4221
        %v4223 = vmul.f32 %v4210, %v4220
        %v4224 = vmul.f32 %v4212, %v4222
        %s4225 = scalar_lea.vmem [#allocation3], 40
        %v4226 = vld [vmem:[%s4225] sm:$0xff]
        %v4228 = vsel %vm2330, %v4223, 0
        %v4231 = vsel %vm2330, %v4224, 0
        %4233 = vmatprep.subr.mxu0 0.0
        %4234 = vmatpush1.msra.mxu0 %v4226
        %4235 = vmatprep.subr.mxu0 0.0
        %4236 = vmatpush1.msra.mxu0 0.0
        %4237 = vmatprep.subr.mxu0 0.0
        %4238 = vmatpush1.msra.mxu0 0.0
        %4239 = vmatprep.subr.mxu0 0.0
        %4240 = vmatpush1.msra.mxu0 0.0
        %4241 = vmatprep.subr.mxu0 0.0
        %4242 = vmatpush1.msra.mxu0 0.0
        %4243 = vmatprep.subr.mxu0 0.0
        %4244 = vmatpush1.msra.mxu0 0.0
        %4245 = vmatprep.subr.mxu0 0.0
        %4246 = vmatpush1.msra.mxu0 0.0
        %4247 = vmatprep.subr.mxu0 0.0
        %4248 = vmatpush1.msra.mxu0 0.0
        %4249 = vmatprep.subr.mxu0 0.0
        %4250 = vmatpush1.msra.mxu0 0.0
        %4251 = vmatprep.subr.mxu0 0.0
        %4252 = vmatpush1.msra.mxu0 0.0
        %4253 = vmatprep.subr.mxu0 0.0
        %4254 = vmatpush1.msra.mxu0 0.0
        %4255 = vmatprep.subr.mxu0 0.0
        %4256 = vmatpush1.msra.mxu0 0.0
        %4257 = vmatprep.subr.mxu0 0.0
        %4258 = vmatpush1.msra.mxu0 0.0
        %4259 = vmatprep.subr.mxu0 0.0
        %4260 = vmatpush1.msra.mxu0 0.0
        %4261 = vmatprep.subr.mxu0 0.0
        %4262 = vmatpush1.msra.mxu0 0.0
        %4263 = vmatprep.subr.mxu0 0.0
        %4264 = vmatpush1.msra.mxu0 0.0
        %4265 = vmatprep.subr.mxu0 0.0
        %4266 = vmatpush1.msra.mxu0 0.0
        %4267 = vmatprep.subr.mxu0 0.0
        %4268 = vmatpush1.msra.mxu0 0.0
        %4269 = vmatprep.subr.mxu0 0.0
        %4270 = vmatpush1.msra.mxu0 0.0
        %4271 = vmatprep.subr.mxu0 0.0
        %4272 = vmatpush1.msra.mxu0 0.0
        %4273 = vmatprep.subr.mxu0 0.0
        %4274 = vmatpush1.msra.mxu0 0.0
        %4275 = vmatprep.subr.mxu0 0.0
        %4276 = vmatpush1.msra.mxu0 0.0
        %4277 = vmatprep.subr.mxu0 0.0
        %4278 = vmatpush1.msra.mxu0 0.0
        %4279 = vmatprep.subr.mxu0 0.0
        %4280 = vmatpush1.msra.mxu0 0.0
        %4281 = vmatprep.subr.mxu0 0.0
        %4282 = vmatpush1.msra.mxu0 0.0
        %4283 = vmatprep.subr.mxu0 0.0
        %4284 = vmatpush1.msra.mxu0 0.0
        %4285 = vmatprep.subr.mxu0 0.0
        %4286 = vmatpush1.msra.mxu0 0.0
        %4287 = vmatprep.subr.mxu0 0.0
        %4288 = vmatpush1.msra.mxu0 0.0
        %4289 = vmatprep.subr.mxu0 0.0
        %4290 = vmatpush1.msra.mxu0 0.0
        %4291 = vmatprep.subr.mxu0 0.0
        %4292 = vmatpush1.msra.mxu0 0.0
        %4293 = vmatprep.subr.mxu0 0.0
        %4294 = vmatpush1.msra.mxu0 0.0
        %4295 = vmatprep.subr.mxu0 0.0
        %4296 = vmatpush1.msra.mxu0 0.0
        %4297 = vmatprep.mubr.f32.mxu0 0.0
        %4298 = vmatmul.mubr.f32.gmra.mrb[0].mxu0 %v4228
        %v4299 = vpop.f32.mrb[0].mxu0
        %v4300 = vadd.f32 0.0, %v4299
        %v4301 = vpop.f32.mrb[0].mxu0
        %4302 = vmatprep.mubr.f32.mxu0 0.0
        %4303 = vmatmul.mubr.f32.gmra.mrb[0].mxu0 %v4231
        %v4304 = vpop.f32.mrb[0].mxu0
        %v4305 = vadd.f32 0.0, %v4304
        %v4306 = vpop.f32.mrb[0].mxu0
        %4307 = vdwg.mxu0
        %s4308 = scalar_lea.vmem %s9, 40
        %v4309 = vld [vmem:[%s4308] sm:$0xff]
        %v4311 = vsel %vm2330, %v4300, 0
        %v4314 = vsel %vm2330, %v4305, 0
        %4316 = vmatprep.subr.mxu0 0.0
        %4317 = vmatpush1.msra.mxu0 %v4309
        %4318 = vmatprep.subr.mxu0 0.0
        %4319 = vmatpush1.msra.mxu0 0.0
        %4320 = vmatprep.subr.mxu0 0.0
        %4321 = vmatpush1.msra.mxu0 0.0
        %4322 = vmatprep.subr.mxu0 0.0
        %4323 = vmatpush1.msra.mxu0 0.0
        %4324 = vmatprep.subr.mxu0 0.0
        %4325 = vmatpush1.msra.mxu0 0.0
        %4326 = vmatprep.subr.mxu0 0.0
        %4327 = vmatpush1.msra.mxu0 0.0
        %4328 = vmatprep.subr.mxu0 0.0
        %4329 = vmatpush1.msra.mxu0 0.0
        %4330 = vmatprep.subr.mxu0 0.0
        %4331 = vmatpush1.msra.mxu0 0.0
        %4332 = vmatprep.subr.mxu0 0.0
        %4333 = vmatpush1.msra.mxu0 0.0
        %4334 = vmatprep.subr.mxu0 0.0
        %4335 = vmatpush1.msra.mxu0 0.0
        %4336 = vmatprep.subr.mxu0 0.0
        %4337 = vmatpush1.msra.mxu0 0.0
        %4338 = vmatprep.subr.mxu0 0.0
        %4339 = vmatpush1.msra.mxu0 0.0
        %4340 = vmatprep.subr.mxu0 0.0
        %4341 = vmatpush1.msra.mxu0 0.0
        %4342 = vmatprep.subr.mxu0 0.0
        %4343 = vmatpush1.msra.mxu0 0.0
        %4344 = vmatprep.subr.mxu0 0.0
        %4345 = vmatpush1.msra.mxu0 0.0
        %4346 = vmatprep.subr.mxu0 0.0
        %4347 = vmatpush1.msra.mxu0 0.0
        %4348 = vmatprep.subr.mxu0 0.0
        %4349 = vmatpush1.msra.mxu0 0.0
        %4350 = vmatprep.subr.mxu0 0.0
        %4351 = vmatpush1.msra.mxu0 0.0
        %4352 = vmatprep.subr.mxu0 0.0
        %4353 = vmatpush1.msra.mxu0 0.0
        %4354 = vmatprep.subr.mxu0 0.0
        %4355 = vmatpush1.msra.mxu0 0.0
        %4356 = vmatprep.subr.mxu0 0.0
        %4357 = vmatpush1.msra.mxu0 0.0
        %4358 = vmatprep.subr.mxu0 0.0
        %4359 = vmatpush1.msra.mxu0 0.0
        %4360 = vmatprep.subr.mxu0 0.0
        %4361 = vmatpush1.msra.mxu0 0.0
        %4362 = vmatprep.subr.mxu0 0.0
        %4363 = vmatpush1.msra.mxu0 0.0
        %4364 = vmatprep.subr.mxu0 0.0
        %4365 = vmatpush1.msra.mxu0 0.0
        %4366 = vmatprep.subr.mxu0 0.0
        %4367 = vmatpush1.msra.mxu0 0.0
        %4368 = vmatprep.subr.mxu0 0.0
        %4369 = vmatpush1.msra.mxu0 0.0
        %4370 = vmatprep.subr.mxu0 0.0
        %4371 = vmatpush1.msra.mxu0 0.0
        %4372 = vmatprep.subr.mxu0 0.0
        %4373 = vmatpush1.msra.mxu0 0.0
        %4374 = vmatprep.subr.mxu0 0.0
        %4375 = vmatpush1.msra.mxu0 0.0
        %4376 = vmatprep.subr.mxu0 0.0
        %4377 = vmatpush1.msra.mxu0 0.0
        %4378 = vmatprep.subr.mxu0 0.0
        %4379 = vmatpush1.msra.mxu0 0.0
        %4380 = vmatprep.mubr.f32.mxu0 0.0
        %4381 = vmatmul.mubr.f32.gmra.mrb[0].mxu0 %v4311
        %v4382 = vpop.f32.mrb[0].mxu0
        %v4383 = vadd.f32 0.0, %v4382
        %v4384 = vpop.f32.mrb[0].mxu0
        %4385 = vmatprep.mubr.f32.mxu0 0.0
        %4386 = vmatmul.mubr.f32.gmra.mrb[0].mxu0 %v4314
        %v4387 = vpop.f32.mrb[0].mxu0
        %v4388 = vadd.f32 0.0, %v4387
        %v4389 = vpop.f32.mrb[0].mxu0
        %4390 = vdwg.mxu0
        %v4391 = vadd.f32 %v4032, %v4383
        %v4392 = vadd.f32 %v4033, %v4388
        %s4393 = scalar_lea.vmem %s6, 384
        %v4394 = vld [vmem:[%s4393] sm:$0xff]
        %v4395 = vld [vmem:[%s4393 + $0x8] sm:$0xff]
        %v4396 = vld [vmem:[%s4393 + $0x10] sm:$0xff]
        %v4397 = vld [vmem:[%s4393 + $0x18] sm:$0xff]
        %v4398 = vld [vmem:[%s4393 + $0x20] sm:$0xff]
        %v4399 = vld [vmem:[%s4393 + $0x28] sm:$0xff]
        %v4400 = vld [vmem:[%s4393 + $0x30] sm:$0xff]
        %v4401 = vld [vmem:[%s4393 + $0x38] sm:$0xff]
        %4402 = vmatprep.subr.mxu0 0.0
        %4403 = vmatpush1.msra.mxu0 %v4394
        %4404 = vmatprep.subr.mxu0 0.0
        %4405 = vmatpush1.msra.mxu0 %v4395
        %4406 = vmatprep.subr.mxu0 0.0
        %4407 = vmatpush1.msra.mxu0 %v4396
        %4408 = vmatprep.subr.mxu0 0.0
        %4409 = vmatpush1.msra.mxu0 %v4397
        %4410 = vmatprep.subr.mxu0 0.0
        %4411 = vmatpush1.msra.mxu0 %v4398
        %4412 = vmatprep.subr.mxu0 0.0
        %4413 = vmatpush1.msra.mxu0 %v4399
        %4414 = vmatprep.subr.mxu0 0.0
        %4415 = vmatpush1.msra.mxu0 %v4400
        %4416 = vmatprep.subr.mxu0 0.0
        %4417 = vmatpush1.msra.mxu0 %v4401
        %4418 = vmatprep.subr.mxu0 0.0
        %4419 = vmatpush1.msra.mxu0 0.0
        %4420 = vmatprep.subr.mxu0 0.0
        %4421 = vmatpush1.msra.mxu0 0.0
        %4422 = vmatprep.subr.mxu0 0.0
        %4423 = vmatpush1.msra.mxu0 0.0
        %4424 = vmatprep.subr.mxu0 0.0
        %4425 = vmatpush1.msra.mxu0 0.0
        %4426 = vmatprep.subr.mxu0 0.0
        %4427 = vmatpush1.msra.mxu0 0.0
        %4428 = vmatprep.subr.mxu0 0.0
        %4429 = vmatpush1.msra.mxu0 0.0
        %4430 = vmatprep.subr.mxu0 0.0
        %4431 = vmatpush1.msra.mxu0 0.0
        %4432 = vmatprep.subr.mxu0 0.0
        %4433 = vmatpush1.msra.mxu0 0.0
        %4434 = vmatprep.subr.mxu0 0.0
        %4435 = vmatpush1.msra.mxu0 0.0
        %4436 = vmatprep.subr.mxu0 0.0
        %4437 = vmatpush1.msra.mxu0 0.0
        %4438 = vmatprep.subr.mxu0 0.0
        %4439 = vmatpush1.msra.mxu0 0.0
        %4440 = vmatprep.subr.mxu0 0.0
        %4441 = vmatpush1.msra.mxu0 0.0
        %4442 = vmatprep.subr.mxu0 0.0
        %4443 = vmatpush1.msra.mxu0 0.0
        %4444 = vmatprep.subr.mxu0 0.0
        %4445 = vmatpush1.msra.mxu0 0.0
        %4446 = vmatprep.subr.mxu0 0.0
        %4447 = vmatpush1.msra.mxu0 0.0
        %4448 = vmatprep.subr.mxu0 0.0
        %4449 = vmatpush1.msra.mxu0 0.0
        %4450 = vmatprep.subr.mxu0 0.0
        %4451 = vmatpush1.msra.mxu0 0.0
        %4452 = vmatprep.subr.mxu0 0.0
        %4453 = vmatpush1.msra.mxu0 0.0
        %4454 = vmatprep.subr.mxu0 0.0
        %4455 = vmatpush1.msra.mxu0 0.0
        %4456 = vmatprep.subr.mxu0 0.0
        %4457 = vmatpush1.msra.mxu0 0.0
        %4458 = vmatprep.subr.mxu0 0.0
        %4459 = vmatpush1.msra.mxu0 0.0
        %4460 = vmatprep.subr.mxu0 0.0
        %4461 = vmatpush1.msra.mxu0 0.0
        %4462 = vmatprep.subr.mxu0 0.0
        %4463 = vmatpush1.msra.mxu0 0.0
        %4464 = vmatprep.subr.mxu0 0.0
        %4465 = vmatpush1.msra.mxu0 0.0
        %4466 = vmatprep.mubr.f32.mxu0 0.0
        %4467 = vmatmul.mubr.f32.gmra.mrb[0].mxu0 %v2249
        %v4468 = vpop.f32.mrb[0].mxu0
        %v4469 = vadd.f32 0.0, %v4468
        %v4470 = vpop.f32.mrb[0].mxu0
        %4471 = vmatprep.mubr.f32.mxu0 0.0
        %4472 = vmatmul.mubr.f32.gmra.mrb[0].mxu0 %v2252
        %v4473 = vpop.f32.mrb[0].mxu0
        %v4474 = vadd.f32 0.0, %v4473
        %v4475 = vpop.f32.mrb[0].mxu0
        %4476 = vdwg.mxu0
        %s4477 = scalar_lea.vmem [#allocation2], 48
        %v4478 = vld [vmem:[%s4477] sm:$0xff]
        %v4480 = vsel %vm2330, %v4469, 0
        %v4483 = vsel %vm2330, %v4474, 0
        %4485 = vmatprep.subr.mxu0 0.0
        %4486 = vmatpush1.msra.mxu0 %v4478
        %4487 = vmatprep.subr.mxu0 0.0
        %4488 = vmatpush1.msra.mxu0 0.0
        %4489 = vmatprep.subr.mxu0 0.0
        %4490 = vmatpush1.msra.mxu0 0.0
        %4491 = vmatprep.subr.mxu0 0.0
        %4492 = vmatpush1.msra.mxu0 0.0
        %4493 = vmatprep.subr.mxu0 0.0
        %4494 = vmatpush1.msra.mxu0 0.0
        %4495 = vmatprep.subr.mxu0 0.0
        %4496 = vmatpush1.msra.mxu0 0.0
        %4497 = vmatprep.subr.mxu0 0.0
        %4498 = vmatpush1.msra.mxu0 0.0
        %4499 = vmatprep.subr.mxu0 0.0
        %4500 = vmatpush1.msra.mxu0 0.0
        %4501 = vmatprep.subr.mxu0 0.0
        %4502 = vmatpush1.msra.mxu0 0.0
        %4503 = vmatprep.subr.mxu0 0.0
        %4504 = vmatpush1.msra.mxu0 0.0
        %4505 = vmatprep.subr.mxu0 0.0
        %4506 = vmatpush1.msra.mxu0 0.0
        %4507 = vmatprep.subr.mxu0 0.0
        %4508 = vmatpush1.msra.mxu0 0.0
        %4509 = vmatprep.subr.mxu0 0.0
        %4510 = vmatpush1.msra.mxu0 0.0
        %4511 = vmatprep.subr.mxu0 0.0
        %4512 = vmatpush1.msra.mxu0 0.0
        %4513 = vmatprep.subr.mxu0 0.0
        %4514 = vmatpush1.msra.mxu0 0.0
        %4515 = vmatprep.subr.mxu0 0.0
        %4516 = vmatpush1.msra.mxu0 0.0
        %4517 = vmatprep.subr.mxu0 0.0
        %4518 = vmatpush1.msra.mxu0 0.0
        %4519 = vmatprep.subr.mxu0 0.0
        %4520 = vmatpush1.msra.mxu0 0.0
        %4521 = vmatprep.subr.mxu0 0.0
        %4522 = vmatpush1.msra.mxu0 0.0
        %4523 = vmatprep.subr.mxu0 0.0
        %4524 = vmatpush1.msra.mxu0 0.0
        %4525 = vmatprep.subr.mxu0 0.0
        %4526 = vmatpush1.msra.mxu0 0.0
        %4527 = vmatprep.subr.mxu0 0.0
        %4528 = vmatpush1.msra.mxu0 0.0
        %4529 = vmatprep.subr.mxu0 0.0
        %4530 = vmatpush1.msra.mxu0 0.0
        %4531 = vmatprep.subr.mxu0 0.0
        %4532 = vmatpush1.msra.mxu0 0.0
        %4533 = vmatprep.subr.mxu0 0.0
        %4534 = vmatpush1.msra.mxu0 0.0
        %4535 = vmatprep.subr.mxu0 0.0
        %4536 = vmatpush1.msra.mxu0 0.0
        %4537 = vmatprep.subr.mxu0 0.0
        %4538 = vmatpush1.msra.mxu0 0.0
        %4539 = vmatprep.subr.mxu0 0.0
        %4540 = vmatpush1.msra.mxu0 0.0
        %4541 = vmatprep.subr.mxu0 0.0
        %4542 = vmatpush1.msra.mxu0 0.0
        %4543 = vmatprep.subr.mxu0 0.0
        %4544 = vmatpush1.msra.mxu0 0.0
        %4545 = vmatprep.subr.mxu0 0.0
        %4546 = vmatpush1.msra.mxu0 0.0
        %4547 = vmatprep.subr.mxu0 0.0
        %4548 = vmatpush1.msra.mxu0 0.0
        %4549 = vmatprep.mubr.f32.mxu0 0.0
        %4550 = vmatmul.mubr.f32.gmra.mrb[0].mxu0 %v4480
        %v4551 = vpop.f32.mrb[0].mxu0
        %v4552 = vadd.f32 0.0, %v4551
        %v4553 = vpop.f32.mrb[0].mxu0
        %4554 = vmatprep.mubr.f32.mxu0 0.0
        %4555 = vmatmul.mubr.f32.gmra.mrb[0].mxu0 %v4483
        %v4556 = vpop.f32.mrb[0].mxu0
        %v4557 = vadd.f32 0.0, %v4556
        %v4558 = vpop.f32.mrb[0].mxu0
        %4559 = vdwg.mxu0
        %v4560 = vsel %vm2330, %v4552, -inf
        %4561 = vmax.xlane.f32.xlu0 %v4560
        %v4562 = vpop.xlane.xlu0 %4561
        %v4563 = vsel %vm2330, %v4557, -inf
        %4564 = vmax.xlane.f32.xlu0 %v4563
        %v4565 = vpop.xlane.xlu0 %4564
        %v4566 = vsub.f32 %v4552, %v4562
        %v4567 = vsub.f32 %v4557, %v4565
        %v4568 = vmul.f32 %v4566, 1.442695
        %v4569 = vpow.pop %v4568
        %v4570 = vmul.f32 %v4567, 1.442695
        %v4571 = vpow.pop %v4570
        %v4572 = vsel %vm2330, %v4569, 0.0
        %4573 = vadd.xlane.f32.xlu0 %v4572
        %v4574 = vpop.xlane.xlu0 %4573
        %v4575 = vsel %vm2330, %v4571, 0.0
        %4576 = vadd.xlane.f32.xlu0 %v4575
        %v4577 = vpop.xlane.xlu0 %4576
        %v4578 = vrcp.pop %v4574
        %v4579 = vmul.f32 1.0, %v4578
        %v4580 = vrcp.pop %v4577
        %v4581 = vmul.f32 1.0, %v4580
        %v4582 = vmul.f32 %v4569, %v4579
        %v4583 = vmul.f32 %v4571, %v4581
        %s4584 = scalar_lea.vmem [#allocation3], 48
        %v4585 = vld [vmem:[%s4584] sm:$0xff]
        %v4587 = vsel %vm2330, %v4582, 0
        %v4590 = vsel %vm2330, %v4583, 0
        %4592 = vmatprep.subr.mxu0 0.0
        %4593 = vmatpush1.msra.mxu0 %v4585
        %4594 = vmatprep.subr.mxu0 0.0
        %4595 = vmatpush1.msra.mxu0 0.0
        %4596 = vmatprep.subr.mxu0 0.0
        %4597 = vmatpush1.msra.mxu0 0.0
        %4598 = vmatprep.subr.mxu0 0.0
        %4599 = vmatpush1.msra.mxu0 0.0
        %4600 = vmatprep.subr.mxu0 0.0
        %4601 = vmatpush1.msra.mxu0 0.0
        %4602 = vmatprep.subr.mxu0 0.0
        %4603 = vmatpush1.msra.mxu0 0.0
        %4604 = vmatprep.subr.mxu0 0.0
        %4605 = vmatpush1.msra.mxu0 0.0
        %4606 = vmatprep.subr.mxu0 0.0
        %4607 = vmatpush1.msra.mxu0 0.0
        %4608 = vmatprep.subr.mxu0 0.0
        %4609 = vmatpush1.msra.mxu0 0.0
        %4610 = vmatprep.subr.mxu0 0.0
        %4611 = vmatpush1.msra.mxu0 0.0
        %4612 = vmatprep.subr.mxu0 0.0
        %4613 = vmatpush1.msra.mxu0 0.0
        %4614 = vmatprep.subr.mxu0 0.0
        %4615 = vmatpush1.msra.mxu0 0.0
        %4616 = vmatprep.subr.mxu0 0.0
        %4617 = vmatpush1.msra.mxu0 0.0
        %4618 = vmatprep.subr.mxu0 0.0
        %4619 = vmatpush1.msra.mxu0 0.0
        %4620 = vmatprep.subr.mxu0 0.0
        %4621 = vmatpush1.msra.mxu0 0.0
        %4622 = vmatprep.subr.mxu0 0.0
        %4623 = vmatpush1.msra.mxu0 0.0
        %4624 = vmatprep.subr.mxu0 0.0
        %4625 = vmatpush1.msra.mxu0 0.0
        %4626 = vmatprep.subr.mxu0 0.0
        %4627 = vmatpush1.msra.mxu0 0.0
        %4628 = vmatprep.subr.mxu0 0.0
        %4629 = vmatpush1.msra.mxu0 0.0
        %4630 = vmatprep.subr.mxu0 0.0
        %4631 = vmatpush1.msra.mxu0 0.0
        %4632 = vmatprep.subr.mxu0 0.0
        %4633 = vmatpush1.msra.mxu0 0.0
        %4634 = vmatprep.subr.mxu0 0.0
        %4635 = vmatpush1.msra.mxu0 0.0
        %4636 = vmatprep.subr.mxu0 0.0
        %4637 = vmatpush1.msra.mxu0 0.0
        %4638 = vmatprep.subr.mxu0 0.0
        %4639 = vmatpush1.msra.mxu0 0.0
        %4640 = vmatprep.subr.mxu0 0.0
        %4641 = vmatpush1.msra.mxu0 0.0
        %4642 = vmatprep.subr.mxu0 0.0
        %4643 = vmatpush1.msra.mxu0 0.0
        %4644 = vmatprep.subr.mxu0 0.0
        %4645 = vmatpush1.msra.mxu0 0.0
        %4646 = vmatprep.subr.mxu0 0.0
        %4647 = vmatpush1.msra.mxu0 0.0
        %4648 = vmatprep.subr.mxu0 0.0
        %4649 = vmatpush1.msra.mxu0 0.0
        %4650 = vmatprep.subr.mxu0 0.0
        %4651 = vmatpush1.msra.mxu0 0.0
        %4652 = vmatprep.subr.mxu0 0.0
        %4653 = vmatpush1.msra.mxu0 0.0
        %4654 = vmatprep.subr.mxu0 0.0
        %4655 = vmatpush1.msra.mxu0 0.0
        %4656 = vmatprep.mubr.f32.mxu0 0.0
        %4657 = vmatmul.mubr.f32.gmra.mrb[0].mxu0 %v4587
        %v4658 = vpop.f32.mrb[0].mxu0
        %v4659 = vadd.f32 0.0, %v4658
        %v4660 = vpop.f32.mrb[0].mxu0
        %4661 = vmatprep.mubr.f32.mxu0 0.0
        %4662 = vmatmul.mubr.f32.gmra.mrb[0].mxu0 %v4590
        %v4663 = vpop.f32.mrb[0].mxu0
        %v4664 = vadd.f32 0.0, %v4663
        %v4665 = vpop.f32.mrb[0].mxu0
        %4666 = vdwg.mxu0
        %s4667 = scalar_lea.vmem %s9, 48
        %v4668 = vld [vmem:[%s4667] sm:$0xff]
        %v4670 = vsel %vm2330, %v4659, 0
        %v4673 = vsel %vm2330, %v4664, 0
        %4675 = vmatprep.subr.mxu0 0.0
        %4676 = vmatpush1.msra.mxu0 %v4668
        %4677 = vmatprep.subr.mxu0 0.0
        %4678 = vmatpush1.msra.mxu0 0.0
        %4679 = vmatprep.subr.mxu0 0.0
        %4680 = vmatpush1.msra.mxu0 0.0
        %4681 = vmatprep.subr.mxu0 0.0
        %4682 = vmatpush1.msra.mxu0 0.0
        %4683 = vmatprep.subr.mxu0 0.0
        %4684 = vmatpush1.msra.mxu0 0.0
        %4685 = vmatprep.subr.mxu0 0.0
        %4686 = vmatpush1.msra.mxu0 0.0
        %4687 = vmatprep.subr.mxu0 0.0
        %4688 = vmatpush1.msra.mxu0 0.0
        %4689 = vmatprep.subr.mxu0 0.0
        %4690 = vmatpush1.msra.mxu0 0.0
        %4691 = vmatprep.subr.mxu0 0.0
        %4692 = vmatpush1.msra.mxu0 0.0
        %4693 = vmatprep.subr.mxu0 0.0
        %4694 = vmatpush1.msra.mxu0 0.0
        %4695 = vmatprep.subr.mxu0 0.0
        %4696 = vmatpush1.msra.mxu0 0.0
        %4697 = vmatprep.subr.mxu0 0.0
        %4698 = vmatpush1.msra.mxu0 0.0
        %4699 = vmatprep.subr.mxu0 0.0
        %4700 = vmatpush1.msra.mxu0 0.0
        %4701 = vmatprep.subr.mxu0 0.0
        %4702 = vmatpush1.msra.mxu0 0.0
        %4703 = vmatprep.subr.mxu0 0.0
        %4704 = vmatpush1.msra.mxu0 0.0
        %4705 = vmatprep.subr.mxu0 0.0
        %4706 = vmatpush1.msra.mxu0 0.0
        %4707 = vmatprep.subr.mxu0 0.0
        %4708 = vmatpush1.msra.mxu0 0.0
        %4709 = vmatprep.subr.mxu0 0.0
        %4710 = vmatpush1.msra.mxu0 0.0
        %4711 = vmatprep.subr.mxu0 0.0
        %4712 = vmatpush1.msra.mxu0 0.0
        %4713 = vmatprep.subr.mxu0 0.0
        %4714 = vmatpush1.msra.mxu0 0.0
        %4715 = vmatprep.subr.mxu0 0.0
        %4716 = vmatpush1.msra.mxu0 0.0
        %4717 = vmatprep.subr.mxu0 0.0
        %4718 = vmatpush1.msra.mxu0 0.0
        %4719 = vmatprep.subr.mxu0 0.0
        %4720 = vmatpush1.msra.mxu0 0.0
        %4721 = vmatprep.subr.mxu0 0.0
        %4722 = vmatpush1.msra.mxu0 0.0
        %4723 = vmatprep.subr.mxu0 0.0
        %4724 = vmatpush1.msra.mxu0 0.0
        %4725 = vmatprep.subr.mxu0 0.0
        %4726 = vmatpush1.msra.mxu0 0.0
        %4727 = vmatprep.subr.mxu0 0.0
        %4728 = vmatpush1.msra.mxu0 0.0
        %4729 = vmatprep.subr.mxu0 0.0
        %4730 = vmatpush1.msra.mxu0 0.0
        %4731 = vmatprep.subr.mxu0 0.0
        %4732 = vmatpush1.msra.mxu0 0.0
        %4733 = vmatprep.subr.mxu0 0.0
        %4734 = vmatpush1.msra.mxu0 0.0
        %4735 = vmatprep.subr.mxu0 0.0
        %4736 = vmatpush1.msra.mxu0 0.0
        %4737 = vmatprep.subr.mxu0 0.0
        %4738 = vmatpush1.msra.mxu0 0.0
        %4739 = vmatprep.mubr.f32.mxu0 0.0
        %4740 = vmatmul.mubr.f32.gmra.mrb[0].mxu0 %v4670
        %v4741 = vpop.f32.mrb[0].mxu0
        %v4742 = vadd.f32 0.0, %v4741
        %v4743 = vpop.f32.mrb[0].mxu0
        %4744 = vmatprep.mubr.f32.mxu0 0.0
        %4745 = vmatmul.mubr.f32.gmra.mrb[0].mxu0 %v4673
        %v4746 = vpop.f32.mrb[0].mxu0
        %v4747 = vadd.f32 0.0, %v4746
        %v4748 = vpop.f32.mrb[0].mxu0
        %4749 = vdwg.mxu0
        %v4750 = vadd.f32 %v4391, %v4742
        %v4751 = vadd.f32 %v4392, %v4747
        %s4752 = scalar_lea.vmem %s6, 448
        %v4753 = vld [vmem:[%s4752] sm:$0xff]
        %v4754 = vld [vmem:[%s4752 + $0x8] sm:$0xff]
        %v4755 = vld [vmem:[%s4752 + $0x10] sm:$0xff]
        %v4756 = vld [vmem:[%s4752 + $0x18] sm:$0xff]
        %v4757 = vld [vmem:[%s4752 + $0x20] sm:$0xff]
        %v4758 = vld [vmem:[%s4752 + $0x28] sm:$0xff]
        %v4759 = vld [vmem:[%s4752 + $0x30] sm:$0xff]
        %v4760 = vld [vmem:[%s4752 + $0x38] sm:$0xff]
        %4761 = vmatprep.subr.mxu0 0.0
        %4762 = vmatpush1.msra.mxu0 %v4753
        %4763 = vmatprep.subr.mxu0 0.0
        %4764 = vmatpush1.msra.mxu0 %v4754
        %4765 = vmatprep.subr.mxu0 0.0
        %4766 = vmatpush1.msra.mxu0 %v4755
        %4767 = vmatprep.subr.mxu0 0.0
        %4768 = vmatpush1.msra.mxu0 %v4756
        %4769 = vmatprep.subr.mxu0 0.0
        %4770 = vmatpush1.msra.mxu0 %v4757
        %4771 = vmatprep.subr.mxu0 0.0
        %4772 = vmatpush1.msra.mxu0 %v4758
        %4773 = vmatprep.subr.mxu0 0.0
        %4774 = vmatpush1.msra.mxu0 %v4759
        %4775 = vmatprep.subr.mxu0 0.0
        %4776 = vmatpush1.msra.mxu0 %v4760
        %4777 = vmatprep.subr.mxu0 0.0
        %4778 = vmatpush1.msra.mxu0 0.0
        %4779 = vmatprep.subr.mxu0 0.0
        %4780 = vmatpush1.msra.mxu0 0.0
        %4781 = vmatprep.subr.mxu0 0.0
        %4782 = vmatpush1.msra.mxu0 0.0
        %4783 = vmatprep.subr.mxu0 0.0
        %4784 = vmatpush1.msra.mxu0 0.0
        %4785 = vmatprep.subr.mxu0 0.0
        %4786 = vmatpush1.msra.mxu0 0.0
        %4787 = vmatprep.subr.mxu0 0.0
        %4788 = vmatpush1.msra.mxu0 0.0
        %4789 = vmatprep.subr.mxu0 0.0
        %4790 = vmatpush1.msra.mxu0 0.0
        %4791 = vmatprep.subr.mxu0 0.0
        %4792 = vmatpush1.msra.mxu0 0.0
        %4793 = vmatprep.subr.mxu0 0.0
        %4794 = vmatpush1.msra.mxu0 0.0
        %4795 = vmatprep.subr.mxu0 0.0
        %4796 = vmatpush1.msra.mxu0 0.0
        %4797 = vmatprep.subr.mxu0 0.0
        %4798 = vmatpush1.msra.mxu0 0.0
        %4799 = vmatprep.subr.mxu0 0.0
        %4800 = vmatpush1.msra.mxu0 0.0
        %4801 = vmatprep.subr.mxu0 0.0
        %4802 = vmatpush1.msra.mxu0 0.0
        %4803 = vmatprep.subr.mxu0 0.0
        %4804 = vmatpush1.msra.mxu0 0.0
        %4805 = vmatprep.subr.mxu0 0.0
        %4806 = vmatpush1.msra.mxu0 0.0
        %4807 = vmatprep.subr.mxu0 0.0
        %4808 = vmatpush1.msra.mxu0 0.0
        %4809 = vmatprep.subr.mxu0 0.0
        %4810 = vmatpush1.msra.mxu0 0.0
        %4811 = vmatprep.subr.mxu0 0.0
        %4812 = vmatpush1.msra.mxu0 0.0
        %4813 = vmatprep.subr.mxu0 0.0
        %4814 = vmatpush1.msra.mxu0 0.0
        %4815 = vmatprep.subr.mxu0 0.0
        %4816 = vmatpush1.msra.mxu0 0.0
        %4817 = vmatprep.subr.mxu0 0.0
        %4818 = vmatpush1.msra.mxu0 0.0
        %4819 = vmatprep.subr.mxu0 0.0
        %4820 = vmatpush1.msra.mxu0 0.0
        %4821 = vmatprep.subr.mxu0 0.0
        %4822 = vmatpush1.msra.mxu0 0.0
        %4823 = vmatprep.subr.mxu0 0.0
        %4824 = vmatpush1.msra.mxu0 0.0
        %4825 = vmatprep.mubr.f32.mxu0 0.0
        %4826 = vmatmul.mubr.f32.gmra.mrb[0].mxu0 %v2249
        %v4827 = vpop.f32.mrb[0].mxu0
        %v4828 = vadd.f32 0.0, %v4827
        %v4829 = vpop.f32.mrb[0].mxu0
        %4830 = vmatprep.mubr.f32.mxu0 0.0
        %4831 = vmatmul.mubr.f32.gmra.mrb[0].mxu0 %v2252
        %v4832 = vpop.f32.mrb[0].mxu0
        %v4833 = vadd.f32 0.0, %v4832
        %v4834 = vpop.f32.mrb[0].mxu0
        %4835 = vdwg.mxu0
        %s4836 = scalar_lea.vmem [#allocation2], 56
        %v4837 = vld [vmem:[%s4836] sm:$0xff]
        %v4839 = vsel %vm2330, %v4828, 0
        %v4842 = vsel %vm2330, %v4833, 0
        %4844 = vmatprep.subr.mxu0 0.0
        %4845 = vmatpush1.msra.mxu0 %v4837
        %4846 = vmatprep.subr.mxu0 0.0
        %4847 = vmatpush1.msra.mxu0 0.0
        %4848 = vmatprep.subr.mxu0 0.0
        %4849 = vmatpush1.msra.mxu0 0.0
        %4850 = vmatprep.subr.mxu0 0.0
        %4851 = vmatpush1.msra.mxu0 0.0
        %4852 = vmatprep.subr.mxu0 0.0
        %4853 = vmatpush1.msra.mxu0 0.0
        %4854 = vmatprep.subr.mxu0 0.0
        %4855 = vmatpush1.msra.mxu0 0.0
        %4856 = vmatprep.subr.mxu0 0.0
        %4857 = vmatpush1.msra.mxu0 0.0
        %4858 = vmatprep.subr.mxu0 0.0
        %4859 = vmatpush1.msra.mxu0 0.0
        %4860 = vmatprep.subr.mxu0 0.0
        %4861 = vmatpush1.msra.mxu0 0.0
        %4862 = vmatprep.subr.mxu0 0.0
        %4863 = vmatpush1.msra.mxu0 0.0
        %4864 = vmatprep.subr.mxu0 0.0
        %4865 = vmatpush1.msra.mxu0 0.0
        %4866 = vmatprep.subr.mxu0 0.0
        %4867 = vmatpush1.msra.mxu0 0.0
        %4868 = vmatprep.subr.mxu0 0.0
        %4869 = vmatpush1.msra.mxu0 0.0
        %4870 = vmatprep.subr.mxu0 0.0
        %4871 = vmatpush1.msra.mxu0 0.0
        %4872 = vmatprep.subr.mxu0 0.0
        %4873 = vmatpush1.msra.mxu0 0.0
        %4874 = vmatprep.subr.mxu0 0.0
        %4875 = vmatpush1.msra.mxu0 0.0
        %4876 = vmatprep.subr.mxu0 0.0
        %4877 = vmatpush1.msra.mxu0 0.0
        %4878 = vmatprep.subr.mxu0 0.0
        %4879 = vmatpush1.msra.mxu0 0.0
        %4880 = vmatprep.subr.mxu0 0.0
        %4881 = vmatpush1.msra.mxu0 0.0
        %4882 = vmatprep.subr.mxu0 0.0
        %4883 = vmatpush1.msra.mxu0 0.0
        %4884 = vmatprep.subr.mxu0 0.0
        %4885 = vmatpush1.msra.mxu0 0.0
        %4886 = vmatprep.subr.mxu0 0.0
        %4887 = vmatpush1.msra.mxu0 0.0
        %4888 = vmatprep.subr.mxu0 0.0
        %4889 = vmatpush1.msra.mxu0 0.0
        %4890 = vmatprep.subr.mxu0 0.0
        %4891 = vmatpush1.msra.mxu0 0.0
        %4892 = vmatprep.subr.mxu0 0.0
        %4893 = vmatpush1.msra.mxu0 0.0
        %4894 = vmatprep.subr.mxu0 0.0
        %4895 = vmatpush1.msra.mxu0 0.0
        %4896 = vmatprep.subr.mxu0 0.0
        %4897 = vmatpush1.msra.mxu0 0.0
        %4898 = vmatprep.subr.mxu0 0.0
        %4899 = vmatpush1.msra.mxu0 0.0
        %4900 = vmatprep.subr.mxu0 0.0
        %4901 = vmatpush1.msra.mxu0 0.0
        %4902 = vmatprep.subr.mxu0 0.0
        %4903 = vmatpush1.msra.mxu0 0.0
        %4904 = vmatprep.subr.mxu0 0.0
        %4905 = vmatpush1.msra.mxu0 0.0
        %4906 = vmatprep.subr.mxu0 0.0
        %4907 = vmatpush1.msra.mxu0 0.0
        %4908 = vmatprep.mubr.f32.mxu0 0.0
        %4909 = vmatmul.mubr.f32.gmra.mrb[0].mxu0 %v4839
        %v4910 = vpop.f32.mrb[0].mxu0
        %v4911 = vadd.f32 0.0, %v4910
        %v4912 = vpop.f32.mrb[0].mxu0
        %4913 = vmatprep.mubr.f32.mxu0 0.0
        %4914 = vmatmul.mubr.f32.gmra.mrb[0].mxu0 %v4842
        %v4915 = vpop.f32.mrb[0].mxu0
        %v4916 = vadd.f32 0.0, %v4915
        %v4917 = vpop.f32.mrb[0].mxu0
        %4918 = vdwg.mxu0
        %v4919 = vsel %vm2330, %v4911, -inf
        %4920 = vmax.xlane.f32.xlu0 %v4919
        %v4921 = vpop.xlane.xlu0 %4920
        %v4922 = vsel %vm2330, %v4916, -inf
        %4923 = vmax.xlane.f32.xlu0 %v4922
        %v4924 = vpop.xlane.xlu0 %4923
        %v4925 = vsub.f32 %v4911, %v4921
        %v4926 = vsub.f32 %v4916, %v4924
        %v4927 = vmul.f32 %v4925, 1.442695
        %v4928 = vpow.pop %v4927
        %v4929 = vmul.f32 %v4926, 1.442695
        %v4930 = vpow.pop %v4929
        %v4931 = vsel %vm2330, %v4928, 0.0
        %4932 = vadd.xlane.f32.xlu0 %v4931
        %v4933 = vpop.xlane.xlu0 %4932
        %v4934 = vsel %vm2330, %v4930, 0.0
        %4935 = vadd.xlane.f32.xlu0 %v4934
        %v4936 = vpop.xlane.xlu0 %4935
        %v4937 = vrcp.pop %v4933
        %v4938 = vmul.f32 1.0, %v4937
        %v4939 = vrcp.pop %v4936
        %v4940 = vmul.f32 1.0, %v4939
        %v4941 = vmul.f32 %v4928, %v4938
        %v4942 = vmul.f32 %v4930, %v4940
        %s4943 = scalar_lea.vmem [#allocation3], 56
        %v4944 = vld [vmem:[%s4943] sm:$0xff]
        %v4946 = vsel %vm2330, %v4941, 0
        %v4949 = vsel %vm2330, %v4942, 0
        %4951 = vmatprep.subr.mxu0 0.0
        %4952 = vmatpush1.msra.mxu0 %v4944
        %4953 = vmatprep.subr.mxu0 0.0
        %4954 = vmatpush1.msra.mxu0 0.0
        %4955 = vmatprep.subr.mxu0 0.0
        %4956 = vmatpush1.msra.mxu0 0.0
        %4957 = vmatprep.subr.mxu0 0.0
        %4958 = vmatpush1.msra.mxu0 0.0
        %4959 = vmatprep.subr.mxu0 0.0
        %4960 = vmatpush1.msra.mxu0 0.0
        %4961 = vmatprep.subr.mxu0 0.0
        %4962 = vmatpush1.msra.mxu0 0.0
        %4963 = vmatprep.subr.mxu0 0.0
        %4964 = vmatpush1.msra.mxu0 0.0
        %4965 = vmatprep.subr.mxu0 0.0
        %4966 = vmatpush1.msra.mxu0 0.0
        %4967 = vmatprep.subr.mxu0 0.0
        %4968 = vmatpush1.msra.mxu0 0.0
        %4969 = vmatprep.subr.mxu0 0.0
        %4970 = vmatpush1.msra.mxu0 0.0
        %4971 = vmatprep.subr.mxu0 0.0
        %4972 = vmatpush1.msra.mxu0 0.0
        %4973 = vmatprep.subr.mxu0 0.0
        %4974 = vmatpush1.msra.mxu0 0.0
        %4975 = vmatprep.subr.mxu0 0.0
        %4976 = vmatpush1.msra.mxu0 0.0
        %4977 = vmatprep.subr.mxu0 0.0
        %4978 = vmatpush1.msra.mxu0 0.0
        %4979 = vmatprep.subr.mxu0 0.0
        %4980 = vmatpush1.msra.mxu0 0.0
        %4981 = vmatprep.subr.mxu0 0.0
        %4982 = vmatpush1.msra.mxu0 0.0
        %4983 = vmatprep.subr.mxu0 0.0
        %4984 = vmatpush1.msra.mxu0 0.0
        %4985 = vmatprep.subr.mxu0 0.0
        %4986 = vmatpush1.msra.mxu0 0.0
        %4987 = vmatprep.subr.mxu0 0.0
        %4988 = vmatpush1.msra.mxu0 0.0
        %4989 = vmatprep.subr.mxu0 0.0
        %4990 = vmatpush1.msra.mxu0 0.0
        %4991 = vmatprep.subr.mxu0 0.0
        %4992 = vmatpush1.msra.mxu0 0.0
        %4993 = vmatprep.subr.mxu0 0.0
        %4994 = vmatpush1.msra.mxu0 0.0
        %4995 = vmatprep.subr.mxu0 0.0
        %4996 = vmatpush1.msra.mxu0 0.0
        %4997 = vmatprep.subr.mxu0 0.0
        %4998 = vmatpush1.msra.mxu0 0.0
        %4999 = vmatprep.subr.mxu0 0.0
        %5000 = vmatpush1.msra.mxu0 0.0
        %5001 = vmatprep.subr.mxu0 0.0
        %5002 = vmatpush1.msra.mxu0 0.0
        %5003 = vmatprep.subr.mxu0 0.0
        %5004 = vmatpush1.msra.mxu0 0.0
        %5005 = vmatprep.subr.mxu0 0.0
        %5006 = vmatpush1.msra.mxu0 0.0
        %5007 = vmatprep.subr.mxu0 0.0
        %5008 = vmatpush1.msra.mxu0 0.0
        %5009 = vmatprep.subr.mxu0 0.0
        %5010 = vmatpush1.msra.mxu0 0.0
        %5011 = vmatprep.subr.mxu0 0.0
        %5012 = vmatpush1.msra.mxu0 0.0
        %5013 = vmatprep.subr.mxu0 0.0
        %5014 = vmatpush1.msra.mxu0 0.0
        %5015 = vmatprep.mubr.f32.mxu0 0.0
        %5016 = vmatmul.mubr.f32.gmra.mrb[0].mxu0 %v4946
        %v5017 = vpop.f32.mrb[0].mxu0
        %v5018 = vadd.f32 0.0, %v5017
        %v5019 = vpop.f32.mrb[0].mxu0
        %5020 = vmatprep.mubr.f32.mxu0 0.0
        %5021 = vmatmul.mubr.f32.gmra.mrb[0].mxu0 %v4949
        %v5022 = vpop.f32.mrb[0].mxu0
        %v5023 = vadd.f32 0.0, %v5022
        %v5024 = vpop.f32.mrb[0].mxu0
        %5025 = vdwg.mxu0
        %s5026 = scalar_lea.vmem %s9, 56
        %v5027 = vld [vmem:[%s5026] sm:$0xff]
        %v5029 = vsel %vm2330, %v5018, 0
        %v5032 = vsel %vm2330, %v5023, 0
        %5034 = vmatprep.subr.mxu0 0.0
        %5035 = vmatpush1.msra.mxu0 %v5027
        %5036 = vmatprep.subr.mxu0 0.0
        %5037 = vmatpush1.msra.mxu0 0.0
        %5038 = vmatprep.subr.mxu0 0.0
        %5039 = vmatpush1.msra.mxu0 0.0
        %5040 = vmatprep.subr.mxu0 0.0
        %5041 = vmatpush1.msra.mxu0 0.0
        %5042 = vmatprep.subr.mxu0 0.0
        %5043 = vmatpush1.msra.mxu0 0.0
        %5044 = vmatprep.subr.mxu0 0.0
        %5045 = vmatpush1.msra.mxu0 0.0
        %5046 = vmatprep.subr.mxu0 0.0
        %5047 = vmatpush1.msra.mxu0 0.0
        %5048 = vmatprep.subr.mxu0 0.0
        %5049 = vmatpush1.msra.mxu0 0.0
        %5050 = vmatprep.subr.mxu0 0.0
        %5051 = vmatpush1.msra.mxu0 0.0
        %5052 = vmatprep.subr.mxu0 0.0
        %5053 = vmatpush1.msra.mxu0 0.0
        %5054 = vmatprep.subr.mxu0 0.0
        %5055 = vmatpush1.msra.mxu0 0.0
        %5056 = vmatprep.subr.mxu0 0.0
        %5057 = vmatpush1.msra.mxu0 0.0
        %5058 = vmatprep.subr.mxu0 0.0
        %5059 = vmatpush1.msra.mxu0 0.0
        %5060 = vmatprep.subr.mxu0 0.0
        %5061 = vmatpush1.msra.mxu0 0.0
        %5062 = vmatprep.subr.mxu0 0.0
        %5063 = vmatpush1.msra.mxu0 0.0
        %5064 = vmatprep.subr.mxu0 0.0
        %5065 = vmatpush1.msra.mxu0 0.0
        %5066 = vmatprep.subr.mxu0 0.0
        %5067 = vmatpush1.msra.mxu0 0.0
        %5068 = vmatprep.subr.mxu0 0.0
        %5069 = vmatpush1.msra.mxu0 0.0
        %5070 = vmatprep.subr.mxu0 0.0
        %5071 = vmatpush1.msra.mxu0 0.0
        %5072 = vmatprep.subr.mxu0 0.0
        %5073 = vmatpush1.msra.mxu0 0.0
        %5074 = vmatprep.subr.mxu0 0.0
        %5075 = vmatpush1.msra.mxu0 0.0
        %5076 = vmatprep.subr.mxu0 0.0
        %5077 = vmatpush1.msra.mxu0 0.0
        %5078 = vmatprep.subr.mxu0 0.0
        %5079 = vmatpush1.msra.mxu0 0.0
        %5080 = vmatprep.subr.mxu0 0.0
        %5081 = vmatpush1.msra.mxu0 0.0
        %5082 = vmatprep.subr.mxu0 0.0
        %5083 = vmatpush1.msra.mxu0 0.0
        %5084 = vmatprep.subr.mxu0 0.0
        %5085 = vmatpush1.msra.mxu0 0.0
        %5086 = vmatprep.subr.mxu0 0.0
        %5087 = vmatpush1.msra.mxu0 0.0
        %5088 = vmatprep.subr.mxu0 0.0
        %5089 = vmatpush1.msra.mxu0 0.0
        %5090 = vmatprep.subr.mxu0 0.0
        %5091 = vmatpush1.msra.mxu0 0.0
        %5092 = vmatprep.subr.mxu0 0.0
        %5093 = vmatpush1.msra.mxu0 0.0
        %5094 = vmatprep.subr.mxu0 0.0
        %5095 = vmatpush1.msra.mxu0 0.0
        %5096 = vmatprep.subr.mxu0 0.0
        %5097 = vmatpush1.msra.mxu0 0.0
        %5098 = vmatprep.mubr.f32.mxu0 0.0
        %5099 = vmatmul.mubr.f32.gmra.mrb[0].mxu0 %v5029
        %v5100 = vpop.f32.mrb[0].mxu0
        %v5101 = vadd.f32 0.0, %v5100
        %v5102 = vpop.f32.mrb[0].mxu0
        %5103 = vmatprep.mubr.f32.mxu0 0.0
        %5104 = vmatmul.mubr.f32.gmra.mrb[0].mxu0 %v5032
        %v5105 = vpop.f32.mrb[0].mxu0
        %v5106 = vadd.f32 0.0, %v5105
        %v5107 = vpop.f32.mrb[0].mxu0
        %5108 = vdwg.mxu0
        %v5109 = vadd.f32 %v4750, %v5101
        %v5110 = vadd.f32 %v4751, %v5106
        %v5111 = vadd.f32 %v2192, %v5109
        %v5112 = vadd.f32 %v2193, %v5110
        %v5113 = vld [vmem:[%s10] sm:$0x1]
        %v5115 = vlaneseq
        %v5116 = vshrl.u32 %v5115, 7
        %v5117 = vsub.s32 0, %v5116
        %v5118 = vrot.slane %v5113, %v5117
        %v5120 = vadd.f32 %v5111, %v5118
        %v5121 = vadd.f32 %v5112, %v5118
        %v5122 = vld [vmem:[%s11] sm:$0x1]
        %v5123 = vld [vmem:[%s12] sm:$0x1]
        %v5124 = vsel %vm2196, %v5120, 0.0
        %5125 = vadd.xlane.f32.xlu0 %v5124
        %v5126 = vpop.xlane.xlu0 %5125
        %v5127 = vsel %vm2196, %v5121, 0.0
        %5128 = vadd.xlane.f32.xlu0 %v5127
        %v5129 = vpop.xlane.xlu0 %5128
        %v5130 = vmul.f32 %v5126, %v2203
        %v5131 = vmul.f32 %v5129, %v2203
        %v5132 = vsub.f32 %v5120, %v5130
        %v5133 = vsub.f32 %v5121, %v5131
        %v5134 = vmul.f32 %v5132, %v5132
        %v5135 = vmul.f32 %v5133, %v5133
        %v5136 = vsel %vm2196, %v5134, 0.0
        %5137 = vadd.xlane.f32.xlu0 %v5136
        %v5138 = vpop.xlane.xlu0 %5137
        %v5139 = vsel %vm2196, %v5135, 0.0
        %5140 = vadd.xlane.f32.xlu0 %v5139
        %v5141 = vpop.xlane.xlu0 %5140
        %v5142 = vmul.f32 %v5138, %v2203
        %v5143 = vmul.f32 %v5141, %v2203
        %v5144 = vadd.f32 %v5142, 1e-05
        %v5145 = vadd.f32 %v5143, 1e-05
        %v5146 = vrsqrt.pop %v5144
        %v5147 = vrsqrt.pop %v5145
        %v5148 = vmul.f32 %v5132, %v5146
        %v5149 = vmul.f32 %v5133, %v5147
        %v5151 = vlaneseq
        %v5152 = vshrl.u32 %v5151, 7
        %v5153 = vsub.s32 0, %v5152
        %v5154 = vrot.slane %v5122, %v5153
        %v5156 = vmul.f32 %v5148, %v5154
        %v5157 = vmul.f32 %v5149, %v5154
        %v5159 = vlaneseq
        %v5160 = vshrl.u32 %v5159, 7
        %v5161 = vsub.s32 0, %v5160
        %v5162 = vrot.slane %v5123, %v5161
        %v5164 = vadd.f32 %v5156, %v5162
        %v5165 = vadd.f32 %v5157, %v5162
        %v5166 = vld [vmem:[%s13] sm:$0xff]
        %v5167 = vld [vmem:[%s13 + $0x8] sm:$0xff]
        %v5168 = vld [vmem:[%s13 + $0x10] sm:$0xff]
        %v5169 = vld [vmem:[%s13 + $0x18] sm:$0xff]
        %v5170 = vld [vmem:[%s13 + $0x20] sm:$0xff]
        %v5171 = vld [vmem:[%s13 + $0x28] sm:$0xff]
        %v5172 = vld [vmem:[%s13 + $0x30] sm:$0xff]
        %v5173 = vld [vmem:[%s13 + $0x38] sm:$0xff]
        %v5174 = vld [vmem:[%s13 + $0x40] sm:$0xff]
        %v5175 = vld [vmem:[%s13 + $0x48] sm:$0xff]
        %v5176 = vld [vmem:[%s13 + $0x50] sm:$0xff]
        %v5177 = vld [vmem:[%s13 + $0x58] sm:$0xff]
        %v5178 = vld [vmem:[%s13 + $0x60] sm:$0xff]
        %v5179 = vld [vmem:[%s13 + $0x68] sm:$0xff]
        %v5180 = vld [vmem:[%s13 + $0x70] sm:$0xff]
        %v5181 = vld [vmem:[%s13 + $0x78] sm:$0xff]
        %v5182 = vld [vmem:[%s14] sm:$0x3]
        %v5184 = vlaneseq
        %v5185 = vshrl.u32 %v5184, 7
        %v5186 = vsub.s32 0, %v5185
        %v5187 = vrot.slane %v5182, %v5186
        %v5188 = vlaneseq
        %v5189 = vshrl.u32 %v5188, 7
        %v5190 = vsub.s32 1, %v5189
        %v5191 = vrot.slane %v5182, %v5190
        %v5195 = vsel %vm2196, %v5164, 0
        %v5198 = vsel %vm2196, %v5165, 0
        %5200 = vmatprep.subr.mxu0 %v5167
        %5201 = vmatpush1.msra.mxu0 %v5166
        %5202 = vmatprep.subr.mxu0 %v5169
        %5203 = vmatpush1.msra.mxu0 %v5168
        %5204 = vmatprep.subr.mxu0 %v5171
        %5205 = vmatpush1.msra.mxu0 %v5170
        %5206 = vmatprep.subr.mxu0 %v5173
        %5207 = vmatpush1.msra.mxu0 %v5172
        %5208 = vmatprep.subr.mxu0 %v5175
        %5209 = vmatpush1.msra.mxu0 %v5174
        %5210 = vmatprep.subr.mxu0 %v5177
        %5211 = vmatpush1.msra.mxu0 %v5176
        %5212 = vmatprep.subr.mxu0 %v5179
        %5213 = vmatpush1.msra.mxu0 %v5178
        %5214 = vmatprep.subr.mxu0 %v5181
        %5215 = vmatpush1.msra.mxu0 %v5180
        %5216 = vmatprep.subr.mxu0 0.0
        %5217 = vmatpush1.msra.mxu0 0.0
        %5218 = vmatprep.subr.mxu0 0.0
        %5219 = vmatpush1.msra.mxu0 0.0
        %5220 = vmatprep.subr.mxu0 0.0
        %5221 = vmatpush1.msra.mxu0 0.0
        %5222 = vmatprep.subr.mxu0 0.0
        %5223 = vmatpush1.msra.mxu0 0.0
        %5224 = vmatprep.subr.mxu0 0.0
        %5225 = vmatpush1.msra.mxu0 0.0
        %5226 = vmatprep.subr.mxu0 0.0
        %5227 = vmatpush1.msra.mxu0 0.0
        %5228 = vmatprep.subr.mxu0 0.0
        %5229 = vmatpush1.msra.mxu0 0.0
        %5230 = vmatprep.subr.mxu0 0.0
        %5231 = vmatpush1.msra.mxu0 0.0
        %5232 = vmatprep.subr.mxu0 0.0
        %5233 = vmatpush1.msra.mxu0 0.0
        %5234 = vmatprep.subr.mxu0 0.0
        %5235 = vmatpush1.msra.mxu0 0.0
        %5236 = vmatprep.subr.mxu0 0.0
        %5237 = vmatpush1.msra.mxu0 0.0
        %5238 = vmatprep.subr.mxu0 0.0
        %5239 = vmatpush1.msra.mxu0 0.0
        %5240 = vmatprep.subr.mxu0 0.0
        %5241 = vmatpush1.msra.mxu0 0.0
        %5242 = vmatprep.subr.mxu0 0.0
        %5243 = vmatpush1.msra.mxu0 0.0
        %5244 = vmatprep.subr.mxu0 0.0
        %5245 = vmatpush1.msra.mxu0 0.0
        %5246 = vmatprep.subr.mxu0 0.0
        %5247 = vmatpush1.msra.mxu0 0.0
        %5248 = vmatprep.subr.mxu0 0.0
        %5249 = vmatpush1.msra.mxu0 0.0
        %5250 = vmatprep.subr.mxu0 0.0
        %5251 = vmatpush1.msra.mxu0 0.0
        %5252 = vmatprep.subr.mxu0 0.0
        %5253 = vmatpush1.msra.mxu0 0.0
        %5254 = vmatprep.subr.mxu0 0.0
        %5255 = vmatpush1.msra.mxu0 0.0
        %5256 = vmatprep.subr.mxu0 0.0
        %5257 = vmatpush1.msra.mxu0 0.0
        %5258 = vmatprep.subr.mxu0 0.0
        %5259 = vmatpush1.msra.mxu0 0.0
        %5260 = vmatprep.subr.mxu0 0.0
        %5261 = vmatpush1.msra.mxu0 0.0
        %5262 = vmatprep.subr.mxu0 0.0
        %5263 = vmatpush1.msra.mxu0 0.0
        %5264 = vmatprep.mubr.f32.mxu0 0.0
        %5265 = vmatmul.mubr.f32.gmra.mrb[0].mxu0 %v5195
        %v5266 = vpop.f32.mrb[0].mxu0
        %v5267 = vadd.f32 %v5187, %v5266
        %v5268 = vpop.f32.mrb[0].mxu0
        %v5269 = vadd.f32 %v5191, %v5268
        %5270 = vmatprep.mubr.f32.mxu0 0.0
        %5271 = vmatmul.mubr.f32.gmra.mrb[0].mxu0 %v5198
        %v5272 = vpop.f32.mrb[0].mxu0
        %v5273 = vadd.f32 %v5187, %v5272
        %v5274 = vpop.f32.mrb[0].mxu0
        %v5275 = vadd.f32 %v5191, %v5274
        %5276 = vdwg.mxu0
        %v5277 = vmul.f32 %v5267, 0.5
        %v5278 = vmul.f32 %v5269, 0.5
        %v5279 = vmul.f32 %v5273, 0.5
        %v5280 = vmul.f32 %v5275, 0.5
        %v5281 = vmul.f32 %v5267, 0.044715
        %v5282 = vmul.f32 %v5269, 0.044715
        %v5283 = vmul.f32 %v5273, 0.044715
        %v5284 = vmul.f32 %v5275, 0.044715
        %v5285 = vmul.f32 %v5281, %v5267
        %v5286 = vmul.f32 %v5282, %v5269
        %v5287 = vmul.f32 %v5283, %v5273
        %v5288 = vmul.f32 %v5284, %v5275
        %v5289 = vmul.f32 %v5285, %v5267
        %v5290 = vmul.f32 %v5286, %v5269
        %v5291 = vmul.f32 %v5287, %v5273
        %v5292 = vmul.f32 %v5288, %v5275
        %v5293 = vadd.f32 %v5267, %v5289
        %v5294 = vadd.f32 %v5269, %v5290
        %v5295 = vadd.f32 %v5273, %v5291
        %v5296 = vadd.f32 %v5275, %v5292
        %v5297 = vmul.f32 %v5293, 0.7978846
        %v5298 = vmul.f32 %v5294, 0.7978846
        %v5299 = vmul.f32 %v5295, 0.7978846
        %v5300 = vmul.f32 %v5296, 0.7978846
        %v5301 = vtanh.pop %v5297
        %v5302 = vtanh.pop %v5298
        %v5303 = vtanh.pop %v5299
        %v5304 = vtanh.pop %v5300
        %v5305 = vadd.f32 %v5301, 1.0
        %v5306 = vadd.f32 %v5302, 1.0
        %v5307 = vadd.f32 %v5303, 1.0
        %v5308 = vadd.f32 %v5304, 1.0
        %v5309 = vmul.f32 %v5277, %v5305
        %v5310 = vmul.f32 %v5278, %v5306
        %v5311 = vmul.f32 %v5279, %v5307
        %v5312 = vmul.f32 %v5280, %v5308
        %v5313 = vld [vmem:[%s15] sm:$0xff]
        %v5314 = vld [vmem:[%s15 + $0x8] sm:$0xff]
        %v5315 = vld [vmem:[%s15 + $0x10] sm:$0xff]
        %v5316 = vld [vmem:[%s15 + $0x18] sm:$0xff]
        %v5317 = vld [vmem:[%s15 + $0x20] sm:$0xff]
        %v5318 = vld [vmem:[%s15 + $0x28] sm:$0xff]
        %v5319 = vld [vmem:[%s15 + $0x30] sm:$0xff]
        %v5320 = vld [vmem:[%s15 + $0x38] sm:$0xff]
        %v5321 = vld [vmem:[%s15 + $0x40] sm:$0xff]
        %v5322 = vld [vmem:[%s15 + $0x48] sm:$0xff]
        %v5323 = vld [vmem:[%s15 + $0x50] sm:$0xff]
        %v5324 = vld [vmem:[%s15 + $0x58] sm:$0xff]
        %v5325 = vld [vmem:[%s15 + $0x60] sm:$0xff]
        %v5326 = vld [vmem:[%s15 + $0x68] sm:$0xff]
        %v5327 = vld [vmem:[%s15 + $0x70] sm:$0xff]
        %v5328 = vld [vmem:[%s15 + $0x78] sm:$0xff]
        %v5329 = vld [vmem:[%s15 + $0x80] sm:$0xff]
        %v5330 = vld [vmem:[%s15 + $0x88] sm:$0xff]
        %v5331 = vld [vmem:[%s15 + $0x90] sm:$0xff]
        %v5332 = vld [vmem:[%s15 + $0x98] sm:$0xff]
        %v5333 = vld [vmem:[%s15 + $0xa0] sm:$0xff]
        %v5334 = vld [vmem:[%s15 + $0xa8] sm:$0xff]
        %v5335 = vld [vmem:[%s15 + $0xb0] sm:$0xff]
        %v5336 = vld [vmem:[%s15 + $0xb8] sm:$0xff]
        %v5337 = vld [vmem:[%s15 + $0xc0] sm:$0xff]
        %v5338 = vld [vmem:[%s15 + $0xc8] sm:$0xff]
        %v5339 = vld [vmem:[%s15 + $0xd0] sm:$0xff]
        %v5340 = vld [vmem:[%s15 + $0xd8] sm:$0xff]
        %v5341 = vld [vmem:[%s15 + $0xe0] sm:$0xff]
        %v5342 = vld [vmem:[%s15 + $0xe8] sm:$0xff]
        %v5343 = vld [vmem:[%s15 + $0xf0] sm:$0xff]
        %v5344 = vld [vmem:[%s15 + $0xf8] sm:$0xff]
        %v5345 = vld [vmem:[%s16] sm:$0x1]
        %v5347 = vlaneseq
        %v5348 = vshrl.u32 %v5347, 7
        %v5349 = vsub.s32 0, %v5348
        %v5350 = vrot.slane %v5345, %v5349
        %5352 = vmatprep.subr.mxu0 0.0
        %5353 = vmatpush1.msra.mxu0 %v5313
        %5354 = vmatprep.subr.mxu0 0.0
        %5355 = vmatpush1.msra.mxu0 %v5314
        %5356 = vmatprep.subr.mxu0 0.0
        %5357 = vmatpush1.msra.mxu0 %v5315
        %5358 = vmatprep.subr.mxu0 0.0
        %5359 = vmatpush1.msra.mxu0 %v5316
        %5360 = vmatprep.subr.mxu0 0.0
        %5361 = vmatpush1.msra.mxu0 %v5317
        %5362 = vmatprep.subr.mxu0 0.0
        %5363 = vmatpush1.msra.mxu0 %v5318
        %5364 = vmatprep.subr.mxu0 0.0
        %5365 = vmatpush1.msra.mxu0 %v5319
        %5366 = vmatprep.subr.mxu0 0.0
        %5367 = vmatpush1.msra.mxu0 %v5320
        %5368 = vmatprep.subr.mxu0 0.0
        %5369 = vmatpush1.msra.mxu0 %v5321
        %5370 = vmatprep.subr.mxu0 0.0
        %5371 = vmatpush1.msra.mxu0 %v5322
        %5372 = vmatprep.subr.mxu0 0.0
        %5373 = vmatpush1.msra.mxu0 %v5323
        %5374 = vmatprep.subr.mxu0 0.0
        %5375 = vmatpush1.msra.mxu0 %v5324
        %5376 = vmatprep.subr.mxu0 0.0
        %5377 = vmatpush1.msra.mxu0 %v5325
        %5378 = vmatprep.subr.mxu0 0.0
        %5379 = vmatpush1.msra.mxu0 %v5326
        %5380 = vmatprep.subr.mxu0 0.0
        %5381 = vmatpush1.msra.mxu0 %v5327
        %5382 = vmatprep.subr.mxu0 0.0
        %5383 = vmatpush1.msra.mxu0 %v5328
        %5384 = vmatprep.subr.mxu0 0.0
        %5385 = vmatpush1.msra.mxu0 %v5329
        %5386 = vmatprep.subr.mxu0 0.0
        %5387 = vmatpush1.msra.mxu0 %v5330
        %5388 = vmatprep.subr.mxu0 0.0
        %5389 = vmatpush1.msra.mxu0 %v5331
        %5390 = vmatprep.subr.mxu0 0.0
        %5391 = vmatpush1.msra.mxu0 %v5332
        %5392 = vmatprep.subr.mxu0 0.0
        %5393 = vmatpush1.msra.mxu0 %v5333
        %5394 = vmatprep.subr.mxu0 0.0
        %5395 = vmatpush1.msra.mxu0 %v5334
        %5396 = vmatprep.subr.mxu0 0.0
        %5397 = vmatpush1.msra.mxu0 %v5335
        %5398 = vmatprep.subr.mxu0 0.0
        %5399 = vmatpush1.msra.mxu0 %v5336
        %5400 = vmatprep.subr.mxu0 0.0
        %5401 = vmatpush1.msra.mxu0 %v5337
        %5402 = vmatprep.subr.mxu0 0.0
        %5403 = vmatpush1.msra.mxu0 %v5338
        %5404 = vmatprep.subr.mxu0 0.0
        %5405 = vmatpush1.msra.mxu0 %v5339
        %5406 = vmatprep.subr.mxu0 0.0
        %5407 = vmatpush1.msra.mxu0 %v5340
        %5408 = vmatprep.subr.mxu0 0.0
        %5409 = vmatpush1.msra.mxu0 %v5341
        %5410 = vmatprep.subr.mxu0 0.0
        %5411 = vmatpush1.msra.mxu0 %v5342
        %5412 = vmatprep.subr.mxu0 0.0
        %5413 = vmatpush1.msra.mxu0 %v5343
        %5414 = vmatprep.subr.mxu0 0.0
        %5415 = vmatpush1.msra.mxu0 %v5344
        %5416 = vmatprep.mubr.f32.mxu0 %v5310
        %5417 = vmatmul.mubr.f32.gmra.mrb[0].mxu0 %v5309
        %v5418 = vpop.f32.mrb[0].mxu0
        %v5419 = vadd.f32 %v5350, %v5418
        %v5420 = vpop.f32.mrb[0].mxu0
        %5421 = vmatprep.mubr.f32.mxu0 %v5312
        %5422 = vmatmul.mubr.f32.gmra.mrb[0].mxu0 %v5311
        %v5423 = vpop.f32.mrb[0].mxu0
        %v5424 = vadd.f32 %v5350, %v5423
        %v5425 = vpop.f32.mrb[0].mxu0
        %5426 = vdwg.mxu0
        %v5427 = vadd.f32 %v5120, %v5419
        %v5428 = vadd.f32 %v5121, %v5424
        %5429 = vst.msk [vmem:[%s579] sm:$0xff] %vm2196, %v5427
        %5430 = vst.msk [vmem:[%s579 + $0x8] sm:$0xff] %vm2196, %v5428
        %s5431 = sand.u32 %s422, 1
        %s5432 = scalar_lea.sflag [#allocation5], %s5431
        %s5433 = sand.u32 %s422, 1
        %s5434 = smul.addr %s5433, 16
        %s5435 = scalar_lea.vmem [#allocation4], %s5434
        // Predicated region
        $region93: #{tpu_custom_call.1} parent=87 // pred_check
          %p5436 = pneg %p432
        $region94: #{tpu_custom_call.1} parent=87 // pred_check_branch
          %5438 = sbr.rel (%p5436) target = $region96
        $region95: #{tpu_custom_call.1} parent=87 // pred_region
          %s5439 = smul.u32 2, %s36
          %s5441 = ssub.s32 256, 256
          %5442 = vsyncadd %s5432, %s5441
          %s5443 = smul.addr %s35, 2
          %s5444 = sadd.s32 %s5439, %s5443
          %s5445 = smul.addr %s5444, 128
          %s5446 = scalar_lea.hbm %s17, %s5445
          %s5447 = sshll.u32 %s5435, 4
          %s5448 = int_to_ptr.vmem [resolvable:$true] %s5447
          %5453 = dma.vmem_to_hbm [thread:$0]  %s5448, 256, %s5446, %s5432, 128, 128, 8
        $region96: #{tpu_custom_call.1} parent=87 // pred_fallthru
          _
      $region88: #{tpu_custom_call.1} parent=5 // pred_fallthru
        _
      %p5454 = scmp.le.s32.totalorder 2, %s26
      // Predicated region
      $region97: #{tpu_custom_call.1} parent=5 // pred_check
        %p5455 = pneg %p5454
      $region98: #{tpu_custom_call.1} parent=5 // pred_check_branch
        %5457 = sbr.rel (%p5455) target = $region100
      $region99: #{tpu_custom_call.1} parent=5 // pred_region
        %s5458 = ssub.s32 %s26, 2
        // Predicated region
        $region101: #{tpu_custom_call.1} parent=99 // pred_check
          %p5459 = pneg %p438
        $region102: #{tpu_custom_call.1} parent=99 // pred_check_branch
          %5461 = sbr.rel (%p5459) target = $region104
        $region103: #{tpu_custom_call.1} parent=99 // pred_region
          %s5462 = sand.u32 %s423, 1
          %s5463 = scalar_lea.sflag [#allocation5], %s5462
          %s5464 = sand.u32 %s423, 1
          %s5465 = smul.addr %s5464, 16
          %s5466 = scalar_lea.vmem [#allocation4], %s5465
          %5467 = dma.done %s5463, 256
        $region104: #{tpu_custom_call.1} parent=99 // pred_fallthru
          _
      $region100: #{tpu_custom_call.1} parent=5 // pred_fallthru
        _
    $region6: #{tpu_custom_call.1} parent=1 // loop_footer
      %s30 = sadd.s32 1, %s26
    $region7: #{tpu_custom_call.1} parent=1 // loop_footer_branch
      %25 = sbr.rel target = $region3
    $region8: #{tpu_custom_call.1} parent=1 // loop_exit
      _
    %5468 = vsyncpa [#allocation5], 1
    %s5469 = scalar_lea.sflag [#allocation5], 1
    %5470 = vsyncpa %s5469, 1

</llo_original>
